<compile_context>
chip_gen: v7x
topology: tpu7x:2x2x1
jax: 0.10.0
libtpu: 0.0.40
codegen_flags: <defaults>
</compile_context>

<pallas_src>
import functools

import jax
import jax.numpy as jnp
import numpy as np
from jax.experimental import pallas as pl
from jax.experimental.pallas import tpu as pltpu


# ----------------------------- Pallas kernel --------------------------------------------


def _seghead_kernel(x_ref, w3_ref, b3_ref, w1_ref, b1_ref, wh_ref, wwt_ref, o_ref, *,
                    relayout):
    """Fused SegHead forward for one (batch, H-tile) grid step.

    x_ref:   (1, H+2, Wp, Cin)     bf16  zero-padded NHWC image (rows sliced per tile)
    w3_ref:  (9, Cin, Cmid)        bf16  3x3 conv weights, BN scale folded in, tap = 3*dy+dx
    b3_ref:  (1, Cmid)             f32   folded BN bias
    w1_ref:  (Cmid, K)             bf16  1x1 classifier weight
    b1_ref:  (1, K)                f32   classifier bias
    wh_ref:  (1, 4*tileH, R)       bf16  per-tile height-interp rows (cols = window rows)
    wwt_ref: (W, Wout)             bf16  transposed width-interp matrix
    o_ref:   (1, K, 4*tileH, Wout) bf16/f32 NCHW output tile
    """
    Hp, Wp, Cin = x_ref.shape[1], x_ref.shape[2], x_ref.shape[3]
    H = Hp - 2
    Cmid = w3_ref.shape[2]
    K, Ho_t, Wout = o_ref.shape[1], o_ref.shape[2], o_ref.shape[3]
    W = wwt_ref.shape[0]
    R = wh_ref.shape[2]                      # logit-row window per tile (tileH+2, or H)
    tile_h = Ho_t // 4

    # Logit-row window [rlo, rlo+R) covering the bilinear support of this output tile.
    r0 = pl.program_id(1) * tile_h
    rlo = jnp.clip(r0 - 1, 0, H - R)

    # --- 3x3 conv: 9 accumulated tap matmuls (no materialized im2col patches) ---
    # Conv output row r / tap dy reads padded row r+dy; output col w / tap dx reads
    # padded col w+dx (padding was applied once in the wrapper).
    xwin = x_ref[0, pl.ds(rlo, R + 2), :, :]                   # (R+2, Wp, Cin) bf16
    acc = jnp.zeros((R * W, Cmid), jnp.float32)
    for dy in range(3):
        for dx in range(3):
            tap = xwin[dy:dy + R, dx:dx + W, :].reshape(R * W, Cin)
            acc = acc + jnp.dot(tap, w3_ref[3 * dy + dx],
                                preferred_element_type=jnp.float32)

    # --- folded BatchNorm bias + ReLU (BN scale already lives in w3 columns) ---
    y = jnp.maximum(acc + b3_ref[...], 0.0)                    # (R*W, Cmid) f32
    # TODO(synk): nn.Dropout(0.1) is identity in eval mode; training-mode dropout not modeled.

    # --- 1x1 classifier (bf16 MXU, f32 accumulation) ---
    z = jnp.dot(y.astype(jnp.bfloat16), w1_ref[...],
                preferred_element_type=jnp.float32) + b1_ref[...]    # (R*W, K) f32
    z3 = z.reshape(R, W, K)

    # --- channels-last -> class-major relayout of the (small) logits ---
    if relayout == "einshape":
        zk = pltpu.einshape("hwk->khw", z3.astype(jnp.bfloat16))     # (K, R, W) bf16
        zmaps = [zk[c] for c in range(K)]
    else:
        # Masked-reduce fallback (known-good lowering on older Mosaic), O(K^2*R*W) VPU.
        cls = jax.lax.broadcasted_iota(jnp.int32, (1, 1, K), 2)
        zmaps = [jnp.sum(jnp.where(cls == c, z3, 0.0), axis=2).astype(jnp.bfloat16)
                 for c in range(K)]

    # --- bilinear x4 upsample (align_corners=True): per-class 2-D matmuls ---
    wwt = wwt_ref[...]                                         # (W, Wout) bf16
    wh = wh_ref[0]                                             # (Ho_t, R) bf16
    for c in range(K):
        t_c = jnp.dot(zmaps[c], wwt, preferred_element_type=jnp.float32)      # (R, Wout)
        o_c = jnp.dot(wh, t_c.astype(jnp.bfloat16),
                      preferred_element_type=jnp.float32)                     # (Ho_t, Wout)
        o_ref[0, c] = o_c.astype(o_ref.dtype)
    # TODO(synk): at very large H*W*Cin, replace the whole-image input block with a manual
    # halo DMA (memory_space=pl.ANY + pltpu.make_async_copy) so the input working set is
    # strictly per-tile as well.


# ----------------------------- glue / wrapper --------------------------------------------


def _interp_matrix_np(out_size: int, in_size: int) -> np.ndarray:
    """Bilinear interpolation matrix, PyTorch align_corners=True semantics (host numpy)."""
    m = np.zeros((out_size, in_size), np.float32)
    if out_size == 1:
        m[0, 0] = 1.0
        return m
    src = np.arange(out_size, dtype=np.float64) * (in_size - 1) / (out_size - 1)
    i0 = np.clip(np.floor(src).astype(np.int64), 0, in_size - 1)
    i1 = np.clip(i0 + 1, 0, in_size - 1)
    frac = (src - i0).astype(np.float32)
    rows = np.arange(out_size)
    np.add.at(m, (rows, i0), 1.0 - frac)
    np.add.at(m, (rows, i1), frac)
    return m


def _vmem_limit_bytes():
    """Per-generation VMEM budget (don't hard-code 64 MiB == all of v7x's VMEM)."""
    try:
        cap = pltpu.get_tpu_info().vmem_capacity_bytes
        return int(cap) * 3 // 4          # leave headroom for compiler scratch / dbl-buffers
    except Exception:
        return None                        # fall back to the default scoped limit


def make_params(key, num_classes, in_channels, mid_channels):
    k3, k1, kb = jax.random.split(key, 3)
    w3 = jax.random.normal(k3, (3, 3, in_channels, mid_channels), jnp.float32) * 0.1
    # BatchNorm2d(mid) default init / running stats: gamma=1, beta=0, mean=0, var=1.
    gamma = jnp.ones((mid_channels,), jnp.float32)
    beta = jnp.zeros((mid_channels,), jnp.float32)
    rmean = jnp.zeros((mid_channels,), jnp.float32)
    rvar = jnp.ones((mid_channels,), jnp.float32)
    eps = 1e-5
    scale = gamma / jnp.sqrt(rvar + eps)
    shift = beta - rmean * scale
    # Fold inference BN into the conv: scale the output channels of w3, bias = shift.
    w3f = (w3 * scale[None, None, None, :]).reshape(9, in_channels, mid_channels)
    w1 = jax.random.normal(k1, (mid_channels, num_classes), jnp.float32) * 0.1
    b1 = jax.random.normal(kb, (num_classes,), jnp.float32) * 0.1
    return {
        "w3": w3f.astype(jnp.bfloat16),               # (9, Cin, Cmid), tap = 3*dy+dx
        "b3": shift.reshape(1, mid_channels),         # (1, Cmid) f32
        "w1": w1.astype(jnp.bfloat16),                # (Cmid, K)
        "b1": b1.reshape(1, num_classes),             # (1, K) f32
    }


@functools.partial(jax.jit,
                   static_argnames=("relayout", "tile_h", "out_dtype", "data_format"))
def seghead_forward(x, params, *, relayout="einshape", tile_h=8,
                    out_dtype=jnp.bfloat16, data_format="NCHW"):
    if data_format == "NCHW":
        N, Cin, H, W = x.shape
        x_nhwc = jnp.transpose(x, (0, 2, 3, 1))
        # TODO(synk): for zero-copy integration the producer should hand over NHWC bf16
        # activations (TPU-native); pass data_format="NHWC" and this transpose is skipped.
    else:
        N, H, W, Cin = x.shape
        x_nhwc = x
    Cmid = params["w3"].shape[2]
    K = params["w1"].shape[1]
    Hout, Wout = 4 * H, 4 * W

    tileH = tile_h if (tile_h <= H and H % tile_h == 0) else H
    HT = H // tileH
    R = min(tileH + 2, H)            # conv/logit row window per tile (1-row halo each side)
    Wp = W + 8                       # pad W+2 -> W+8 to keep the padded sublane extent aligned

    # Zero padding (pad=1) + bf16 cast done once here; kernel does no concat copies.
    xpad = jnp.pad(x_nhwc.astype(jnp.bfloat16),
                   ((0, 0), (1, 1), (1, Wp - W - 1), (0, 0)))   # (N, H+2, Wp, Cin)

    # Interpolation matrices (align_corners=True), bf16; height rows pre-sliced per tile so
    # only the R columns each tile actually needs are shipped to the kernel.
    wh_full = _interp_matrix_np(Hout, H)                        # (Hout, H) f32
    wwt = jnp.asarray(_interp_matrix_np(Wout, W).T, jnp.bfloat16)   # (W, Wout)
    whs_np = np.zeros((HT, 4 * tileH, R), np.float32)
    for ht in range(HT):
        rlo = int(np.clip(ht * tileH - 1, 0, H - R))            # same formula as the kernel
        whs_np[ht] = wh_full[4 * ht * tileH:4 * (ht + 1) * tileH, rlo:rlo + R]
    whs = jnp.asarray(whs_np, jnp.bfloat16)                     # (HT, 4*tileH, R)

    kernel = functools.partial(_seghead_kernel, relayout=relayout)
    return pl.pallas_call(
        kernel,
        out_shape=jax.ShapeDtypeStruct((N, K, Hout, Wout), out_dtype),
        grid_spec=pltpu.PrefetchScalarGridSpec(
            num_scalar_prefetch=0,
            grid=(N, HT),
            in_specs=[
                pl.BlockSpec((1, H + 2, Wp, Cin), lambda n, t: (n, 0, 0, 0)),
                pl.BlockSpec((9, Cin, Cmid), lambda n, t: (0, 0, 0)),
                pl.BlockSpec((1, Cmid), lambda n, t: (0, 0)),
                pl.BlockSpec((Cmid, K), lambda n, t: (0, 0)),
                pl.BlockSpec((1, K), lambda n, t: (0, 0)),
                pl.BlockSpec((1, 4 * tileH, R), lambda n, t: (t, 0, 0)),
                pl.BlockSpec((W, Wout), lambda n, t: (0, 0)),
            ],
            out_specs=pl.BlockSpec((1, K, 4 * tileH, Wout), lambda n, t: (n, 0, t, 0)),
        ),
        compiler_params=pltpu.CompilerParams(
            dimension_semantics=("parallel", "parallel"),
            vmem_limit_bytes=_vmem_limit_bytes(),
        ),
    )(xpad, params["w3"], params["b3"], params["w1"], params["b1"], whs, wwt)


# pure-JAX reference (same bf16-operand / f32-accumulation quantization at the boundaries)
def seghead_reference(x_nchw, params):
    n, cin, h, w = x_nchw.shape
    cmid = params["w3"].shape[2]
    x = jnp.transpose(x_nchw, (0, 2, 3, 1)).astype(jnp.bfloat16).astype(jnp.float32)
    w3 = params["w3"].astype(jnp.float32).reshape(3, 3, cin, cmid)
    y = jax.lax.conv_general_dilated(
        x, w3, window_strides=(1, 1), padding="SAME",
        dimension_numbers=("NHWC", "HWIO", "NHWC"))
    y = jnp.maximum(y + params["b3"][0], 0.0)
    z = jnp.einsum("nhwc,ck->nhwk",
                   y.astype(jnp.bfloat16).astype(jnp.float32),
                   params["w1"].astype(jnp.float32)) + params["b1"][0]
    z = jnp.transpose(z, (0, 3, 1, 2))                          # NCHW logits
    wh = jnp.asarray(_interp_matrix_np(4 * h, h))
    ww = jnp.asarray(_interp_matrix_np(4 * w, w))
    out = jnp.einsum("oh,nkhw->nkow", wh, z)
    out = jnp.einsum("pw,nkow->nkop", ww, out)
    return out


def _run_and_check(x, params, relayout):
    out = jax.block_until_ready(seghead_forward(x, params, relayout=relayout))
    ref = jax.block_until_ready(seghead_reference(x, params))
    np.testing.assert_allclose(np.asarray(out.astype(jnp.float32)),
                               np.asarray(ref), rtol=2e-2, atol=2e-2)
    return out


if __name__ == "__main__":
    num_classes, in_channels, mid_channels = 3, 4, 8
    N, H, W = 2, 16, 16

    key = jax.random.PRNGKey(0)
    kx, kp = jax.random.split(key)
    x = jax.random.normal(kx, (N, in_channels, H, W), jnp.float32)
    params = make_params(kp, num_classes, in_channels, mid_channels)

    try:
        out = _run_and_check(x, params, "einshape")
    except Exception:
        # Fallback if pltpu.einshape('hwk->khw') does not lower on this toolchain: same
        # kernel with the (slower but known-good) masked-reduce class relayout.
        out = _run_and_check(x, params, "masked")

    assert out.shape == (N, num_classes, 4 * H, 4 * W), out.shape
    print("KERNEL_OK")
</pallas_src>

<mosaic_0001>
module attributes {stable_mosaic.version = 11 : i64} {
  func.func @_seghead_kernel(%arg0: i32, %arg1: i32, %arg2: memref<1x18x24x4xbf16, #tpu.memory_space<vmem>>, %arg3: memref<9x4x8xbf16, #tpu.memory_space<vmem>>, %arg4: memref<1x8xf32, #tpu.memory_space<vmem>>, %arg5: memref<8x3xbf16, #tpu.memory_space<vmem>>, %arg6: memref<1x3xf32, #tpu.memory_space<vmem>>, %arg7: memref<1x32x10xbf16, #tpu.memory_space<vmem>>, %arg8: memref<16x64xbf16, #tpu.memory_space<vmem>>, %arg9: memref<1x3x32x64xbf16, #tpu.memory_space<vmem>>) attributes {dimension_semantics = [#tpu.dimension_semantics<parallel>, #tpu.dimension_semantics<parallel>], iteration_bounds = array<i64: 2, 2>, scalar_prefetch = 0 : i64, scratch_operands = 0 : i64, tpu.core_type = #tpu.core_type<tc>, window_params = [{transform_indices = @transform_0, window_bounds = array<i64: 1, 18, 24, 4>}, {pipeline_mode = #tpu.pipeline_mode<synchronous>, transform_indices = @transform_1, window_bounds = array<i64: 9, 4, 8>}, {pipeline_mode = #tpu.pipeline_mode<synchronous>, transform_indices = @transform_2, window_bounds = array<i64: 1, 8>}, {pipeline_mode = #tpu.pipeline_mode<synchronous>, transform_indices = @transform_3, window_bounds = array<i64: 8, 3>}, {pipeline_mode = #tpu.pipeline_mode<synchronous>, transform_indices = @transform_4, window_bounds = array<i64: 1, 3>}, {transform_indices = @transform_5, window_bounds = array<i64: 1, 32, 10>}, {pipeline_mode = #tpu.pipeline_mode<synchronous>, transform_indices = @transform_6, window_bounds = array<i64: 16, 64>}, {transform_indices = @transform_7, window_bounds = array<i64: 1, 3, 32, 64>}]} {
    %c8_i32 = arith.constant 8 : i32
    %0 = arith.muli %arg1, %c8_i32 : i32
    %c1_i32 = arith.constant 1 : i32
    %1 = arith.subi %0, %c1_i32 : i32
    %c0_i32 = arith.constant 0 : i32
    %c6_i32 = arith.constant 6 : i32
    %2 = arith.maxsi %c0_i32, %1 : i32
    %3 = arith.minsi %c6_i32, %2 : i32
    %c0 = arith.constant 0 : index
    %4 = arith.index_cast %3 : i32 to index
    %c0_0 = arith.constant 0 : index
    %c0_1 = arith.constant 0 : index
    %5 = vector.load %arg2[%c0, %4, %c0_0, %c0_1] : memref<1x18x24x4xbf16, #tpu.memory_space<vmem>>, vector<1x12x24x4xbf16>
    %6 = vector.shape_cast %5 : vector<1x12x24x4xbf16> to vector<12x24x4xbf16>
    %cst = arith.constant 0.000000e+00 : f32
    %7 = vector.broadcast %cst : f32 to vector<160x8xf32>
    %8 = vector.extract_strided_slice %6 {offsets = [0, 0, 0], sizes = [10, 16, 4], strides = [1, 1, 1]} : vector<12x24x4xbf16> to vector<10x16x4xbf16>
    %9 = vector.shape_cast %8 : vector<10x16x4xbf16> to vector<160x4xbf16>
    %c0_2 = arith.constant 0 : index
    %c0_3 = arith.constant 0 : index
    %c0_4 = arith.constant 0 : index
    %10 = vector.load %arg3[%c0_2, %c0_3, %c0_4] : memref<9x4x8xbf16, #tpu.memory_space<vmem>>, vector<1x4x8xbf16>
    %11 = vector.shape_cast %10 : vector<1x4x8xbf16> to vector<4x8xbf16>
    %cst_5 = arith.constant dense<0.000000e+00> : vector<160x8xf32>
    %12 = tpu.matmul %9, %11, %cst_5 {dimension_numbers = #tpu.dot_dimension_numbers<[1], [0], [0], [1], [0, 0, 1, 1], [], []>} : vector<160x4xbf16>, vector<4x8xbf16>, vector<160x8xf32> -> vector<160x8xf32>
    %13 = arith.addf %7, %12 : vector<160x8xf32>
    %14 = vector.extract_strided_slice %6 {offsets = [0, 1, 0], sizes = [10, 16, 4], strides = [1, 1, 1]} : vector<12x24x4xbf16> to vector<10x16x4xbf16>
    %15 = vector.shape_cast %14 : vector<10x16x4xbf16> to vector<160x4xbf16>
    %c1 = arith.constant 1 : index
    %c0_6 = arith.constant 0 : index
    %c0_7 = arith.constant 0 : index
    %16 = vector.load %arg3[%c1, %c0_6, %c0_7] : memref<9x4x8xbf16, #tpu.memory_space<vmem>>, vector<1x4x8xbf16>
    %17 = vector.shape_cast %16 : vector<1x4x8xbf16> to vector<4x8xbf16>
    %cst_8 = arith.constant dense<0.000000e+00> : vector<160x8xf32>
    %18 = tpu.matmul %15, %17, %cst_8 {dimension_numbers = #tpu.dot_dimension_numbers<[1], [0], [0], [1], [0, 0, 1, 1], [], []>} : vector<160x4xbf16>, vector<4x8xbf16>, vector<160x8xf32> -> vector<160x8xf32>
    %19 = arith.addf %13, %18 : vector<160x8xf32>
    %20 = vector.extract_strided_slice %6 {offsets = [0, 2, 0], sizes = [10, 16, 4], strides = [1, 1, 1]} : vector<12x24x4xbf16> to vector<10x16x4xbf16>
    %21 = vector.shape_cast %20 : vector<10x16x4xbf16> to vector<160x4xbf16>
    %c2 = arith.constant 2 : index
    %c0_9 = arith.constant 0 : index
    %c0_10 = arith.constant 0 : index
    %22 = vector.load %arg3[%c2, %c0_9, %c0_10] : memref<9x4x8xbf16, #tpu.memory_space<vmem>>, vector<1x4x8xbf16>
    %23 = vector.shape_cast %22 : vector<1x4x8xbf16> to vector<4x8xbf16>
    %cst_11 = arith.constant dense<0.000000e+00> : vector<160x8xf32>
    %24 = tpu.matmul %21, %23, %cst_11 {dimension_numbers = #tpu.dot_dimension_numbers<[1], [0], [0], [1], [0, 0, 1, 1], [], []>} : vector<160x4xbf16>, vector<4x8xbf16>, vector<160x8xf32> -> vector<160x8xf32>
    %25 = arith.addf %19, %24 : vector<160x8xf32>
    %26 = vector.extract_strided_slice %6 {offsets = [1, 0, 0], sizes = [10, 16, 4], strides = [1, 1, 1]} : vector<12x24x4xbf16> to vector<10x16x4xbf16>
    %27 = vector.shape_cast %26 : vector<10x16x4xbf16> to vector<160x4xbf16>
    %c3 = arith.constant 3 : index
    %c0_12 = arith.constant 0 : index
    %c0_13 = arith.constant 0 : index
    %28 = vector.load %arg3[%c3, %c0_12, %c0_13] : memref<9x4x8xbf16, #tpu.memory_space<vmem>>, vector<1x4x8xbf16>
    %29 = vector.shape_cast %28 : vector<1x4x8xbf16> to vector<4x8xbf16>
    %cst_14 = arith.constant dense<0.000000e+00> : vector<160x8xf32>
    %30 = tpu.matmul %27, %29, %cst_14 {dimension_numbers = #tpu.dot_dimension_numbers<[1], [0], [0], [1], [0, 0, 1, 1], [], []>} : vector<160x4xbf16>, vector<4x8xbf16>, vector<160x8xf32> -> vector<160x8xf32>
    %31 = arith.addf %25, %30 : vector<160x8xf32>
    %32 = vector.extract_strided_slice %6 {offsets = [1, 1, 0], sizes = [10, 16, 4], strides = [1, 1, 1]} : vector<12x24x4xbf16> to vector<10x16x4xbf16>
    %33 = vector.shape_cast %32 : vector<10x16x4xbf16> to vector<160x4xbf16>
    %c4 = arith.constant 4 : index
    %c0_15 = arith.constant 0 : index
    %c0_16 = arith.constant 0 : index
    %34 = vector.load %arg3[%c4, %c0_15, %c0_16] : memref<9x4x8xbf16, #tpu.memory_space<vmem>>, vector<1x4x8xbf16>
    %35 = vector.shape_cast %34 : vector<1x4x8xbf16> to vector<4x8xbf16>
    %cst_17 = arith.constant dense<0.000000e+00> : vector<160x8xf32>
    %36 = tpu.matmul %33, %35, %cst_17 {dimension_numbers = #tpu.dot_dimension_numbers<[1], [0], [0], [1], [0, 0, 1, 1], [], []>} : vector<160x4xbf16>, vector<4x8xbf16>, vector<160x8xf32> -> vector<160x8xf32>
    %37 = arith.addf %31, %36 : vector<160x8xf32>
    %38 = vector.extract_strided_slice %6 {offsets = [1, 2, 0], sizes = [10, 16, 4], strides = [1, 1, 1]} : vector<12x24x4xbf16> to vector<10x16x4xbf16>
    %39 = vector.shape_cast %38 : vector<10x16x4xbf16> to vector<160x4xbf16>
    %c5 = arith.constant 5 : index
    %c0_18 = arith.constant 0 : index
    %c0_19 = arith.constant 0 : index
    %40 = vector.load %arg3[%c5, %c0_18, %c0_19] : memref<9x4x8xbf16, #tpu.memory_space<vmem>>, vector<1x4x8xbf16>
    %41 = vector.shape_cast %40 : vector<1x4x8xbf16> to vector<4x8xbf16>
    %cst_20 = arith.constant dense<0.000000e+00> : vector<160x8xf32>
    %42 = tpu.matmul %39, %41, %cst_20 {dimension_numbers = #tpu.dot_dimension_numbers<[1], [0], [0], [1], [0, 0, 1, 1], [], []>} : vector<160x4xbf16>, vector<4x8xbf16>, vector<160x8xf32> -> vector<160x8xf32>
    %43 = arith.addf %37, %42 : vector<160x8xf32>
    %44 = vector.extract_strided_slice %6 {offsets = [2, 0, 0], sizes = [10, 16, 4], strides = [1, 1, 1]} : vector<12x24x4xbf16> to vector<10x16x4xbf16>
    %45 = vector.shape_cast %44 : vector<10x16x4xbf16> to vector<160x4xbf16>
    %c6 = arith.constant 6 : index
    %c0_21 = arith.constant 0 : index
    %c0_22 = arith.constant 0 : index
    %46 = vector.load %arg3[%c6, %c0_21, %c0_22] : memref<9x4x8xbf16, #tpu.memory_space<vmem>>, vector<1x4x8xbf16>
    %47 = vector.shape_cast %46 : vector<1x4x8xbf16> to vector<4x8xbf16>
    %cst_23 = arith.constant dense<0.000000e+00> : vector<160x8xf32>
    %48 = tpu.matmul %45, %47, %cst_23 {dimension_numbers = #tpu.dot_dimension_numbers<[1], [0], [0], [1], [0, 0, 1, 1], [], []>} : vector<160x4xbf16>, vector<4x8xbf16>, vector<160x8xf32> -> vector<160x8xf32>
    %49 = arith.addf %43, %48 : vector<160x8xf32>
    %50 = vector.extract_strided_slice %6 {offsets = [2, 1, 0], sizes = [10, 16, 4], strides = [1, 1, 1]} : vector<12x24x4xbf16> to vector<10x16x4xbf16>
    %51 = vector.shape_cast %50 : vector<10x16x4xbf16> to vector<160x4xbf16>
    %c7 = arith.constant 7 : index
    %c0_24 = arith.constant 0 : index
    %c0_25 = arith.constant 0 : index
    %52 = vector.load %arg3[%c7, %c0_24, %c0_25] : memref<9x4x8xbf16, #tpu.memory_space<vmem>>, vector<1x4x8xbf16>
    %53 = vector.shape_cast %52 : vector<1x4x8xbf16> to vector<4x8xbf16>
    %cst_26 = arith.constant dense<0.000000e+00> : vector<160x8xf32>
    %54 = tpu.matmul %51, %53, %cst_26 {dimension_numbers = #tpu.dot_dimension_numbers<[1], [0], [0], [1], [0, 0, 1, 1], [], []>} : vector<160x4xbf16>, vector<4x8xbf16>, vector<160x8xf32> -> vector<160x8xf32>
    %55 = arith.addf %49, %54 : vector<160x8xf32>
    %56 = vector.extract_strided_slice %6 {offsets = [2, 2, 0], sizes = [10, 16, 4], strides = [1, 1, 1]} : vector<12x24x4xbf16> to vector<10x16x4xbf16>
    %57 = vector.shape_cast %56 : vector<10x16x4xbf16> to vector<160x4xbf16>
    %c8 = arith.constant 8 : index
    %c0_27 = arith.constant 0 : index
    %c0_28 = arith.constant 0 : index
    %58 = vector.load %arg3[%c8, %c0_27, %c0_28] : memref<9x4x8xbf16, #tpu.memory_space<vmem>>, vector<1x4x8xbf16>
    %59 = vector.shape_cast %58 : vector<1x4x8xbf16> to vector<4x8xbf16>
    %cst_29 = arith.constant dense<0.000000e+00> : vector<160x8xf32>
    %60 = tpu.matmul %57, %59, %cst_29 {dimension_numbers = #tpu.dot_dimension_numbers<[1], [0], [0], [1], [0, 0, 1, 1], [], []>} : vector<160x4xbf16>, vector<4x8xbf16>, vector<160x8xf32> -> vector<160x8xf32>
    %61 = arith.addf %55, %60 : vector<160x8xf32>
    %c0_30 = arith.constant 0 : index
    %c0_31 = arith.constant 0 : index
    %62 = vector.load %arg4[%c0_30, %c0_31] : memref<1x8xf32, #tpu.memory_space<vmem>>, vector<1x8xf32>
    %63 = vector.broadcast %62 : vector<1x8xf32> to vector<160x8xf32>
    %64 = arith.addf %61, %63 : vector<160x8xf32>
    %cst_32 = arith.constant 0.000000e+00 : f32
    %65 = vector.broadcast %cst_32 : f32 to vector<160x8xf32>
    %66 = arith.maximumf %64, %65 : vector<160x8xf32>
    %67 = arith.truncf %66 : vector<160x8xf32> to vector<160x8xbf16>
    %c0_33 = arith.constant 0 : index
    %c0_34 = arith.constant 0 : index
    %68 = vector.load %arg5[%c0_33, %c0_34] : memref<8x3xbf16, #tpu.memory_space<vmem>>, vector<8x3xbf16>
    %cst_35 = arith.constant dense<0.000000e+00> : vector<160x3xf32>
    %69 = tpu.matmul %67, %68, %cst_35 {dimension_numbers = #tpu.dot_dimension_numbers<[1], [0], [0], [1], [0, 0, 1, 1], [], []>} : vector<160x8xbf16>, vector<8x3xbf16>, vector<160x3xf32> -> vector<160x3xf32>
    %c0_36 = arith.constant 0 : index
    %c0_37 = arith.constant 0 : index
    %70 = vector.load %arg6[%c0_36, %c0_37] : memref<1x3xf32, #tpu.memory_space<vmem>>, vector<1x3xf32>
    %71 = vector.broadcast %70 : vector<1x3xf32> to vector<160x3xf32>
    %72 = arith.addf %69, %71 : vector<160x3xf32>
    %73 = vector.shape_cast %72 : vector<160x3xf32> to vector<10x16x3xf32>
    %74 = arith.truncf %73 : vector<10x16x3xf32> to vector<10x16x3xbf16>
    %75 = tpu.transpose %74, [2, 0, 1] : vector<10x16x3xbf16> -> vector<3x10x16xbf16>
    %76 = vector.extract_strided_slice %75 {offsets = [0, 0, 0], sizes = [1, 10, 16], strides = [1, 1, 1]} : vector<3x10x16xbf16> to vector<1x10x16xbf16>
    %77 = vector.shape_cast %76 : vector<1x10x16xbf16> to vector<10x16xbf16>
    %78 = vector.extract_strided_slice %75 {offsets = [1, 0, 0], sizes = [1, 10, 16], strides = [1, 1, 1]} : vector<3x10x16xbf16> to vector<1x10x16xbf16>
    %79 = vector.shape_cast %78 : vector<1x10x16xbf16> to vector<10x16xbf16>
    %80 = vector.extract_strided_slice %75 {offsets = [2, 0, 0], sizes = [1, 10, 16], strides = [1, 1, 1]} : vector<3x10x16xbf16> to vector<1x10x16xbf16>
    %81 = vector.shape_cast %80 : vector<1x10x16xbf16> to vector<10x16xbf16>
    %c0_38 = arith.constant 0 : index
    %c0_39 = arith.constant 0 : index
    %82 = vector.load %arg8[%c0_38, %c0_39] : memref<16x64xbf16, #tpu.memory_space<vmem>>, vector<16x64xbf16>
    %c0_40 = arith.constant 0 : index
    %c0_41 = arith.constant 0 : index
    %c0_42 = arith.constant 0 : index
    %83 = vector.load %arg7[%c0_40, %c0_41, %c0_42] : memref<1x32x10xbf16, #tpu.memory_space<vmem>>, vector<1x32x10xbf16>
    %84 = vector.shape_cast %83 : vector<1x32x10xbf16> to vector<32x10xbf16>
    %cst_43 = arith.constant dense<0.000000e+00> : vector<10x64xf32>
    %85 = tpu.matmul %77, %82, %cst_43 {dimension_numbers = #tpu.dot_dimension_numbers<[1], [0], [0], [1], [0, 0, 1, 1], [], []>} : vector<10x16xbf16>, vector<16x64xbf16>, vector<10x64xf32> -> vector<10x64xf32>
    %86 = arith.truncf %85 : vector<10x64xf32> to vector<10x64xbf16>
    %cst_44 = arith.constant dense<0.000000e+00> : vector<32x64xf32>
    %87 = tpu.matmul %84, %86, %cst_44 {dimension_numbers = #tpu.dot_dimension_numbers<[1], [0], [0], [1], [0, 0, 1, 1], [], []>} : vector<32x10xbf16>, vector<10x64xbf16>, vector<32x64xf32> -> vector<32x64xf32>
    %88 = arith.truncf %87 : vector<32x64xf32> to vector<32x64xbf16>
    %c0_45 = arith.constant 0 : index
    %c0_46 = arith.constant 0 : index
    %c0_47 = arith.constant 0 : index
    %c0_48 = arith.constant 0 : index
    %89 = vector.load %arg9[%c0_45, %c0_46, %c0_47, %c0_48] : memref<1x3x32x64xbf16, #tpu.memory_space<vmem>>, vector<1x1x32x64xbf16>
    %90 = vector.shape_cast %89 : vector<1x1x32x64xbf16> to vector<32x64xbf16>
    %91 = vector.shape_cast %88 : vector<32x64xbf16> to vector<1x1x32x64xbf16>
    tpu.vector_store %arg9[%c0_45, %c0_46, %c0_47, %c0_48], %91 {strides = array<i32>} : memref<1x3x32x64xbf16, #tpu.memory_space<vmem>>, vector<1x1x32x64xbf16>,
    %cst_49 = arith.constant dense<0.000000e+00> : vector<10x64xf32>
    %92 = tpu.matmul %79, %82, %cst_49 {dimension_numbers = #tpu.dot_dimension_numbers<[1], [0], [0], [1], [0, 0, 1, 1], [], []>} : vector<10x16xbf16>, vector<16x64xbf16>, vector<10x64xf32> -> vector<10x64xf32>
    %93 = arith.truncf %92 : vector<10x64xf32> to vector<10x64xbf16>
    %cst_50 = arith.constant dense<0.000000e+00> : vector<32x64xf32>
    %94 = tpu.matmul %84, %93, %cst_50 {dimension_numbers = #tpu.dot_dimension_numbers<[1], [0], [0], [1], [0, 0, 1, 1], [], []>} : vector<32x10xbf16>, vector<10x64xbf16>, vector<32x64xf32> -> vector<32x64xf32>
    %95 = arith.truncf %94 : vector<32x64xf32> to vector<32x64xbf16>
    %c0_51 = arith.constant 0 : index
    %c1_52 = arith.constant 1 : index
    %c0_53 = arith.constant 0 : index
    %c0_54 = arith.constant 0 : index
    %96 = vector.load %arg9[%c0_51, %c1_52, %c0_53, %c0_54] : memref<1x3x32x64xbf16, #tpu.memory_space<vmem>>, vector<1x1x32x64xbf16>
    %97 = vector.shape_cast %96 : vector<1x1x32x64xbf16> to vector<32x64xbf16>
    %98 = vector.shape_cast %95 : vector<32x64xbf16> to vector<1x1x32x64xbf16>
    tpu.vector_store %arg9[%c0_51, %c1_52, %c0_53, %c0_54], %98 {strides = array<i32>} : memref<1x3x32x64xbf16, #tpu.memory_space<vmem>>, vector<1x1x32x64xbf16>,
    %cst_55 = arith.constant dense<0.000000e+00> : vector<10x64xf32>
    %99 = tpu.matmul %81, %82, %cst_55 {dimension_numbers = #tpu.dot_dimension_numbers<[1], [0], [0], [1], [0, 0, 1, 1], [], []>} : vector<10x16xbf16>, vector<16x64xbf16>, vector<10x64xf32> -> vector<10x64xf32>
    %100 = arith.truncf %99 : vector<10x64xf32> to vector<10x64xbf16>
    %cst_56 = arith.constant dense<0.000000e+00> : vector<32x64xf32>
    %101 = tpu.matmul %84, %100, %cst_56 {dimension_numbers = #tpu.dot_dimension_numbers<[1], [0], [0], [1], [0, 0, 1, 1], [], []>} : vector<32x10xbf16>, vector<10x64xbf16>, vector<32x64xf32> -> vector<32x64xf32>
    %102 = arith.truncf %101 : vector<32x64xf32> to vector<32x64xbf16>
    %c0_57 = arith.constant 0 : index
    %c2_58 = arith.constant 2 : index
    %c0_59 = arith.constant 0 : index
    %c0_60 = arith.constant 0 : index
    %103 = vector.load %arg9[%c0_57, %c2_58, %c0_59, %c0_60] : memref<1x3x32x64xbf16, #tpu.memory_space<vmem>>, vector<1x1x32x64xbf16>
    %104 = vector.shape_cast %103 : vector<1x1x32x64xbf16> to vector<32x64xbf16>
    %105 = vector.shape_cast %102 : vector<32x64xbf16> to vector<1x1x32x64xbf16>
    tpu.vector_store %arg9[%c0_57, %c2_58, %c0_59, %c0_60], %105 {strides = array<i32>} : memref<1x3x32x64xbf16, #tpu.memory_space<vmem>>, vector<1x1x32x64xbf16>,
    return
  }
  func.func @transform_0(%arg0: i32, %arg1: i32) -> (i32, i32, i32, i32) {
    %c0_i32 = arith.constant 0 : i32
    %c0_i32_0 = arith.constant 0 : i32
    %c0_i32_1 = arith.constant 0 : i32
    %c0_i32_2 = arith.constant 0 : i32
    return %arg0, %c0_i32, %c0_i32_0, %c0_i32_1 : i32, i32, i32, i32
  }
  func.func @transform_1(%arg0: i32, %arg1: i32) -> (i32, i32, i32) {
    %c0_i32 = arith.constant 0 : i32
    %c0_i32_0 = arith.constant 0 : i32
    %c0_i32_1 = arith.constant 0 : i32
    %c0_i32_2 = arith.constant 0 : i32
    return %c0_i32, %c0_i32_0, %c0_i32_1 : i32, i32, i32
  }
  func.func @transform_2(%arg0: i32, %arg1: i32) -> (i32, i32) {
    %c0_i32 = arith.constant 0 : i32
    %c0_i32_0 = arith.constant 0 : i32
    %c0_i32_1 = arith.constant 0 : i32
    return %c0_i32, %c0_i32_0 : i32, i32
  }
  func.func @transform_3(%arg0: i32, %arg1: i32) -> (i32, i32) {
    %c0_i32 = arith.constant 0 : i32
    %c0_i32_0 = arith.constant 0 : i32
    %c0_i32_1 = arith.constant 0 : i32
    return %c0_i32, %c0_i32_0 : i32, i32
  }
  func.func @transform_4(%arg0: i32, %arg1: i32) -> (i32, i32) {
    %c0_i32 = arith.constant 0 : i32
    %c0_i32_0 = arith.constant 0 : i32
    %c0_i32_1 = arith.constant 0 : i32
    return %c0_i32, %c0_i32_0 : i32, i32
  }
  func.func @transform_5(%arg0: i32, %arg1: i32) -> (i32, i32, i32) {
    %c0_i32 = arith.constant 0 : i32
    %c0_i32_0 = arith.constant 0 : i32
    %c0_i32_1 = arith.constant 0 : i32
    return %arg1, %c0_i32, %c0_i32_0 : i32, i32, i32
  }
  func.func @transform_6(%arg0: i32, %arg1: i32) -> (i32, i32) {
    %c0_i32 = arith.constant 0 : i32
    %c0_i32_0 = arith.constant 0 : i32
    %c0_i32_1 = arith.constant 0 : i32
    return %c0_i32, %c0_i32_0 : i32, i32
  }
  func.func @transform_7(%arg0: i32, %arg1: i32) -> (i32, i32, i32, i32) {
    %c0_i32 = arith.constant 0 : i32
    %c0_i32_0 = arith.constant 0 : i32
    %c0_i32_1 = arith.constant 0 : i32
    return %arg0, %c0_i32, %arg1, %c0_i32_0 : i32, i32, i32, i32
  }
}

module attributes {stable_mosaic.version = 11 : i64} {
  func.func @_seghead_kernel(%arg0: i32, %arg1: i32, %arg2: memref<1x18x24x4xbf16, #tpu.memory_space<vmem>>, %arg3: memref<9x4x8xbf16, #tpu.memory_space<vmem>>, %arg4: memref<1x8xf32, #tpu.memory_space<vmem>>, %arg5: memref<8x3xbf16, #tpu.memory_space<vmem>>, %arg6: memref<1x3xf32, #tpu.memory_space<vmem>>, %arg7: memref<1x32x10xbf16, #tpu.memory_space<vmem>>, %arg8: memref<16x64xbf16, #tpu.memory_space<vmem>>, %arg9: memref<1x3x32x64xbf16, #tpu.memory_space<vmem>>) attributes {dimension_semantics = [#tpu.dimension_semantics<parallel>, #tpu.dimension_semantics<parallel>], iteration_bounds = array<i64: 2, 2>, scalar_prefetch = 0 : i64, scratch_operands = 0 : i64, tpu.core_type = #tpu.core_type<tc>, window_params = [{transform_indices = @transform_0, window_bounds = array<i64: 1, 18, 24, 4>}, {pipeline_mode = #tpu.pipeline_mode<synchronous>, transform_indices = @transform_1, window_bounds = array<i64: 9, 4, 8>}, {pipeline_mode = #tpu.pipeline_mode<synchronous>, transform_indices = @transform_2, window_bounds = array<i64: 1, 8>}, {pipeline_mode = #tpu.pipeline_mode<synchronous>, transform_indices = @transform_3, window_bounds = array<i64: 8, 3>}, {pipeline_mode = #tpu.pipeline_mode<synchronous>, transform_indices = @transform_4, window_bounds = array<i64: 1, 3>}, {transform_indices = @transform_5, window_bounds = array<i64: 1, 32, 10>}, {pipeline_mode = #tpu.pipeline_mode<synchronous>, transform_indices = @transform_6, window_bounds = array<i64: 16, 64>}, {transform_indices = @transform_7, window_bounds = array<i64: 1, 3, 32, 64>}]} {
    %c8_i32 = arith.constant 8 : i32
    %0 = arith.muli %arg1, %c8_i32 : i32
    %c1_i32 = arith.constant 1 : i32
    %1 = arith.subi %0, %c1_i32 : i32
    %c0_i32 = arith.constant 0 : i32
    %c6_i32 = arith.constant 6 : i32
    %2 = arith.maxsi %c0_i32, %1 : i32
    %3 = arith.minsi %c6_i32, %2 : i32
    %c0 = arith.constant 0 : index
    %4 = arith.index_cast %3 : i32 to index
    %c0_0 = arith.constant 0 : index
    %c0_1 = arith.constant 0 : index
    %5 = vector.load %arg2[%c0, %4, %c0_0, %c0_1] : memref<1x18x24x4xbf16, #tpu.memory_space<vmem>>, vector<1x12x24x4xbf16>
    %6 = vector.shape_cast %5 : vector<1x12x24x4xbf16> to vector<12x24x4xbf16>
    %cst = arith.constant 0.000000e+00 : f32
    %7 = vector.broadcast %cst : f32 to vector<160x8xf32>
    %8 = vector.extract_strided_slice %6 {offsets = [0, 0, 0], sizes = [10, 16, 4], strides = [1, 1, 1]} : vector<12x24x4xbf16> to vector<10x16x4xbf16>
    %9 = vector.shape_cast %8 : vector<10x16x4xbf16> to vector<160x4xbf16>
    %c0_2 = arith.constant 0 : index
    %c0_3 = arith.constant 0 : index
    %c0_4 = arith.constant 0 : index
    %10 = vector.load %arg3[%c0_2, %c0_3, %c0_4] : memref<9x4x8xbf16, #tpu.memory_space<vmem>>, vector<1x4x8xbf16>
    %11 = vector.shape_cast %10 : vector<1x4x8xbf16> to vector<4x8xbf16>
    %cst_5 = arith.constant dense<0.000000e+00> : vector<160x8xf32>
    %12 = tpu.matmul %9, %11, %cst_5 {dimension_numbers = #tpu.dot_dimension_numbers<[1], [0], [0], [1], [0, 0, 1, 1], [], []>} : vector<160x4xbf16>, vector<4x8xbf16>, vector<160x8xf32> -> vector<160x8xf32>
    %13 = arith.addf %7, %12 : vector<160x8xf32>
    %14 = vector.extract_strided_slice %6 {offsets = [0, 1, 0], sizes = [10, 16, 4], strides = [1, 1, 1]} : vector<12x24x4xbf16> to vector<10x16x4xbf16>
    %15 = vector.shape_cast %14 : vector<10x16x4xbf16> to vector<160x4xbf16>
    %c1 = arith.constant 1 : index
    %c0_6 = arith.constant 0 : index
    %c0_7 = arith.constant 0 : index
    %16 = vector.load %arg3[%c1, %c0_6, %c0_7] : memref<9x4x8xbf16, #tpu.memory_space<vmem>>, vector<1x4x8xbf16>
    %17 = vector.shape_cast %16 : vector<1x4x8xbf16> to vector<4x8xbf16>
    %cst_8 = arith.constant dense<0.000000e+00> : vector<160x8xf32>
    %18 = tpu.matmul %15, %17, %cst_8 {dimension_numbers = #tpu.dot_dimension_numbers<[1], [0], [0], [1], [0, 0, 1, 1], [], []>} : vector<160x4xbf16>, vector<4x8xbf16>, vector<160x8xf32> -> vector<160x8xf32>
    %19 = arith.addf %13, %18 : vector<160x8xf32>
    %20 = vector.extract_strided_slice %6 {offsets = [0, 2, 0], sizes = [10, 16, 4], strides = [1, 1, 1]} : vector<12x24x4xbf16> to vector<10x16x4xbf16>
    %21 = vector.shape_cast %20 : vector<10x16x4xbf16> to vector<160x4xbf16>
    %c2 = arith.constant 2 : index
    %c0_9 = arith.constant 0 : index
    %c0_10 = arith.constant 0 : index
    %22 = vector.load %arg3[%c2, %c0_9, %c0_10] : memref<9x4x8xbf16, #tpu.memory_space<vmem>>, vector<1x4x8xbf16>
    %23 = vector.shape_cast %22 : vector<1x4x8xbf16> to vector<4x8xbf16>
    %cst_11 = arith.constant dense<0.000000e+00> : vector<160x8xf32>
    %24 = tpu.matmul %21, %23, %cst_11 {dimension_numbers = #tpu.dot_dimension_numbers<[1], [0], [0], [1], [0, 0, 1, 1], [], []>} : vector<160x4xbf16>, vector<4x8xbf16>, vector<160x8xf32> -> vector<160x8xf32>
    %25 = arith.addf %19, %24 : vector<160x8xf32>
    %26 = vector.extract_strided_slice %6 {offsets = [1, 0, 0], sizes = [10, 16, 4], strides = [1, 1, 1]} : vector<12x24x4xbf16> to vector<10x16x4xbf16>
    %27 = vector.shape_cast %26 : vector<10x16x4xbf16> to vector<160x4xbf16>
    %c3 = arith.constant 3 : index
    %c0_12 = arith.constant 0 : index
    %c0_13 = arith.constant 0 : index
    %28 = vector.load %arg3[%c3, %c0_12, %c0_13] : memref<9x4x8xbf16, #tpu.memory_space<vmem>>, vector<1x4x8xbf16>
    %29 = vector.shape_cast %28 : vector<1x4x8xbf16> to vector<4x8xbf16>
    %cst_14 = arith.constant dense<0.000000e+00> : vector<160x8xf32>
    %30 = tpu.matmul %27, %29, %cst_14 {dimension_numbers = #tpu.dot_dimension_numbers<[1], [0], [0], [1], [0, 0, 1, 1], [], []>} : vector<160x4xbf16>, vector<4x8xbf16>, vector<160x8xf32> -> vector<160x8xf32>
    %31 = arith.addf %25, %30 : vector<160x8xf32>
    %32 = vector.extract_strided_slice %6 {offsets = [1, 1, 0], sizes = [10, 16, 4], strides = [1, 1, 1]} : vector<12x24x4xbf16> to vector<10x16x4xbf16>
    %33 = vector.shape_cast %32 : vector<10x16x4xbf16> to vector<160x4xbf16>
    %c4 = arith.constant 4 : index
    %c0_15 = arith.constant 0 : index
    %c0_16 = arith.constant 0 : index
    %34 = vector.load %arg3[%c4, %c0_15, %c0_16] : memref<9x4x8xbf16, #tpu.memory_space<vmem>>, vector<1x4x8xbf16>
    %35 = vector.shape_cast %34 : vector<1x4x8xbf16> to vector<4x8xbf16>
    %cst_17 = arith.constant dense<0.000000e+00> : vector<160x8xf32>
    %36 = tpu.matmul %33, %35, %cst_17 {dimension_numbers = #tpu.dot_dimension_numbers<[1], [0], [0], [1], [0, 0, 1, 1], [], []>} : vector<160x4xbf16>, vector<4x8xbf16>, vector<160x8xf32> -> vector<160x8xf32>
    %37 = arith.addf %31, %36 : vector<160x8xf32>
    %38 = vector.extract_strided_slice %6 {offsets = [1, 2, 0], sizes = [10, 16, 4], strides = [1, 1, 1]} : vector<12x24x4xbf16> to vector<10x16x4xbf16>
    %39 = vector.shape_cast %38 : vector<10x16x4xbf16> to vector<160x4xbf16>
    %c5 = arith.constant 5 : index
    %c0_18 = arith.constant 0 : index
    %c0_19 = arith.constant 0 : index
    %40 = vector.load %arg3[%c5, %c0_18, %c0_19] : memref<9x4x8xbf16, #tpu.memory_space<vmem>>, vector<1x4x8xbf16>
    %41 = vector.shape_cast %40 : vector<1x4x8xbf16> to vector<4x8xbf16>
    %cst_20 = arith.constant dense<0.000000e+00> : vector<160x8xf32>
    %42 = tpu.matmul %39, %41, %cst_20 {dimension_numbers = #tpu.dot_dimension_numbers<[1], [0], [0], [1], [0, 0, 1, 1], [], []>} : vector<160x4xbf16>, vector<4x8xbf16>, vector<160x8xf32> -> vector<160x8xf32>
    %43 = arith.addf %37, %42 : vector<160x8xf32>
    %44 = vector.extract_strided_slice %6 {offsets = [2, 0, 0], sizes = [10, 16, 4], strides = [1, 1, 1]} : vector<12x24x4xbf16> to vector<10x16x4xbf16>
    %45 = vector.shape_cast %44 : vector<10x16x4xbf16> to vector<160x4xbf16>
    %c6 = arith.constant 6 : index
    %c0_21 = arith.constant 0 : index
    %c0_22 = arith.constant 0 : index
    %46 = vector.load %arg3[%c6, %c0_21, %c0_22] : memref<9x4x8xbf16, #tpu.memory_space<vmem>>, vector<1x4x8xbf16>
    %47 = vector.shape_cast %46 : vector<1x4x8xbf16> to vector<4x8xbf16>
    %cst_23 = arith.constant dense<0.000000e+00> : vector<160x8xf32>
    %48 = tpu.matmul %45, %47, %cst_23 {dimension_numbers = #tpu.dot_dimension_numbers<[1], [0], [0], [1], [0, 0, 1, 1], [], []>} : vector<160x4xbf16>, vector<4x8xbf16>, vector<160x8xf32> -> vector<160x8xf32>
    %49 = arith.addf %43, %48 : vector<160x8xf32>
    %50 = vector.extract_strided_slice %6 {offsets = [2, 1, 0], sizes = [10, 16, 4], strides = [1, 1, 1]} : vector<12x24x4xbf16> to vector<10x16x4xbf16>
    %51 = vector.shape_cast %50 : vector<10x16x4xbf16> to vector<160x4xbf16>
    %c7 = arith.constant 7 : index
    %c0_24 = arith.constant 0 : index
    %c0_25 = arith.constant 0 : index
    %52 = vector.load %arg3[%c7, %c0_24, %c0_25] : memref<9x4x8xbf16, #tpu.memory_space<vmem>>, vector<1x4x8xbf16>
    %53 = vector.shape_cast %52 : vector<1x4x8xbf16> to vector<4x8xbf16>
    %cst_26 = arith.constant dense<0.000000e+00> : vector<160x8xf32>
    %54 = tpu.matmul %51, %53, %cst_26 {dimension_numbers = #tpu.dot_dimension_numbers<[1], [0], [0], [1], [0, 0, 1, 1], [], []>} : vector<160x4xbf16>, vector<4x8xbf16>, vector<160x8xf32> -> vector<160x8xf32>
    %55 = arith.addf %49, %54 : vector<160x8xf32>
    %56 = vector.extract_strided_slice %6 {offsets = [2, 2, 0], sizes = [10, 16, 4], strides = [1, 1, 1]} : vector<12x24x4xbf16> to vector<10x16x4xbf16>
    %57 = vector.shape_cast %56 : vector<10x16x4xbf16> to vector<160x4xbf16>
    %c8 = arith.constant 8 : index
    %c0_27 = arith.constant 0 : index
    %c0_28 = arith.constant 0 : index
    %58 = vector.load %arg3[%c8, %c0_27, %c0_28] : memref<9x4x8xbf16, #tpu.memory_space<vmem>>, vector<1x4x8xbf16>
    %59 = vector.shape_cast %58 : vector<1x4x8xbf16> to vector<4x8xbf16>
    %cst_29 = arith.constant dense<0.000000e+00> : vector<160x8xf32>
    %60 = tpu.matmul %57, %59, %cst_29 {dimension_numbers = #tpu.dot_dimension_numbers<[1], [0], [0], [1], [0, 0, 1, 1], [], []>} : vector<160x4xbf16>, vector<4x8xbf16>, vector<160x8xf32> -> vector<160x8xf32>
    %61 = arith.addf %55, %60 : vector<160x8xf32>
    %c0_30 = arith.constant 0 : index
    %c0_31 = arith.constant 0 : index
    %62 = vector.load %arg4[%c0_30, %c0_31] : memref<1x8xf32, #tpu.memory_space<vmem>>, vector<1x8xf32>
    %63 = vector.broadcast %62 : vector<1x8xf32> to vector<160x8xf32>
    %64 = arith.addf %61, %63 : vector<160x8xf32>
    %cst_32 = arith.constant 0.000000e+00 : f32
    %65 = vector.broadcast %cst_32 : f32 to vector<160x8xf32>
    %66 = arith.maximumf %64, %65 : vector<160x8xf32>
    %67 = arith.truncf %66 : vector<160x8xf32> to vector<160x8xbf16>
    %c0_33 = arith.constant 0 : index
    %c0_34 = arith.constant 0 : index
    %68 = vector.load %arg5[%c0_33, %c0_34] : memref<8x3xbf16, #tpu.memory_space<vmem>>, vector<8x3xbf16>
    %cst_35 = arith.constant dense<0.000000e+00> : vector<160x3xf32>
    %69 = tpu.matmul %67, %68, %cst_35 {dimension_numbers = #tpu.dot_dimension_numbers<[1], [0], [0], [1], [0, 0, 1, 1], [], []>} : vector<160x8xbf16>, vector<8x3xbf16>, vector<160x3xf32> -> vector<160x3xf32>
    %c0_36 = arith.constant 0 : index
    %c0_37 = arith.constant 0 : index
    %70 = vector.load %arg6[%c0_36, %c0_37] : memref<1x3xf32, #tpu.memory_space<vmem>>, vector<1x3xf32>
    %71 = vector.broadcast %70 : vector<1x3xf32> to vector<160x3xf32>
    %72 = arith.addf %69, %71 : vector<160x3xf32>
    %73 = vector.shape_cast %72 : vector<160x3xf32> to vector<10x16x3xf32>
    %74 = tpu.iota {dimensions = array<i32: 2>} : vector<1x1x3xi32>
    %c0_i32_38 = arith.constant 0 : i32
    %75 = vector.broadcast %c0_i32_38 : i32 to vector<1x1x3xi32>
    %76 = arith.cmpi eq, %74, %75 : vector<1x1x3xi32>
    %cst_39 = arith.constant 0.000000e+00 : f32
    %77 = vector.shape_cast %76 : vector<1x1x3xi1> to vector<1x1x3xi1>
    %78 = vector.broadcast %77 : vector<1x1x3xi1> to vector<10x16x3xi1>
    %79 = vector.broadcast %cst_39 : f32 to vector<10x16x3xf32>
    %80 = arith.select %78, %73, %79 : vector<10x16x3xi1>, vector<10x16x3xf32>
    %cst_40 = arith.constant dense<0.000000e+00> : vector<10x16xf32>
    %81 = vector.multi_reduction <add>, %80, %cst_40 [2] : vector<10x16x3xf32> to vector<10x16xf32>
    %82 = arith.truncf %81 : vector<10x16xf32> to vector<10x16xbf16>
    %c1_i32_41 = arith.constant 1 : i32
    %83 = vector.broadcast %c1_i32_41 : i32 to vector<1x1x3xi32>
    %84 = arith.cmpi eq, %74, %83 : vector<1x1x3xi32>
    %cst_42 = arith.constant 0.000000e+00 : f32
    %85 = vector.shape_cast %84 : vector<1x1x3xi1> to vector<1x1x3xi1>
    %86 = vector.broadcast %85 : vector<1x1x3xi1> to vector<10x16x3xi1>
    %87 = vector.broadcast %cst_42 : f32 to vector<10x16x3xf32>
    %88 = arith.select %86, %73, %87 : vector<10x16x3xi1>, vector<10x16x3xf32>
    %cst_43 = arith.constant dense<0.000000e+00> : vector<10x16xf32>
    %89 = vector.multi_reduction <add>, %88, %cst_43 [2] : vector<10x16x3xf32> to vector<10x16xf32>
    %90 = arith.truncf %89 : vector<10x16xf32> to vector<10x16xbf16>
    %c2_i32 = arith.constant 2 : i32
    %91 = vector.broadcast %c2_i32 : i32 to vector<1x1x3xi32>
    %92 = arith.cmpi eq, %74, %91 : vector<1x1x3xi32>
    %cst_44 = arith.constant 0.000000e+00 : f32
    %93 = vector.shape_cast %92 : vector<1x1x3xi1> to vector<1x1x3xi1>
    %94 = vector.broadcast %93 : vector<1x1x3xi1> to vector<10x16x3xi1>
    %95 = vector.broadcast %cst_44 : f32 to vector<10x16x3xf32>
    %96 = arith.select %94, %73, %95 : vector<10x16x3xi1>, vector<10x16x3xf32>
    %cst_45 = arith.constant dense<0.000000e+00> : vector<10x16xf32>
    %97 = vector.multi_reduction <add>, %96, %cst_45 [2] : vector<10x16x3xf32> to vector<10x16xf32>
    %98 = arith.truncf %97 : vector<10x16xf32> to vector<10x16xbf16>
    %c0_46 = arith.constant 0 : index
    %c0_47 = arith.constant 0 : index
    %99 = vector.load %arg8[%c0_46, %c0_47] : memref<16x64xbf16, #tpu.memory_space<vmem>>, vector<16x64xbf16>
    %c0_48 = arith.constant 0 : index
    %c0_49 = arith.constant 0 : index
    %c0_50 = arith.constant 0 : index
    %100 = vector.load %arg7[%c0_48, %c0_49, %c0_50] : memref<1x32x10xbf16, #tpu.memory_space<vmem>>, vector<1x32x10xbf16>
    %101 = vector.shape_cast %100 : vector<1x32x10xbf16> to vector<32x10xbf16>
    %cst_51 = arith.constant dense<0.000000e+00> : vector<10x64xf32>
    %102 = tpu.matmul %82, %99, %cst_51 {dimension_numbers = #tpu.dot_dimension_numbers<[1], [0], [0], [1], [0, 0, 1, 1], [], []>} : vector<10x16xbf16>, vector<16x64xbf16>, vector<10x64xf32> -> vector<10x64xf32>
    %103 = arith.truncf %102 : vector<10x64xf32> to vector<10x64xbf16>
    %cst_52 = arith.constant dense<0.000000e+00> : vector<32x64xf32>
    %104 = tpu.matmul %101, %103, %cst_52 {dimension_numbers = #tpu.dot_dimension_numbers<[1], [0], [0], [1], [0, 0, 1, 1], [], []>} : vector<32x10xbf16>, vector<10x64xbf16>, vector<32x64xf32> -> vector<32x64xf32>
    %105 = arith.truncf %104 : vector<32x64xf32> to vector<32x64xbf16>
    %c0_53 = arith.constant 0 : index
    %c0_54 = arith.constant 0 : index
    %c0_55 = arith.constant 0 : index
    %c0_56 = arith.constant 0 : index
    %106 = vector.load %arg9[%c0_53, %c0_54, %c0_55, %c0_56] : memref<1x3x32x64xbf16, #tpu.memory_space<vmem>>, vector<1x1x32x64xbf16>
    %107 = vector.shape_cast %106 : vector<1x1x32x64xbf16> to vector<32x64xbf16>
    %108 = vector.shape_cast %105 : vector<32x64xbf16> to vector<1x1x32x64xbf16>
    tpu.vector_store %arg9[%c0_53, %c0_54, %c0_55, %c0_56], %108 {strides = array<i32>} : memref<1x3x32x64xbf16, #tpu.memory_space<vmem>>, vector<1x1x32x64xbf16>,
    %cst_57 = arith.constant dense<0.000000e+00> : vector<10x64xf32>
    %109 = tpu.matmul %90, %99, %cst_57 {dimension_numbers = #tpu.dot_dimension_numbers<[1], [0], [0], [1], [0, 0, 1, 1], [], []>} : vector<10x16xbf16>, vector<16x64xbf16>, vector<10x64xf32> -> vector<10x64xf32>
    %110 = arith.truncf %109 : vector<10x64xf32> to vector<10x64xbf16>
    %cst_58 = arith.constant dense<0.000000e+00> : vector<32x64xf32>
    %111 = tpu.matmul %101, %110, %cst_58 {dimension_numbers = #tpu.dot_dimension_numbers<[1], [0], [0], [1], [0, 0, 1, 1], [], []>} : vector<32x10xbf16>, vector<10x64xbf16>, vector<32x64xf32> -> vector<32x64xf32>
    %112 = arith.truncf %111 : vector<32x64xf32> to vector<32x64xbf16>
    %c0_59 = arith.constant 0 : index
    %c1_60 = arith.constant 1 : index
    %c0_61 = arith.constant 0 : index
    %c0_62 = arith.constant 0 : index
    %113 = vector.load %arg9[%c0_59, %c1_60, %c0_61, %c0_62] : memref<1x3x32x64xbf16, #tpu.memory_space<vmem>>, vector<1x1x32x64xbf16>
    %114 = vector.shape_cast %113 : vector<1x1x32x64xbf16> to vector<32x64xbf16>
    %115 = vector.shape_cast %112 : vector<32x64xbf16> to vector<1x1x32x64xbf16>
    tpu.vector_store %arg9[%c0_59, %c1_60, %c0_61, %c0_62], %115 {strides = array<i32>} : memref<1x3x32x64xbf16, #tpu.memory_space<vmem>>, vector<1x1x32x64xbf16>,
    %cst_63 = arith.constant dense<0.000000e+00> : vector<10x64xf32>
    %116 = tpu.matmul %98, %99, %cst_63 {dimension_numbers = #tpu.dot_dimension_numbers<[1], [0], [0], [1], [0, 0, 1, 1], [], []>} : vector<10x16xbf16>, vector<16x64xbf16>, vector<10x64xf32> -> vector<10x64xf32>
    %117 = arith.truncf %116 : vector<10x64xf32> to vector<10x64xbf16>
    %cst_64 = arith.constant dense<0.000000e+00> : vector<32x64xf32>
    %118 = tpu.matmul %101, %117, %cst_64 {dimension_numbers = #tpu.dot_dimension_numbers<[1], [0], [0], [1], [0, 0, 1, 1], [], []>} : vector<32x10xbf16>, vector<10x64xbf16>, vector<32x64xf32> -> vector<32x64xf32>
    %119 = arith.truncf %118 : vector<32x64xf32> to vector<32x64xbf16>
    %c0_65 = arith.constant 0 : index
    %c2_66 = arith.constant 2 : index
    %c0_67 = arith.constant 0 : index
    %c0_68 = arith.constant 0 : index
    %120 = vector.load %arg9[%c0_65, %c2_66, %c0_67, %c0_68] : memref<1x3x32x64xbf16, #tpu.memory_space<vmem>>, vector<1x1x32x64xbf16>
    %121 = vector.shape_cast %120 : vector<1x1x32x64xbf16> to vector<32x64xbf16>
    %122 = vector.shape_cast %119 : vector<32x64xbf16> to vector<1x1x32x64xbf16>
    tpu.vector_store %arg9[%c0_65, %c2_66, %c0_67, %c0_68], %122 {strides = array<i32>} : memref<1x3x32x64xbf16, #tpu.memory_space<vmem>>, vector<1x1x32x64xbf16>,
    return
  }
  func.func @transform_0(%arg0: i32, %arg1: i32) -> (i32, i32, i32, i32) {
    %c0_i32 = arith.constant 0 : i32
    %c0_i32_0 = arith.constant 0 : i32
    %c0_i32_1 = arith.constant 0 : i32
    %c0_i32_2 = arith.constant 0 : i32
    return %arg0, %c0_i32, %c0_i32_0, %c0_i32_1 : i32, i32, i32, i32
  }
  func.func @transform_1(%arg0: i32, %arg1: i32) -> (i32, i32, i32) {
    %c0_i32 = arith.constant 0 : i32
    %c0_i32_0 = arith.constant 0 : i32
    %c0_i32_1 = arith.constant 0 : i32
    %c0_i32_2 = arith.constant 0 : i32
    return %c0_i32, %c0_i32_0, %c0_i32_1 : i32, i32, i32
  }
  func.func @transform_2(%arg0: i32, %arg1: i32) -> (i32, i32) {
    %c0_i32 = arith.constant 0 : i32
    %c0_i32_0 = arith.constant 0 : i32
    %c0_i32_1 = arith.constant 0 : i32
    return %c0_i32, %c0_i32_0 : i32, i32
  }
  func.func @transform_3(%arg0: i32, %arg1: i32) -> (i32, i32) {
    %c0_i32 = arith.constant 0 : i32
    %c0_i32_0 = arith.constant 0 : i32
    %c0_i32_1 = arith.constant 0 : i32
    return %c0_i32, %c0_i32_0 : i32, i32
  }
  func.func @transform_4(%arg0: i32, %arg1: i32) -> (i32, i32) {
    %c0_i32 = arith.constant 0 : i32
    %c0_i32_0 = arith.constant 0 : i32
    %c0_i32_1 = arith.constant 0 : i32
    return %c0_i32, %c0_i32_0 : i32, i32
  }
  func.func @transform_5(%arg0: i32, %arg1: i32) -> (i32, i32, i32) {
    %c0_i32 = arith.constant 0 : i32
    %c0_i32_0 = arith.constant 0 : i32
    %c0_i32_1 = arith.constant 0 : i32
    return %arg1, %c0_i32, %c0_i32_0 : i32, i32, i32
  }
  func.func @transform_6(%arg0: i32, %arg1: i32) -> (i32, i32) {
    %c0_i32 = arith.constant 0 : i32
    %c0_i32_0 = arith.constant 0 : i32
    %c0_i32_1 = arith.constant 0 : i32
    return %c0_i32, %c0_i32_0 : i32, i32
  }
  func.func @transform_7(%arg0: i32, %arg1: i32) -> (i32, i32, i32, i32) {
    %c0_i32 = arith.constant 0 : i32
    %c0_i32_0 = arith.constant 0 : i32
    %c0_i32_1 = arith.constant 0 : i32
    return %arg0, %c0_i32, %arg1, %c0_i32_0 : i32, i32, i32, i32
  }
}

</mosaic_0001>

<llo_original>
// kernel: seghead_forward.1
$region0: #{seghead_forward.1}
  #allocation0 [shape = 'u32[]', space=smem, size = 0x4, offset = 0x4, fixed_abs, tag = 'smem constant byte address 0x4 - core index']
  #allocation1 [shape = 'u32[144,128]{1,0:T(1,128)}', space=vmem, size = 0x12000, scoped, tag = 'internal scratch']
  #allocation4 [shape = 's32[]', space=sflag, size = 0x4, offset = 0, fixed_abs, tag = 'sflag constant byte address 0x0 - dummy sync flag']
  %s0 = inlined_call_operand.vmem [shape: bf16[2,18,24,4], index: 0, kind: input, shape index: {}]
  %s1 = inlined_call_operand.vmem [shape: bf16[9,4,8], index: 1, kind: input, shape index: {}]
  %s2 = inlined_call_operand.vmem [shape: f32[1,8], index: 2, kind: input, shape index: {}]
  %s3 = inlined_call_operand.vmem [shape: bf16[8,3], index: 3, kind: input, shape index: {}]
  %s4 = inlined_call_operand.vmem [shape: f32[1,3], index: 4, kind: input, shape index: {}]
  %s5 = inlined_call_operand.vmem [shape: bf16[2,32,10], index: 5, kind: input, shape index: {}]
  %s6 = inlined_call_operand.vmem [shape: bf16[16,64], index: 6, kind: input, shape index: {}]
  %s7 = inlined_call_operand.hbm [shape: bf16[2,3,64,64], index: 7, kind: output, shape index: {}]
  %s8 = sld [smem:[#allocation0]]
  $region61: #{seghead_forward.1} parent=0
    _
  %s10 = ssub.s32 1, %s8
  %s11 = scalar_select 0, %s10, %s8
  $region1: #{seghead_forward.1} parent=0
    #allocation2 [shape = 'u8[49152]{0}', space=vmem, size = 0xc000, scoped, tag = 'output window, operand 0']
    #allocation3 [shape = 's32[2]{0}', space=sflag, size = 0x8, scoped, tag = 'scoped memory for seghead_forward.1']
    %12 = vsyncpa [#allocation3], 0
    %s13 = scalar_lea.sflag [#allocation3], 1
    %14 = vsyncpa %s13, 0
    loop: start=0, step=1, limit=6
    $region2: #{seghead_forward.1} parent=1 // loop_pre_header
      _
    $region3: #{seghead_forward.1} parent=1 // loop_header
      %s16 = sphi 0, %s20
      %p17 = scmp.ge.s32.totalorder %s16, 6
      %s23 = sphi 0, %s35
      %s24 = sphi 0, %s31
      %s25 = sphi 0, %s23
      %s26 = sphi 0, %s24
      %s27 = sphi 0, %s25
      %s28 = sphi 0, %s26
      %s38 = sphi 0, %s40
      %s41 = sphi 0, %s38
      %s42 = sphi 0, %s41
      %s58 = sphi 0, %s42
      %s62 = sphi 0, %s62
      %s64 = sphi 0, %s62
      %s65 = sphi 0, %s64
      %s79 = sphi 0, %s65
      %s83 = sphi 0, %s83
      %s85 = sphi 0, %s83
      %s86 = sphi 0, %s85
      %s100 = sphi 0, %s86
      %s104 = sphi 0, %s104
      %s106 = sphi 0, %s104
      %s107 = sphi 0, %s106
      %s121 = sphi 0, %s107
      %s125 = sphi 0, %s125
      %s127 = sphi 0, %s125
      %s128 = sphi 0, %s127
      %s142 = sphi 0, %s128
      %s148 = sphi 0, %s150
      %s151 = sphi 0, %s148
      %s152 = sphi 0, %s151
      %s168 = sphi 0, %s152
      %s172 = sphi 0, %s172
      %s174 = sphi 0, %s172
      %s175 = sphi 0, %s174
      %s189 = sphi 0, %s175
      %s197 = sphi 0, %s199
      %s200 = sphi 0, %s197
      %s201 = sphi 0, %s200
      %s217 = sphi 0, %s201
    $region4: #{seghead_forward.1} parent=1 // loop_header_branch
      %19 = sbr.rel (%p17) target = $region8
    $region5: #{seghead_forward.1} parent=1 // loop_body
      %s21 = ssub.s32 %s16, 1
      %s22 = ssub.s32 %s16, 2
      %s29 = sadd.s32 1, %s24
      %p30 = scmp.ge.s32.totalorder %s29, 2
      %s31 = scalar_select %p30, 0, %s29
      %s32 = sadd.s32 1, %s23
      %s33 = scalar_select %p30, %s32, %s23
      %p34 = scmp.ge.s32.totalorder %s33, 2
      %s35 = scalar_select %p34, 0, %s33
      %s36 = ssub.s32 %s23, %s35
      %p37 = scmp.eq.s32.totalorder %s36, 0
      %s39 = sadd.s32 %s38, 1
      %s40 = scalar_select %p37, %s38, %s39
      %p43 = pneg %p37
      %p44 = scmp.eq.s32.totalorder %s16, 3
      %p45 = por %p43, %p44
      %p46 = scmp.ne.s32.totalorder %s38, %s41
      %p47 = scmp.eq.s32.totalorder %s16, 0
      %p48 = por %p46, %p47
      %p49 = scmp.ne.s32.totalorder %s38, %s41
      %p50 = scmp.eq.s32.totalorder %s21, 3
      %p51 = por %p49, %p50
      %p52 = scmp.ne.s32.totalorder %s41, %s42
      %p53 = scmp.eq.s32.totalorder %s21, 0
      %p54 = por %p52, %p53
      %p55 = scmp.ne.s32.totalorder %s41, %s42
      %p56 = scmp.eq.s32.totalorder %s22, 3
      %p57 = por %p55, %p56
      %p59 = scmp.ne.s32.totalorder %s42, %s58
      %p60 = scmp.eq.s32.totalorder %s22, 0
      %p61 = por %p59, %p60
      %s63 = sadd.s32 %s62, 1
      %p66 = scmp.eq.s32.totalorder %s16, 3
      %p67 = scmp.ne.s32.totalorder %s62, %s64
      %p68 = scmp.eq.s32.totalorder %s16, 0
      %p69 = por %p67, %p68
      %p70 = scmp.ne.s32.totalorder %s62, %s64
      %p71 = scmp.eq.s32.totalorder %s21, 3
      %p72 = por %p70, %p71
      %p73 = scmp.ne.s32.totalorder %s64, %s65
      %p74 = scmp.eq.s32.totalorder %s21, 0
      %p75 = por %p73, %p74
      %p76 = scmp.ne.s32.totalorder %s64, %s65
      %p77 = scmp.eq.s32.totalorder %s22, 3
      %p78 = por %p76, %p77
      %p80 = scmp.ne.s32.totalorder %s65, %s79
      %p81 = scmp.eq.s32.totalorder %s22, 0
      %p82 = por %p80, %p81
      %s84 = sadd.s32 %s83, 1
      %p87 = scmp.eq.s32.totalorder %s16, 3
      %p88 = scmp.ne.s32.totalorder %s83, %s85
      %p89 = scmp.eq.s32.totalorder %s16, 0
      %p90 = por %p88, %p89
      %p91 = scmp.ne.s32.totalorder %s83, %s85
      %p92 = scmp.eq.s32.totalorder %s21, 3
      %p93 = por %p91, %p92
      %p94 = scmp.ne.s32.totalorder %s85, %s86
      %p95 = scmp.eq.s32.totalorder %s21, 0
      %p96 = por %p94, %p95
      %p97 = scmp.ne.s32.totalorder %s85, %s86
      %p98 = scmp.eq.s32.totalorder %s22, 3
      %p99 = por %p97, %p98
      %p101 = scmp.ne.s32.totalorder %s86, %s100
      %p102 = scmp.eq.s32.totalorder %s22, 0
      %p103 = por %p101, %p102
      %s105 = sadd.s32 %s104, 1
      %p108 = scmp.eq.s32.totalorder %s16, 3
      %p109 = scmp.ne.s32.totalorder %s104, %s106
      %p110 = scmp.eq.s32.totalorder %s16, 0
      %p111 = por %p109, %p110
      %p112 = scmp.ne.s32.totalorder %s104, %s106
      %p113 = scmp.eq.s32.totalorder %s21, 3
      %p114 = por %p112, %p113
      %p115 = scmp.ne.s32.totalorder %s106, %s107
      %p116 = scmp.eq.s32.totalorder %s21, 0
      %p117 = por %p115, %p116
      %p118 = scmp.ne.s32.totalorder %s106, %s107
      %p119 = scmp.eq.s32.totalorder %s22, 3
      %p120 = por %p118, %p119
      %p122 = scmp.ne.s32.totalorder %s107, %s121
      %p123 = scmp.eq.s32.totalorder %s22, 0
      %p124 = por %p122, %p123
      %s126 = sadd.s32 %s125, 1
      %p129 = scmp.eq.s32.totalorder %s16, 3
      %p130 = scmp.ne.s32.totalorder %s125, %s127
      %p131 = scmp.eq.s32.totalorder %s16, 0
      %p132 = por %p130, %p131
      %p133 = scmp.ne.s32.totalorder %s125, %s127
      %p134 = scmp.eq.s32.totalorder %s21, 3
      %p135 = por %p133, %p134
      %p136 = scmp.ne.s32.totalorder %s127, %s128
      %p137 = scmp.eq.s32.totalorder %s21, 0
      %p138 = por %p136, %p137
      %p139 = scmp.ne.s32.totalorder %s127, %s128
      %p140 = scmp.eq.s32.totalorder %s22, 3
      %p141 = por %p139, %p140
      %p143 = scmp.ne.s32.totalorder %s128, %s142
      %p144 = scmp.eq.s32.totalorder %s22, 0
      %p145 = por %p143, %p144
      %s146 = ssub.s32 %s24, %s31
      %p147 = scmp.eq.s32.totalorder %s146, 0
      %s149 = sadd.s32 %s148, 1
      %s150 = scalar_select %p147, %s148, %s149
      %p153 = pneg %p147
      %p154 = scmp.eq.s32.totalorder %s16, 3
      %p155 = por %p153, %p154
      %p156 = scmp.ne.s32.totalorder %s148, %s151
      %p157 = scmp.eq.s32.totalorder %s16, 0
      %p158 = por %p156, %p157
      %p159 = scmp.ne.s32.totalorder %s148, %s151
      %p160 = scmp.eq.s32.totalorder %s21, 3
      %p161 = por %p159, %p160
      %p162 = scmp.ne.s32.totalorder %s151, %s152
      %p163 = scmp.eq.s32.totalorder %s21, 0
      %p164 = por %p162, %p163
      %p165 = scmp.ne.s32.totalorder %s151, %s152
      %p166 = scmp.eq.s32.totalorder %s22, 3
      %p167 = por %p165, %p166
      %p169 = scmp.ne.s32.totalorder %s152, %s168
      %p170 = scmp.eq.s32.totalorder %s22, 0
      %p171 = por %p169, %p170
      %s173 = sadd.s32 %s172, 1
      %p176 = scmp.eq.s32.totalorder %s16, 3
      %p177 = scmp.ne.s32.totalorder %s172, %s174
      %p178 = scmp.eq.s32.totalorder %s16, 0
      %p179 = por %p177, %p178
      %p180 = scmp.ne.s32.totalorder %s172, %s174
      %p181 = scmp.eq.s32.totalorder %s21, 3
      %p182 = por %p180, %p181
      %p183 = scmp.ne.s32.totalorder %s174, %s175
      %p184 = scmp.eq.s32.totalorder %s21, 0
      %p185 = por %p183, %p184
      %p186 = scmp.ne.s32.totalorder %s174, %s175
      %p187 = scmp.eq.s32.totalorder %s22, 3
      %p188 = por %p186, %p187
      %p190 = scmp.ne.s32.totalorder %s175, %s189
      %p191 = scmp.eq.s32.totalorder %s22, 0
      %p192 = por %p190, %p191
      %s193 = ssub.s32 %s23, %s35
      %s194 = ssub.s32 %s24, %s31
      %s195 = sor.u32 %s193, %s194
      %p196 = scmp.eq.s32.totalorder %s195, 0
      %s198 = sadd.s32 %s197, 1
      %s199 = scalar_select %p196, %s197, %s198
      %p202 = pneg %p196
      %p203 = scmp.eq.s32.totalorder %s16, 3
      %p204 = por %p202, %p203
      %p205 = scmp.ne.s32.totalorder %s197, %s200
      %p206 = scmp.eq.s32.totalorder %s16, 0
      %p207 = por %p205, %p206
      %p208 = scmp.ne.s32.totalorder %s197, %s200
      %p209 = scmp.eq.s32.totalorder %s21, 3
      %p210 = por %p208, %p209
      %p211 = scmp.ne.s32.totalorder %s200, %s201
      %p212 = scmp.eq.s32.totalorder %s21, 0
      %p213 = por %p211, %p212
      %p214 = scmp.ne.s32.totalorder %s200, %s201
      %p215 = scmp.eq.s32.totalorder %s22, 3
      %p216 = por %p214, %p215
      %p218 = scmp.ne.s32.totalorder %s201, %s217
      %p219 = scmp.eq.s32.totalorder %s22, 0
      %p220 = por %p218, %p219
      %p221 = scmp.le.s32.totalorder 1, %s16
      %p222 = scmp.lt.s32.totalorder %s16, 5
      %p223 = pnand %p221, %p222
      %p224 = pneg %p223
      // Predicated region
      $region9: #{seghead_forward.1} parent=5 // pred_check
        _
      $region10: #{seghead_forward.1} parent=5 // pred_check_branch
        %226 = sbr.rel (%p223) target = $region12
      $region11: #{seghead_forward.1} parent=5 // pred_region
        %s227 = ssub.s32 %s16, 1
        // Predicated region
        $region13: #{seghead_forward.1} parent=11 // pred_check
          %p228 = pneg %p75
        $region14: #{seghead_forward.1} parent=11 // pred_check_branch
          %230 = sbr.rel (%p228) target = $region16
        $region15: #{seghead_forward.1} parent=11 // pred_region
          _
        $region16: #{seghead_forward.1} parent=11 // pred_fallthru
          _
        // Predicated region
        $region17: #{seghead_forward.1} parent=11 // pred_check
          %p231 = pneg %p96
        $region18: #{seghead_forward.1} parent=11 // pred_check_branch
          %233 = sbr.rel (%p231) target = $region20
        $region19: #{seghead_forward.1} parent=11 // pred_region
          _
        $region20: #{seghead_forward.1} parent=11 // pred_fallthru
          _
        // Predicated region
        $region21: #{seghead_forward.1} parent=11 // pred_check
          %p234 = pneg %p117
        $region22: #{seghead_forward.1} parent=11 // pred_check_branch
          %236 = sbr.rel (%p234) target = $region24
        $region23: #{seghead_forward.1} parent=11 // pred_region
          _
        $region24: #{seghead_forward.1} parent=11 // pred_fallthru
          _
        // Predicated region
        $region25: #{seghead_forward.1} parent=11 // pred_check
          %p237 = pneg %p138
        $region26: #{seghead_forward.1} parent=11 // pred_check_branch
          %239 = sbr.rel (%p237) target = $region28
        $region27: #{seghead_forward.1} parent=11 // pred_region
          _
        $region28: #{seghead_forward.1} parent=11 // pred_fallthru
          _
        // Predicated region
        $region29: #{seghead_forward.1} parent=11 // pred_check
          %p240 = pneg %p185
        $region30: #{seghead_forward.1} parent=11 // pred_check_branch
          %242 = sbr.rel (%p240) target = $region32
        $region31: #{seghead_forward.1} parent=11 // pred_region
          _
        $region32: #{seghead_forward.1} parent=11 // pred_fallthru
          _
      $region12: #{seghead_forward.1} parent=5 // pred_fallthru
        _
      %p243 = scmp.lt.s32.totalorder %s16, 4
      // Predicated region
      $region33: #{seghead_forward.1} parent=5 // pred_check
        %p244 = pneg %p243
      $region34: #{seghead_forward.1} parent=5 // pred_check_branch
        %246 = sbr.rel (%p244) target = $region36
      $region35: #{seghead_forward.1} parent=5 // pred_region
        // Predicated region
        $region37: #{seghead_forward.1} parent=35 // pred_check
          %p247 = pneg %p48
        $region38: #{seghead_forward.1} parent=35 // pred_check_branch
          %249 = sbr.rel (%p247) target = $region40
        $region39: #{seghead_forward.1} parent=35 // pred_region
          %p250 = scmp.lt.s32.totalorder %s23, 1
          %s251 = scalar_select %p250, %s23, 1
          %s252 = smul.addr %s251, 54
          %s253 = smul.addr %s252, 4
          %s254 = scalar_lea.vmem %s0, %s253
        $region40: #{seghead_forward.1} parent=35 // pred_fallthru
          _
        // Predicated region
        $region41: #{seghead_forward.1} parent=35 // pred_check
          %p255 = pneg %p158
        $region42: #{seghead_forward.1} parent=35 // pred_check_branch
          %257 = sbr.rel (%p255) target = $region44
        $region43: #{seghead_forward.1} parent=35 // pred_region
          %p258 = scmp.lt.s32.totalorder %s24, 1
          %s259 = scalar_select %p258, %s24, 1
          %s260 = smul.addr %s259, 4
          %s261 = smul.addr %s260, 4
          %s262 = scalar_lea.vmem %s5, %s261
        $region44: #{seghead_forward.1} parent=35 // pred_fallthru
          _
      $region36: #{seghead_forward.1} parent=5 // pred_fallthru
        _
      %p263 = scmp.le.s32.totalorder 1, %s16
      %p264 = scmp.lt.s32.totalorder %s16, 5
      %p265 = pnand %p263, %p264
      %p266 = pneg %p265
      // Predicated region
      $region45: #{seghead_forward.1} parent=5 // pred_check
        _
      $region46: #{seghead_forward.1} parent=5 // pred_check_branch
        %268 = sbr.rel (%p265) target = $region48
      $region47: #{seghead_forward.1} parent=5 // pred_region
        %s269 = ssub.s32 %s16, 1
        %p270 = scmp.lt.s32.totalorder %s25, 1
        %s271 = scalar_select %p270, %s25, 1
        %s272 = smul.addr %s271, 54
        %s273 = smul.addr %s272, 4
        %s274 = scalar_lea.vmem %s0, %s273
        %p275 = pneg %p54
        %p276 = pneg %p51
        %p277 = pneg %p75
        %p278 = pneg %p72
        %p279 = pneg %p96
        %p280 = pneg %p93
        %p281 = pneg %p117
        %p282 = pneg %p114
        %p283 = pneg %p138
        %p284 = pneg %p135
        %p285 = scmp.lt.s32.totalorder %s26, 1
        %s286 = scalar_select %p285, %s26, 1
        %s287 = smul.addr %s286, 4
        %s288 = smul.addr %s287, 4
        %s289 = scalar_lea.vmem %s5, %s288
        %p290 = pneg %p164
        %p291 = pneg %p161
        %p292 = pneg %p185
        %p293 = pneg %p182
        %p294 = pneg %p213
        %p295 = pneg %p210
        %s296 = sand.u32 %s200, 1
        %s297 = scalar_lea.sflag [#allocation3], %s296
        %s298 = sand.u32 %s200, 1
        %s299 = smul.addr %s298, 48
        %s300 = scalar_lea.vmem [#allocation2], %s299
        %p301 = scmp.lt.s32.totalorder %s25, 1
        %s302 = scalar_select %p301, %s25, 1
        %s303 = smul.addr %s302, 54
        %s304 = smul.addr %s303, 4
        %s305 = scalar_lea.vmem %s0, %s304
        %p306 = scmp.lt.s32.totalorder %s26, 1
        %s307 = scalar_select %p306, %s26, 1
        %s308 = smul.addr %s307, 4
        %s309 = smul.addr %s308, 4
        %s310 = scalar_lea.vmem %s5, %s309
        %s311 = smul.u32 4, %s26
        %s313 = smul.u32 %s26, 8
        %s314 = ssub.s32 %s313, 1
        %p315 = scmp.gt.s32.totalorder %s314, 0
        %s316 = scalar_select %p315, %s314, 0
        %p317 = scmp.lt.s32.totalorder %s316, 6
        %s318 = scalar_select %p317, %s316, 6
        %s319 = smul.u32 %s318, 3
        %s320 = smul.addr %s319, 4
        %s321 = scalar_lea.vmem %s305, %s320
        %v322 = vld [vmem:[%s321] sm:$0xf]
        %v323 = vld [vmem:[%s321 + $0x4] sm:$0xf]
        %v324 = vld [vmem:[%s321 + $0x8] sm:$0xf]
        %v325 = vld [vmem:[%s321 + $0xc] sm:$0xf]
        %v326 = vld [vmem:[%s321 + $0x10] sm:$0xf]
        %v327 = vld [vmem:[%s321 + $0x14] sm:$0xf]
        %v328 = vld [vmem:[%s321 + $0x18] sm:$0xf]
        %v329 = vld [vmem:[%s321 + $0x1c] sm:$0xf]
        %v330 = vld [vmem:[%s321 + $0x20] sm:$0xf]
        %v331 = vld [vmem:[%s321 + $0x24] sm:$0xf]
        %v332 = vld [vmem:[%s321 + $0x28] sm:$0xf]
        %v333 = vld [vmem:[%s321 + $0x2c] sm:$0xf]
        %v334 = vld [vmem:[%s321 + $0x30] sm:$0xf]
        %v335 = vld [vmem:[%s321 + $0x34] sm:$0xf]
        %v336 = vld [vmem:[%s321 + $0x38] sm:$0xf]
        %v337 = vld [vmem:[%s321 + $0x3c] sm:$0xf]
        %v338 = vld [vmem:[%s321 + $0x40] sm:$0xf]
        %v339 = vld [vmem:[%s321 + $0x44] sm:$0xf]
        %v340 = vld [vmem:[%s321 + $0x48] sm:$0xf]
        %v341 = vld [vmem:[%s321 + $0x4c] sm:$0xf]
        %v342 = vld [vmem:[%s321 + $0x50] sm:$0xf]
        %v343 = vld [vmem:[%s321 + $0x54] sm:$0xf]
        %v344 = vld [vmem:[%s321 + $0x58] sm:$0xf]
        %v345 = vld [vmem:[%s321 + $0x5c] sm:$0xf]
        %v346 = vld [vmem:[%s321 + $0x60] sm:$0xf]
        %v347 = vld [vmem:[%s321 + $0x64] sm:$0xf]
        %v348 = vld [vmem:[%s321 + $0x68] sm:$0xf]
        %v349 = vld [vmem:[%s321 + $0x6c] sm:$0xf]
        %v350 = vld [vmem:[%s321 + $0x70] sm:$0xf]
        %v351 = vld [vmem:[%s321 + $0x74] sm:$0xf]
        %v352 = vld [vmem:[%s321 + $0x78] sm:$0xf]
        %v353 = vld [vmem:[%s321 + $0x7c] sm:$0xf]
        %v354 = vld [vmem:[%s321 + $0x80] sm:$0xf]
        %v355 = vld [vmem:[%s321 + $0x84] sm:$0xf]
        %v356 = vld [vmem:[%s321 + $0x88] sm:$0xf]
        %v357 = vld [vmem:[%s321 + $0x8c] sm:$0xf]
        %v358 = vld [vmem:[%s1] sm:$0x3]
        %vm359 = vsmask.f32 3328
        %vm360 = vsmask.f32 7440
        %vm361 = vmor %vm359, %vm360
        %v363 = vshrl.u32 %v322, 16
        %v365 = vrot.slane %v363, 4
        %v366 = vshll.u32 %v322, 16
        %v368 = vrot.slane %v366, 5
        %v369 = vor.u32 %v365, %v368
        %v370 = vrot.slane %v369, 4
        %v372 = vshll.u32 %v323, 16
        %v374 = vrot.slane %v372, 5
        %v375 = vsel %vm361, %v370, %v374
        %v376 = vshrl.u32 %v323, 16
        %v378 = vrot.slane %v376, 4
        %v379 = vor.u32 %v378, %v374
        %v380 = vrot.slane %v379, 4
        %v382 = vshll.u32 %v324, 16
        %v384 = vrot.slane %v382, 5
        %v385 = vsel %vm361, %v380, %v384
        %v387 = vshrl.u32 %v325, 16
        %v389 = vrot.slane %v387, 4
        %v390 = vshll.u32 %v325, 16
        %v392 = vrot.slane %v390, 5
        %v393 = vor.u32 %v389, %v392
        %v394 = vrot.slane %v393, 4
        %v396 = vshll.u32 %v326, 16
        %v398 = vrot.slane %v396, 5
        %v399 = vsel %vm361, %v394, %v398
        %v400 = vshrl.u32 %v326, 16
        %v402 = vrot.slane %v400, 4
        %v403 = vor.u32 %v402, %v398
        %v404 = vrot.slane %v403, 4
        %v406 = vshll.u32 %v327, 16
        %v408 = vrot.slane %v406, 5
        %v409 = vsel %vm361, %v404, %v408
        %v411 = vshrl.u32 %v328, 16
        %v413 = vrot.slane %v411, 4
        %v414 = vshll.u32 %v328, 16
        %v416 = vrot.slane %v414, 5
        %v417 = vor.u32 %v413, %v416
        %v418 = vrot.slane %v417, 4
        %v420 = vshll.u32 %v329, 16
        %v422 = vrot.slane %v420, 5
        %v423 = vsel %vm361, %v418, %v422
        %v424 = vshrl.u32 %v329, 16
        %v426 = vrot.slane %v424, 4
        %v427 = vor.u32 %v426, %v422
        %v428 = vrot.slane %v427, 4
        %v430 = vshll.u32 %v330, 16
        %v432 = vrot.slane %v430, 5
        %v433 = vsel %vm361, %v428, %v432
        %v435 = vshrl.u32 %v331, 16
        %v437 = vrot.slane %v435, 4
        %v438 = vshll.u32 %v331, 16
        %v440 = vrot.slane %v438, 5
        %v441 = vor.u32 %v437, %v440
        %v442 = vrot.slane %v441, 4
        %v444 = vshll.u32 %v332, 16
        %v446 = vrot.slane %v444, 5
        %v447 = vsel %vm361, %v442, %v446
        %v448 = vshrl.u32 %v332, 16
        %v450 = vrot.slane %v448, 4
        %v451 = vor.u32 %v450, %v446
        %v452 = vrot.slane %v451, 4
        %v454 = vshll.u32 %v333, 16
        %v456 = vrot.slane %v454, 5
        %v457 = vsel %vm361, %v452, %v456
        %v459 = vshrl.u32 %v334, 16
        %v461 = vrot.slane %v459, 4
        %v462 = vshll.u32 %v334, 16
        %v464 = vrot.slane %v462, 5
        %v465 = vor.u32 %v461, %v464
        %v466 = vrot.slane %v465, 4
        %v468 = vshll.u32 %v335, 16
        %v470 = vrot.slane %v468, 5
        %v471 = vsel %vm361, %v466, %v470
        %v472 = vshrl.u32 %v335, 16
        %v474 = vrot.slane %v472, 4
        %v475 = vor.u32 %v474, %v470
        %v476 = vrot.slane %v475, 4
        %v478 = vshll.u32 %v336, 16
        %v480 = vrot.slane %v478, 5
        %v481 = vsel %vm361, %v476, %v480
        %v483 = vshrl.u32 %v337, 16
        %v485 = vrot.slane %v483, 4
        %v486 = vshll.u32 %v337, 16
        %v488 = vrot.slane %v486, 5
        %v489 = vor.u32 %v485, %v488
        %v490 = vrot.slane %v489, 4
        %v492 = vshll.u32 %v338, 16
        %v494 = vrot.slane %v492, 5
        %v495 = vsel %vm361, %v490, %v494
        %v496 = vshrl.u32 %v338, 16
        %v498 = vrot.slane %v496, 4
        %v499 = vor.u32 %v498, %v494
        %v500 = vrot.slane %v499, 4
        %v502 = vshll.u32 %v339, 16
        %v504 = vrot.slane %v502, 5
        %v505 = vsel %vm361, %v500, %v504
        %v507 = vshrl.u32 %v340, 16
        %v509 = vrot.slane %v507, 4
        %v510 = vshll.u32 %v340, 16
        %v512 = vrot.slane %v510, 5
        %v513 = vor.u32 %v509, %v512
        %v514 = vrot.slane %v513, 4
        %v516 = vshll.u32 %v341, 16
        %v518 = vrot.slane %v516, 5
        %v519 = vsel %vm361, %v514, %v518
        %v520 = vshrl.u32 %v341, 16
        %v522 = vrot.slane %v520, 4
        %v523 = vor.u32 %v522, %v518
        %v524 = vrot.slane %v523, 4
        %v526 = vshll.u32 %v342, 16
        %v528 = vrot.slane %v526, 5
        %v529 = vsel %vm361, %v524, %v528
        %v531 = vshrl.u32 %v343, 16
        %v533 = vrot.slane %v531, 4
        %v534 = vshll.u32 %v343, 16
        %v536 = vrot.slane %v534, 5
        %v537 = vor.u32 %v533, %v536
        %v538 = vrot.slane %v537, 4
        %v540 = vshll.u32 %v344, 16
        %v542 = vrot.slane %v540, 5
        %v543 = vsel %vm361, %v538, %v542
        %v544 = vshrl.u32 %v344, 16
        %v546 = vrot.slane %v544, 4
        %v547 = vor.u32 %v546, %v542
        %v548 = vrot.slane %v547, 4
        %v550 = vshll.u32 %v345, 16
        %v552 = vrot.slane %v550, 5
        %v553 = vsel %vm361, %v548, %v552
        %v555 = vshrl.u32 %v346, 16
        %v557 = vrot.slane %v555, 4
        %v558 = vshll.u32 %v346, 16
        %v560 = vrot.slane %v558, 5
        %v561 = vor.u32 %v557, %v560
        %v562 = vrot.slane %v561, 4
        %v564 = vshll.u32 %v347, 16
        %v566 = vrot.slane %v564, 5
        %v567 = vsel %vm361, %v562, %v566
        %v568 = vshrl.u32 %v347, 16
        %v570 = vrot.slane %v568, 4
        %v571 = vor.u32 %v570, %v566
        %v572 = vrot.slane %v571, 4
        %v574 = vshll.u32 %v348, 16
        %v576 = vrot.slane %v574, 5
        %v577 = vsel %vm361, %v572, %v576
        %v579 = vshrl.u32 %v349, 16
        %v581 = vrot.slane %v579, 4
        %v582 = vshll.u32 %v349, 16
        %v584 = vrot.slane %v582, 5
        %v585 = vor.u32 %v581, %v584
        %v586 = vrot.slane %v585, 4
        %v588 = vshll.u32 %v350, 16
        %v590 = vrot.slane %v588, 5
        %v591 = vsel %vm361, %v586, %v590
        %v592 = vshrl.u32 %v350, 16
        %v594 = vrot.slane %v592, 4
        %v595 = vor.u32 %v594, %v590
        %v596 = vrot.slane %v595, 4
        %v598 = vshll.u32 %v351, 16
        %v600 = vrot.slane %v598, 5
        %v601 = vsel %vm361, %v596, %v600
        %s602 = scalar_lea.vmem %s1, 2
        %v603 = vld [vmem:[%s602] sm:$0x3]
        %v604 = vunpack.c.l.b16 %v375
        %v605 = vunpack.c.l.b16 %v385
        %v606 = vunpack.c.l.b16 %v399
        %v607 = vunpack.c.l.b16 %v409
        %v608 = vunpack.c.l.b16 %v423
        %v609 = vunpack.c.l.b16 %v433
        %v610 = vunpack.c.l.b16 %v447
        %v611 = vunpack.c.l.b16 %v457
        %v612 = vunpack.c.l.b16 %v471
        %v613 = vunpack.c.l.b16 %v481
        %v614 = vunpack.c.l.b16 %v495
        %v615 = vunpack.c.l.b16 %v505
        %v616 = vunpack.c.l.b16 %v519
        %v617 = vunpack.c.l.b16 %v529
        %v618 = vunpack.c.l.b16 %v543
        %v619 = vunpack.c.l.b16 %v553
        %v620 = vunpack.c.l.b16 %v567
        %v621 = vunpack.c.l.b16 %v577
        %v622 = vunpack.c.l.b16 %v591
        %v623 = vunpack.c.l.b16 %v601
        %v624 = vpack.c.b16 %v605, %v604
        %v625 = vpack.c.b16 %v607, %v606
        %v626 = vpack.c.b16 %v609, %v608
        %v627 = vpack.c.b16 %v611, %v610
        %v628 = vpack.c.b16 %v613, %v612
        %v629 = vpack.c.b16 %v615, %v614
        %v630 = vpack.c.b16 %v617, %v616
        %v631 = vpack.c.b16 %v619, %v618
        %v632 = vpack.c.b16 %v621, %v620
        %v633 = vpack.c.b16 %v623, %v622
        %vm634 = vcmask 31744
        %v636 = vsel %vm634, %v624, 0
        %v639 = vsel %vm634, %v625, 0
        %v642 = vsel %vm634, %v626, 0
        %v645 = vsel %vm634, %v627, 0
        %v648 = vsel %vm634, %v628, 0
        %v651 = vsel %vm634, %v629, 0
        %v654 = vsel %vm634, %v630, 0
        %v657 = vsel %vm634, %v631, 0
        %v660 = vsel %vm634, %v632, 0
        %v663 = vsel %vm634, %v633, 0
        %vm665 = vcmask 1041408
        %v667 = vsel %vm665, %v603, 0
        %669 = vmatprep.subr.bf16.mxu0 0
        %670 = vmatpush1.bf16.msra.mxu0 %v667
        %671 = vmatprep.subr.bf16.mxu0 0
        %672 = vmatpush1.bf16.msra.mxu0 0
        %673 = vmatprep.subr.bf16.mxu0 0
        %674 = vmatpush1.bf16.msra.mxu0 0
        %675 = vmatprep.subr.bf16.mxu0 0
        %676 = vmatpush1.bf16.msra.mxu0 0
        %677 = vmatprep.subr.bf16.mxu0 0
        %678 = vmatpush1.bf16.msra.mxu0 0
        %679 = vmatprep.subr.bf16.mxu0 0
        %680 = vmatpush1.bf16.msra.mxu0 0
        %681 = vmatprep.subr.bf16.mxu0 0
        %682 = vmatpush1.bf16.msra.mxu0 0
        %683 = vmatprep.subr.bf16.mxu0 0
        %684 = vmatpush1.bf16.msra.mxu0 0
        %685 = vmatprep.subr.bf16.mxu0 0
        %686 = vmatpush1.bf16.msra.mxu0 0
        %687 = vmatprep.subr.bf16.mxu0 0
        %688 = vmatpush1.bf16.msra.mxu0 0
        %689 = vmatprep.subr.bf16.mxu0 0
        %690 = vmatpush1.bf16.msra.mxu0 0
        %691 = vmatprep.subr.bf16.mxu0 0
        %692 = vmatpush1.bf16.msra.mxu0 0
        %693 = vmatprep.subr.bf16.mxu0 0
        %694 = vmatpush1.bf16.msra.mxu0 0
        %695 = vmatprep.subr.bf16.mxu0 0
        %696 = vmatpush1.bf16.msra.mxu0 0
        %697 = vmatprep.subr.bf16.mxu0 0
        %698 = vmatpush1.bf16.msra.mxu0 0
        %699 = vmatprep.subr.bf16.mxu0 0
        %700 = vmatpush1.bf16.msra.mxu0 0
        %701 = vmatprep.mubr.bf16.mxu0 0
        %702 = vmatmul.mubr.bf16.gmra.mrb[0].mxu0 %v636
        %v703 = vpop.f32.mrb[0].mxu0
        %v704 = vadd.f32 0.0, %v703
        %v705 = vpop.f32.mrb[0].mxu0
        %v706 = vpop.f32.mrb[0].mxu0
        %v707 = vadd.f32 0.0, %v706
        %v708 = vpop.f32.mrb[0].mxu0
        %709 = vmatprep.mubr.bf16.mxu0 0
        %710 = vmatmul.mubr.bf16.gmra.mrb[0].mxu0 %v639
        %v711 = vpop.f32.mrb[0].mxu0
        %v712 = vadd.f32 0.0, %v711
        %v713 = vpop.f32.mrb[0].mxu0
        %v714 = vpop.f32.mrb[0].mxu0
        %v715 = vadd.f32 0.0, %v714
        %v716 = vpop.f32.mrb[0].mxu0
        %717 = vmatprep.mubr.bf16.mxu0 0
        %718 = vmatmul.mubr.bf16.gmra.mrb[0].mxu0 %v642
        %v719 = vpop.f32.mrb[0].mxu0
        %v720 = vadd.f32 0.0, %v719
        %v721 = vpop.f32.mrb[0].mxu0
        %v722 = vpop.f32.mrb[0].mxu0
        %v723 = vadd.f32 0.0, %v722
        %v724 = vpop.f32.mrb[0].mxu0
        %725 = vmatprep.mubr.bf16.mxu0 0
        %726 = vmatmul.mubr.bf16.gmra.mrb[0].mxu0 %v645
        %v727 = vpop.f32.mrb[0].mxu0
        %v728 = vadd.f32 0.0, %v727
        %v729 = vpop.f32.mrb[0].mxu0
        %v730 = vpop.f32.mrb[0].mxu0
        %v731 = vadd.f32 0.0, %v730
        %v732 = vpop.f32.mrb[0].mxu0
        %733 = vmatprep.mubr.bf16.mxu0 0
        %734 = vmatmul.mubr.bf16.gmra.mrb[0].mxu0 %v648
        %v735 = vpop.f32.mrb[0].mxu0
        %v736 = vadd.f32 0.0, %v735
        %v737 = vpop.f32.mrb[0].mxu0
        %v738 = vpop.f32.mrb[0].mxu0
        %v739 = vadd.f32 0.0, %v738
        %v740 = vpop.f32.mrb[0].mxu0
        %741 = vmatprep.mubr.bf16.mxu0 0
        %742 = vmatmul.mubr.bf16.gmra.mrb[0].mxu0 %v651
        %v743 = vpop.f32.mrb[0].mxu0
        %v744 = vadd.f32 0.0, %v743
        %v745 = vpop.f32.mrb[0].mxu0
        %v746 = vpop.f32.mrb[0].mxu0
        %v747 = vadd.f32 0.0, %v746
        %v748 = vpop.f32.mrb[0].mxu0
        %749 = vmatprep.mubr.bf16.mxu0 0
        %750 = vmatmul.mubr.bf16.gmra.mrb[0].mxu0 %v654
        %v751 = vpop.f32.mrb[0].mxu0
        %v752 = vadd.f32 0.0, %v751
        %v753 = vpop.f32.mrb[0].mxu0
        %v754 = vpop.f32.mrb[0].mxu0
        %v755 = vadd.f32 0.0, %v754
        %v756 = vpop.f32.mrb[0].mxu0
        %757 = vmatprep.mubr.bf16.mxu0 0
        %758 = vmatmul.mubr.bf16.gmra.mrb[0].mxu0 %v657
        %v759 = vpop.f32.mrb[0].mxu0
        %v760 = vadd.f32 0.0, %v759
        %v761 = vpop.f32.mrb[0].mxu0
        %v762 = vpop.f32.mrb[0].mxu0
        %v763 = vadd.f32 0.0, %v762
        %v764 = vpop.f32.mrb[0].mxu0
        %765 = vmatprep.mubr.bf16.mxu0 0
        %766 = vmatmul.mubr.bf16.gmra.mrb[0].mxu0 %v660
        %v767 = vpop.f32.mrb[0].mxu0
        %v768 = vadd.f32 0.0, %v767
        %v769 = vpop.f32.mrb[0].mxu0
        %v770 = vpop.f32.mrb[0].mxu0
        %v771 = vadd.f32 0.0, %v770
        %v772 = vpop.f32.mrb[0].mxu0
        %773 = vmatprep.mubr.bf16.mxu0 0
        %774 = vmatmul.mubr.bf16.gmra.mrb[0].mxu0 %v663
        %v775 = vpop.f32.mrb[0].mxu0
        %v776 = vadd.f32 0.0, %v775
        %v777 = vpop.f32.mrb[0].mxu0
        %v778 = vpop.f32.mrb[0].mxu0
        %v779 = vadd.f32 0.0, %v778
        %v780 = vpop.f32.mrb[0].mxu0
        %781 = vdwg.mxu0
        %v802 = vunpack.c.l.b16 %v322
        %v803 = vunpack.c.l.b16 %v323
        %v804 = vunpack.c.l.b16 %v325
        %v805 = vunpack.c.l.b16 %v326
        %v806 = vunpack.c.l.b16 %v328
        %v807 = vunpack.c.l.b16 %v329
        %v808 = vunpack.c.l.b16 %v331
        %v809 = vunpack.c.l.b16 %v332
        %v810 = vunpack.c.l.b16 %v334
        %v811 = vunpack.c.l.b16 %v335
        %v812 = vunpack.c.l.b16 %v337
        %v813 = vunpack.c.l.b16 %v338
        %v814 = vunpack.c.l.b16 %v340
        %v815 = vunpack.c.l.b16 %v341
        %v816 = vunpack.c.l.b16 %v343
        %v817 = vunpack.c.l.b16 %v344
        %v818 = vunpack.c.l.b16 %v346
        %v819 = vunpack.c.l.b16 %v347
        %v820 = vunpack.c.l.b16 %v349
        %v821 = vunpack.c.l.b16 %v350
        %v822 = vpack.c.b16 %v803, %v802
        %v823 = vpack.c.b16 %v805, %v804
        %v824 = vpack.c.b16 %v807, %v806
        %v825 = vpack.c.b16 %v809, %v808
        %v826 = vpack.c.b16 %v811, %v810
        %v827 = vpack.c.b16 %v813, %v812
        %v828 = vpack.c.b16 %v815, %v814
        %v829 = vpack.c.b16 %v817, %v816
        %v830 = vpack.c.b16 %v819, %v818
        %v831 = vpack.c.b16 %v821, %v820
        %v833 = vsel %vm634, %v822, 0
        %v836 = vsel %vm634, %v823, 0
        %v839 = vsel %vm634, %v824, 0
        %v842 = vsel %vm634, %v825, 0
        %v845 = vsel %vm634, %v826, 0
        %v848 = vsel %vm634, %v827, 0
        %v851 = vsel %vm634, %v828, 0
        %v854 = vsel %vm634, %v829, 0
        %v857 = vsel %vm634, %v830, 0
        %v860 = vsel %vm634, %v831, 0
        %v863 = vsel %vm665, %v358, 0
        %865 = vmatprep.subr.bf16.mxu0 0
        %866 = vmatpush1.bf16.msra.mxu0 %v863
        %867 = vmatprep.subr.bf16.mxu0 0
        %868 = vmatpush1.bf16.msra.mxu0 0
        %869 = vmatprep.subr.bf16.mxu0 0
        %870 = vmatpush1.bf16.msra.mxu0 0
        %871 = vmatprep.subr.bf16.mxu0 0
        %872 = vmatpush1.bf16.msra.mxu0 0
        %873 = vmatprep.subr.bf16.mxu0 0
        %874 = vmatpush1.bf16.msra.mxu0 0
        %875 = vmatprep.subr.bf16.mxu0 0
        %876 = vmatpush1.bf16.msra.mxu0 0
        %877 = vmatprep.subr.bf16.mxu0 0
        %878 = vmatpush1.bf16.msra.mxu0 0
        %879 = vmatprep.subr.bf16.mxu0 0
        %880 = vmatpush1.bf16.msra.mxu0 0
        %881 = vmatprep.subr.bf16.mxu0 0
        %882 = vmatpush1.bf16.msra.mxu0 0
        %883 = vmatprep.subr.bf16.mxu0 0
        %884 = vmatpush1.bf16.msra.mxu0 0
        %885 = vmatprep.subr.bf16.mxu0 0
        %886 = vmatpush1.bf16.msra.mxu0 0
        %887 = vmatprep.subr.bf16.mxu0 0
        %888 = vmatpush1.bf16.msra.mxu0 0
        %889 = vmatprep.subr.bf16.mxu0 0
        %890 = vmatpush1.bf16.msra.mxu0 0
        %891 = vmatprep.subr.bf16.mxu0 0
        %892 = vmatpush1.bf16.msra.mxu0 0
        %893 = vmatprep.subr.bf16.mxu0 0
        %894 = vmatpush1.bf16.msra.mxu0 0
        %895 = vmatprep.subr.bf16.mxu0 0
        %896 = vmatpush1.bf16.msra.mxu0 0
        %897 = vmatprep.mubr.bf16.mxu0 0
        %898 = vmatmul.mubr.bf16.gmra.mrb[0].mxu0 %v833
        %v899 = vpop.f32.mrb[0].mxu0
        %v900 = vadd.f32 %v704, %v899
        %v901 = vpop.f32.mrb[0].mxu0
        %v902 = vpop.f32.mrb[0].mxu0
        %v903 = vadd.f32 %v707, %v902
        %v904 = vpop.f32.mrb[0].mxu0
        %905 = vmatprep.mubr.bf16.mxu0 0
        %906 = vmatmul.mubr.bf16.gmra.mrb[0].mxu0 %v836
        %v907 = vpop.f32.mrb[0].mxu0
        %v908 = vadd.f32 %v712, %v907
        %v909 = vpop.f32.mrb[0].mxu0
        %v910 = vpop.f32.mrb[0].mxu0
        %v911 = vadd.f32 %v715, %v910
        %v912 = vpop.f32.mrb[0].mxu0
        %913 = vmatprep.mubr.bf16.mxu0 0
        %914 = vmatmul.mubr.bf16.gmra.mrb[0].mxu0 %v839
        %v915 = vpop.f32.mrb[0].mxu0
        %v916 = vadd.f32 %v720, %v915
        %v917 = vpop.f32.mrb[0].mxu0
        %v918 = vpop.f32.mrb[0].mxu0
        %v919 = vadd.f32 %v723, %v918
        %v920 = vpop.f32.mrb[0].mxu0
        %921 = vmatprep.mubr.bf16.mxu0 0
        %922 = vmatmul.mubr.bf16.gmra.mrb[0].mxu0 %v842
        %v923 = vpop.f32.mrb[0].mxu0
        %v924 = vadd.f32 %v728, %v923
        %v925 = vpop.f32.mrb[0].mxu0
        %v926 = vpop.f32.mrb[0].mxu0
        %v927 = vadd.f32 %v731, %v926
        %v928 = vpop.f32.mrb[0].mxu0
        %929 = vmatprep.mubr.bf16.mxu0 0
        %930 = vmatmul.mubr.bf16.gmra.mrb[0].mxu0 %v845
        %v931 = vpop.f32.mrb[0].mxu0
        %v932 = vadd.f32 %v736, %v931
        %v933 = vpop.f32.mrb[0].mxu0
        %v934 = vpop.f32.mrb[0].mxu0
        %v935 = vadd.f32 %v739, %v934
        %v936 = vpop.f32.mrb[0].mxu0
        %937 = vmatprep.mubr.bf16.mxu0 0
        %938 = vmatmul.mubr.bf16.gmra.mrb[0].mxu0 %v848
        %v939 = vpop.f32.mrb[0].mxu0
        %v940 = vadd.f32 %v744, %v939
        %v941 = vpop.f32.mrb[0].mxu0
        %v942 = vpop.f32.mrb[0].mxu0
        %v943 = vadd.f32 %v747, %v942
        %v944 = vpop.f32.mrb[0].mxu0
        %945 = vmatprep.mubr.bf16.mxu0 0
        %946 = vmatmul.mubr.bf16.gmra.mrb[0].mxu0 %v851
        %v947 = vpop.f32.mrb[0].mxu0
        %v948 = vadd.f32 %v752, %v947
        %v949 = vpop.f32.mrb[0].mxu0
        %v950 = vpop.f32.mrb[0].mxu0
        %v951 = vadd.f32 %v755, %v950
        %v952 = vpop.f32.mrb[0].mxu0
        %953 = vmatprep.mubr.bf16.mxu0 0
        %954 = vmatmul.mubr.bf16.gmra.mrb[0].mxu0 %v854
        %v955 = vpop.f32.mrb[0].mxu0
        %v956 = vadd.f32 %v760, %v955
        %v957 = vpop.f32.mrb[0].mxu0
        %v958 = vpop.f32.mrb[0].mxu0
        %v959 = vadd.f32 %v763, %v958
        %v960 = vpop.f32.mrb[0].mxu0
        %961 = vmatprep.mubr.bf16.mxu0 0
        %962 = vmatmul.mubr.bf16.gmra.mrb[0].mxu0 %v857
        %v963 = vpop.f32.mrb[0].mxu0
        %v964 = vadd.f32 %v768, %v963
        %v965 = vpop.f32.mrb[0].mxu0
        %v966 = vpop.f32.mrb[0].mxu0
        %v967 = vadd.f32 %v771, %v966
        %v968 = vpop.f32.mrb[0].mxu0
        %969 = vmatprep.mubr.bf16.mxu0 0
        %970 = vmatmul.mubr.bf16.gmra.mrb[0].mxu0 %v860
        %v971 = vpop.f32.mrb[0].mxu0
        %v972 = vadd.f32 %v776, %v971
        %v973 = vpop.f32.mrb[0].mxu0
        %v974 = vpop.f32.mrb[0].mxu0
        %v975 = vadd.f32 %v779, %v974
        %v976 = vpop.f32.mrb[0].mxu0
        %977 = vdwg.mxu0
        %vm988 = vcmask 1042432
        %vm989 = vcmask 1046532
        %vm990 = vmor %vm988, %vm989
        %v991 = vrot.slane %v322, 5
        %v992 = vrot.slane %v991, 4
        %v993 = vrot.slane %v323, 5
        %v994 = vsel %vm990, %v992, %v993
        %v995 = vrot.slane %v993, 4
        %v996 = vrot.slane %v324, 5
        %v997 = vsel %vm990, %v995, %v996
        %v998 = vrot.slane %v325, 5
        %v999 = vrot.slane %v998, 4
        %v1000 = vrot.slane %v326, 5
        %v1001 = vsel %vm990, %v999, %v1000
        %v1002 = vrot.slane %v1000, 4
        %v1003 = vrot.slane %v327, 5
        %v1004 = vsel %vm990, %v1002, %v1003
        %v1005 = vrot.slane %v328, 5
        %v1006 = vrot.slane %v1005, 4
        %v1007 = vrot.slane %v329, 5
        %v1008 = vsel %vm990, %v1006, %v1007
        %v1009 = vrot.slane %v1007, 4
        %v1010 = vrot.slane %v330, 5
        %v1011 = vsel %vm990, %v1009, %v1010
        %v1012 = vrot.slane %v331, 5
        %v1013 = vrot.slane %v1012, 4
        %v1014 = vrot.slane %v332, 5
        %v1015 = vsel %vm990, %v1013, %v1014
        %v1016 = vrot.slane %v1014, 4
        %v1017 = vrot.slane %v333, 5
        %v1018 = vsel %vm990, %v1016, %v1017
        %v1019 = vrot.slane %v334, 5
        %v1020 = vrot.slane %v1019, 4
        %v1021 = vrot.slane %v335, 5
        %v1022 = vsel %vm990, %v1020, %v1021
        %v1023 = vrot.slane %v1021, 4
        %v1024 = vrot.slane %v336, 5
        %v1025 = vsel %vm990, %v1023, %v1024
        %v1026 = vrot.slane %v337, 5
        %v1027 = vrot.slane %v1026, 4
        %v1028 = vrot.slane %v338, 5
        %v1029 = vsel %vm990, %v1027, %v1028
        %v1030 = vrot.slane %v1028, 4
        %v1031 = vrot.slane %v339, 5
        %v1032 = vsel %vm990, %v1030, %v1031
        %v1033 = vrot.slane %v340, 5
        %v1034 = vrot.slane %v1033, 4
        %v1035 = vrot.slane %v341, 5
        %v1036 = vsel %vm990, %v1034, %v1035
        %v1037 = vrot.slane %v1035, 4
        %v1038 = vrot.slane %v342, 5
        %v1039 = vsel %vm990, %v1037, %v1038
        %v1040 = vrot.slane %v343, 5
        %v1041 = vrot.slane %v1040, 4
        %v1042 = vrot.slane %v344, 5
        %v1043 = vsel %vm990, %v1041, %v1042
        %v1044 = vrot.slane %v1042, 4
        %v1045 = vrot.slane %v345, 5
        %v1046 = vsel %vm990, %v1044, %v1045
        %v1047 = vrot.slane %v346, 5
        %v1048 = vrot.slane %v1047, 4
        %v1049 = vrot.slane %v347, 5
        %v1050 = vsel %vm990, %v1048, %v1049
        %v1051 = vrot.slane %v1049, 4
        %v1052 = vrot.slane %v348, 5
        %v1053 = vsel %vm990, %v1051, %v1052
        %v1054 = vrot.slane %v349, 5
        %v1055 = vrot.slane %v1054, 4
        %v1056 = vrot.slane %v350, 5
        %v1057 = vsel %vm990, %v1055, %v1056
        %v1058 = vrot.slane %v1056, 4
        %v1059 = vrot.slane %v351, 5
        %v1060 = vsel %vm990, %v1058, %v1059
        %s1061 = scalar_lea.vmem %s1, 4
        %v1062 = vld [vmem:[%s1061] sm:$0x3]
        %v1063 = vunpack.c.l.b16 %v994
        %v1064 = vunpack.c.l.b16 %v997
        %v1065 = vunpack.c.l.b16 %v1001
        %v1066 = vunpack.c.l.b16 %v1004
        %v1067 = vunpack.c.l.b16 %v1008
        %v1068 = vunpack.c.l.b16 %v1011
        %v1069 = vunpack.c.l.b16 %v1015
        %v1070 = vunpack.c.l.b16 %v1018
        %v1071 = vunpack.c.l.b16 %v1022
        %v1072 = vunpack.c.l.b16 %v1025
        %v1073 = vunpack.c.l.b16 %v1029
        %v1074 = vunpack.c.l.b16 %v1032
        %v1075 = vunpack.c.l.b16 %v1036
        %v1076 = vunpack.c.l.b16 %v1039
        %v1077 = vunpack.c.l.b16 %v1043
        %v1078 = vunpack.c.l.b16 %v1046
        %v1079 = vunpack.c.l.b16 %v1050
        %v1080 = vunpack.c.l.b16 %v1053
        %v1081 = vunpack.c.l.b16 %v1057
        %v1082 = vunpack.c.l.b16 %v1060
        %v1083 = vpack.c.b16 %v1064, %v1063
        %v1084 = vpack.c.b16 %v1066, %v1065
        %v1085 = vpack.c.b16 %v1068, %v1067
        %v1086 = vpack.c.b16 %v1070, %v1069
        %v1087 = vpack.c.b16 %v1072, %v1071
        %v1088 = vpack.c.b16 %v1074, %v1073
        %v1089 = vpack.c.b16 %v1076, %v1075
        %v1090 = vpack.c.b16 %v1078, %v1077
        %v1091 = vpack.c.b16 %v1080, %v1079
        %v1092 = vpack.c.b16 %v1082, %v1081
        %v1094 = vsel %vm634, %v1083, 0
        %v1097 = vsel %vm634, %v1084, 0
        %v1100 = vsel %vm634, %v1085, 0
        %v1103 = vsel %vm634, %v1086, 0
        %v1106 = vsel %vm634, %v1087, 0
        %v1109 = vsel %vm634, %v1088, 0
        %v1112 = vsel %vm634, %v1089, 0
        %v1115 = vsel %vm634, %v1090, 0
        %v1118 = vsel %vm634, %v1091, 0
        %v1121 = vsel %vm634, %v1092, 0
        %v1124 = vsel %vm665, %v1062, 0
        %1126 = vmatprep.subr.bf16.mxu0 0
        %1127 = vmatpush1.bf16.msra.mxu0 %v1124
        %1128 = vmatprep.subr.bf16.mxu0 0
        %1129 = vmatpush1.bf16.msra.mxu0 0
        %1130 = vmatprep.subr.bf16.mxu0 0
        %1131 = vmatpush1.bf16.msra.mxu0 0
        %1132 = vmatprep.subr.bf16.mxu0 0
        %1133 = vmatpush1.bf16.msra.mxu0 0
        %1134 = vmatprep.subr.bf16.mxu0 0
        %1135 = vmatpush1.bf16.msra.mxu0 0
        %1136 = vmatprep.subr.bf16.mxu0 0
        %1137 = vmatpush1.bf16.msra.mxu0 0
        %1138 = vmatprep.subr.bf16.mxu0 0
        %1139 = vmatpush1.bf16.msra.mxu0 0
        %1140 = vmatprep.subr.bf16.mxu0 0
        %1141 = vmatpush1.bf16.msra.mxu0 0
        %1142 = vmatprep.subr.bf16.mxu0 0
        %1143 = vmatpush1.bf16.msra.mxu0 0
        %1144 = vmatprep.subr.bf16.mxu0 0
        %1145 = vmatpush1.bf16.msra.mxu0 0
        %1146 = vmatprep.subr.bf16.mxu0 0
        %1147 = vmatpush1.bf16.msra.mxu0 0
        %1148 = vmatprep.subr.bf16.mxu0 0
        %1149 = vmatpush1.bf16.msra.mxu0 0
        %1150 = vmatprep.subr.bf16.mxu0 0
        %1151 = vmatpush1.bf16.msra.mxu0 0
        %1152 = vmatprep.subr.bf16.mxu0 0
        %1153 = vmatpush1.bf16.msra.mxu0 0
        %1154 = vmatprep.subr.bf16.mxu0 0
        %1155 = vmatpush1.bf16.msra.mxu0 0
        %1156 = vmatprep.subr.bf16.mxu0 0
        %1157 = vmatpush1.bf16.msra.mxu0 0
        %1158 = vmatprep.mubr.bf16.mxu0 0
        %1159 = vmatmul.mubr.bf16.gmra.mrb[0].mxu0 %v1094
        %v1160 = vpop.f32.mrb[0].mxu0
        %v1161 = vadd.f32 0.0, %v1160
        %v1162 = vpop.f32.mrb[0].mxu0
        %v1163 = vpop.f32.mrb[0].mxu0
        %v1164 = vadd.f32 0.0, %v1163
        %v1165 = vpop.f32.mrb[0].mxu0
        %1166 = vmatprep.mubr.bf16.mxu0 0
        %1167 = vmatmul.mubr.bf16.gmra.mrb[0].mxu0 %v1097
        %v1168 = vpop.f32.mrb[0].mxu0
        %v1169 = vadd.f32 0.0, %v1168
        %v1170 = vpop.f32.mrb[0].mxu0
        %v1171 = vpop.f32.mrb[0].mxu0
        %v1172 = vadd.f32 0.0, %v1171
        %v1173 = vpop.f32.mrb[0].mxu0
        %1174 = vmatprep.mubr.bf16.mxu0 0
        %1175 = vmatmul.mubr.bf16.gmra.mrb[0].mxu0 %v1100
        %v1176 = vpop.f32.mrb[0].mxu0
        %v1177 = vadd.f32 0.0, %v1176
        %v1178 = vpop.f32.mrb[0].mxu0
        %v1179 = vpop.f32.mrb[0].mxu0
        %v1180 = vadd.f32 0.0, %v1179
        %v1181 = vpop.f32.mrb[0].mxu0
        %1182 = vmatprep.mubr.bf16.mxu0 0
        %1183 = vmatmul.mubr.bf16.gmra.mrb[0].mxu0 %v1103
        %v1184 = vpop.f32.mrb[0].mxu0
        %v1185 = vadd.f32 0.0, %v1184
        %v1186 = vpop.f32.mrb[0].mxu0
        %v1187 = vpop.f32.mrb[0].mxu0
        %v1188 = vadd.f32 0.0, %v1187
        %v1189 = vpop.f32.mrb[0].mxu0
        %1190 = vmatprep.mubr.bf16.mxu0 0
        %1191 = vmatmul.mubr.bf16.gmra.mrb[0].mxu0 %v1106
        %v1192 = vpop.f32.mrb[0].mxu0
        %v1193 = vadd.f32 0.0, %v1192
        %v1194 = vpop.f32.mrb[0].mxu0
        %v1195 = vpop.f32.mrb[0].mxu0
        %v1196 = vadd.f32 0.0, %v1195
        %v1197 = vpop.f32.mrb[0].mxu0
        %1198 = vmatprep.mubr.bf16.mxu0 0
        %1199 = vmatmul.mubr.bf16.gmra.mrb[0].mxu0 %v1109
        %v1200 = vpop.f32.mrb[0].mxu0
        %v1201 = vadd.f32 0.0, %v1200
        %v1202 = vpop.f32.mrb[0].mxu0
        %v1203 = vpop.f32.mrb[0].mxu0
        %v1204 = vadd.f32 0.0, %v1203
        %v1205 = vpop.f32.mrb[0].mxu0
        %1206 = vmatprep.mubr.bf16.mxu0 0
        %1207 = vmatmul.mubr.bf16.gmra.mrb[0].mxu0 %v1112
        %v1208 = vpop.f32.mrb[0].mxu0
        %v1209 = vadd.f32 0.0, %v1208
        %v1210 = vpop.f32.mrb[0].mxu0
        %v1211 = vpop.f32.mrb[0].mxu0
        %v1212 = vadd.f32 0.0, %v1211
        %v1213 = vpop.f32.mrb[0].mxu0
        %1214 = vmatprep.mubr.bf16.mxu0 0
        %1215 = vmatmul.mubr.bf16.gmra.mrb[0].mxu0 %v1115
        %v1216 = vpop.f32.mrb[0].mxu0
        %v1217 = vadd.f32 0.0, %v1216
        %v1218 = vpop.f32.mrb[0].mxu0
        %v1219 = vpop.f32.mrb[0].mxu0
        %v1220 = vadd.f32 0.0, %v1219
        %v1221 = vpop.f32.mrb[0].mxu0
        %1222 = vmatprep.mubr.bf16.mxu0 0
        %1223 = vmatmul.mubr.bf16.gmra.mrb[0].mxu0 %v1118
        %v1224 = vpop.f32.mrb[0].mxu0
        %v1225 = vadd.f32 0.0, %v1224
        %v1226 = vpop.f32.mrb[0].mxu0
        %v1227 = vpop.f32.mrb[0].mxu0
        %v1228 = vadd.f32 0.0, %v1227
        %v1229 = vpop.f32.mrb[0].mxu0
        %1230 = vmatprep.mubr.bf16.mxu0 0
        %1231 = vmatmul.mubr.bf16.gmra.mrb[0].mxu0 %v1121
        %v1232 = vpop.f32.mrb[0].mxu0
        %v1233 = vadd.f32 0.0, %v1232
        %v1234 = vpop.f32.mrb[0].mxu0
        %v1235 = vpop.f32.mrb[0].mxu0
        %v1236 = vadd.f32 0.0, %v1235
        %v1237 = vpop.f32.mrb[0].mxu0
        %1238 = vdwg.mxu0
        %v1239 = vadd.f32 %v900, %v1161
        %v1240 = vadd.f32 %v903, %v1164
        %v1241 = vadd.f32 %v908, %v1169
        %v1242 = vadd.f32 %v911, %v1172
        %v1243 = vadd.f32 %v916, %v1177
        %v1244 = vadd.f32 %v919, %v1180
        %v1245 = vadd.f32 %v924, %v1185
        %v1246 = vadd.f32 %v927, %v1188
        %v1247 = vadd.f32 %v932, %v1193
        %v1248 = vadd.f32 %v935, %v1196
        %v1249 = vadd.f32 %v940, %v1201
        %v1250 = vadd.f32 %v943, %v1204
        %v1251 = vadd.f32 %v948, %v1209
        %v1252 = vadd.f32 %v951, %v1212
        %v1253 = vadd.f32 %v956, %v1217
        %v1254 = vadd.f32 %v959, %v1220
        %v1255 = vadd.f32 %v964, %v1225
        %v1256 = vadd.f32 %v967, %v1228
        %v1257 = vadd.f32 %v972, %v1233
        %v1258 = vadd.f32 %v975, %v1236
        %s1259 = scalar_lea.vmem %s1, 6
        %v1260 = vld [vmem:[%s1259] sm:$0x3]
        %v1263 = vunpack.c.l.b16 %v352
        %v1264 = vunpack.c.l.b16 %v353
        %v1265 = vpack.c.b16 %v1264, %v1263
        %v1267 = vsel %vm634, %v1265, 0
        %v1270 = vsel %vm665, %v1260, 0
        %1272 = vmatprep.subr.bf16.mxu0 0
        %1273 = vmatpush1.bf16.msra.mxu0 %v1270
        %1274 = vmatprep.subr.bf16.mxu0 0
        %1275 = vmatpush1.bf16.msra.mxu0 0
        %1276 = vmatprep.subr.bf16.mxu0 0
        %1277 = vmatpush1.bf16.msra.mxu0 0
        %1278 = vmatprep.subr.bf16.mxu0 0
        %1279 = vmatpush1.bf16.msra.mxu0 0
        %1280 = vmatprep.subr.bf16.mxu0 0
        %1281 = vmatpush1.bf16.msra.mxu0 0
        %1282 = vmatprep.subr.bf16.mxu0 0
        %1283 = vmatpush1.bf16.msra.mxu0 0
        %1284 = vmatprep.subr.bf16.mxu0 0
        %1285 = vmatpush1.bf16.msra.mxu0 0
        %1286 = vmatprep.subr.bf16.mxu0 0
        %1287 = vmatpush1.bf16.msra.mxu0 0
        %1288 = vmatprep.subr.bf16.mxu0 0
        %1289 = vmatpush1.bf16.msra.mxu0 0
        %1290 = vmatprep.subr.bf16.mxu0 0
        %1291 = vmatpush1.bf16.msra.mxu0 0
        %1292 = vmatprep.subr.bf16.mxu0 0
        %1293 = vmatpush1.bf16.msra.mxu0 0
        %1294 = vmatprep.subr.bf16.mxu0 0
        %1295 = vmatpush1.bf16.msra.mxu0 0
        %1296 = vmatprep.subr.bf16.mxu0 0
        %1297 = vmatpush1.bf16.msra.mxu0 0
        %1298 = vmatprep.subr.bf16.mxu0 0
        %1299 = vmatpush1.bf16.msra.mxu0 0
        %1300 = vmatprep.subr.bf16.mxu0 0
        %1301 = vmatpush1.bf16.msra.mxu0 0
        %1302 = vmatprep.subr.bf16.mxu0 0
        %1303 = vmatpush1.bf16.msra.mxu0 0
        %1304 = vmatprep.mubr.bf16.mxu0 0
        %1305 = vmatmul.mubr.bf16.gmra.mrb[0].mxu0 %v836
        %v1306 = vpop.f32.mrb[0].mxu0
        %v1307 = vadd.f32 0.0, %v1306
        %v1308 = vpop.f32.mrb[0].mxu0
        %v1309 = vpop.f32.mrb[0].mxu0
        %v1310 = vadd.f32 0.0, %v1309
        %v1311 = vpop.f32.mrb[0].mxu0
        %1312 = vmatprep.mubr.bf16.mxu0 0
        %1313 = vmatmul.mubr.bf16.gmra.mrb[0].mxu0 %v839
        %v1314 = vpop.f32.mrb[0].mxu0
        %v1315 = vadd.f32 0.0, %v1314
        %v1316 = vpop.f32.mrb[0].mxu0
        %v1317 = vpop.f32.mrb[0].mxu0
        %v1318 = vadd.f32 0.0, %v1317
        %v1319 = vpop.f32.mrb[0].mxu0
        %1320 = vmatprep.mubr.bf16.mxu0 0
        %1321 = vmatmul.mubr.bf16.gmra.mrb[0].mxu0 %v842
        %v1322 = vpop.f32.mrb[0].mxu0
        %v1323 = vadd.f32 0.0, %v1322
        %v1324 = vpop.f32.mrb[0].mxu0
        %v1325 = vpop.f32.mrb[0].mxu0
        %v1326 = vadd.f32 0.0, %v1325
        %v1327 = vpop.f32.mrb[0].mxu0
        %1328 = vmatprep.mubr.bf16.mxu0 0
        %1329 = vmatmul.mubr.bf16.gmra.mrb[0].mxu0 %v845
        %v1330 = vpop.f32.mrb[0].mxu0
        %v1331 = vadd.f32 0.0, %v1330
        %v1332 = vpop.f32.mrb[0].mxu0
        %v1333 = vpop.f32.mrb[0].mxu0
        %v1334 = vadd.f32 0.0, %v1333
        %v1335 = vpop.f32.mrb[0].mxu0
        %1336 = vmatprep.mubr.bf16.mxu0 0
        %1337 = vmatmul.mubr.bf16.gmra.mrb[0].mxu0 %v848
        %v1338 = vpop.f32.mrb[0].mxu0
        %v1339 = vadd.f32 0.0, %v1338
        %v1340 = vpop.f32.mrb[0].mxu0
        %v1341 = vpop.f32.mrb[0].mxu0
        %v1342 = vadd.f32 0.0, %v1341
        %v1343 = vpop.f32.mrb[0].mxu0
        %1344 = vmatprep.mubr.bf16.mxu0 0
        %1345 = vmatmul.mubr.bf16.gmra.mrb[0].mxu0 %v851
        %v1346 = vpop.f32.mrb[0].mxu0
        %v1347 = vadd.f32 0.0, %v1346
        %v1348 = vpop.f32.mrb[0].mxu0
        %v1349 = vpop.f32.mrb[0].mxu0
        %v1350 = vadd.f32 0.0, %v1349
        %v1351 = vpop.f32.mrb[0].mxu0
        %1352 = vmatprep.mubr.bf16.mxu0 0
        %1353 = vmatmul.mubr.bf16.gmra.mrb[0].mxu0 %v854
        %v1354 = vpop.f32.mrb[0].mxu0
        %v1355 = vadd.f32 0.0, %v1354
        %v1356 = vpop.f32.mrb[0].mxu0
        %v1357 = vpop.f32.mrb[0].mxu0
        %v1358 = vadd.f32 0.0, %v1357
        %v1359 = vpop.f32.mrb[0].mxu0
        %1360 = vmatprep.mubr.bf16.mxu0 0
        %1361 = vmatmul.mubr.bf16.gmra.mrb[0].mxu0 %v857
        %v1362 = vpop.f32.mrb[0].mxu0
        %v1363 = vadd.f32 0.0, %v1362
        %v1364 = vpop.f32.mrb[0].mxu0
        %v1365 = vpop.f32.mrb[0].mxu0
        %v1366 = vadd.f32 0.0, %v1365
        %v1367 = vpop.f32.mrb[0].mxu0
        %1368 = vmatprep.mubr.bf16.mxu0 0
        %1369 = vmatmul.mubr.bf16.gmra.mrb[0].mxu0 %v860
        %v1370 = vpop.f32.mrb[0].mxu0
        %v1371 = vadd.f32 0.0, %v1370
        %v1372 = vpop.f32.mrb[0].mxu0
        %v1373 = vpop.f32.mrb[0].mxu0
        %v1374 = vadd.f32 0.0, %v1373
        %v1375 = vpop.f32.mrb[0].mxu0
        %1376 = vmatprep.mubr.bf16.mxu0 0
        %1377 = vmatmul.mubr.bf16.gmra.mrb[0].mxu0 %v1267
        %v1378 = vpop.f32.mrb[0].mxu0
        %v1379 = vadd.f32 0.0, %v1378
        %v1380 = vpop.f32.mrb[0].mxu0
        %v1381 = vpop.f32.mrb[0].mxu0
        %v1382 = vadd.f32 0.0, %v1381
        %v1383 = vpop.f32.mrb[0].mxu0
        %1384 = vdwg.mxu0
        %v1385 = vadd.f32 %v1239, %v1307
        %v1386 = vadd.f32 %v1240, %v1310
        %v1387 = vadd.f32 %v1241, %v1315
        %v1388 = vadd.f32 %v1242, %v1318
        %v1389 = vadd.f32 %v1243, %v1323
        %v1390 = vadd.f32 %v1244, %v1326
        %v1391 = vadd.f32 %v1245, %v1331
        %v1392 = vadd.f32 %v1246, %v1334
        %v1393 = vadd.f32 %v1247, %v1339
        %v1394 = vadd.f32 %v1248, %v1342
        %v1395 = vadd.f32 %v1249, %v1347
        %v1396 = vadd.f32 %v1250, %v1350
        %v1397 = vadd.f32 %v1251, %v1355
        %v1398 = vadd.f32 %v1252, %v1358
        %v1399 = vadd.f32 %v1253, %v1363
        %v1400 = vadd.f32 %v1254, %v1366
        %v1401 = vadd.f32 %v1255, %v1371
        %v1402 = vadd.f32 %v1256, %v1374
        %v1403 = vadd.f32 %v1257, %v1379
        %v1404 = vadd.f32 %v1258, %v1382
        %v1406 = vshrl.u32 %v352, 16
        %v1408 = vrot.slane %v1406, 4
        %v1409 = vshll.u32 %v352, 16
        %v1411 = vrot.slane %v1409, 5
        %v1412 = vor.u32 %v1408, %v1411
        %v1413 = vrot.slane %v1412, 4
        %v1415 = vshll.u32 %v353, 16
        %v1417 = vrot.slane %v1415, 5
        %v1418 = vsel %vm361, %v1413, %v1417
        %v1419 = vshrl.u32 %v353, 16
        %v1421 = vrot.slane %v1419, 4
        %v1422 = vor.u32 %v1421, %v1417
        %v1423 = vrot.slane %v1422, 4
        %v1425 = vshll.u32 %v354, 16
        %v1427 = vrot.slane %v1425, 5
        %v1428 = vsel %vm361, %v1423, %v1427
        %s1429 = scalar_lea.vmem %s1, 8
        %v1430 = vld [vmem:[%s1429] sm:$0x3]
        %v1431 = vunpack.c.l.b16 %v1418
        %v1432 = vunpack.c.l.b16 %v1428
        %v1433 = vpack.c.b16 %v1432, %v1431
        %v1435 = vsel %vm634, %v1433, 0
        %v1438 = vsel %vm665, %v1430, 0
        %1440 = vmatprep.subr.bf16.mxu0 0
        %1441 = vmatpush1.bf16.msra.mxu0 %v1438
        %1442 = vmatprep.subr.bf16.mxu0 0
        %1443 = vmatpush1.bf16.msra.mxu0 0
        %1444 = vmatprep.subr.bf16.mxu0 0
        %1445 = vmatpush1.bf16.msra.mxu0 0
        %1446 = vmatprep.subr.bf16.mxu0 0
        %1447 = vmatpush1.bf16.msra.mxu0 0
        %1448 = vmatprep.subr.bf16.mxu0 0
        %1449 = vmatpush1.bf16.msra.mxu0 0
        %1450 = vmatprep.subr.bf16.mxu0 0
        %1451 = vmatpush1.bf16.msra.mxu0 0
        %1452 = vmatprep.subr.bf16.mxu0 0
        %1453 = vmatpush1.bf16.msra.mxu0 0
        %1454 = vmatprep.subr.bf16.mxu0 0
        %1455 = vmatpush1.bf16.msra.mxu0 0
        %1456 = vmatprep.subr.bf16.mxu0 0
        %1457 = vmatpush1.bf16.msra.mxu0 0
        %1458 = vmatprep.subr.bf16.mxu0 0
        %1459 = vmatpush1.bf16.msra.mxu0 0
        %1460 = vmatprep.subr.bf16.mxu0 0
        %1461 = vmatpush1.bf16.msra.mxu0 0
        %1462 = vmatprep.subr.bf16.mxu0 0
        %1463 = vmatpush1.bf16.msra.mxu0 0
        %1464 = vmatprep.subr.bf16.mxu0 0
        %1465 = vmatpush1.bf16.msra.mxu0 0
        %1466 = vmatprep.subr.bf16.mxu0 0
        %1467 = vmatpush1.bf16.msra.mxu0 0
        %1468 = vmatprep.subr.bf16.mxu0 0
        %1469 = vmatpush1.bf16.msra.mxu0 0
        %1470 = vmatprep.subr.bf16.mxu0 0
        %1471 = vmatpush1.bf16.msra.mxu0 0
        %1472 = vmatprep.mubr.bf16.mxu0 0
        %1473 = vmatmul.mubr.bf16.gmra.mrb[0].mxu0 %v639
        %v1474 = vpop.f32.mrb[0].mxu0
        %v1475 = vadd.f32 0.0, %v1474
        %v1476 = vpop.f32.mrb[0].mxu0
        %v1477 = vpop.f32.mrb[0].mxu0
        %v1478 = vadd.f32 0.0, %v1477
        %v1479 = vpop.f32.mrb[0].mxu0
        %1480 = vmatprep.mubr.bf16.mxu0 0
        %1481 = vmatmul.mubr.bf16.gmra.mrb[0].mxu0 %v642
        %v1482 = vpop.f32.mrb[0].mxu0
        %v1483 = vadd.f32 0.0, %v1482
        %v1484 = vpop.f32.mrb[0].mxu0
        %v1485 = vpop.f32.mrb[0].mxu0
        %v1486 = vadd.f32 0.0, %v1485
        %v1487 = vpop.f32.mrb[0].mxu0
        %1488 = vmatprep.mubr.bf16.mxu0 0
        %1489 = vmatmul.mubr.bf16.gmra.mrb[0].mxu0 %v645
        %v1490 = vpop.f32.mrb[0].mxu0
        %v1491 = vadd.f32 0.0, %v1490
        %v1492 = vpop.f32.mrb[0].mxu0
        %v1493 = vpop.f32.mrb[0].mxu0
        %v1494 = vadd.f32 0.0, %v1493
        %v1495 = vpop.f32.mrb[0].mxu0
        %1496 = vmatprep.mubr.bf16.mxu0 0
        %1497 = vmatmul.mubr.bf16.gmra.mrb[0].mxu0 %v648
        %v1498 = vpop.f32.mrb[0].mxu0
        %v1499 = vadd.f32 0.0, %v1498
        %v1500 = vpop.f32.mrb[0].mxu0
        %v1501 = vpop.f32.mrb[0].mxu0
        %v1502 = vadd.f32 0.0, %v1501
        %v1503 = vpop.f32.mrb[0].mxu0
        %1504 = vmatprep.mubr.bf16.mxu0 0
        %1505 = vmatmul.mubr.bf16.gmra.mrb[0].mxu0 %v651
        %v1506 = vpop.f32.mrb[0].mxu0
        %v1507 = vadd.f32 0.0, %v1506
        %v1508 = vpop.f32.mrb[0].mxu0
        %v1509 = vpop.f32.mrb[0].mxu0
        %v1510 = vadd.f32 0.0, %v1509
        %v1511 = vpop.f32.mrb[0].mxu0
        %1512 = vmatprep.mubr.bf16.mxu0 0
        %1513 = vmatmul.mubr.bf16.gmra.mrb[0].mxu0 %v654
        %v1514 = vpop.f32.mrb[0].mxu0
        %v1515 = vadd.f32 0.0, %v1514
        %v1516 = vpop.f32.mrb[0].mxu0
        %v1517 = vpop.f32.mrb[0].mxu0
        %v1518 = vadd.f32 0.0, %v1517
        %v1519 = vpop.f32.mrb[0].mxu0
        %1520 = vmatprep.mubr.bf16.mxu0 0
        %1521 = vmatmul.mubr.bf16.gmra.mrb[0].mxu0 %v657
        %v1522 = vpop.f32.mrb[0].mxu0
        %v1523 = vadd.f32 0.0, %v1522
        %v1524 = vpop.f32.mrb[0].mxu0
        %v1525 = vpop.f32.mrb[0].mxu0
        %v1526 = vadd.f32 0.0, %v1525
        %v1527 = vpop.f32.mrb[0].mxu0
        %1528 = vmatprep.mubr.bf16.mxu0 0
        %1529 = vmatmul.mubr.bf16.gmra.mrb[0].mxu0 %v660
        %v1530 = vpop.f32.mrb[0].mxu0
        %v1531 = vadd.f32 0.0, %v1530
        %v1532 = vpop.f32.mrb[0].mxu0
        %v1533 = vpop.f32.mrb[0].mxu0
        %v1534 = vadd.f32 0.0, %v1533
        %v1535 = vpop.f32.mrb[0].mxu0
        %1536 = vmatprep.mubr.bf16.mxu0 0
        %1537 = vmatmul.mubr.bf16.gmra.mrb[0].mxu0 %v663
        %v1538 = vpop.f32.mrb[0].mxu0
        %v1539 = vadd.f32 0.0, %v1538
        %v1540 = vpop.f32.mrb[0].mxu0
        %v1541 = vpop.f32.mrb[0].mxu0
        %v1542 = vadd.f32 0.0, %v1541
        %v1543 = vpop.f32.mrb[0].mxu0
        %1544 = vmatprep.mubr.bf16.mxu0 0
        %1545 = vmatmul.mubr.bf16.gmra.mrb[0].mxu0 %v1435
        %v1546 = vpop.f32.mrb[0].mxu0
        %v1547 = vadd.f32 0.0, %v1546
        %v1548 = vpop.f32.mrb[0].mxu0
        %v1549 = vpop.f32.mrb[0].mxu0
        %v1550 = vadd.f32 0.0, %v1549
        %v1551 = vpop.f32.mrb[0].mxu0
        %1552 = vdwg.mxu0
        %v1553 = vadd.f32 %v1385, %v1475
        %v1554 = vadd.f32 %v1386, %v1478
        %v1555 = vadd.f32 %v1387, %v1483
        %v1556 = vadd.f32 %v1388, %v1486
        %v1557 = vadd.f32 %v1389, %v1491
        %v1558 = vadd.f32 %v1390, %v1494
        %v1559 = vadd.f32 %v1391, %v1499
        %v1560 = vadd.f32 %v1392, %v1502
        %v1561 = vadd.f32 %v1393, %v1507
        %v1562 = vadd.f32 %v1394, %v1510
        %v1563 = vadd.f32 %v1395, %v1515
        %v1564 = vadd.f32 %v1396, %v1518
        %v1565 = vadd.f32 %v1397, %v1523
        %v1566 = vadd.f32 %v1398, %v1526
        %v1567 = vadd.f32 %v1399, %v1531
        %v1568 = vadd.f32 %v1400, %v1534
        %v1569 = vadd.f32 %v1401, %v1539
        %v1570 = vadd.f32 %v1402, %v1542
        %v1571 = vadd.f32 %v1403, %v1547
        %v1572 = vadd.f32 %v1404, %v1550
        %v1574 = vrot.slane %v352, 5
        %v1575 = vrot.slane %v1574, 4
        %v1576 = vrot.slane %v353, 5
        %v1577 = vsel %vm990, %v1575, %v1576
        %v1578 = vrot.slane %v1576, 4
        %v1579 = vrot.slane %v354, 5
        %v1580 = vsel %vm990, %v1578, %v1579
        %s1581 = scalar_lea.vmem %s1, 10
        %v1582 = vld [vmem:[%s1581] sm:$0x3]
        %v1583 = vunpack.c.l.b16 %v1577
        %v1584 = vunpack.c.l.b16 %v1580
        %v1585 = vpack.c.b16 %v1584, %v1583
        %v1587 = vsel %vm634, %v1585, 0
        %v1590 = vsel %vm665, %v1582, 0
        %1592 = vmatprep.subr.bf16.mxu0 0
        %1593 = vmatpush1.bf16.msra.mxu0 %v1590
        %1594 = vmatprep.subr.bf16.mxu0 0
        %1595 = vmatpush1.bf16.msra.mxu0 0
        %1596 = vmatprep.subr.bf16.mxu0 0
        %1597 = vmatpush1.bf16.msra.mxu0 0
        %1598 = vmatprep.subr.bf16.mxu0 0
        %1599 = vmatpush1.bf16.msra.mxu0 0
        %1600 = vmatprep.subr.bf16.mxu0 0
        %1601 = vmatpush1.bf16.msra.mxu0 0
        %1602 = vmatprep.subr.bf16.mxu0 0
        %1603 = vmatpush1.bf16.msra.mxu0 0
        %1604 = vmatprep.subr.bf16.mxu0 0
        %1605 = vmatpush1.bf16.msra.mxu0 0
        %1606 = vmatprep.subr.bf16.mxu0 0
        %1607 = vmatpush1.bf16.msra.mxu0 0
        %1608 = vmatprep.subr.bf16.mxu0 0
        %1609 = vmatpush1.bf16.msra.mxu0 0
        %1610 = vmatprep.subr.bf16.mxu0 0
        %1611 = vmatpush1.bf16.msra.mxu0 0
        %1612 = vmatprep.subr.bf16.mxu0 0
        %1613 = vmatpush1.bf16.msra.mxu0 0
        %1614 = vmatprep.subr.bf16.mxu0 0
        %1615 = vmatpush1.bf16.msra.mxu0 0
        %1616 = vmatprep.subr.bf16.mxu0 0
        %1617 = vmatpush1.bf16.msra.mxu0 0
        %1618 = vmatprep.subr.bf16.mxu0 0
        %1619 = vmatpush1.bf16.msra.mxu0 0
        %1620 = vmatprep.subr.bf16.mxu0 0
        %1621 = vmatpush1.bf16.msra.mxu0 0
        %1622 = vmatprep.subr.bf16.mxu0 0
        %1623 = vmatpush1.bf16.msra.mxu0 0
        %1624 = vmatprep.mubr.bf16.mxu0 0
        %1625 = vmatmul.mubr.bf16.gmra.mrb[0].mxu0 %v1097
        %v1626 = vpop.f32.mrb[0].mxu0
        %v1627 = vadd.f32 0.0, %v1626
        %v1628 = vpop.f32.mrb[0].mxu0
        %v1629 = vpop.f32.mrb[0].mxu0
        %v1630 = vadd.f32 0.0, %v1629
        %v1631 = vpop.f32.mrb[0].mxu0
        %1632 = vmatprep.mubr.bf16.mxu0 0
        %1633 = vmatmul.mubr.bf16.gmra.mrb[0].mxu0 %v1100
        %v1634 = vpop.f32.mrb[0].mxu0
        %v1635 = vadd.f32 0.0, %v1634
        %v1636 = vpop.f32.mrb[0].mxu0
        %v1637 = vpop.f32.mrb[0].mxu0
        %v1638 = vadd.f32 0.0, %v1637
        %v1639 = vpop.f32.mrb[0].mxu0
        %1640 = vmatprep.mubr.bf16.mxu0 0
        %1641 = vmatmul.mubr.bf16.gmra.mrb[0].mxu0 %v1103
        %v1642 = vpop.f32.mrb[0].mxu0
        %v1643 = vadd.f32 0.0, %v1642
        %v1644 = vpop.f32.mrb[0].mxu0
        %v1645 = vpop.f32.mrb[0].mxu0
        %v1646 = vadd.f32 0.0, %v1645
        %v1647 = vpop.f32.mrb[0].mxu0
        %1648 = vmatprep.mubr.bf16.mxu0 0
        %1649 = vmatmul.mubr.bf16.gmra.mrb[0].mxu0 %v1106
        %v1650 = vpop.f32.mrb[0].mxu0
        %v1651 = vadd.f32 0.0, %v1650
        %v1652 = vpop.f32.mrb[0].mxu0
        %v1653 = vpop.f32.mrb[0].mxu0
        %v1654 = vadd.f32 0.0, %v1653
        %v1655 = vpop.f32.mrb[0].mxu0
        %1656 = vmatprep.mubr.bf16.mxu0 0
        %1657 = vmatmul.mubr.bf16.gmra.mrb[0].mxu0 %v1109
        %v1658 = vpop.f32.mrb[0].mxu0
        %v1659 = vadd.f32 0.0, %v1658
        %v1660 = vpop.f32.mrb[0].mxu0
        %v1661 = vpop.f32.mrb[0].mxu0
        %v1662 = vadd.f32 0.0, %v1661
        %v1663 = vpop.f32.mrb[0].mxu0
        %1664 = vmatprep.mubr.bf16.mxu0 0
        %1665 = vmatmul.mubr.bf16.gmra.mrb[0].mxu0 %v1112
        %v1666 = vpop.f32.mrb[0].mxu0
        %v1667 = vadd.f32 0.0, %v1666
        %v1668 = vpop.f32.mrb[0].mxu0
        %v1669 = vpop.f32.mrb[0].mxu0
        %v1670 = vadd.f32 0.0, %v1669
        %v1671 = vpop.f32.mrb[0].mxu0
        %1672 = vmatprep.mubr.bf16.mxu0 0
        %1673 = vmatmul.mubr.bf16.gmra.mrb[0].mxu0 %v1115
        %v1674 = vpop.f32.mrb[0].mxu0
        %v1675 = vadd.f32 0.0, %v1674
        %v1676 = vpop.f32.mrb[0].mxu0
        %v1677 = vpop.f32.mrb[0].mxu0
        %v1678 = vadd.f32 0.0, %v1677
        %v1679 = vpop.f32.mrb[0].mxu0
        %1680 = vmatprep.mubr.bf16.mxu0 0
        %1681 = vmatmul.mubr.bf16.gmra.mrb[0].mxu0 %v1118
        %v1682 = vpop.f32.mrb[0].mxu0
        %v1683 = vadd.f32 0.0, %v1682
        %v1684 = vpop.f32.mrb[0].mxu0
        %v1685 = vpop.f32.mrb[0].mxu0
        %v1686 = vadd.f32 0.0, %v1685
        %v1687 = vpop.f32.mrb[0].mxu0
        %1688 = vmatprep.mubr.bf16.mxu0 0
        %1689 = vmatmul.mubr.bf16.gmra.mrb[0].mxu0 %v1121
        %v1690 = vpop.f32.mrb[0].mxu0
        %v1691 = vadd.f32 0.0, %v1690
        %v1692 = vpop.f32.mrb[0].mxu0
        %v1693 = vpop.f32.mrb[0].mxu0
        %v1694 = vadd.f32 0.0, %v1693
        %v1695 = vpop.f32.mrb[0].mxu0
        %1696 = vmatprep.mubr.bf16.mxu0 0
        %1697 = vmatmul.mubr.bf16.gmra.mrb[0].mxu0 %v1587
        %v1698 = vpop.f32.mrb[0].mxu0
        %v1699 = vadd.f32 0.0, %v1698
        %v1700 = vpop.f32.mrb[0].mxu0
        %v1701 = vpop.f32.mrb[0].mxu0
        %v1702 = vadd.f32 0.0, %v1701
        %v1703 = vpop.f32.mrb[0].mxu0
        %1704 = vdwg.mxu0
        %v1705 = vadd.f32 %v1553, %v1627
        %v1706 = vadd.f32 %v1554, %v1630
        %v1707 = vadd.f32 %v1555, %v1635
        %v1708 = vadd.f32 %v1556, %v1638
        %v1709 = vadd.f32 %v1557, %v1643
        %v1710 = vadd.f32 %v1558, %v1646
        %v1711 = vadd.f32 %v1559, %v1651
        %v1712 = vadd.f32 %v1560, %v1654
        %v1713 = vadd.f32 %v1561, %v1659
        %v1714 = vadd.f32 %v1562, %v1662
        %v1715 = vadd.f32 %v1563, %v1667
        %v1716 = vadd.f32 %v1564, %v1670
        %v1717 = vadd.f32 %v1565, %v1675
        %v1718 = vadd.f32 %v1566, %v1678
        %v1719 = vadd.f32 %v1567, %v1683
        %v1720 = vadd.f32 %v1568, %v1686
        %v1721 = vadd.f32 %v1569, %v1691
        %v1722 = vadd.f32 %v1570, %v1694
        %v1723 = vadd.f32 %v1571, %v1699
        %v1724 = vadd.f32 %v1572, %v1702
        %s1725 = scalar_lea.vmem %s1, 12
        %v1726 = vld [vmem:[%s1725] sm:$0x3]
        %v1729 = vunpack.c.l.b16 %v355
        %v1730 = vunpack.c.l.b16 %v356
        %v1731 = vpack.c.b16 %v1730, %v1729
        %v1733 = vsel %vm634, %v1731, 0
        %v1736 = vsel %vm665, %v1726, 0
        %1738 = vmatprep.subr.bf16.mxu0 0
        %1739 = vmatpush1.bf16.msra.mxu0 %v1736
        %1740 = vmatprep.subr.bf16.mxu0 0
        %1741 = vmatpush1.bf16.msra.mxu0 0
        %1742 = vmatprep.subr.bf16.mxu0 0
        %1743 = vmatpush1.bf16.msra.mxu0 0
        %1744 = vmatprep.subr.bf16.mxu0 0
        %1745 = vmatpush1.bf16.msra.mxu0 0
        %1746 = vmatprep.subr.bf16.mxu0 0
        %1747 = vmatpush1.bf16.msra.mxu0 0
        %1748 = vmatprep.subr.bf16.mxu0 0
        %1749 = vmatpush1.bf16.msra.mxu0 0
        %1750 = vmatprep.subr.bf16.mxu0 0
        %1751 = vmatpush1.bf16.msra.mxu0 0
        %1752 = vmatprep.subr.bf16.mxu0 0
        %1753 = vmatpush1.bf16.msra.mxu0 0
        %1754 = vmatprep.subr.bf16.mxu0 0
        %1755 = vmatpush1.bf16.msra.mxu0 0
        %1756 = vmatprep.subr.bf16.mxu0 0
        %1757 = vmatpush1.bf16.msra.mxu0 0
        %1758 = vmatprep.subr.bf16.mxu0 0
        %1759 = vmatpush1.bf16.msra.mxu0 0
        %1760 = vmatprep.subr.bf16.mxu0 0
        %1761 = vmatpush1.bf16.msra.mxu0 0
        %1762 = vmatprep.subr.bf16.mxu0 0
        %1763 = vmatpush1.bf16.msra.mxu0 0
        %1764 = vmatprep.subr.bf16.mxu0 0
        %1765 = vmatpush1.bf16.msra.mxu0 0
        %1766 = vmatprep.subr.bf16.mxu0 0
        %1767 = vmatpush1.bf16.msra.mxu0 0
        %1768 = vmatprep.subr.bf16.mxu0 0
        %1769 = vmatpush1.bf16.msra.mxu0 0
        %1770 = vmatprep.mubr.bf16.mxu0 0
        %1771 = vmatmul.mubr.bf16.gmra.mrb[0].mxu0 %v839
        %v1772 = vpop.f32.mrb[0].mxu0
        %v1773 = vadd.f32 0.0, %v1772
        %v1774 = vpop.f32.mrb[0].mxu0
        %v1775 = vpop.f32.mrb[0].mxu0
        %v1776 = vadd.f32 0.0, %v1775
        %v1777 = vpop.f32.mrb[0].mxu0
        %1778 = vmatprep.mubr.bf16.mxu0 0
        %1779 = vmatmul.mubr.bf16.gmra.mrb[0].mxu0 %v842
        %v1780 = vpop.f32.mrb[0].mxu0
        %v1781 = vadd.f32 0.0, %v1780
        %v1782 = vpop.f32.mrb[0].mxu0
        %v1783 = vpop.f32.mrb[0].mxu0
        %v1784 = vadd.f32 0.0, %v1783
        %v1785 = vpop.f32.mrb[0].mxu0
        %1786 = vmatprep.mubr.bf16.mxu0 0
        %1787 = vmatmul.mubr.bf16.gmra.mrb[0].mxu0 %v845
        %v1788 = vpop.f32.mrb[0].mxu0
        %v1789 = vadd.f32 0.0, %v1788
        %v1790 = vpop.f32.mrb[0].mxu0
        %v1791 = vpop.f32.mrb[0].mxu0
        %v1792 = vadd.f32 0.0, %v1791
        %v1793 = vpop.f32.mrb[0].mxu0
        %1794 = vmatprep.mubr.bf16.mxu0 0
        %1795 = vmatmul.mubr.bf16.gmra.mrb[0].mxu0 %v848
        %v1796 = vpop.f32.mrb[0].mxu0
        %v1797 = vadd.f32 0.0, %v1796
        %v1798 = vpop.f32.mrb[0].mxu0
        %v1799 = vpop.f32.mrb[0].mxu0
        %v1800 = vadd.f32 0.0, %v1799
        %v1801 = vpop.f32.mrb[0].mxu0
        %1802 = vmatprep.mubr.bf16.mxu0 0
        %1803 = vmatmul.mubr.bf16.gmra.mrb[0].mxu0 %v851
        %v1804 = vpop.f32.mrb[0].mxu0
        %v1805 = vadd.f32 0.0, %v1804
        %v1806 = vpop.f32.mrb[0].mxu0
        %v1807 = vpop.f32.mrb[0].mxu0
        %v1808 = vadd.f32 0.0, %v1807
        %v1809 = vpop.f32.mrb[0].mxu0
        %1810 = vmatprep.mubr.bf16.mxu0 0
        %1811 = vmatmul.mubr.bf16.gmra.mrb[0].mxu0 %v854
        %v1812 = vpop.f32.mrb[0].mxu0
        %v1813 = vadd.f32 0.0, %v1812
        %v1814 = vpop.f32.mrb[0].mxu0
        %v1815 = vpop.f32.mrb[0].mxu0
        %v1816 = vadd.f32 0.0, %v1815
        %v1817 = vpop.f32.mrb[0].mxu0
        %1818 = vmatprep.mubr.bf16.mxu0 0
        %1819 = vmatmul.mubr.bf16.gmra.mrb[0].mxu0 %v857
        %v1820 = vpop.f32.mrb[0].mxu0
        %v1821 = vadd.f32 0.0, %v1820
        %v1822 = vpop.f32.mrb[0].mxu0
        %v1823 = vpop.f32.mrb[0].mxu0
        %v1824 = vadd.f32 0.0, %v1823
        %v1825 = vpop.f32.mrb[0].mxu0
        %1826 = vmatprep.mubr.bf16.mxu0 0
        %1827 = vmatmul.mubr.bf16.gmra.mrb[0].mxu0 %v860
        %v1828 = vpop.f32.mrb[0].mxu0
        %v1829 = vadd.f32 0.0, %v1828
        %v1830 = vpop.f32.mrb[0].mxu0
        %v1831 = vpop.f32.mrb[0].mxu0
        %v1832 = vadd.f32 0.0, %v1831
        %v1833 = vpop.f32.mrb[0].mxu0
        %1834 = vmatprep.mubr.bf16.mxu0 0
        %1835 = vmatmul.mubr.bf16.gmra.mrb[0].mxu0 %v1267
        %v1836 = vpop.f32.mrb[0].mxu0
        %v1837 = vadd.f32 0.0, %v1836
        %v1838 = vpop.f32.mrb[0].mxu0
        %v1839 = vpop.f32.mrb[0].mxu0
        %v1840 = vadd.f32 0.0, %v1839
        %v1841 = vpop.f32.mrb[0].mxu0
        %1842 = vmatprep.mubr.bf16.mxu0 0
        %1843 = vmatmul.mubr.bf16.gmra.mrb[0].mxu0 %v1733
        %v1844 = vpop.f32.mrb[0].mxu0
        %v1845 = vadd.f32 0.0, %v1844
        %v1846 = vpop.f32.mrb[0].mxu0
        %v1847 = vpop.f32.mrb[0].mxu0
        %v1848 = vadd.f32 0.0, %v1847
        %v1849 = vpop.f32.mrb[0].mxu0
        %1850 = vdwg.mxu0
        %v1851 = vadd.f32 %v1705, %v1773
        %v1852 = vadd.f32 %v1706, %v1776
        %v1853 = vadd.f32 %v1707, %v1781
        %v1854 = vadd.f32 %v1708, %v1784
        %v1855 = vadd.f32 %v1709, %v1789
        %v1856 = vadd.f32 %v1710, %v1792
        %v1857 = vadd.f32 %v1711, %v1797
        %v1858 = vadd.f32 %v1712, %v1800
        %v1859 = vadd.f32 %v1713, %v1805
        %v1860 = vadd.f32 %v1714, %v1808
        %v1861 = vadd.f32 %v1715, %v1813
        %v1862 = vadd.f32 %v1716, %v1816
        %v1863 = vadd.f32 %v1717, %v1821
        %v1864 = vadd.f32 %v1718, %v1824
        %v1865 = vadd.f32 %v1719, %v1829
        %v1866 = vadd.f32 %v1720, %v1832
        %v1867 = vadd.f32 %v1721, %v1837
        %v1868 = vadd.f32 %v1722, %v1840
        %v1869 = vadd.f32 %v1723, %v1845
        %v1870 = vadd.f32 %v1724, %v1848
        %v1872 = vshrl.u32 %v355, 16
        %v1874 = vrot.slane %v1872, 4
        %v1875 = vshll.u32 %v355, 16
        %v1877 = vrot.slane %v1875, 5
        %v1878 = vor.u32 %v1874, %v1877
        %v1879 = vrot.slane %v1878, 4
        %v1881 = vshll.u32 %v356, 16
        %v1883 = vrot.slane %v1881, 5
        %v1884 = vsel %vm361, %v1879, %v1883
        %v1885 = vshrl.u32 %v356, 16
        %v1887 = vrot.slane %v1885, 4
        %v1888 = vor.u32 %v1887, %v1883
        %v1889 = vrot.slane %v1888, 4
        %v1891 = vshll.u32 %v357, 16
        %v1893 = vrot.slane %v1891, 5
        %v1894 = vsel %vm361, %v1889, %v1893
        %s1895 = scalar_lea.vmem %s1, 14
        %v1896 = vld [vmem:[%s1895] sm:$0x3]
        %v1897 = vunpack.c.l.b16 %v1884
        %v1898 = vunpack.c.l.b16 %v1894
        %v1899 = vpack.c.b16 %v1898, %v1897
        %v1901 = vsel %vm634, %v1899, 0
        %v1904 = vsel %vm665, %v1896, 0
        %1906 = vmatprep.subr.bf16.mxu0 0
        %1907 = vmatpush1.bf16.msra.mxu0 %v1904
        %1908 = vmatprep.subr.bf16.mxu0 0
        %1909 = vmatpush1.bf16.msra.mxu0 0
        %1910 = vmatprep.subr.bf16.mxu0 0
        %1911 = vmatpush1.bf16.msra.mxu0 0
        %1912 = vmatprep.subr.bf16.mxu0 0
        %1913 = vmatpush1.bf16.msra.mxu0 0
        %1914 = vmatprep.subr.bf16.mxu0 0
        %1915 = vmatpush1.bf16.msra.mxu0 0
        %1916 = vmatprep.subr.bf16.mxu0 0
        %1917 = vmatpush1.bf16.msra.mxu0 0
        %1918 = vmatprep.subr.bf16.mxu0 0
        %1919 = vmatpush1.bf16.msra.mxu0 0
        %1920 = vmatprep.subr.bf16.mxu0 0
        %1921 = vmatpush1.bf16.msra.mxu0 0
        %1922 = vmatprep.subr.bf16.mxu0 0
        %1923 = vmatpush1.bf16.msra.mxu0 0
        %1924 = vmatprep.subr.bf16.mxu0 0
        %1925 = vmatpush1.bf16.msra.mxu0 0
        %1926 = vmatprep.subr.bf16.mxu0 0
        %1927 = vmatpush1.bf16.msra.mxu0 0
        %1928 = vmatprep.subr.bf16.mxu0 0
        %1929 = vmatpush1.bf16.msra.mxu0 0
        %1930 = vmatprep.subr.bf16.mxu0 0
        %1931 = vmatpush1.bf16.msra.mxu0 0
        %1932 = vmatprep.subr.bf16.mxu0 0
        %1933 = vmatpush1.bf16.msra.mxu0 0
        %1934 = vmatprep.subr.bf16.mxu0 0
        %1935 = vmatpush1.bf16.msra.mxu0 0
        %1936 = vmatprep.subr.bf16.mxu0 0
        %1937 = vmatpush1.bf16.msra.mxu0 0
        %1938 = vmatprep.mubr.bf16.mxu0 0
        %1939 = vmatmul.mubr.bf16.gmra.mrb[0].mxu0 %v642
        %v1940 = vpop.f32.mrb[0].mxu0
        %v1941 = vadd.f32 0.0, %v1940
        %v1942 = vpop.f32.mrb[0].mxu0
        %v1943 = vpop.f32.mrb[0].mxu0
        %v1944 = vadd.f32 0.0, %v1943
        %v1945 = vpop.f32.mrb[0].mxu0
        %1946 = vmatprep.mubr.bf16.mxu0 0
        %1947 = vmatmul.mubr.bf16.gmra.mrb[0].mxu0 %v645
        %v1948 = vpop.f32.mrb[0].mxu0
        %v1949 = vadd.f32 0.0, %v1948
        %v1950 = vpop.f32.mrb[0].mxu0
        %v1951 = vpop.f32.mrb[0].mxu0
        %v1952 = vadd.f32 0.0, %v1951
        %v1953 = vpop.f32.mrb[0].mxu0
        %1954 = vmatprep.mubr.bf16.mxu0 0
        %1955 = vmatmul.mubr.bf16.gmra.mrb[0].mxu0 %v648
        %v1956 = vpop.f32.mrb[0].mxu0
        %v1957 = vadd.f32 0.0, %v1956
        %v1958 = vpop.f32.mrb[0].mxu0
        %v1959 = vpop.f32.mrb[0].mxu0
        %v1960 = vadd.f32 0.0, %v1959
        %v1961 = vpop.f32.mrb[0].mxu0
        %1962 = vmatprep.mubr.bf16.mxu0 0
        %1963 = vmatmul.mubr.bf16.gmra.mrb[0].mxu0 %v651
        %v1964 = vpop.f32.mrb[0].mxu0
        %v1965 = vadd.f32 0.0, %v1964
        %v1966 = vpop.f32.mrb[0].mxu0
        %v1967 = vpop.f32.mrb[0].mxu0
        %v1968 = vadd.f32 0.0, %v1967
        %v1969 = vpop.f32.mrb[0].mxu0
        %1970 = vmatprep.mubr.bf16.mxu0 0
        %1971 = vmatmul.mubr.bf16.gmra.mrb[0].mxu0 %v654
        %v1972 = vpop.f32.mrb[0].mxu0
        %v1973 = vadd.f32 0.0, %v1972
        %v1974 = vpop.f32.mrb[0].mxu0
        %v1975 = vpop.f32.mrb[0].mxu0
        %v1976 = vadd.f32 0.0, %v1975
        %v1977 = vpop.f32.mrb[0].mxu0
        %1978 = vmatprep.mubr.bf16.mxu0 0
        %1979 = vmatmul.mubr.bf16.gmra.mrb[0].mxu0 %v657
        %v1980 = vpop.f32.mrb[0].mxu0
        %v1981 = vadd.f32 0.0, %v1980
        %v1982 = vpop.f32.mrb[0].mxu0
        %v1983 = vpop.f32.mrb[0].mxu0
        %v1984 = vadd.f32 0.0, %v1983
        %v1985 = vpop.f32.mrb[0].mxu0
        %1986 = vmatprep.mubr.bf16.mxu0 0
        %1987 = vmatmul.mubr.bf16.gmra.mrb[0].mxu0 %v660
        %v1988 = vpop.f32.mrb[0].mxu0
        %v1989 = vadd.f32 0.0, %v1988
        %v1990 = vpop.f32.mrb[0].mxu0
        %v1991 = vpop.f32.mrb[0].mxu0
        %v1992 = vadd.f32 0.0, %v1991
        %v1993 = vpop.f32.mrb[0].mxu0
        %1994 = vmatprep.mubr.bf16.mxu0 0
        %1995 = vmatmul.mubr.bf16.gmra.mrb[0].mxu0 %v663
        %v1996 = vpop.f32.mrb[0].mxu0
        %v1997 = vadd.f32 0.0, %v1996
        %v1998 = vpop.f32.mrb[0].mxu0
        %v1999 = vpop.f32.mrb[0].mxu0
        %v2000 = vadd.f32 0.0, %v1999
        %v2001 = vpop.f32.mrb[0].mxu0
        %2002 = vmatprep.mubr.bf16.mxu0 0
        %2003 = vmatmul.mubr.bf16.gmra.mrb[0].mxu0 %v1435
        %v2004 = vpop.f32.mrb[0].mxu0
        %v2005 = vadd.f32 0.0, %v2004
        %v2006 = vpop.f32.mrb[0].mxu0
        %v2007 = vpop.f32.mrb[0].mxu0
        %v2008 = vadd.f32 0.0, %v2007
        %v2009 = vpop.f32.mrb[0].mxu0
        %2010 = vmatprep.mubr.bf16.mxu0 0
        %2011 = vmatmul.mubr.bf16.gmra.mrb[0].mxu0 %v1901
        %v2012 = vpop.f32.mrb[0].mxu0
        %v2013 = vadd.f32 0.0, %v2012
        %v2014 = vpop.f32.mrb[0].mxu0
        %v2015 = vpop.f32.mrb[0].mxu0
        %v2016 = vadd.f32 0.0, %v2015
        %v2017 = vpop.f32.mrb[0].mxu0
        %2018 = vdwg.mxu0
        %v2019 = vadd.f32 %v1851, %v1941
        %v2020 = vadd.f32 %v1852, %v1944
        %v2021 = vadd.f32 %v1853, %v1949
        %v2022 = vadd.f32 %v1854, %v1952
        %v2023 = vadd.f32 %v1855, %v1957
        %v2024 = vadd.f32 %v1856, %v1960
        %v2025 = vadd.f32 %v1857, %v1965
        %v2026 = vadd.f32 %v1858, %v1968
        %v2027 = vadd.f32 %v1859, %v1973
        %v2028 = vadd.f32 %v1860, %v1976
        %v2029 = vadd.f32 %v1861, %v1981
        %v2030 = vadd.f32 %v1862, %v1984
        %v2031 = vadd.f32 %v1863, %v1989
        %v2032 = vadd.f32 %v1864, %v1992
        %v2033 = vadd.f32 %v1865, %v1997
        %v2034 = vadd.f32 %v1866, %v2000
        %v2035 = vadd.f32 %v1867, %v2005
        %v2036 = vadd.f32 %v1868, %v2008
        %v2037 = vadd.f32 %v1869, %v2013
        %v2038 = vadd.f32 %v1870, %v2016
        %v2040 = vrot.slane %v355, 5
        %v2041 = vrot.slane %v2040, 4
        %v2042 = vrot.slane %v356, 5
        %v2043 = vsel %vm990, %v2041, %v2042
        %v2044 = vrot.slane %v2042, 4
        %v2045 = vrot.slane %v357, 5
        %v2046 = vsel %vm990, %v2044, %v2045
        %s2047 = scalar_lea.vmem %s1, 16
        %v2048 = vld [vmem:[%s2047] sm:$0x3]
        %v2049 = vunpack.c.l.b16 %v2043
        %v2050 = vunpack.c.l.b16 %v2046
        %v2051 = vpack.c.b16 %v2050, %v2049
        %v2053 = vsel %vm634, %v2051, 0
        %v2056 = vsel %vm665, %v2048, 0
        %2058 = vmatprep.subr.bf16.mxu0 0
        %2059 = vmatpush1.bf16.msra.mxu0 %v2056
        %2060 = vmatprep.subr.bf16.mxu0 0
        %2061 = vmatpush1.bf16.msra.mxu0 0
        %2062 = vmatprep.subr.bf16.mxu0 0
        %2063 = vmatpush1.bf16.msra.mxu0 0
        %2064 = vmatprep.subr.bf16.mxu0 0
        %2065 = vmatpush1.bf16.msra.mxu0 0
        %2066 = vmatprep.subr.bf16.mxu0 0
        %2067 = vmatpush1.bf16.msra.mxu0 0
        %2068 = vmatprep.subr.bf16.mxu0 0
        %2069 = vmatpush1.bf16.msra.mxu0 0
        %2070 = vmatprep.subr.bf16.mxu0 0
        %2071 = vmatpush1.bf16.msra.mxu0 0
        %2072 = vmatprep.subr.bf16.mxu0 0
        %2073 = vmatpush1.bf16.msra.mxu0 0
        %2074 = vmatprep.subr.bf16.mxu0 0
        %2075 = vmatpush1.bf16.msra.mxu0 0
        %2076 = vmatprep.subr.bf16.mxu0 0
        %2077 = vmatpush1.bf16.msra.mxu0 0
        %2078 = vmatprep.subr.bf16.mxu0 0
        %2079 = vmatpush1.bf16.msra.mxu0 0
        %2080 = vmatprep.subr.bf16.mxu0 0
        %2081 = vmatpush1.bf16.msra.mxu0 0
        %2082 = vmatprep.subr.bf16.mxu0 0
        %2083 = vmatpush1.bf16.msra.mxu0 0
        %2084 = vmatprep.subr.bf16.mxu0 0
        %2085 = vmatpush1.bf16.msra.mxu0 0
        %2086 = vmatprep.subr.bf16.mxu0 0
        %2087 = vmatpush1.bf16.msra.mxu0 0
        %2088 = vmatprep.subr.bf16.mxu0 0
        %2089 = vmatpush1.bf16.msra.mxu0 0
        %2090 = vmatprep.mubr.bf16.mxu0 0
        %2091 = vmatmul.mubr.bf16.gmra.mrb[0].mxu0 %v1100
        %v2092 = vpop.f32.mrb[0].mxu0
        %v2093 = vadd.f32 0.0, %v2092
        %v2094 = vpop.f32.mrb[0].mxu0
        %v2095 = vpop.f32.mrb[0].mxu0
        %v2096 = vadd.f32 0.0, %v2095
        %v2097 = vpop.f32.mrb[0].mxu0
        %2098 = vmatprep.mubr.bf16.mxu0 0
        %2099 = vmatmul.mubr.bf16.gmra.mrb[0].mxu0 %v1103
        %v2100 = vpop.f32.mrb[0].mxu0
        %v2101 = vadd.f32 0.0, %v2100
        %v2102 = vpop.f32.mrb[0].mxu0
        %v2103 = vpop.f32.mrb[0].mxu0
        %v2104 = vadd.f32 0.0, %v2103
        %v2105 = vpop.f32.mrb[0].mxu0
        %2106 = vmatprep.mubr.bf16.mxu0 0
        %2107 = vmatmul.mubr.bf16.gmra.mrb[0].mxu0 %v1106
        %v2108 = vpop.f32.mrb[0].mxu0
        %v2109 = vadd.f32 0.0, %v2108
        %v2110 = vpop.f32.mrb[0].mxu0
        %v2111 = vpop.f32.mrb[0].mxu0
        %v2112 = vadd.f32 0.0, %v2111
        %v2113 = vpop.f32.mrb[0].mxu0
        %2114 = vmatprep.mubr.bf16.mxu0 0
        %2115 = vmatmul.mubr.bf16.gmra.mrb[0].mxu0 %v1109
        %v2116 = vpop.f32.mrb[0].mxu0
        %v2117 = vadd.f32 0.0, %v2116
        %v2118 = vpop.f32.mrb[0].mxu0
        %v2119 = vpop.f32.mrb[0].mxu0
        %v2120 = vadd.f32 0.0, %v2119
        %v2121 = vpop.f32.mrb[0].mxu0
        %2122 = vmatprep.mubr.bf16.mxu0 0
        %2123 = vmatmul.mubr.bf16.gmra.mrb[0].mxu0 %v1112
        %v2124 = vpop.f32.mrb[0].mxu0
        %v2125 = vadd.f32 0.0, %v2124
        %v2126 = vpop.f32.mrb[0].mxu0
        %v2127 = vpop.f32.mrb[0].mxu0
        %v2128 = vadd.f32 0.0, %v2127
        %v2129 = vpop.f32.mrb[0].mxu0
        %2130 = vmatprep.mubr.bf16.mxu0 0
        %2131 = vmatmul.mubr.bf16.gmra.mrb[0].mxu0 %v1115
        %v2132 = vpop.f32.mrb[0].mxu0
        %v2133 = vadd.f32 0.0, %v2132
        %v2134 = vpop.f32.mrb[0].mxu0
        %v2135 = vpop.f32.mrb[0].mxu0
        %v2136 = vadd.f32 0.0, %v2135
        %v2137 = vpop.f32.mrb[0].mxu0
        %2138 = vmatprep.mubr.bf16.mxu0 0
        %2139 = vmatmul.mubr.bf16.gmra.mrb[0].mxu0 %v1118
        %v2140 = vpop.f32.mrb[0].mxu0
        %v2141 = vadd.f32 0.0, %v2140
        %v2142 = vpop.f32.mrb[0].mxu0
        %v2143 = vpop.f32.mrb[0].mxu0
        %v2144 = vadd.f32 0.0, %v2143
        %v2145 = vpop.f32.mrb[0].mxu0
        %2146 = vmatprep.mubr.bf16.mxu0 0
        %2147 = vmatmul.mubr.bf16.gmra.mrb[0].mxu0 %v1121
        %v2148 = vpop.f32.mrb[0].mxu0
        %v2149 = vadd.f32 0.0, %v2148
        %v2150 = vpop.f32.mrb[0].mxu0
        %v2151 = vpop.f32.mrb[0].mxu0
        %v2152 = vadd.f32 0.0, %v2151
        %v2153 = vpop.f32.mrb[0].mxu0
        %2154 = vmatprep.mubr.bf16.mxu0 0
        %2155 = vmatmul.mubr.bf16.gmra.mrb[0].mxu0 %v1587
        %v2156 = vpop.f32.mrb[0].mxu0
        %v2157 = vadd.f32 0.0, %v2156
        %v2158 = vpop.f32.mrb[0].mxu0
        %v2159 = vpop.f32.mrb[0].mxu0
        %v2160 = vadd.f32 0.0, %v2159
        %v2161 = vpop.f32.mrb[0].mxu0
        %2162 = vmatprep.mubr.bf16.mxu0 0
        %2163 = vmatmul.mubr.bf16.gmra.mrb[0].mxu0 %v2053
        %v2164 = vpop.f32.mrb[0].mxu0
        %v2165 = vadd.f32 0.0, %v2164
        %v2166 = vpop.f32.mrb[0].mxu0
        %v2167 = vpop.f32.mrb[0].mxu0
        %v2168 = vadd.f32 0.0, %v2167
        %v2169 = vpop.f32.mrb[0].mxu0
        %2170 = vdwg.mxu0
        %v2171 = vadd.f32 %v2019, %v2093
        %v2172 = vadd.f32 %v2020, %v2096
        %v2173 = vadd.f32 %v2021, %v2101
        %v2174 = vadd.f32 %v2022, %v2104
        %v2175 = vadd.f32 %v2023, %v2109
        %v2176 = vadd.f32 %v2024, %v2112
        %v2177 = vadd.f32 %v2025, %v2117
        %v2178 = vadd.f32 %v2026, %v2120
        %v2179 = vadd.f32 %v2027, %v2125
        %v2180 = vadd.f32 %v2028, %v2128
        %v2181 = vadd.f32 %v2029, %v2133
        %v2182 = vadd.f32 %v2030, %v2136
        %v2183 = vadd.f32 %v2031, %v2141
        %v2184 = vadd.f32 %v2032, %v2144
        %v2185 = vadd.f32 %v2033, %v2149
        %v2186 = vadd.f32 %v2034, %v2152
        %v2187 = vadd.f32 %v2035, %v2157
        %v2188 = vadd.f32 %v2036, %v2160
        %v2189 = vadd.f32 %v2037, %v2165
        %v2190 = vadd.f32 %v2038, %v2168
        %v2191 = vld [vmem:[%s2] sm:$0x1]
        %v2193 = vlaneseq
        %v2194 = vshrl.u32 %v2193, 7
        %v2195 = vsub.s32 0, %v2194
        %v2196 = vrot.slane %v2191, %v2195
        %v2198 = vadd.f32 %v2171, %v2196
        %v2199 = vadd.f32 %v2172, %v2196
        %v2200 = vadd.f32 %v2173, %v2196
        %v2201 = vadd.f32 %v2174, %v2196
        %v2202 = vadd.f32 %v2175, %v2196
        %v2203 = vadd.f32 %v2176, %v2196
        %v2204 = vadd.f32 %v2177, %v2196
        %v2205 = vadd.f32 %v2178, %v2196
        %v2206 = vadd.f32 %v2179, %v2196
        %v2207 = vadd.f32 %v2180, %v2196
        %v2208 = vadd.f32 %v2181, %v2196
        %v2209 = vadd.f32 %v2182, %v2196
        %v2210 = vadd.f32 %v2183, %v2196
        %v2211 = vadd.f32 %v2184, %v2196
        %v2212 = vadd.f32 %v2185, %v2196
        %v2213 = vadd.f32 %v2186, %v2196
        %v2214 = vadd.f32 %v2187, %v2196
        %v2215 = vadd.f32 %v2188, %v2196
        %v2216 = vadd.f32 %v2189, %v2196
        %v2217 = vadd.f32 %v2190, %v2196
        %v2218 = vmax.f32 %v2198, 0.0
        %v2219 = vmax.f32 %v2199, 0.0
        %v2220 = vmax.f32 %v2200, 0.0
        %v2221 = vmax.f32 %v2201, 0.0
        %v2222 = vmax.f32 %v2202, 0.0
        %v2223 = vmax.f32 %v2203, 0.0
        %v2224 = vmax.f32 %v2204, 0.0
        %v2225 = vmax.f32 %v2205, 0.0
        %v2226 = vmax.f32 %v2206, 0.0
        %v2227 = vmax.f32 %v2207, 0.0
        %v2228 = vmax.f32 %v2208, 0.0
        %v2229 = vmax.f32 %v2209, 0.0
        %v2230 = vmax.f32 %v2210, 0.0
        %v2231 = vmax.f32 %v2211, 0.0
        %v2232 = vmax.f32 %v2212, 0.0
        %v2233 = vmax.f32 %v2213, 0.0
        %v2234 = vmax.f32 %v2214, 0.0
        %v2235 = vmax.f32 %v2215, 0.0
        %v2236 = vmax.f32 %v2216, 0.0
        %v2237 = vmax.f32 %v2217, 0.0
        %v2238 = vpack.c.bf16 %v2219, %v2218
        %v2239 = vpack.c.bf16 %v2221, %v2220
        %v2240 = vpack.c.bf16 %v2223, %v2222
        %v2241 = vpack.c.bf16 %v2225, %v2224
        %v2242 = vpack.c.bf16 %v2227, %v2226
        %v2243 = vpack.c.bf16 %v2229, %v2228
        %v2244 = vpack.c.bf16 %v2231, %v2230
        %v2245 = vpack.c.bf16 %v2233, %v2232
        %v2246 = vpack.c.bf16 %v2235, %v2234
        %v2247 = vpack.c.bf16 %v2237, %v2236
        %v2248 = vld [vmem:[%s3] sm:$0xf]
        %v2249 = vld [vmem:[%s4] sm:$0x1]
        %v2251 = vlaneseq
        %v2252 = vshrl.u32 %v2251, 7
        %v2253 = vsub.s32 0, %v2252
        %v2254 = vrot.slane %v2249, %v2253
        %vm2256 = vcmask 64512
        %v2258 = vsel %vm2256, %v2238, 0
        %v2261 = vsel %vm2256, %v2239, 0
        %v2264 = vsel %vm2256, %v2240, 0
        %v2267 = vsel %vm2256, %v2241, 0
        %v2270 = vsel %vm2256, %v2242, 0
        %v2273 = vsel %vm2256, %v2243, 0
        %v2276 = vsel %vm2256, %v2244, 0
        %v2279 = vsel %vm2256, %v2245, 0
        %v2282 = vsel %vm2256, %v2246, 0
        %v2285 = vsel %vm2256, %v2247, 0
        %vm2287 = vcmask 1043456
        %v2289 = vsel %vm2287, %v2248, 0
        %2291 = vmatprep.subr.bf16.mxu0 0
        %2292 = vmatpush1.bf16.msra.mxu0 %v2289
        %2293 = vmatprep.subr.bf16.mxu0 0
        %2294 = vmatpush1.bf16.msra.mxu0 0
        %2295 = vmatprep.subr.bf16.mxu0 0
        %2296 = vmatpush1.bf16.msra.mxu0 0
        %2297 = vmatprep.subr.bf16.mxu0 0
        %2298 = vmatpush1.bf16.msra.mxu0 0
        %2299 = vmatprep.subr.bf16.mxu0 0
        %2300 = vmatpush1.bf16.msra.mxu0 0
        %2301 = vmatprep.subr.bf16.mxu0 0
        %2302 = vmatpush1.bf16.msra.mxu0 0
        %2303 = vmatprep.subr.bf16.mxu0 0
        %2304 = vmatpush1.bf16.msra.mxu0 0
        %2305 = vmatprep.subr.bf16.mxu0 0
        %2306 = vmatpush1.bf16.msra.mxu0 0
        %2307 = vmatprep.subr.bf16.mxu0 0
        %2308 = vmatpush1.bf16.msra.mxu0 0
        %2309 = vmatprep.subr.bf16.mxu0 0
        %2310 = vmatpush1.bf16.msra.mxu0 0
        %2311 = vmatprep.subr.bf16.mxu0 0
        %2312 = vmatpush1.bf16.msra.mxu0 0
        %2313 = vmatprep.subr.bf16.mxu0 0
        %2314 = vmatpush1.bf16.msra.mxu0 0
        %2315 = vmatprep.subr.bf16.mxu0 0
        %2316 = vmatpush1.bf16.msra.mxu0 0
        %2317 = vmatprep.subr.bf16.mxu0 0
        %2318 = vmatpush1.bf16.msra.mxu0 0
        %2319 = vmatprep.subr.bf16.mxu0 0
        %2320 = vmatpush1.bf16.msra.mxu0 0
        %2321 = vmatprep.subr.bf16.mxu0 0
        %2322 = vmatpush1.bf16.msra.mxu0 0
        %2323 = vmatprep.mubr.bf16.mxu0 0
        %2324 = vmatmul.mubr.bf16.gmra.mrb[0].mxu0 %v2258
        %v2325 = vpop.f32.mrb[0].mxu0
        %v2326 = vadd.f32 %v2254, %v2325
        %v2327 = vpop.f32.mrb[0].mxu0
        %v2328 = vpop.f32.mrb[0].mxu0
        %v2329 = vadd.f32 %v2254, %v2328
        %v2330 = vpop.f32.mrb[0].mxu0
        %2331 = vmatprep.mubr.bf16.mxu0 0
        %2332 = vmatmul.mubr.bf16.gmra.mrb[0].mxu0 %v2261
        %v2333 = vpop.f32.mrb[0].mxu0
        %v2334 = vadd.f32 %v2254, %v2333
        %v2335 = vpop.f32.mrb[0].mxu0
        %v2336 = vpop.f32.mrb[0].mxu0
        %v2337 = vadd.f32 %v2254, %v2336
        %v2338 = vpop.f32.mrb[0].mxu0
        %2339 = vmatprep.mubr.bf16.mxu0 0
        %2340 = vmatmul.mubr.bf16.gmra.mrb[0].mxu0 %v2264
        %v2341 = vpop.f32.mrb[0].mxu0
        %v2342 = vadd.f32 %v2254, %v2341
        %v2343 = vpop.f32.mrb[0].mxu0
        %v2344 = vpop.f32.mrb[0].mxu0
        %v2345 = vadd.f32 %v2254, %v2344
        %v2346 = vpop.f32.mrb[0].mxu0
        %2347 = vmatprep.mubr.bf16.mxu0 0
        %2348 = vmatmul.mubr.bf16.gmra.mrb[0].mxu0 %v2267
        %v2349 = vpop.f32.mrb[0].mxu0
        %v2350 = vadd.f32 %v2254, %v2349
        %v2351 = vpop.f32.mrb[0].mxu0
        %v2352 = vpop.f32.mrb[0].mxu0
        %v2353 = vadd.f32 %v2254, %v2352
        %v2354 = vpop.f32.mrb[0].mxu0
        %2355 = vmatprep.mubr.bf16.mxu0 0
        %2356 = vmatmul.mubr.bf16.gmra.mrb[0].mxu0 %v2270
        %v2357 = vpop.f32.mrb[0].mxu0
        %v2358 = vadd.f32 %v2254, %v2357
        %v2359 = vpop.f32.mrb[0].mxu0
        %v2360 = vpop.f32.mrb[0].mxu0
        %v2361 = vadd.f32 %v2254, %v2360
        %v2362 = vpop.f32.mrb[0].mxu0
        %2363 = vmatprep.mubr.bf16.mxu0 0
        %2364 = vmatmul.mubr.bf16.gmra.mrb[0].mxu0 %v2273
        %v2365 = vpop.f32.mrb[0].mxu0
        %v2366 = vadd.f32 %v2254, %v2365
        %v2367 = vpop.f32.mrb[0].mxu0
        %v2368 = vpop.f32.mrb[0].mxu0
        %v2369 = vadd.f32 %v2254, %v2368
        %v2370 = vpop.f32.mrb[0].mxu0
        %2371 = vmatprep.mubr.bf16.mxu0 0
        %2372 = vmatmul.mubr.bf16.gmra.mrb[0].mxu0 %v2276
        %v2373 = vpop.f32.mrb[0].mxu0
        %v2374 = vadd.f32 %v2254, %v2373
        %v2375 = vpop.f32.mrb[0].mxu0
        %v2376 = vpop.f32.mrb[0].mxu0
        %v2377 = vadd.f32 %v2254, %v2376
        %v2378 = vpop.f32.mrb[0].mxu0
        %2379 = vmatprep.mubr.bf16.mxu0 0
        %2380 = vmatmul.mubr.bf16.gmra.mrb[0].mxu0 %v2279
        %v2381 = vpop.f32.mrb[0].mxu0
        %v2382 = vadd.f32 %v2254, %v2381
        %v2383 = vpop.f32.mrb[0].mxu0
        %v2384 = vpop.f32.mrb[0].mxu0
        %v2385 = vadd.f32 %v2254, %v2384
        %v2386 = vpop.f32.mrb[0].mxu0
        %2387 = vmatprep.mubr.bf16.mxu0 0
        %2388 = vmatmul.mubr.bf16.gmra.mrb[0].mxu0 %v2282
        %v2389 = vpop.f32.mrb[0].mxu0
        %v2390 = vadd.f32 %v2254, %v2389
        %v2391 = vpop.f32.mrb[0].mxu0
        %v2392 = vpop.f32.mrb[0].mxu0
        %v2393 = vadd.f32 %v2254, %v2392
        %v2394 = vpop.f32.mrb[0].mxu0
        %2395 = vmatprep.mubr.bf16.mxu0 0
        %2396 = vmatmul.mubr.bf16.gmra.mrb[0].mxu0 %v2285
        %v2397 = vpop.f32.mrb[0].mxu0
        %v2398 = vadd.f32 %v2254, %v2397
        %v2399 = vpop.f32.mrb[0].mxu0
        %v2400 = vpop.f32.mrb[0].mxu0
        %v2401 = vadd.f32 %v2254, %v2400
        %v2402 = vpop.f32.mrb[0].mxu0
        %2403 = vdwg.mxu0
        %v2404 = vpack.c.bf16 %v2329, %v2326
        %v2405 = vpack.c.bf16 %v2337, %v2334
        %v2406 = vpack.c.bf16 %v2345, %v2342
        %v2407 = vpack.c.bf16 %v2353, %v2350
        %v2408 = vpack.c.bf16 %v2361, %v2358
        %v2409 = vpack.c.bf16 %v2369, %v2366
        %v2410 = vpack.c.bf16 %v2377, %v2374
        %v2411 = vpack.c.bf16 %v2385, %v2382
        %v2412 = vpack.c.bf16 %v2393, %v2390
        %v2413 = vpack.c.bf16 %v2401, %v2398
        %2414 = vxpose.xlu0.c.b16.start [1/8] %v2404, 128
        %2415 = vxpose.xlu0.c.b16.cont [2/8] 0, 128
        %2416 = vxpose.xlu0.c.b16.cont [3/8] 0, 128
        %2417 = vxpose.xlu0.c.b16.cont [4/8] 0, 128
        %2418 = vxpose.xlu0.c.b16.cont [5/8] 0, 128
        %2419 = vxpose.xlu0.c.b16.cont [6/8] 0, 128
        %2420 = vxpose.xlu0.c.b16.cont [7/8] 0, 128
        %2421 = vxpose.xlu0.c.b16.end [8/8] 0, 128
        %v2422 = vpop.trf.xlu0
        %v2423 = vpop.trf.xlu0
        %v2424 = vpop.trf.xlu0
        %v2425 = vpop.trf.xlu0
        %v2426 = vpop.trf.xlu0
        %v2427 = vpop.trf.xlu0
        %v2428 = vpop.trf.xlu0
        %v2429 = vpop.trf.xlu0
        %2430 = vxpose.xlu0.c.b16.start [1/8] %v2405, 128
        %2431 = vxpose.xlu0.c.b16.cont [2/8] 0, 128
        %2432 = vxpose.xlu0.c.b16.cont [3/8] 0, 128
        %2433 = vxpose.xlu0.c.b16.cont [4/8] 0, 128
        %2434 = vxpose.xlu0.c.b16.cont [5/8] 0, 128
        %2435 = vxpose.xlu0.c.b16.cont [6/8] 0, 128
        %2436 = vxpose.xlu0.c.b16.cont [7/8] 0, 128
        %2437 = vxpose.xlu0.c.b16.end [8/8] 0, 128
        %v2438 = vpop.trf.xlu0
        %v2439 = vpop.trf.xlu0
        %v2440 = vpop.trf.xlu0
        %v2441 = vpop.trf.xlu0
        %v2442 = vpop.trf.xlu0
        %v2443 = vpop.trf.xlu0
        %v2444 = vpop.trf.xlu0
        %v2445 = vpop.trf.xlu0
        %2446 = vxpose.xlu0.c.b16.start [1/8] %v2406, 128
        %2447 = vxpose.xlu0.c.b16.cont [2/8] 0, 128
        %2448 = vxpose.xlu0.c.b16.cont [3/8] 0, 128
        %2449 = vxpose.xlu0.c.b16.cont [4/8] 0, 128
        %2450 = vxpose.xlu0.c.b16.cont [5/8] 0, 128
        %2451 = vxpose.xlu0.c.b16.cont [6/8] 0, 128
        %2452 = vxpose.xlu0.c.b16.cont [7/8] 0, 128
        %2453 = vxpose.xlu0.c.b16.end [8/8] 0, 128
        %v2454 = vpop.trf.xlu0
        %v2455 = vpop.trf.xlu0
        %v2456 = vpop.trf.xlu0
        %v2457 = vpop.trf.xlu0
        %v2458 = vpop.trf.xlu0
        %v2459 = vpop.trf.xlu0
        %v2460 = vpop.trf.xlu0
        %v2461 = vpop.trf.xlu0
        %2462 = vxpose.xlu0.c.b16.start [1/8] %v2407, 128
        %2463 = vxpose.xlu0.c.b16.cont [2/8] 0, 128
        %2464 = vxpose.xlu0.c.b16.cont [3/8] 0, 128
        %2465 = vxpose.xlu0.c.b16.cont [4/8] 0, 128
        %2466 = vxpose.xlu0.c.b16.cont [5/8] 0, 128
        %2467 = vxpose.xlu0.c.b16.cont [6/8] 0, 128
        %2468 = vxpose.xlu0.c.b16.cont [7/8] 0, 128
        %2469 = vxpose.xlu0.c.b16.end [8/8] 0, 128
        %v2470 = vpop.trf.xlu0
        %v2471 = vpop.trf.xlu0
        %v2472 = vpop.trf.xlu0
        %v2473 = vpop.trf.xlu0
        %v2474 = vpop.trf.xlu0
        %v2475 = vpop.trf.xlu0
        %v2476 = vpop.trf.xlu0
        %v2477 = vpop.trf.xlu0
        %2478 = vxpose.xlu0.c.b16.start [1/8] %v2408, 128
        %2479 = vxpose.xlu0.c.b16.cont [2/8] 0, 128
        %2480 = vxpose.xlu0.c.b16.cont [3/8] 0, 128
        %2481 = vxpose.xlu0.c.b16.cont [4/8] 0, 128
        %2482 = vxpose.xlu0.c.b16.cont [5/8] 0, 128
        %2483 = vxpose.xlu0.c.b16.cont [6/8] 0, 128
        %2484 = vxpose.xlu0.c.b16.cont [7/8] 0, 128
        %2485 = vxpose.xlu0.c.b16.end [8/8] 0, 128
        %v2486 = vpop.trf.xlu0
        %v2487 = vpop.trf.xlu0
        %v2488 = vpop.trf.xlu0
        %v2489 = vpop.trf.xlu0
        %v2490 = vpop.trf.xlu0
        %v2491 = vpop.trf.xlu0
        %v2492 = vpop.trf.xlu0
        %v2493 = vpop.trf.xlu0
        %2494 = vxpose.xlu0.c.b16.start [1/8] %v2409, 128
        %2495 = vxpose.xlu0.c.b16.cont [2/8] 0, 128
        %2496 = vxpose.xlu0.c.b16.cont [3/8] 0, 128
        %2497 = vxpose.xlu0.c.b16.cont [4/8] 0, 128
        %2498 = vxpose.xlu0.c.b16.cont [5/8] 0, 128
        %2499 = vxpose.xlu0.c.b16.cont [6/8] 0, 128
        %2500 = vxpose.xlu0.c.b16.cont [7/8] 0, 128
        %2501 = vxpose.xlu0.c.b16.end [8/8] 0, 128
        %v2502 = vpop.trf.xlu0
        %v2503 = vpop.trf.xlu0
        %v2504 = vpop.trf.xlu0
        %v2505 = vpop.trf.xlu0
        %v2506 = vpop.trf.xlu0
        %v2507 = vpop.trf.xlu0
        %v2508 = vpop.trf.xlu0
        %v2509 = vpop.trf.xlu0
        %2510 = vxpose.xlu0.c.b16.start [1/8] %v2410, 128
        %2511 = vxpose.xlu0.c.b16.cont [2/8] 0, 128
        %2512 = vxpose.xlu0.c.b16.cont [3/8] 0, 128
        %2513 = vxpose.xlu0.c.b16.cont [4/8] 0, 128
        %2514 = vxpose.xlu0.c.b16.cont [5/8] 0, 128
        %2515 = vxpose.xlu0.c.b16.cont [6/8] 0, 128
        %2516 = vxpose.xlu0.c.b16.cont [7/8] 0, 128
        %2517 = vxpose.xlu0.c.b16.end [8/8] 0, 128
        %v2518 = vpop.trf.xlu0
        %v2519 = vpop.trf.xlu0
        %v2520 = vpop.trf.xlu0
        %v2521 = vpop.trf.xlu0
        %v2522 = vpop.trf.xlu0
        %v2523 = vpop.trf.xlu0
        %v2524 = vpop.trf.xlu0
        %v2525 = vpop.trf.xlu0
        %2526 = vxpose.xlu0.c.b16.start [1/8] %v2411, 128
        %2527 = vxpose.xlu0.c.b16.cont [2/8] 0, 128
        %2528 = vxpose.xlu0.c.b16.cont [3/8] 0, 128
        %2529 = vxpose.xlu0.c.b16.cont [4/8] 0, 128
        %2530 = vxpose.xlu0.c.b16.cont [5/8] 0, 128
        %2531 = vxpose.xlu0.c.b16.cont [6/8] 0, 128
        %2532 = vxpose.xlu0.c.b16.cont [7/8] 0, 128
        %2533 = vxpose.xlu0.c.b16.end [8/8] 0, 128
        %v2534 = vpop.trf.xlu0
        %v2535 = vpop.trf.xlu0
        %v2536 = vpop.trf.xlu0
        %v2537 = vpop.trf.xlu0
        %v2538 = vpop.trf.xlu0
        %v2539 = vpop.trf.xlu0
        %v2540 = vpop.trf.xlu0
        %v2541 = vpop.trf.xlu0
        %2542 = vxpose.xlu0.c.b16.start [1/8] %v2412, 128
        %2543 = vxpose.xlu0.c.b16.cont [2/8] 0, 128
        %2544 = vxpose.xlu0.c.b16.cont [3/8] 0, 128
        %2545 = vxpose.xlu0.c.b16.cont [4/8] 0, 128
        %2546 = vxpose.xlu0.c.b16.cont [5/8] 0, 128
        %2547 = vxpose.xlu0.c.b16.cont [6/8] 0, 128
        %2548 = vxpose.xlu0.c.b16.cont [7/8] 0, 128
        %2549 = vxpose.xlu0.c.b16.end [8/8] 0, 128
        %v2550 = vpop.trf.xlu0
        %v2551 = vpop.trf.xlu0
        %v2552 = vpop.trf.xlu0
        %v2553 = vpop.trf.xlu0
        %v2554 = vpop.trf.xlu0
        %v2555 = vpop.trf.xlu0
        %v2556 = vpop.trf.xlu0
        %v2557 = vpop.trf.xlu0
        %2558 = vxpose.xlu0.c.b16.start [1/8] %v2413, 128
        %2559 = vxpose.xlu0.c.b16.cont [2/8] 0, 128
        %2560 = vxpose.xlu0.c.b16.cont [3/8] 0, 128
        %2561 = vxpose.xlu0.c.b16.cont [4/8] 0, 128
        %2562 = vxpose.xlu0.c.b16.cont [5/8] 0, 128
        %2563 = vxpose.xlu0.c.b16.cont [6/8] 0, 128
        %2564 = vxpose.xlu0.c.b16.cont [7/8] 0, 128
        %2565 = vxpose.xlu0.c.b16.end [8/8] 0, 128
        %v2566 = vpop.trf.xlu0
        %v2567 = vpop.trf.xlu0
        %v2568 = vpop.trf.xlu0
        %v2569 = vpop.trf.xlu0
        %v2570 = vpop.trf.xlu0
        %v2571 = vpop.trf.xlu0
        %v2572 = vpop.trf.xlu0
        %v2573 = vpop.trf.xlu0
        %v2574 = vcombine.low %v2422, %v2486
        %v2576 = vunpack.c.l.s4 1983009808
        %v2577 = vunpack.c.0.s8 %v2576
        %v2578 = vlaneseq
        %v2579 = vshrl.u32 %v2578, 7
        %v2580 = vsub.s32 %v2577, %v2579
        %v2581 = vrot.slane %v2574, %v2580
        %v2582 = vcombine.low %v2454, %v2518
        %v2584 = vunpack.c.l.s4 1983009808
        %v2585 = vunpack.c.0.s8 %v2584
        %v2586 = vlaneseq
        %v2587 = vshrl.u32 %v2586, 7
        %v2588 = vsub.s32 %v2585, %v2587
        %v2589 = vrot.slane %v2582, %v2588
        %v2590 = vcombine.low %v2581, %v2589
        %v2592 = vunpack.c.l.s4 1934713408
        %v2593 = vunpack.c.0.s8 %v2592
        %v2594 = vlaneseq
        %v2595 = vshrl.u32 %v2594, 7
        %v2596 = vsub.s32 %v2593, %v2595
        %v2597 = vrot.slane %v2590, %v2596
        %v2599 = vunpack.c.l.s4 1934713408
        %v2600 = vunpack.c.0.s8 %v2599
        %v2601 = vlaneseq
        %v2602 = vshrl.u32 %v2601, 7
        %v2603 = vsub.s32 %v2600, %v2602
        %v2604 = vrot.slane %v2550, %v2603
        %v2605 = vcombine.low %v2597, %v2604
        %v2606 = vcombine.high %v2597, %v2604
        %v2607 = vcombine.low %v2438, %v2502
        %v2609 = vunpack.c.l.s4 1983009808
        %v2610 = vunpack.c.0.s8 %v2609
        %v2611 = vlaneseq
        %v2612 = vshrl.u32 %v2611, 7
        %v2613 = vsub.s32 %v2610, %v2612
        %v2614 = vrot.slane %v2607, %v2613
        %v2615 = vcombine.low %v2470, %v2534
        %v2617 = vunpack.c.l.s4 1983009808
        %v2618 = vunpack.c.0.s8 %v2617
        %v2619 = vlaneseq
        %v2620 = vshrl.u32 %v2619, 7
        %v2621 = vsub.s32 %v2618, %v2620
        %v2622 = vrot.slane %v2615, %v2621
        %v2623 = vcombine.low %v2614, %v2622
        %v2625 = vunpack.c.l.s4 1934713408
        %v2626 = vunpack.c.0.s8 %v2625
        %v2627 = vlaneseq
        %v2628 = vshrl.u32 %v2627, 7
        %v2629 = vsub.s32 %v2626, %v2628
        %v2630 = vrot.slane %v2623, %v2629
        %v2632 = vunpack.c.l.s4 1934713408
        %v2633 = vunpack.c.0.s8 %v2632
        %v2634 = vlaneseq
        %v2635 = vshrl.u32 %v2634, 7
        %v2636 = vsub.s32 %v2633, %v2635
        %v2637 = vrot.slane %v2566, %v2636
        %v2638 = vcombine.low %v2630, %v2637
        %v2639 = vcombine.high %v2630, %v2637
        %v2642 = vpack.i.b16 %v2638, %v2605
        %v2643 = vshrl.u32 %v2605, 16
        %v2644 = vshrl.u32 %v2638, 16
        %v2645 = vpack.i.b16 %v2644, %v2643
        %v2648 = vpack.i.b16 %v2639, %v2606
        %v2649 = vld [vmem:[%s6] sm:$0xf]
        %v2650 = vld [vmem:[%s6 + $0x4] sm:$0xf]
        %v2651 = vld [vmem:[%s310] sm:$0xf]
        %v2652 = vld [vmem:[%s310 + $0x4] sm:$0xf]
        %v2653 = vld [vmem:[%s310 + $0x8] sm:$0xf]
        %v2654 = vld [vmem:[%s310 + $0xc] sm:$0xf]
        %v2657 = vunpack.c.l.b16 %v2649
        %v2658 = vunpack.c.l.b16 %v2650
        %v2659 = vpack.c.b16 %v2658, %v2657
        %vm2661 = vcmask 130048
        %v2663 = vsel %vm2661, %v2642, 0
        %2665 = vmatprep.subr.bf16.mxu0 0
        %2666 = vmatpush1.bf16.msra.mxu0 %v2659
        %2667 = vmatprep.subr.bf16.mxu0 0
        %2668 = vmatpush1.bf16.msra.mxu0 0
        %2669 = vmatprep.subr.bf16.mxu0 0
        %2670 = vmatpush1.bf16.msra.mxu0 0
        %2671 = vmatprep.subr.bf16.mxu0 0
        %2672 = vmatpush1.bf16.msra.mxu0 0
        %2673 = vmatprep.subr.bf16.mxu0 0
        %2674 = vmatpush1.bf16.msra.mxu0 0
        %2675 = vmatprep.subr.bf16.mxu0 0
        %2676 = vmatpush1.bf16.msra.mxu0 0
        %2677 = vmatprep.subr.bf16.mxu0 0
        %2678 = vmatpush1.bf16.msra.mxu0 0
        %2679 = vmatprep.subr.bf16.mxu0 0
        %2680 = vmatpush1.bf16.msra.mxu0 0
        %2681 = vmatprep.subr.bf16.mxu0 0
        %2682 = vmatpush1.bf16.msra.mxu0 0
        %2683 = vmatprep.subr.bf16.mxu0 0
        %2684 = vmatpush1.bf16.msra.mxu0 0
        %2685 = vmatprep.subr.bf16.mxu0 0
        %2686 = vmatpush1.bf16.msra.mxu0 0
        %2687 = vmatprep.subr.bf16.mxu0 0
        %2688 = vmatpush1.bf16.msra.mxu0 0
        %2689 = vmatprep.subr.bf16.mxu0 0
        %2690 = vmatpush1.bf16.msra.mxu0 0
        %2691 = vmatprep.subr.bf16.mxu0 0
        %2692 = vmatpush1.bf16.msra.mxu0 0
        %2693 = vmatprep.subr.bf16.mxu0 0
        %2694 = vmatpush1.bf16.msra.mxu0 0
        %2695 = vmatprep.subr.bf16.mxu0 0
        %2696 = vmatpush1.bf16.msra.mxu0 0
        %2697 = vmatprep.mubr.bf16.mxu0 0
        %2698 = vmatmul.mubr.bf16.gmra.mrb[0].mxu0 %v2663
        %v2699 = vpop.f32.mrb[0].mxu0
        %v2700 = vadd.f32 0.0, %v2699
        %v2701 = vpop.f32.mrb[0].mxu0
        %v2702 = vpop.f32.mrb[0].mxu0
        %v2703 = vadd.f32 0.0, %v2702
        %v2704 = vpop.f32.mrb[0].mxu0
        %2705 = vdwg.mxu0
        %v2706 = vpack.c.bf16 %v2703, %v2700
        %v2711 = vunpack.c.l.b16 %v2651
        %v2712 = vunpack.c.l.b16 %v2652
        %v2713 = vunpack.c.l.b16 %v2653
        %v2714 = vunpack.c.l.b16 %v2654
        %v2715 = vpack.c.b16 %v2712, %v2711
        %v2716 = vpack.c.b16 %v2714, %v2713
        %vm2717 = vcmask 80896
        %v2719 = vsel %vm2717, %v2715, 0
        %v2722 = vsel %vm2717, %v2716, 0
        %vm2724 = vcmask 1044480
        %v2726 = vsel %vm2724, %v2706, 0
        %2728 = vmatprep.subr.bf16.mxu0 0
        %2729 = vmatpush1.bf16.msra.mxu0 %v2726
        %2730 = vmatprep.subr.bf16.mxu0 0
        %2731 = vmatpush1.bf16.msra.mxu0 0
        %2732 = vmatprep.subr.bf16.mxu0 0
        %2733 = vmatpush1.bf16.msra.mxu0 0
        %2734 = vmatprep.subr.bf16.mxu0 0
        %2735 = vmatpush1.bf16.msra.mxu0 0
        %2736 = vmatprep.subr.bf16.mxu0 0
        %2737 = vmatpush1.bf16.msra.mxu0 0
        %2738 = vmatprep.subr.bf16.mxu0 0
        %2739 = vmatpush1.bf16.msra.mxu0 0
        %2740 = vmatprep.subr.bf16.mxu0 0
        %2741 = vmatpush1.bf16.msra.mxu0 0
        %2742 = vmatprep.subr.bf16.mxu0 0
        %2743 = vmatpush1.bf16.msra.mxu0 0
        %2744 = vmatprep.subr.bf16.mxu0 0
        %2745 = vmatpush1.bf16.msra.mxu0 0
        %2746 = vmatprep.subr.bf16.mxu0 0
        %2747 = vmatpush1.bf16.msra.mxu0 0
        %2748 = vmatprep.subr.bf16.mxu0 0
        %2749 = vmatpush1.bf16.msra.mxu0 0
        %2750 = vmatprep.subr.bf16.mxu0 0
        %2751 = vmatpush1.bf16.msra.mxu0 0
        %2752 = vmatprep.subr.bf16.mxu0 0
        %2753 = vmatpush1.bf16.msra.mxu0 0
        %2754 = vmatprep.subr.bf16.mxu0 0
        %2755 = vmatpush1.bf16.msra.mxu0 0
        %2756 = vmatprep.subr.bf16.mxu0 0
        %2757 = vmatpush1.bf16.msra.mxu0 0
        %2758 = vmatprep.subr.bf16.mxu0 0
        %2759 = vmatpush1.bf16.msra.mxu0 0
        %2760 = vmatprep.mubr.bf16.mxu0 0
        %2761 = vmatmul.mubr.bf16.gmra.mrb[0].mxu0 %v2719
        %v2762 = vpop.f32.mrb[0].mxu0
        %v2763 = vadd.f32 0.0, %v2762
        %v2764 = vpop.f32.mrb[0].mxu0
        %v2765 = vpop.f32.mrb[0].mxu0
        %v2766 = vadd.f32 0.0, %v2765
        %v2767 = vpop.f32.mrb[0].mxu0
        %2768 = vmatprep.mubr.bf16.mxu0 0
        %2769 = vmatmul.mubr.bf16.gmra.mrb[0].mxu0 %v2722
        %v2770 = vpop.f32.mrb[0].mxu0
        %v2771 = vadd.f32 0.0, %v2770
        %v2772 = vpop.f32.mrb[0].mxu0
        %v2773 = vpop.f32.mrb[0].mxu0
        %v2774 = vadd.f32 0.0, %v2773
        %v2775 = vpop.f32.mrb[0].mxu0
        %2776 = vdwg.mxu0
        %v2777 = vpack.c.bf16 %v2766, %v2763
        %v2778 = vpack.c.bf16 %v2774, %v2771
        %v2781 = vunpack.c.l.b16 %v2777
        %v2782 = vunpack.c.h.b16 %v2777
        %v2783 = vunpack.c.l.b16 %v2778
        %v2784 = vunpack.c.h.b16 %v2778
        %v2785 = vpack.c.b16 %v2781, %v2781
        %v2786 = vpack.c.b16 %v2782, %v2782
        %v2787 = vpack.c.b16 %v2783, %v2783
        %v2788 = vpack.c.b16 %v2784, %v2784
        %vm2793 = vcmask 519168
        %2794 = vst.msk [vmem:[%s300] sm:$0xf] %vm2793, %v2785
        %2795 = vst.msk [vmem:[%s300 + $0x4] sm:$0xf] %vm2793, %v2786
        %2796 = vst.msk [vmem:[%s300 + $0x8] sm:$0xf] %vm2793, %v2787
        %2797 = vst.msk [vmem:[%s300 + $0xc] sm:$0xf] %vm2793, %v2788
        %v2799 = vsel %vm2661, %v2645, 0
        %2801 = vmatprep.subr.bf16.mxu0 0
        %2802 = vmatpush1.bf16.msra.mxu0 %v2659
        %2803 = vmatprep.subr.bf16.mxu0 0
        %2804 = vmatpush1.bf16.msra.mxu0 0
        %2805 = vmatprep.subr.bf16.mxu0 0
        %2806 = vmatpush1.bf16.msra.mxu0 0
        %2807 = vmatprep.subr.bf16.mxu0 0
        %2808 = vmatpush1.bf16.msra.mxu0 0
        %2809 = vmatprep.subr.bf16.mxu0 0
        %2810 = vmatpush1.bf16.msra.mxu0 0
        %2811 = vmatprep.subr.bf16.mxu0 0
        %2812 = vmatpush1.bf16.msra.mxu0 0
        %2813 = vmatprep.subr.bf16.mxu0 0
        %2814 = vmatpush1.bf16.msra.mxu0 0
        %2815 = vmatprep.subr.bf16.mxu0 0
        %2816 = vmatpush1.bf16.msra.mxu0 0
        %2817 = vmatprep.subr.bf16.mxu0 0
        %2818 = vmatpush1.bf16.msra.mxu0 0
        %2819 = vmatprep.subr.bf16.mxu0 0
        %2820 = vmatpush1.bf16.msra.mxu0 0
        %2821 = vmatprep.subr.bf16.mxu0 0
        %2822 = vmatpush1.bf16.msra.mxu0 0
        %2823 = vmatprep.subr.bf16.mxu0 0
        %2824 = vmatpush1.bf16.msra.mxu0 0
        %2825 = vmatprep.subr.bf16.mxu0 0
        %2826 = vmatpush1.bf16.msra.mxu0 0
        %2827 = vmatprep.subr.bf16.mxu0 0
        %2828 = vmatpush1.bf16.msra.mxu0 0
        %2829 = vmatprep.subr.bf16.mxu0 0
        %2830 = vmatpush1.bf16.msra.mxu0 0
        %2831 = vmatprep.subr.bf16.mxu0 0
        %2832 = vmatpush1.bf16.msra.mxu0 0
        %2833 = vmatprep.mubr.bf16.mxu0 0
        %2834 = vmatmul.mubr.bf16.gmra.mrb[0].mxu0 %v2799
        %v2835 = vpop.f32.mrb[0].mxu0
        %v2836 = vadd.f32 0.0, %v2835
        %v2837 = vpop.f32.mrb[0].mxu0
        %v2838 = vpop.f32.mrb[0].mxu0
        %v2839 = vadd.f32 0.0, %v2838
        %v2840 = vpop.f32.mrb[0].mxu0
        %2841 = vdwg.mxu0
        %v2842 = vpack.c.bf16 %v2839, %v2836
        %v2844 = vsel %vm2724, %v2842, 0
        %2846 = vmatprep.subr.bf16.mxu0 0
        %2847 = vmatpush1.bf16.msra.mxu0 %v2844
        %2848 = vmatprep.subr.bf16.mxu0 0
        %2849 = vmatpush1.bf16.msra.mxu0 0
        %2850 = vmatprep.subr.bf16.mxu0 0
        %2851 = vmatpush1.bf16.msra.mxu0 0
        %2852 = vmatprep.subr.bf16.mxu0 0
        %2853 = vmatpush1.bf16.msra.mxu0 0
        %2854 = vmatprep.subr.bf16.mxu0 0
        %2855 = vmatpush1.bf16.msra.mxu0 0
        %2856 = vmatprep.subr.bf16.mxu0 0
        %2857 = vmatpush1.bf16.msra.mxu0 0
        %2858 = vmatprep.subr.bf16.mxu0 0
        %2859 = vmatpush1.bf16.msra.mxu0 0
        %2860 = vmatprep.subr.bf16.mxu0 0
        %2861 = vmatpush1.bf16.msra.mxu0 0
        %2862 = vmatprep.subr.bf16.mxu0 0
        %2863 = vmatpush1.bf16.msra.mxu0 0
        %2864 = vmatprep.subr.bf16.mxu0 0
        %2865 = vmatpush1.bf16.msra.mxu0 0
        %2866 = vmatprep.subr.bf16.mxu0 0
        %2867 = vmatpush1.bf16.msra.mxu0 0
        %2868 = vmatprep.subr.bf16.mxu0 0
        %2869 = vmatpush1.bf16.msra.mxu0 0
        %2870 = vmatprep.subr.bf16.mxu0 0
        %2871 = vmatpush1.bf16.msra.mxu0 0
        %2872 = vmatprep.subr.bf16.mxu0 0
        %2873 = vmatpush1.bf16.msra.mxu0 0
        %2874 = vmatprep.subr.bf16.mxu0 0
        %2875 = vmatpush1.bf16.msra.mxu0 0
        %2876 = vmatprep.subr.bf16.mxu0 0
        %2877 = vmatpush1.bf16.msra.mxu0 0
        %2878 = vmatprep.mubr.bf16.mxu0 0
        %2879 = vmatmul.mubr.bf16.gmra.mrb[0].mxu0 %v2719
        %v2880 = vpop.f32.mrb[0].mxu0
        %v2881 = vadd.f32 0.0, %v2880
        %v2882 = vpop.f32.mrb[0].mxu0
        %v2883 = vpop.f32.mrb[0].mxu0
        %v2884 = vadd.f32 0.0, %v2883
        %v2885 = vpop.f32.mrb[0].mxu0
        %2886 = vmatprep.mubr.bf16.mxu0 0
        %2887 = vmatmul.mubr.bf16.gmra.mrb[0].mxu0 %v2722
        %v2888 = vpop.f32.mrb[0].mxu0
        %v2889 = vadd.f32 0.0, %v2888
        %v2890 = vpop.f32.mrb[0].mxu0
        %v2891 = vpop.f32.mrb[0].mxu0
        %v2892 = vadd.f32 0.0, %v2891
        %v2893 = vpop.f32.mrb[0].mxu0
        %2894 = vdwg.mxu0
        %v2895 = vpack.c.bf16 %v2884, %v2881
        %v2896 = vpack.c.bf16 %v2892, %v2889
        %v2899 = vunpack.c.l.b16 %v2895
        %v2900 = vunpack.c.h.b16 %v2895
        %v2901 = vunpack.c.l.b16 %v2896
        %v2902 = vunpack.c.h.b16 %v2896
        %v2903 = vpack.c.b16 %v2899, %v2899
        %v2904 = vpack.c.b16 %v2900, %v2900
        %v2905 = vpack.c.b16 %v2901, %v2901
        %v2906 = vpack.c.b16 %v2902, %v2902
        %s2911 = scalar_lea.vmem %s300, 16 [#allocation2]
        %2912 = vst.msk [vmem:[%s2911] sm:$0xf] %vm2793, %v2903
        %2913 = vst.msk [vmem:[%s2911 + $0x4] sm:$0xf] %vm2793, %v2904
        %2914 = vst.msk [vmem:[%s2911 + $0x8] sm:$0xf] %vm2793, %v2905
        %2915 = vst.msk [vmem:[%s2911 + $0xc] sm:$0xf] %vm2793, %v2906
        %v2917 = vsel %vm2661, %v2648, 0
        %2919 = vmatprep.subr.bf16.mxu0 0
        %2920 = vmatpush1.bf16.msra.mxu0 %v2659
        %2921 = vmatprep.subr.bf16.mxu0 0
        %2922 = vmatpush1.bf16.msra.mxu0 0
        %2923 = vmatprep.subr.bf16.mxu0 0
        %2924 = vmatpush1.bf16.msra.mxu0 0
        %2925 = vmatprep.subr.bf16.mxu0 0
        %2926 = vmatpush1.bf16.msra.mxu0 0
        %2927 = vmatprep.subr.bf16.mxu0 0
        %2928 = vmatpush1.bf16.msra.mxu0 0
        %2929 = vmatprep.subr.bf16.mxu0 0
        %2930 = vmatpush1.bf16.msra.mxu0 0
        %2931 = vmatprep.subr.bf16.mxu0 0
        %2932 = vmatpush1.bf16.msra.mxu0 0
        %2933 = vmatprep.subr.bf16.mxu0 0
        %2934 = vmatpush1.bf16.msra.mxu0 0
        %2935 = vmatprep.subr.bf16.mxu0 0
        %2936 = vmatpush1.bf16.msra.mxu0 0
        %2937 = vmatprep.subr.bf16.mxu0 0
        %2938 = vmatpush1.bf16.msra.mxu0 0
        %2939 = vmatprep.subr.bf16.mxu0 0
        %2940 = vmatpush1.bf16.msra.mxu0 0
        %2941 = vmatprep.subr.bf16.mxu0 0
        %2942 = vmatpush1.bf16.msra.mxu0 0
        %2943 = vmatprep.subr.bf16.mxu0 0
        %2944 = vmatpush1.bf16.msra.mxu0 0
        %2945 = vmatprep.subr.bf16.mxu0 0
        %2946 = vmatpush1.bf16.msra.mxu0 0
        %2947 = vmatprep.subr.bf16.mxu0 0
        %2948 = vmatpush1.bf16.msra.mxu0 0
        %2949 = vmatprep.subr.bf16.mxu0 0
        %2950 = vmatpush1.bf16.msra.mxu0 0
        %2951 = vmatprep.mubr.bf16.mxu0 0
        %2952 = vmatmul.mubr.bf16.gmra.mrb[0].mxu0 %v2917
        %v2953 = vpop.f32.mrb[0].mxu0
        %v2954 = vadd.f32 0.0, %v2953
        %v2955 = vpop.f32.mrb[0].mxu0
        %v2956 = vpop.f32.mrb[0].mxu0
        %v2957 = vadd.f32 0.0, %v2956
        %v2958 = vpop.f32.mrb[0].mxu0
        %2959 = vdwg.mxu0
        %v2960 = vpack.c.bf16 %v2957, %v2954
        %v2962 = vsel %vm2724, %v2960, 0
        %2964 = vmatprep.subr.bf16.mxu0 0
        %2965 = vmatpush1.bf16.msra.mxu0 %v2962
        %2966 = vmatprep.subr.bf16.mxu0 0
        %2967 = vmatpush1.bf16.msra.mxu0 0
        %2968 = vmatprep.subr.bf16.mxu0 0
        %2969 = vmatpush1.bf16.msra.mxu0 0
        %2970 = vmatprep.subr.bf16.mxu0 0
        %2971 = vmatpush1.bf16.msra.mxu0 0
        %2972 = vmatprep.subr.bf16.mxu0 0
        %2973 = vmatpush1.bf16.msra.mxu0 0
        %2974 = vmatprep.subr.bf16.mxu0 0
        %2975 = vmatpush1.bf16.msra.mxu0 0
        %2976 = vmatprep.subr.bf16.mxu0 0
        %2977 = vmatpush1.bf16.msra.mxu0 0
        %2978 = vmatprep.subr.bf16.mxu0 0
        %2979 = vmatpush1.bf16.msra.mxu0 0
        %2980 = vmatprep.subr.bf16.mxu0 0
        %2981 = vmatpush1.bf16.msra.mxu0 0
        %2982 = vmatprep.subr.bf16.mxu0 0
        %2983 = vmatpush1.bf16.msra.mxu0 0
        %2984 = vmatprep.subr.bf16.mxu0 0
        %2985 = vmatpush1.bf16.msra.mxu0 0
        %2986 = vmatprep.subr.bf16.mxu0 0
        %2987 = vmatpush1.bf16.msra.mxu0 0
        %2988 = vmatprep.subr.bf16.mxu0 0
        %2989 = vmatpush1.bf16.msra.mxu0 0
        %2990 = vmatprep.subr.bf16.mxu0 0
        %2991 = vmatpush1.bf16.msra.mxu0 0
        %2992 = vmatprep.subr.bf16.mxu0 0
        %2993 = vmatpush1.bf16.msra.mxu0 0
        %2994 = vmatprep.subr.bf16.mxu0 0
        %2995 = vmatpush1.bf16.msra.mxu0 0
        %2996 = vmatprep.mubr.bf16.mxu0 0
        %2997 = vmatmul.mubr.bf16.gmra.mrb[0].mxu0 %v2719
        %v2998 = vpop.f32.mrb[0].mxu0
        %v2999 = vadd.f32 0.0, %v2998
        %v3000 = vpop.f32.mrb[0].mxu0
        %v3001 = vpop.f32.mrb[0].mxu0
        %v3002 = vadd.f32 0.0, %v3001
        %v3003 = vpop.f32.mrb[0].mxu0
        %3004 = vmatprep.mubr.bf16.mxu0 0
        %3005 = vmatmul.mubr.bf16.gmra.mrb[0].mxu0 %v2722
        %v3006 = vpop.f32.mrb[0].mxu0
        %v3007 = vadd.f32 0.0, %v3006
        %v3008 = vpop.f32.mrb[0].mxu0
        %v3009 = vpop.f32.mrb[0].mxu0
        %v3010 = vadd.f32 0.0, %v3009
        %v3011 = vpop.f32.mrb[0].mxu0
        %3012 = vdwg.mxu0
        %v3013 = vpack.c.bf16 %v3002, %v2999
        %v3014 = vpack.c.bf16 %v3010, %v3007
        %v3017 = vunpack.c.l.b16 %v3013
        %v3018 = vunpack.c.h.b16 %v3013
        %v3019 = vunpack.c.l.b16 %v3014
        %v3020 = vunpack.c.h.b16 %v3014
        %v3021 = vpack.c.b16 %v3017, %v3017
        %v3022 = vpack.c.b16 %v3018, %v3018
        %v3023 = vpack.c.b16 %v3019, %v3019
        %v3024 = vpack.c.b16 %v3020, %v3020
        %s3029 = scalar_lea.vmem %s300, 32 [#allocation2]
        %3030 = vst.msk [vmem:[%s3029] sm:$0xf] %vm2793, %v3021
        %3031 = vst.msk [vmem:[%s3029 + $0x4] sm:$0xf] %vm2793, %v3022
        %3032 = vst.msk [vmem:[%s3029 + $0x8] sm:$0xf] %vm2793, %v3023
        %3033 = vst.msk [vmem:[%s3029 + $0xc] sm:$0xf] %vm2793, %v3024
        %s3034 = sand.u32 %s200, 1
        %s3035 = scalar_lea.sflag [#allocation3], %s3034
        %s3036 = sand.u32 %s200, 1
        %s3037 = smul.addr %s3036, 48
        %s3038 = scalar_lea.vmem [#allocation2], %s3037
        // Predicated region
        $region49: #{seghead_forward.1} parent=47 // pred_check
          %p3039 = pneg %p210
        $region50: #{seghead_forward.1} parent=47 // pred_check_branch
          %3041 = sbr.rel (%p3039) target = $region52
        $region51: #{seghead_forward.1} parent=47 // pred_region
          #allocation5 [shape = 'u32[6]{0}', space=smem, size = 0x18, scoped, tag = 'DMA stride descriptor']
          %s3042 = smul.u32 4, %s26
          %s3044 = ssub.s32 768, 768
          %3045 = vsyncadd %s3035, %s3044
          %s3046 = smul.addr %s25, 24
          %s3047 = sadd.s32 %s3042, %s3046
          %s3048 = smul.addr %s3047, 64
          %s3049 = scalar_lea.hbm %s7, %s3048
          %s3051 = sshll.u32 1, 14
          %s3052 = sxor.u32 4294967295, %s3051
          %s3055 = sshll.u32 7, 18
          %s3056 = sxor.u32 4294967295, %s3055
          %s3057 = sand.u32 0, %s3056
          %s3059 = sor.u32 %s3057, 0
          %s3061 = sshll.u32 3, 24
          %s3062 = sxor.u32 4294967295, %s3061
          %s3063 = sand.u32 %s3059, %s3062
          %s3065 = sor.u32 %s3063, 0
          %s3066 = sshll.u32 %s3038, 4
          %s3067 = int_to_ptr.vmem [resolvable:$true] %s3066
          %3073 = sst [smem:[#allocation5]] 256
          %s3074 = scalar_lea.smem [#allocation5], 1
          %3075 = sst [smem:[%s3074]] 512
          %s3076 = scalar_lea.smem [#allocation5], 2
          %3077 = sst [smem:[%s3076]] 4
          %s3078 = scalar_lea.smem [#allocation5], 3
          %3079 = sst [smem:[%s3078]] 64
          %s3080 = scalar_lea.smem [#allocation5], 4
          %3081 = sst [smem:[%s3080]] 64
          %s3082 = scalar_lea.smem [#allocation5], 5
          %3083 = sst [smem:[%s3082]] 4
          %3085 = dma.general %s3067, 768, %s3049, %s3035, [#allocation4], [#allocation5], %s3065, 0
        $region52: #{seghead_forward.1} parent=47 // pred_fallthru
          _
      $region48: #{seghead_forward.1} parent=5 // pred_fallthru
        _
      %p3086 = scmp.le.s32.totalorder 2, %s16
      // Predicated region
      $region53: #{seghead_forward.1} parent=5 // pred_check
        %p3087 = pneg %p3086
      $region54: #{seghead_forward.1} parent=5 // pred_check_branch
        %3089 = sbr.rel (%p3087) target = $region56
      $region55: #{seghead_forward.1} parent=5 // pred_region
        %s3090 = ssub.s32 %s16, 2
        // Predicated region
        $region57: #{seghead_forward.1} parent=55 // pred_check
          %p3091 = pneg %p216
        $region58: #{seghead_forward.1} parent=55 // pred_check_branch
          %3093 = sbr.rel (%p3091) target = $region60
        $region59: #{seghead_forward.1} parent=55 // pred_region
          %s3094 = sand.u32 %s201, 1
          %s3095 = scalar_lea.sflag [#allocation3], %s3094
          %s3096 = sand.u32 %s201, 1
          %s3097 = smul.addr %s3096, 48
          %s3098 = scalar_lea.vmem [#allocation2], %s3097
          %3099 = dma.done %s3095, 768
        $region60: #{seghead_forward.1} parent=55 // pred_fallthru
          _
      $region56: #{seghead_forward.1} parent=5 // pred_fallthru
        _
    $region6: #{seghead_forward.1} parent=1 // loop_footer
      %s20 = sadd.s32 1, %s16
    $region7: #{seghead_forward.1} parent=1 // loop_footer_branch
      %15 = sbr.rel target = $region3
    $region8: #{seghead_forward.1} parent=1 // loop_exit
      _
    %3100 = vsyncpa [#allocation3], 1
    %s3101 = scalar_lea.sflag [#allocation3], 1
    %3102 = vsyncpa %s3101, 1

// kernel: seghead_forward.1
$region0: #{seghead_forward.1}
  #allocation0 [shape = 'u32[]', space=smem, size = 0x4, offset = 0x4, fixed_abs, tag = 'smem constant byte address 0x4 - core index']
  #allocation1 [shape = 'u32[144,128]{1,0:T(1,128)}', space=vmem, size = 0x12000, scoped, tag = 'internal scratch']
  #allocation4 [shape = 's32[]', space=sflag, size = 0x4, offset = 0, fixed_abs, tag = 'sflag constant byte address 0x0 - dummy sync flag']
  %s0 = inlined_call_operand.vmem [shape: bf16[2,18,24,4], index: 0, kind: input, shape index: {}]
  %s1 = inlined_call_operand.vmem [shape: bf16[9,4,8], index: 1, kind: input, shape index: {}]
  %s2 = inlined_call_operand.vmem [shape: f32[1,8], index: 2, kind: input, shape index: {}]
  %s3 = inlined_call_operand.vmem [shape: bf16[8,3], index: 3, kind: input, shape index: {}]
  %s4 = inlined_call_operand.vmem [shape: f32[1,3], index: 4, kind: input, shape index: {}]
  %s5 = inlined_call_operand.vmem [shape: bf16[2,32,10], index: 5, kind: input, shape index: {}]
  %s6 = inlined_call_operand.vmem [shape: bf16[16,64], index: 6, kind: input, shape index: {}]
  %s7 = inlined_call_operand.hbm [shape: bf16[2,3,64,64], index: 7, kind: output, shape index: {}]
  %s8 = sld [smem:[#allocation0]]
  $region61: #{seghead_forward.1} parent=0
    _
  %s10 = ssub.s32 1, %s8
  %s11 = scalar_select 0, %s10, %s8
  $region1: #{seghead_forward.1} parent=0
    #allocation2 [shape = 'u8[49152]{0}', space=vmem, size = 0xc000, scoped, tag = 'output window, operand 0']
    #allocation3 [shape = 's32[2]{0}', space=sflag, size = 0x8, scoped, tag = 'scoped memory for seghead_forward.1']
    %12 = vsyncpa [#allocation3], 0
    %s13 = scalar_lea.sflag [#allocation3], 1
    %14 = vsyncpa %s13, 0
    loop: start=0, step=1, limit=6
    $region2: #{seghead_forward.1} parent=1 // loop_pre_header
      _
    $region3: #{seghead_forward.1} parent=1 // loop_header
      %s16 = sphi 0, %s20
      %p17 = scmp.ge.s32.totalorder %s16, 6
      %s23 = sphi 0, %s35
      %s24 = sphi 0, %s31
      %s25 = sphi 0, %s23
      %s26 = sphi 0, %s24
      %s27 = sphi 0, %s25
      %s28 = sphi 0, %s26
      %s38 = sphi 0, %s40
      %s41 = sphi 0, %s38
      %s42 = sphi 0, %s41
      %s58 = sphi 0, %s42
      %s62 = sphi 0, %s62
      %s64 = sphi 0, %s62
      %s65 = sphi 0, %s64
      %s79 = sphi 0, %s65
      %s83 = sphi 0, %s83
      %s85 = sphi 0, %s83
      %s86 = sphi 0, %s85
      %s100 = sphi 0, %s86
      %s104 = sphi 0, %s104
      %s106 = sphi 0, %s104
      %s107 = sphi 0, %s106
      %s121 = sphi 0, %s107
      %s125 = sphi 0, %s125
      %s127 = sphi 0, %s125
      %s128 = sphi 0, %s127
      %s142 = sphi 0, %s128
      %s148 = sphi 0, %s150
      %s151 = sphi 0, %s148
      %s152 = sphi 0, %s151
      %s168 = sphi 0, %s152
      %s172 = sphi 0, %s172
      %s174 = sphi 0, %s172
      %s175 = sphi 0, %s174
      %s189 = sphi 0, %s175
      %s197 = sphi 0, %s199
      %s200 = sphi 0, %s197
      %s201 = sphi 0, %s200
      %s217 = sphi 0, %s201
    $region4: #{seghead_forward.1} parent=1 // loop_header_branch
      %19 = sbr.rel (%p17) target = $region8
    $region5: #{seghead_forward.1} parent=1 // loop_body
      %s21 = ssub.s32 %s16, 1
      %s22 = ssub.s32 %s16, 2
      %s29 = sadd.s32 1, %s24
      %p30 = scmp.ge.s32.totalorder %s29, 2
      %s31 = scalar_select %p30, 0, %s29
      %s32 = sadd.s32 1, %s23
      %s33 = scalar_select %p30, %s32, %s23
      %p34 = scmp.ge.s32.totalorder %s33, 2
      %s35 = scalar_select %p34, 0, %s33
      %s36 = ssub.s32 %s23, %s35
      %p37 = scmp.eq.s32.totalorder %s36, 0
      %s39 = sadd.s32 %s38, 1
      %s40 = scalar_select %p37, %s38, %s39
      %p43 = pneg %p37
      %p44 = scmp.eq.s32.totalorder %s16, 3
      %p45 = por %p43, %p44
      %p46 = scmp.ne.s32.totalorder %s38, %s41
      %p47 = scmp.eq.s32.totalorder %s16, 0
      %p48 = por %p46, %p47
      %p49 = scmp.ne.s32.totalorder %s38, %s41
      %p50 = scmp.eq.s32.totalorder %s21, 3
      %p51 = por %p49, %p50
      %p52 = scmp.ne.s32.totalorder %s41, %s42
      %p53 = scmp.eq.s32.totalorder %s21, 0
      %p54 = por %p52, %p53
      %p55 = scmp.ne.s32.totalorder %s41, %s42
      %p56 = scmp.eq.s32.totalorder %s22, 3
      %p57 = por %p55, %p56
      %p59 = scmp.ne.s32.totalorder %s42, %s58
      %p60 = scmp.eq.s32.totalorder %s22, 0
      %p61 = por %p59, %p60
      %s63 = sadd.s32 %s62, 1
      %p66 = scmp.eq.s32.totalorder %s16, 3
      %p67 = scmp.ne.s32.totalorder %s62, %s64
      %p68 = scmp.eq.s32.totalorder %s16, 0
      %p69 = por %p67, %p68
      %p70 = scmp.ne.s32.totalorder %s62, %s64
      %p71 = scmp.eq.s32.totalorder %s21, 3
      %p72 = por %p70, %p71
      %p73 = scmp.ne.s32.totalorder %s64, %s65
      %p74 = scmp.eq.s32.totalorder %s21, 0
      %p75 = por %p73, %p74
      %p76 = scmp.ne.s32.totalorder %s64, %s65
      %p77 = scmp.eq.s32.totalorder %s22, 3
      %p78 = por %p76, %p77
      %p80 = scmp.ne.s32.totalorder %s65, %s79
      %p81 = scmp.eq.s32.totalorder %s22, 0
      %p82 = por %p80, %p81
      %s84 = sadd.s32 %s83, 1
      %p87 = scmp.eq.s32.totalorder %s16, 3
      %p88 = scmp.ne.s32.totalorder %s83, %s85
      %p89 = scmp.eq.s32.totalorder %s16, 0
      %p90 = por %p88, %p89
      %p91 = scmp.ne.s32.totalorder %s83, %s85
      %p92 = scmp.eq.s32.totalorder %s21, 3
      %p93 = por %p91, %p92
      %p94 = scmp.ne.s32.totalorder %s85, %s86
      %p95 = scmp.eq.s32.totalorder %s21, 0
      %p96 = por %p94, %p95
      %p97 = scmp.ne.s32.totalorder %s85, %s86
      %p98 = scmp.eq.s32.totalorder %s22, 3
      %p99 = por %p97, %p98
      %p101 = scmp.ne.s32.totalorder %s86, %s100
      %p102 = scmp.eq.s32.totalorder %s22, 0
      %p103 = por %p101, %p102
      %s105 = sadd.s32 %s104, 1
      %p108 = scmp.eq.s32.totalorder %s16, 3
      %p109 = scmp.ne.s32.totalorder %s104, %s106
      %p110 = scmp.eq.s32.totalorder %s16, 0
      %p111 = por %p109, %p110
      %p112 = scmp.ne.s32.totalorder %s104, %s106
      %p113 = scmp.eq.s32.totalorder %s21, 3
      %p114 = por %p112, %p113
      %p115 = scmp.ne.s32.totalorder %s106, %s107
      %p116 = scmp.eq.s32.totalorder %s21, 0
      %p117 = por %p115, %p116
      %p118 = scmp.ne.s32.totalorder %s106, %s107
      %p119 = scmp.eq.s32.totalorder %s22, 3
      %p120 = por %p118, %p119
      %p122 = scmp.ne.s32.totalorder %s107, %s121
      %p123 = scmp.eq.s32.totalorder %s22, 0
      %p124 = por %p122, %p123
      %s126 = sadd.s32 %s125, 1
      %p129 = scmp.eq.s32.totalorder %s16, 3
      %p130 = scmp.ne.s32.totalorder %s125, %s127
      %p131 = scmp.eq.s32.totalorder %s16, 0
      %p132 = por %p130, %p131
      %p133 = scmp.ne.s32.totalorder %s125, %s127
      %p134 = scmp.eq.s32.totalorder %s21, 3
      %p135 = por %p133, %p134
      %p136 = scmp.ne.s32.totalorder %s127, %s128
      %p137 = scmp.eq.s32.totalorder %s21, 0
      %p138 = por %p136, %p137
      %p139 = scmp.ne.s32.totalorder %s127, %s128
      %p140 = scmp.eq.s32.totalorder %s22, 3
      %p141 = por %p139, %p140
      %p143 = scmp.ne.s32.totalorder %s128, %s142
      %p144 = scmp.eq.s32.totalorder %s22, 0
      %p145 = por %p143, %p144
      %s146 = ssub.s32 %s24, %s31
      %p147 = scmp.eq.s32.totalorder %s146, 0
      %s149 = sadd.s32 %s148, 1
      %s150 = scalar_select %p147, %s148, %s149
      %p153 = pneg %p147
      %p154 = scmp.eq.s32.totalorder %s16, 3
      %p155 = por %p153, %p154
      %p156 = scmp.ne.s32.totalorder %s148, %s151
      %p157 = scmp.eq.s32.totalorder %s16, 0
      %p158 = por %p156, %p157
      %p159 = scmp.ne.s32.totalorder %s148, %s151
      %p160 = scmp.eq.s32.totalorder %s21, 3
      %p161 = por %p159, %p160
      %p162 = scmp.ne.s32.totalorder %s151, %s152
      %p163 = scmp.eq.s32.totalorder %s21, 0
      %p164 = por %p162, %p163
      %p165 = scmp.ne.s32.totalorder %s151, %s152
      %p166 = scmp.eq.s32.totalorder %s22, 3
      %p167 = por %p165, %p166
      %p169 = scmp.ne.s32.totalorder %s152, %s168
      %p170 = scmp.eq.s32.totalorder %s22, 0
      %p171 = por %p169, %p170
      %s173 = sadd.s32 %s172, 1
      %p176 = scmp.eq.s32.totalorder %s16, 3
      %p177 = scmp.ne.s32.totalorder %s172, %s174
      %p178 = scmp.eq.s32.totalorder %s16, 0
      %p179 = por %p177, %p178
      %p180 = scmp.ne.s32.totalorder %s172, %s174
      %p181 = scmp.eq.s32.totalorder %s21, 3
      %p182 = por %p180, %p181
      %p183 = scmp.ne.s32.totalorder %s174, %s175
      %p184 = scmp.eq.s32.totalorder %s21, 0
      %p185 = por %p183, %p184
      %p186 = scmp.ne.s32.totalorder %s174, %s175
      %p187 = scmp.eq.s32.totalorder %s22, 3
      %p188 = por %p186, %p187
      %p190 = scmp.ne.s32.totalorder %s175, %s189
      %p191 = scmp.eq.s32.totalorder %s22, 0
      %p192 = por %p190, %p191
      %s193 = ssub.s32 %s23, %s35
      %s194 = ssub.s32 %s24, %s31
      %s195 = sor.u32 %s193, %s194
      %p196 = scmp.eq.s32.totalorder %s195, 0
      %s198 = sadd.s32 %s197, 1
      %s199 = scalar_select %p196, %s197, %s198
      %p202 = pneg %p196
      %p203 = scmp.eq.s32.totalorder %s16, 3
      %p204 = por %p202, %p203
      %p205 = scmp.ne.s32.totalorder %s197, %s200
      %p206 = scmp.eq.s32.totalorder %s16, 0
      %p207 = por %p205, %p206
      %p208 = scmp.ne.s32.totalorder %s197, %s200
      %p209 = scmp.eq.s32.totalorder %s21, 3
      %p210 = por %p208, %p209
      %p211 = scmp.ne.s32.totalorder %s200, %s201
      %p212 = scmp.eq.s32.totalorder %s21, 0
      %p213 = por %p211, %p212
      %p214 = scmp.ne.s32.totalorder %s200, %s201
      %p215 = scmp.eq.s32.totalorder %s22, 3
      %p216 = por %p214, %p215
      %p218 = scmp.ne.s32.totalorder %s201, %s217
      %p219 = scmp.eq.s32.totalorder %s22, 0
      %p220 = por %p218, %p219
      %p221 = scmp.le.s32.totalorder 1, %s16
      %p222 = scmp.lt.s32.totalorder %s16, 5
      %p223 = pnand %p221, %p222
      %p224 = pneg %p223
      // Predicated region
      $region9: #{seghead_forward.1} parent=5 // pred_check
        _
      $region10: #{seghead_forward.1} parent=5 // pred_check_branch
        %226 = sbr.rel (%p223) target = $region12
      $region11: #{seghead_forward.1} parent=5 // pred_region
        %s227 = ssub.s32 %s16, 1
        // Predicated region
        $region13: #{seghead_forward.1} parent=11 // pred_check
          %p228 = pneg %p75
        $region14: #{seghead_forward.1} parent=11 // pred_check_branch
          %230 = sbr.rel (%p228) target = $region16
        $region15: #{seghead_forward.1} parent=11 // pred_region
          _
        $region16: #{seghead_forward.1} parent=11 // pred_fallthru
          _
        // Predicated region
        $region17: #{seghead_forward.1} parent=11 // pred_check
          %p231 = pneg %p96
        $region18: #{seghead_forward.1} parent=11 // pred_check_branch
          %233 = sbr.rel (%p231) target = $region20
        $region19: #{seghead_forward.1} parent=11 // pred_region
          _
        $region20: #{seghead_forward.1} parent=11 // pred_fallthru
          _
        // Predicated region
        $region21: #{seghead_forward.1} parent=11 // pred_check
          %p234 = pneg %p117
        $region22: #{seghead_forward.1} parent=11 // pred_check_branch
          %236 = sbr.rel (%p234) target = $region24
        $region23: #{seghead_forward.1} parent=11 // pred_region
          _
        $region24: #{seghead_forward.1} parent=11 // pred_fallthru
          _
        // Predicated region
        $region25: #{seghead_forward.1} parent=11 // pred_check
          %p237 = pneg %p138
        $region26: #{seghead_forward.1} parent=11 // pred_check_branch
          %239 = sbr.rel (%p237) target = $region28
        $region27: #{seghead_forward.1} parent=11 // pred_region
          _
        $region28: #{seghead_forward.1} parent=11 // pred_fallthru
          _
        // Predicated region
        $region29: #{seghead_forward.1} parent=11 // pred_check
          %p240 = pneg %p185
        $region30: #{seghead_forward.1} parent=11 // pred_check_branch
          %242 = sbr.rel (%p240) target = $region32
        $region31: #{seghead_forward.1} parent=11 // pred_region
          _
        $region32: #{seghead_forward.1} parent=11 // pred_fallthru
          _
      $region12: #{seghead_forward.1} parent=5 // pred_fallthru
        _
      %p243 = scmp.lt.s32.totalorder %s16, 4
      // Predicated region
      $region33: #{seghead_forward.1} parent=5 // pred_check
        %p244 = pneg %p243
      $region34: #{seghead_forward.1} parent=5 // pred_check_branch
        %246 = sbr.rel (%p244) target = $region36
      $region35: #{seghead_forward.1} parent=5 // pred_region
        // Predicated region
        $region37: #{seghead_forward.1} parent=35 // pred_check
          %p247 = pneg %p48
        $region38: #{seghead_forward.1} parent=35 // pred_check_branch
          %249 = sbr.rel (%p247) target = $region40
        $region39: #{seghead_forward.1} parent=35 // pred_region
          %p250 = scmp.lt.s32.totalorder %s23, 1
          %s251 = scalar_select %p250, %s23, 1
          %s252 = smul.addr %s251, 54
          %s253 = smul.addr %s252, 4
          %s254 = scalar_lea.vmem %s0, %s253
        $region40: #{seghead_forward.1} parent=35 // pred_fallthru
          _
        // Predicated region
        $region41: #{seghead_forward.1} parent=35 // pred_check
          %p255 = pneg %p158
        $region42: #{seghead_forward.1} parent=35 // pred_check_branch
          %257 = sbr.rel (%p255) target = $region44
        $region43: #{seghead_forward.1} parent=35 // pred_region
          %p258 = scmp.lt.s32.totalorder %s24, 1
          %s259 = scalar_select %p258, %s24, 1
          %s260 = smul.addr %s259, 4
          %s261 = smul.addr %s260, 4
          %s262 = scalar_lea.vmem %s5, %s261
        $region44: #{seghead_forward.1} parent=35 // pred_fallthru
          _
      $region36: #{seghead_forward.1} parent=5 // pred_fallthru
        _
      %p263 = scmp.le.s32.totalorder 1, %s16
      %p264 = scmp.lt.s32.totalorder %s16, 5
      %p265 = pnand %p263, %p264
      %p266 = pneg %p265
      // Predicated region
      $region45: #{seghead_forward.1} parent=5 // pred_check
        _
      $region46: #{seghead_forward.1} parent=5 // pred_check_branch
        %268 = sbr.rel (%p265) target = $region48
      $region47: #{seghead_forward.1} parent=5 // pred_region
        %s269 = ssub.s32 %s16, 1
        %p270 = scmp.lt.s32.totalorder %s25, 1
        %s271 = scalar_select %p270, %s25, 1
        %s272 = smul.addr %s271, 54
        %s273 = smul.addr %s272, 4
        %s274 = scalar_lea.vmem %s0, %s273
        %p275 = pneg %p54
        %p276 = pneg %p51
        %p277 = pneg %p75
        %p278 = pneg %p72
        %p279 = pneg %p96
        %p280 = pneg %p93
        %p281 = pneg %p117
        %p282 = pneg %p114
        %p283 = pneg %p138
        %p284 = pneg %p135
        %p285 = scmp.lt.s32.totalorder %s26, 1
        %s286 = scalar_select %p285, %s26, 1
        %s287 = smul.addr %s286, 4
        %s288 = smul.addr %s287, 4
        %s289 = scalar_lea.vmem %s5, %s288
        %p290 = pneg %p164
        %p291 = pneg %p161
        %p292 = pneg %p185
        %p293 = pneg %p182
        %p294 = pneg %p213
        %p295 = pneg %p210
        %s296 = sand.u32 %s200, 1
        %s297 = scalar_lea.sflag [#allocation3], %s296
        %s298 = sand.u32 %s200, 1
        %s299 = smul.addr %s298, 48
        %s300 = scalar_lea.vmem [#allocation2], %s299
        %p301 = scmp.lt.s32.totalorder %s25, 1
        %s302 = scalar_select %p301, %s25, 1
        %s303 = smul.addr %s302, 54
        %s304 = smul.addr %s303, 4
        %s305 = scalar_lea.vmem %s0, %s304
        %p306 = scmp.lt.s32.totalorder %s26, 1
        %s307 = scalar_select %p306, %s26, 1
        %s308 = smul.addr %s307, 4
        %s309 = smul.addr %s308, 4
        %s310 = scalar_lea.vmem %s5, %s309
        %s311 = smul.u32 4, %s26
        %s313 = smul.u32 %s26, 8
        %s314 = ssub.s32 %s313, 1
        %p315 = scmp.gt.s32.totalorder %s314, 0
        %s316 = scalar_select %p315, %s314, 0
        %p317 = scmp.lt.s32.totalorder %s316, 6
        %s318 = scalar_select %p317, %s316, 6
        %s319 = smul.u32 %s318, 3
        %s320 = smul.addr %s319, 4
        %s321 = scalar_lea.vmem %s305, %s320
        %v322 = vld [vmem:[%s321] sm:$0xf]
        %v323 = vld [vmem:[%s321 + $0x4] sm:$0xf]
        %v324 = vld [vmem:[%s321 + $0x8] sm:$0xf]
        %v325 = vld [vmem:[%s321 + $0xc] sm:$0xf]
        %v326 = vld [vmem:[%s321 + $0x10] sm:$0xf]
        %v327 = vld [vmem:[%s321 + $0x14] sm:$0xf]
        %v328 = vld [vmem:[%s321 + $0x18] sm:$0xf]
        %v329 = vld [vmem:[%s321 + $0x1c] sm:$0xf]
        %v330 = vld [vmem:[%s321 + $0x20] sm:$0xf]
        %v331 = vld [vmem:[%s321 + $0x24] sm:$0xf]
        %v332 = vld [vmem:[%s321 + $0x28] sm:$0xf]
        %v333 = vld [vmem:[%s321 + $0x2c] sm:$0xf]
        %v334 = vld [vmem:[%s321 + $0x30] sm:$0xf]
        %v335 = vld [vmem:[%s321 + $0x34] sm:$0xf]
        %v336 = vld [vmem:[%s321 + $0x38] sm:$0xf]
        %v337 = vld [vmem:[%s321 + $0x3c] sm:$0xf]
        %v338 = vld [vmem:[%s321 + $0x40] sm:$0xf]
        %v339 = vld [vmem:[%s321 + $0x44] sm:$0xf]
        %v340 = vld [vmem:[%s321 + $0x48] sm:$0xf]
        %v341 = vld [vmem:[%s321 + $0x4c] sm:$0xf]
        %v342 = vld [vmem:[%s321 + $0x50] sm:$0xf]
        %v343 = vld [vmem:[%s321 + $0x54] sm:$0xf]
        %v344 = vld [vmem:[%s321 + $0x58] sm:$0xf]
        %v345 = vld [vmem:[%s321 + $0x5c] sm:$0xf]
        %v346 = vld [vmem:[%s321 + $0x60] sm:$0xf]
        %v347 = vld [vmem:[%s321 + $0x64] sm:$0xf]
        %v348 = vld [vmem:[%s321 + $0x68] sm:$0xf]
        %v349 = vld [vmem:[%s321 + $0x6c] sm:$0xf]
        %v350 = vld [vmem:[%s321 + $0x70] sm:$0xf]
        %v351 = vld [vmem:[%s321 + $0x74] sm:$0xf]
        %v352 = vld [vmem:[%s321 + $0x78] sm:$0xf]
        %v353 = vld [vmem:[%s321 + $0x7c] sm:$0xf]
        %v354 = vld [vmem:[%s321 + $0x80] sm:$0xf]
        %v355 = vld [vmem:[%s321 + $0x84] sm:$0xf]
        %v356 = vld [vmem:[%s321 + $0x88] sm:$0xf]
        %v357 = vld [vmem:[%s321 + $0x8c] sm:$0xf]
        %v358 = vld [vmem:[%s1] sm:$0x3]
        %vm359 = vsmask.f32 3328
        %vm360 = vsmask.f32 7440
        %vm361 = vmor %vm359, %vm360
        %v363 = vshrl.u32 %v322, 16
        %v365 = vrot.slane %v363, 4
        %v366 = vshll.u32 %v322, 16
        %v368 = vrot.slane %v366, 5
        %v369 = vor.u32 %v365, %v368
        %v370 = vrot.slane %v369, 4
        %v372 = vshll.u32 %v323, 16
        %v374 = vrot.slane %v372, 5
        %v375 = vsel %vm361, %v370, %v374
        %v376 = vshrl.u32 %v323, 16
        %v378 = vrot.slane %v376, 4
        %v379 = vor.u32 %v378, %v374
        %v380 = vrot.slane %v379, 4
        %v382 = vshll.u32 %v324, 16
        %v384 = vrot.slane %v382, 5
        %v385 = vsel %vm361, %v380, %v384
        %v387 = vshrl.u32 %v325, 16
        %v389 = vrot.slane %v387, 4
        %v390 = vshll.u32 %v325, 16
        %v392 = vrot.slane %v390, 5
        %v393 = vor.u32 %v389, %v392
        %v394 = vrot.slane %v393, 4
        %v396 = vshll.u32 %v326, 16
        %v398 = vrot.slane %v396, 5
        %v399 = vsel %vm361, %v394, %v398
        %v400 = vshrl.u32 %v326, 16
        %v402 = vrot.slane %v400, 4
        %v403 = vor.u32 %v402, %v398
        %v404 = vrot.slane %v403, 4
        %v406 = vshll.u32 %v327, 16
        %v408 = vrot.slane %v406, 5
        %v409 = vsel %vm361, %v404, %v408
        %v411 = vshrl.u32 %v328, 16
        %v413 = vrot.slane %v411, 4
        %v414 = vshll.u32 %v328, 16
        %v416 = vrot.slane %v414, 5
        %v417 = vor.u32 %v413, %v416
        %v418 = vrot.slane %v417, 4
        %v420 = vshll.u32 %v329, 16
        %v422 = vrot.slane %v420, 5
        %v423 = vsel %vm361, %v418, %v422
        %v424 = vshrl.u32 %v329, 16
        %v426 = vrot.slane %v424, 4
        %v427 = vor.u32 %v426, %v422
        %v428 = vrot.slane %v427, 4
        %v430 = vshll.u32 %v330, 16
        %v432 = vrot.slane %v430, 5
        %v433 = vsel %vm361, %v428, %v432
        %v435 = vshrl.u32 %v331, 16
        %v437 = vrot.slane %v435, 4
        %v438 = vshll.u32 %v331, 16
        %v440 = vrot.slane %v438, 5
        %v441 = vor.u32 %v437, %v440
        %v442 = vrot.slane %v441, 4
        %v444 = vshll.u32 %v332, 16
        %v446 = vrot.slane %v444, 5
        %v447 = vsel %vm361, %v442, %v446
        %v448 = vshrl.u32 %v332, 16
        %v450 = vrot.slane %v448, 4
        %v451 = vor.u32 %v450, %v446
        %v452 = vrot.slane %v451, 4
        %v454 = vshll.u32 %v333, 16
        %v456 = vrot.slane %v454, 5
        %v457 = vsel %vm361, %v452, %v456
        %v459 = vshrl.u32 %v334, 16
        %v461 = vrot.slane %v459, 4
        %v462 = vshll.u32 %v334, 16
        %v464 = vrot.slane %v462, 5
        %v465 = vor.u32 %v461, %v464
        %v466 = vrot.slane %v465, 4
        %v468 = vshll.u32 %v335, 16
        %v470 = vrot.slane %v468, 5
        %v471 = vsel %vm361, %v466, %v470
        %v472 = vshrl.u32 %v335, 16
        %v474 = vrot.slane %v472, 4
        %v475 = vor.u32 %v474, %v470
        %v476 = vrot.slane %v475, 4
        %v478 = vshll.u32 %v336, 16
        %v480 = vrot.slane %v478, 5
        %v481 = vsel %vm361, %v476, %v480
        %v483 = vshrl.u32 %v337, 16
        %v485 = vrot.slane %v483, 4
        %v486 = vshll.u32 %v337, 16
        %v488 = vrot.slane %v486, 5
        %v489 = vor.u32 %v485, %v488
        %v490 = vrot.slane %v489, 4
        %v492 = vshll.u32 %v338, 16
        %v494 = vrot.slane %v492, 5
        %v495 = vsel %vm361, %v490, %v494
        %v496 = vshrl.u32 %v338, 16
        %v498 = vrot.slane %v496, 4
        %v499 = vor.u32 %v498, %v494
        %v500 = vrot.slane %v499, 4
        %v502 = vshll.u32 %v339, 16
        %v504 = vrot.slane %v502, 5
        %v505 = vsel %vm361, %v500, %v504
        %v507 = vshrl.u32 %v340, 16
        %v509 = vrot.slane %v507, 4
        %v510 = vshll.u32 %v340, 16
        %v512 = vrot.slane %v510, 5
        %v513 = vor.u32 %v509, %v512
        %v514 = vrot.slane %v513, 4
        %v516 = vshll.u32 %v341, 16
        %v518 = vrot.slane %v516, 5
        %v519 = vsel %vm361, %v514, %v518
        %v520 = vshrl.u32 %v341, 16
        %v522 = vrot.slane %v520, 4
        %v523 = vor.u32 %v522, %v518
        %v524 = vrot.slane %v523, 4
        %v526 = vshll.u32 %v342, 16
        %v528 = vrot.slane %v526, 5
        %v529 = vsel %vm361, %v524, %v528
        %v531 = vshrl.u32 %v343, 16
        %v533 = vrot.slane %v531, 4
        %v534 = vshll.u32 %v343, 16
        %v536 = vrot.slane %v534, 5
        %v537 = vor.u32 %v533, %v536
        %v538 = vrot.slane %v537, 4
        %v540 = vshll.u32 %v344, 16
        %v542 = vrot.slane %v540, 5
        %v543 = vsel %vm361, %v538, %v542
        %v544 = vshrl.u32 %v344, 16
        %v546 = vrot.slane %v544, 4
        %v547 = vor.u32 %v546, %v542
        %v548 = vrot.slane %v547, 4
        %v550 = vshll.u32 %v345, 16
        %v552 = vrot.slane %v550, 5
        %v553 = vsel %vm361, %v548, %v552
        %v555 = vshrl.u32 %v346, 16
        %v557 = vrot.slane %v555, 4
        %v558 = vshll.u32 %v346, 16
        %v560 = vrot.slane %v558, 5
        %v561 = vor.u32 %v557, %v560
        %v562 = vrot.slane %v561, 4
        %v564 = vshll.u32 %v347, 16
        %v566 = vrot.slane %v564, 5
        %v567 = vsel %vm361, %v562, %v566
        %v568 = vshrl.u32 %v347, 16
        %v570 = vrot.slane %v568, 4
        %v571 = vor.u32 %v570, %v566
        %v572 = vrot.slane %v571, 4
        %v574 = vshll.u32 %v348, 16
        %v576 = vrot.slane %v574, 5
        %v577 = vsel %vm361, %v572, %v576
        %v579 = vshrl.u32 %v349, 16
        %v581 = vrot.slane %v579, 4
        %v582 = vshll.u32 %v349, 16
        %v584 = vrot.slane %v582, 5
        %v585 = vor.u32 %v581, %v584
        %v586 = vrot.slane %v585, 4
        %v588 = vshll.u32 %v350, 16
        %v590 = vrot.slane %v588, 5
        %v591 = vsel %vm361, %v586, %v590
        %v592 = vshrl.u32 %v350, 16
        %v594 = vrot.slane %v592, 4
        %v595 = vor.u32 %v594, %v590
        %v596 = vrot.slane %v595, 4
        %v598 = vshll.u32 %v351, 16
        %v600 = vrot.slane %v598, 5
        %v601 = vsel %vm361, %v596, %v600
        %s602 = scalar_lea.vmem %s1, 2
        %v603 = vld [vmem:[%s602] sm:$0x3]
        %v604 = vunpack.c.l.b16 %v375
        %v605 = vunpack.c.l.b16 %v385
        %v606 = vunpack.c.l.b16 %v399
        %v607 = vunpack.c.l.b16 %v409
        %v608 = vunpack.c.l.b16 %v423
        %v609 = vunpack.c.l.b16 %v433
        %v610 = vunpack.c.l.b16 %v447
        %v611 = vunpack.c.l.b16 %v457
        %v612 = vunpack.c.l.b16 %v471
        %v613 = vunpack.c.l.b16 %v481
        %v614 = vunpack.c.l.b16 %v495
        %v615 = vunpack.c.l.b16 %v505
        %v616 = vunpack.c.l.b16 %v519
        %v617 = vunpack.c.l.b16 %v529
        %v618 = vunpack.c.l.b16 %v543
        %v619 = vunpack.c.l.b16 %v553
        %v620 = vunpack.c.l.b16 %v567
        %v621 = vunpack.c.l.b16 %v577
        %v622 = vunpack.c.l.b16 %v591
        %v623 = vunpack.c.l.b16 %v601
        %v624 = vpack.c.b16 %v605, %v604
        %v625 = vpack.c.b16 %v607, %v606
        %v626 = vpack.c.b16 %v609, %v608
        %v627 = vpack.c.b16 %v611, %v610
        %v628 = vpack.c.b16 %v613, %v612
        %v629 = vpack.c.b16 %v615, %v614
        %v630 = vpack.c.b16 %v617, %v616
        %v631 = vpack.c.b16 %v619, %v618
        %v632 = vpack.c.b16 %v621, %v620
        %v633 = vpack.c.b16 %v623, %v622
        %vm634 = vcmask 31744
        %v636 = vsel %vm634, %v624, 0
        %v639 = vsel %vm634, %v625, 0
        %v642 = vsel %vm634, %v626, 0
        %v645 = vsel %vm634, %v627, 0
        %v648 = vsel %vm634, %v628, 0
        %v651 = vsel %vm634, %v629, 0
        %v654 = vsel %vm634, %v630, 0
        %v657 = vsel %vm634, %v631, 0
        %v660 = vsel %vm634, %v632, 0
        %v663 = vsel %vm634, %v633, 0
        %vm665 = vcmask 1041408
        %v667 = vsel %vm665, %v603, 0
        %669 = vmatprep.subr.bf16.mxu0 0
        %670 = vmatpush1.bf16.msra.mxu0 %v667
        %671 = vmatprep.subr.bf16.mxu0 0
        %672 = vmatpush1.bf16.msra.mxu0 0
        %673 = vmatprep.subr.bf16.mxu0 0
        %674 = vmatpush1.bf16.msra.mxu0 0
        %675 = vmatprep.subr.bf16.mxu0 0
        %676 = vmatpush1.bf16.msra.mxu0 0
        %677 = vmatprep.subr.bf16.mxu0 0
        %678 = vmatpush1.bf16.msra.mxu0 0
        %679 = vmatprep.subr.bf16.mxu0 0
        %680 = vmatpush1.bf16.msra.mxu0 0
        %681 = vmatprep.subr.bf16.mxu0 0
        %682 = vmatpush1.bf16.msra.mxu0 0
        %683 = vmatprep.subr.bf16.mxu0 0
        %684 = vmatpush1.bf16.msra.mxu0 0
        %685 = vmatprep.subr.bf16.mxu0 0
        %686 = vmatpush1.bf16.msra.mxu0 0
        %687 = vmatprep.subr.bf16.mxu0 0
        %688 = vmatpush1.bf16.msra.mxu0 0
        %689 = vmatprep.subr.bf16.mxu0 0
        %690 = vmatpush1.bf16.msra.mxu0 0
        %691 = vmatprep.subr.bf16.mxu0 0
        %692 = vmatpush1.bf16.msra.mxu0 0
        %693 = vmatprep.subr.bf16.mxu0 0
        %694 = vmatpush1.bf16.msra.mxu0 0
        %695 = vmatprep.subr.bf16.mxu0 0
        %696 = vmatpush1.bf16.msra.mxu0 0
        %697 = vmatprep.subr.bf16.mxu0 0
        %698 = vmatpush1.bf16.msra.mxu0 0
        %699 = vmatprep.subr.bf16.mxu0 0
        %700 = vmatpush1.bf16.msra.mxu0 0
        %701 = vmatprep.mubr.bf16.mxu0 0
        %702 = vmatmul.mubr.bf16.gmra.mrb[0].mxu0 %v636
        %v703 = vpop.f32.mrb[0].mxu0
        %v704 = vadd.f32 0.0, %v703
        %v705 = vpop.f32.mrb[0].mxu0
        %v706 = vpop.f32.mrb[0].mxu0
        %v707 = vadd.f32 0.0, %v706
        %v708 = vpop.f32.mrb[0].mxu0
        %709 = vmatprep.mubr.bf16.mxu0 0
        %710 = vmatmul.mubr.bf16.gmra.mrb[0].mxu0 %v639
        %v711 = vpop.f32.mrb[0].mxu0
        %v712 = vadd.f32 0.0, %v711
        %v713 = vpop.f32.mrb[0].mxu0
        %v714 = vpop.f32.mrb[0].mxu0
        %v715 = vadd.f32 0.0, %v714
        %v716 = vpop.f32.mrb[0].mxu0
        %717 = vmatprep.mubr.bf16.mxu0 0
        %718 = vmatmul.mubr.bf16.gmra.mrb[0].mxu0 %v642
        %v719 = vpop.f32.mrb[0].mxu0
        %v720 = vadd.f32 0.0, %v719
        %v721 = vpop.f32.mrb[0].mxu0
        %v722 = vpop.f32.mrb[0].mxu0
        %v723 = vadd.f32 0.0, %v722
        %v724 = vpop.f32.mrb[0].mxu0
        %725 = vmatprep.mubr.bf16.mxu0 0
        %726 = vmatmul.mubr.bf16.gmra.mrb[0].mxu0 %v645
        %v727 = vpop.f32.mrb[0].mxu0
        %v728 = vadd.f32 0.0, %v727
        %v729 = vpop.f32.mrb[0].mxu0
        %v730 = vpop.f32.mrb[0].mxu0
        %v731 = vadd.f32 0.0, %v730
        %v732 = vpop.f32.mrb[0].mxu0
        %733 = vmatprep.mubr.bf16.mxu0 0
        %734 = vmatmul.mubr.bf16.gmra.mrb[0].mxu0 %v648
        %v735 = vpop.f32.mrb[0].mxu0
        %v736 = vadd.f32 0.0, %v735
        %v737 = vpop.f32.mrb[0].mxu0
        %v738 = vpop.f32.mrb[0].mxu0
        %v739 = vadd.f32 0.0, %v738
        %v740 = vpop.f32.mrb[0].mxu0
        %741 = vmatprep.mubr.bf16.mxu0 0
        %742 = vmatmul.mubr.bf16.gmra.mrb[0].mxu0 %v651
        %v743 = vpop.f32.mrb[0].mxu0
        %v744 = vadd.f32 0.0, %v743
        %v745 = vpop.f32.mrb[0].mxu0
        %v746 = vpop.f32.mrb[0].mxu0
        %v747 = vadd.f32 0.0, %v746
        %v748 = vpop.f32.mrb[0].mxu0
        %749 = vmatprep.mubr.bf16.mxu0 0
        %750 = vmatmul.mubr.bf16.gmra.mrb[0].mxu0 %v654
        %v751 = vpop.f32.mrb[0].mxu0
        %v752 = vadd.f32 0.0, %v751
        %v753 = vpop.f32.mrb[0].mxu0
        %v754 = vpop.f32.mrb[0].mxu0
        %v755 = vadd.f32 0.0, %v754
        %v756 = vpop.f32.mrb[0].mxu0
        %757 = vmatprep.mubr.bf16.mxu0 0
        %758 = vmatmul.mubr.bf16.gmra.mrb[0].mxu0 %v657
        %v759 = vpop.f32.mrb[0].mxu0
        %v760 = vadd.f32 0.0, %v759
        %v761 = vpop.f32.mrb[0].mxu0
        %v762 = vpop.f32.mrb[0].mxu0
        %v763 = vadd.f32 0.0, %v762
        %v764 = vpop.f32.mrb[0].mxu0
        %765 = vmatprep.mubr.bf16.mxu0 0
        %766 = vmatmul.mubr.bf16.gmra.mrb[0].mxu0 %v660
        %v767 = vpop.f32.mrb[0].mxu0
        %v768 = vadd.f32 0.0, %v767
        %v769 = vpop.f32.mrb[0].mxu0
        %v770 = vpop.f32.mrb[0].mxu0
        %v771 = vadd.f32 0.0, %v770
        %v772 = vpop.f32.mrb[0].mxu0
        %773 = vmatprep.mubr.bf16.mxu0 0
        %774 = vmatmul.mubr.bf16.gmra.mrb[0].mxu0 %v663
        %v775 = vpop.f32.mrb[0].mxu0
        %v776 = vadd.f32 0.0, %v775
        %v777 = vpop.f32.mrb[0].mxu0
        %v778 = vpop.f32.mrb[0].mxu0
        %v779 = vadd.f32 0.0, %v778
        %v780 = vpop.f32.mrb[0].mxu0
        %781 = vdwg.mxu0
        %v802 = vunpack.c.l.b16 %v322
        %v803 = vunpack.c.l.b16 %v323
        %v804 = vunpack.c.l.b16 %v325
        %v805 = vunpack.c.l.b16 %v326
        %v806 = vunpack.c.l.b16 %v328
        %v807 = vunpack.c.l.b16 %v329
        %v808 = vunpack.c.l.b16 %v331
        %v809 = vunpack.c.l.b16 %v332
        %v810 = vunpack.c.l.b16 %v334
        %v811 = vunpack.c.l.b16 %v335
        %v812 = vunpack.c.l.b16 %v337
        %v813 = vunpack.c.l.b16 %v338
        %v814 = vunpack.c.l.b16 %v340
        %v815 = vunpack.c.l.b16 %v341
        %v816 = vunpack.c.l.b16 %v343
        %v817 = vunpack.c.l.b16 %v344
        %v818 = vunpack.c.l.b16 %v346
        %v819 = vunpack.c.l.b16 %v347
        %v820 = vunpack.c.l.b16 %v349
        %v821 = vunpack.c.l.b16 %v350
        %v822 = vpack.c.b16 %v803, %v802
        %v823 = vpack.c.b16 %v805, %v804
        %v824 = vpack.c.b16 %v807, %v806
        %v825 = vpack.c.b16 %v809, %v808
        %v826 = vpack.c.b16 %v811, %v810
        %v827 = vpack.c.b16 %v813, %v812
        %v828 = vpack.c.b16 %v815, %v814
        %v829 = vpack.c.b16 %v817, %v816
        %v830 = vpack.c.b16 %v819, %v818
        %v831 = vpack.c.b16 %v821, %v820
        %v833 = vsel %vm634, %v822, 0
        %v836 = vsel %vm634, %v823, 0
        %v839 = vsel %vm634, %v824, 0
        %v842 = vsel %vm634, %v825, 0
        %v845 = vsel %vm634, %v826, 0
        %v848 = vsel %vm634, %v827, 0
        %v851 = vsel %vm634, %v828, 0
        %v854 = vsel %vm634, %v829, 0
        %v857 = vsel %vm634, %v830, 0
        %v860 = vsel %vm634, %v831, 0
        %v863 = vsel %vm665, %v358, 0
        %865 = vmatprep.subr.bf16.mxu0 0
        %866 = vmatpush1.bf16.msra.mxu0 %v863
        %867 = vmatprep.subr.bf16.mxu0 0
        %868 = vmatpush1.bf16.msra.mxu0 0
        %869 = vmatprep.subr.bf16.mxu0 0
        %870 = vmatpush1.bf16.msra.mxu0 0
        %871 = vmatprep.subr.bf16.mxu0 0
        %872 = vmatpush1.bf16.msra.mxu0 0
        %873 = vmatprep.subr.bf16.mxu0 0
        %874 = vmatpush1.bf16.msra.mxu0 0
        %875 = vmatprep.subr.bf16.mxu0 0
        %876 = vmatpush1.bf16.msra.mxu0 0
        %877 = vmatprep.subr.bf16.mxu0 0
        %878 = vmatpush1.bf16.msra.mxu0 0
        %879 = vmatprep.subr.bf16.mxu0 0
        %880 = vmatpush1.bf16.msra.mxu0 0
        %881 = vmatprep.subr.bf16.mxu0 0
        %882 = vmatpush1.bf16.msra.mxu0 0
        %883 = vmatprep.subr.bf16.mxu0 0
        %884 = vmatpush1.bf16.msra.mxu0 0
        %885 = vmatprep.subr.bf16.mxu0 0
        %886 = vmatpush1.bf16.msra.mxu0 0
        %887 = vmatprep.subr.bf16.mxu0 0
        %888 = vmatpush1.bf16.msra.mxu0 0
        %889 = vmatprep.subr.bf16.mxu0 0
        %890 = vmatpush1.bf16.msra.mxu0 0
        %891 = vmatprep.subr.bf16.mxu0 0
        %892 = vmatpush1.bf16.msra.mxu0 0
        %893 = vmatprep.subr.bf16.mxu0 0
        %894 = vmatpush1.bf16.msra.mxu0 0
        %895 = vmatprep.subr.bf16.mxu0 0
        %896 = vmatpush1.bf16.msra.mxu0 0
        %897 = vmatprep.mubr.bf16.mxu0 0
        %898 = vmatmul.mubr.bf16.gmra.mrb[0].mxu0 %v833
        %v899 = vpop.f32.mrb[0].mxu0
        %v900 = vadd.f32 %v704, %v899
        %v901 = vpop.f32.mrb[0].mxu0
        %v902 = vpop.f32.mrb[0].mxu0
        %v903 = vadd.f32 %v707, %v902
        %v904 = vpop.f32.mrb[0].mxu0
        %905 = vmatprep.mubr.bf16.mxu0 0
        %906 = vmatmul.mubr.bf16.gmra.mrb[0].mxu0 %v836
        %v907 = vpop.f32.mrb[0].mxu0
        %v908 = vadd.f32 %v712, %v907
        %v909 = vpop.f32.mrb[0].mxu0
        %v910 = vpop.f32.mrb[0].mxu0
        %v911 = vadd.f32 %v715, %v910
        %v912 = vpop.f32.mrb[0].mxu0
        %913 = vmatprep.mubr.bf16.mxu0 0
        %914 = vmatmul.mubr.bf16.gmra.mrb[0].mxu0 %v839
        %v915 = vpop.f32.mrb[0].mxu0
        %v916 = vadd.f32 %v720, %v915
        %v917 = vpop.f32.mrb[0].mxu0
        %v918 = vpop.f32.mrb[0].mxu0
        %v919 = vadd.f32 %v723, %v918
        %v920 = vpop.f32.mrb[0].mxu0
        %921 = vmatprep.mubr.bf16.mxu0 0
        %922 = vmatmul.mubr.bf16.gmra.mrb[0].mxu0 %v842
        %v923 = vpop.f32.mrb[0].mxu0
        %v924 = vadd.f32 %v728, %v923
        %v925 = vpop.f32.mrb[0].mxu0
        %v926 = vpop.f32.mrb[0].mxu0
        %v927 = vadd.f32 %v731, %v926
        %v928 = vpop.f32.mrb[0].mxu0
        %929 = vmatprep.mubr.bf16.mxu0 0
        %930 = vmatmul.mubr.bf16.gmra.mrb[0].mxu0 %v845
        %v931 = vpop.f32.mrb[0].mxu0
        %v932 = vadd.f32 %v736, %v931
        %v933 = vpop.f32.mrb[0].mxu0
        %v934 = vpop.f32.mrb[0].mxu0
        %v935 = vadd.f32 %v739, %v934
        %v936 = vpop.f32.mrb[0].mxu0
        %937 = vmatprep.mubr.bf16.mxu0 0
        %938 = vmatmul.mubr.bf16.gmra.mrb[0].mxu0 %v848
        %v939 = vpop.f32.mrb[0].mxu0
        %v940 = vadd.f32 %v744, %v939
        %v941 = vpop.f32.mrb[0].mxu0
        %v942 = vpop.f32.mrb[0].mxu0
        %v943 = vadd.f32 %v747, %v942
        %v944 = vpop.f32.mrb[0].mxu0
        %945 = vmatprep.mubr.bf16.mxu0 0
        %946 = vmatmul.mubr.bf16.gmra.mrb[0].mxu0 %v851
        %v947 = vpop.f32.mrb[0].mxu0
        %v948 = vadd.f32 %v752, %v947
        %v949 = vpop.f32.mrb[0].mxu0
        %v950 = vpop.f32.mrb[0].mxu0
        %v951 = vadd.f32 %v755, %v950
        %v952 = vpop.f32.mrb[0].mxu0
        %953 = vmatprep.mubr.bf16.mxu0 0
        %954 = vmatmul.mubr.bf16.gmra.mrb[0].mxu0 %v854
        %v955 = vpop.f32.mrb[0].mxu0
        %v956 = vadd.f32 %v760, %v955
        %v957 = vpop.f32.mrb[0].mxu0
        %v958 = vpop.f32.mrb[0].mxu0
        %v959 = vadd.f32 %v763, %v958
        %v960 = vpop.f32.mrb[0].mxu0
        %961 = vmatprep.mubr.bf16.mxu0 0
        %962 = vmatmul.mubr.bf16.gmra.mrb[0].mxu0 %v857
        %v963 = vpop.f32.mrb[0].mxu0
        %v964 = vadd.f32 %v768, %v963
        %v965 = vpop.f32.mrb[0].mxu0
        %v966 = vpop.f32.mrb[0].mxu0
        %v967 = vadd.f32 %v771, %v966
        %v968 = vpop.f32.mrb[0].mxu0
        %969 = vmatprep.mubr.bf16.mxu0 0
        %970 = vmatmul.mubr.bf16.gmra.mrb[0].mxu0 %v860
        %v971 = vpop.f32.mrb[0].mxu0
        %v972 = vadd.f32 %v776, %v971
        %v973 = vpop.f32.mrb[0].mxu0
        %v974 = vpop.f32.mrb[0].mxu0
        %v975 = vadd.f32 %v779, %v974
        %v976 = vpop.f32.mrb[0].mxu0
        %977 = vdwg.mxu0
        %vm988 = vcmask 1042432
        %vm989 = vcmask 1046532
        %vm990 = vmor %vm988, %vm989
        %v991 = vrot.slane %v322, 5
        %v992 = vrot.slane %v991, 4
        %v993 = vrot.slane %v323, 5
        %v994 = vsel %vm990, %v992, %v993
        %v995 = vrot.slane %v993, 4
        %v996 = vrot.slane %v324, 5
        %v997 = vsel %vm990, %v995, %v996
        %v998 = vrot.slane %v325, 5
        %v999 = vrot.slane %v998, 4
        %v1000 = vrot.slane %v326, 5
        %v1001 = vsel %vm990, %v999, %v1000
        %v1002 = vrot.slane %v1000, 4
        %v1003 = vrot.slane %v327, 5
        %v1004 = vsel %vm990, %v1002, %v1003
        %v1005 = vrot.slane %v328, 5
        %v1006 = vrot.slane %v1005, 4
        %v1007 = vrot.slane %v329, 5
        %v1008 = vsel %vm990, %v1006, %v1007
        %v1009 = vrot.slane %v1007, 4
        %v1010 = vrot.slane %v330, 5
        %v1011 = vsel %vm990, %v1009, %v1010
        %v1012 = vrot.slane %v331, 5
        %v1013 = vrot.slane %v1012, 4
        %v1014 = vrot.slane %v332, 5
        %v1015 = vsel %vm990, %v1013, %v1014
        %v1016 = vrot.slane %v1014, 4
        %v1017 = vrot.slane %v333, 5
        %v1018 = vsel %vm990, %v1016, %v1017
        %v1019 = vrot.slane %v334, 5
        %v1020 = vrot.slane %v1019, 4
        %v1021 = vrot.slane %v335, 5
        %v1022 = vsel %vm990, %v1020, %v1021
        %v1023 = vrot.slane %v1021, 4
        %v1024 = vrot.slane %v336, 5
        %v1025 = vsel %vm990, %v1023, %v1024
        %v1026 = vrot.slane %v337, 5
        %v1027 = vrot.slane %v1026, 4
        %v1028 = vrot.slane %v338, 5
        %v1029 = vsel %vm990, %v1027, %v1028
        %v1030 = vrot.slane %v1028, 4
        %v1031 = vrot.slane %v339, 5
        %v1032 = vsel %vm990, %v1030, %v1031
        %v1033 = vrot.slane %v340, 5
        %v1034 = vrot.slane %v1033, 4
        %v1035 = vrot.slane %v341, 5
        %v1036 = vsel %vm990, %v1034, %v1035
        %v1037 = vrot.slane %v1035, 4
        %v1038 = vrot.slane %v342, 5
        %v1039 = vsel %vm990, %v1037, %v1038
        %v1040 = vrot.slane %v343, 5
        %v1041 = vrot.slane %v1040, 4
        %v1042 = vrot.slane %v344, 5
        %v1043 = vsel %vm990, %v1041, %v1042
        %v1044 = vrot.slane %v1042, 4
        %v1045 = vrot.slane %v345, 5
        %v1046 = vsel %vm990, %v1044, %v1045
        %v1047 = vrot.slane %v346, 5
        %v1048 = vrot.slane %v1047, 4
        %v1049 = vrot.slane %v347, 5
        %v1050 = vsel %vm990, %v1048, %v1049
        %v1051 = vrot.slane %v1049, 4
        %v1052 = vrot.slane %v348, 5
        %v1053 = vsel %vm990, %v1051, %v1052
        %v1054 = vrot.slane %v349, 5
        %v1055 = vrot.slane %v1054, 4
        %v1056 = vrot.slane %v350, 5
        %v1057 = vsel %vm990, %v1055, %v1056
        %v1058 = vrot.slane %v1056, 4
        %v1059 = vrot.slane %v351, 5
        %v1060 = vsel %vm990, %v1058, %v1059
        %s1061 = scalar_lea.vmem %s1, 4
        %v1062 = vld [vmem:[%s1061] sm:$0x3]
        %v1063 = vunpack.c.l.b16 %v994
        %v1064 = vunpack.c.l.b16 %v997
        %v1065 = vunpack.c.l.b16 %v1001
        %v1066 = vunpack.c.l.b16 %v1004
        %v1067 = vunpack.c.l.b16 %v1008
        %v1068 = vunpack.c.l.b16 %v1011
        %v1069 = vunpack.c.l.b16 %v1015
        %v1070 = vunpack.c.l.b16 %v1018
        %v1071 = vunpack.c.l.b16 %v1022
        %v1072 = vunpack.c.l.b16 %v1025
        %v1073 = vunpack.c.l.b16 %v1029
        %v1074 = vunpack.c.l.b16 %v1032
        %v1075 = vunpack.c.l.b16 %v1036
        %v1076 = vunpack.c.l.b16 %v1039
        %v1077 = vunpack.c.l.b16 %v1043
        %v1078 = vunpack.c.l.b16 %v1046
        %v1079 = vunpack.c.l.b16 %v1050
        %v1080 = vunpack.c.l.b16 %v1053
        %v1081 = vunpack.c.l.b16 %v1057
        %v1082 = vunpack.c.l.b16 %v1060
        %v1083 = vpack.c.b16 %v1064, %v1063
        %v1084 = vpack.c.b16 %v1066, %v1065
        %v1085 = vpack.c.b16 %v1068, %v1067
        %v1086 = vpack.c.b16 %v1070, %v1069
        %v1087 = vpack.c.b16 %v1072, %v1071
        %v1088 = vpack.c.b16 %v1074, %v1073
        %v1089 = vpack.c.b16 %v1076, %v1075
        %v1090 = vpack.c.b16 %v1078, %v1077
        %v1091 = vpack.c.b16 %v1080, %v1079
        %v1092 = vpack.c.b16 %v1082, %v1081
        %v1094 = vsel %vm634, %v1083, 0
        %v1097 = vsel %vm634, %v1084, 0
        %v1100 = vsel %vm634, %v1085, 0
        %v1103 = vsel %vm634, %v1086, 0
        %v1106 = vsel %vm634, %v1087, 0
        %v1109 = vsel %vm634, %v1088, 0
        %v1112 = vsel %vm634, %v1089, 0
        %v1115 = vsel %vm634, %v1090, 0
        %v1118 = vsel %vm634, %v1091, 0
        %v1121 = vsel %vm634, %v1092, 0
        %v1124 = vsel %vm665, %v1062, 0
        %1126 = vmatprep.subr.bf16.mxu0 0
        %1127 = vmatpush1.bf16.msra.mxu0 %v1124
        %1128 = vmatprep.subr.bf16.mxu0 0
        %1129 = vmatpush1.bf16.msra.mxu0 0
        %1130 = vmatprep.subr.bf16.mxu0 0
        %1131 = vmatpush1.bf16.msra.mxu0 0
        %1132 = vmatprep.subr.bf16.mxu0 0
        %1133 = vmatpush1.bf16.msra.mxu0 0
        %1134 = vmatprep.subr.bf16.mxu0 0
        %1135 = vmatpush1.bf16.msra.mxu0 0
        %1136 = vmatprep.subr.bf16.mxu0 0
        %1137 = vmatpush1.bf16.msra.mxu0 0
        %1138 = vmatprep.subr.bf16.mxu0 0
        %1139 = vmatpush1.bf16.msra.mxu0 0
        %1140 = vmatprep.subr.bf16.mxu0 0
        %1141 = vmatpush1.bf16.msra.mxu0 0
        %1142 = vmatprep.subr.bf16.mxu0 0
        %1143 = vmatpush1.bf16.msra.mxu0 0
        %1144 = vmatprep.subr.bf16.mxu0 0
        %1145 = vmatpush1.bf16.msra.mxu0 0
        %1146 = vmatprep.subr.bf16.mxu0 0
        %1147 = vmatpush1.bf16.msra.mxu0 0
        %1148 = vmatprep.subr.bf16.mxu0 0
        %1149 = vmatpush1.bf16.msra.mxu0 0
        %1150 = vmatprep.subr.bf16.mxu0 0
        %1151 = vmatpush1.bf16.msra.mxu0 0
        %1152 = vmatprep.subr.bf16.mxu0 0
        %1153 = vmatpush1.bf16.msra.mxu0 0
        %1154 = vmatprep.subr.bf16.mxu0 0
        %1155 = vmatpush1.bf16.msra.mxu0 0
        %1156 = vmatprep.subr.bf16.mxu0 0
        %1157 = vmatpush1.bf16.msra.mxu0 0
        %1158 = vmatprep.mubr.bf16.mxu0 0
        %1159 = vmatmul.mubr.bf16.gmra.mrb[0].mxu0 %v1094
        %v1160 = vpop.f32.mrb[0].mxu0
        %v1161 = vadd.f32 0.0, %v1160
        %v1162 = vpop.f32.mrb[0].mxu0
        %v1163 = vpop.f32.mrb[0].mxu0
        %v1164 = vadd.f32 0.0, %v1163
        %v1165 = vpop.f32.mrb[0].mxu0
        %1166 = vmatprep.mubr.bf16.mxu0 0
        %1167 = vmatmul.mubr.bf16.gmra.mrb[0].mxu0 %v1097
        %v1168 = vpop.f32.mrb[0].mxu0
        %v1169 = vadd.f32 0.0, %v1168
        %v1170 = vpop.f32.mrb[0].mxu0
        %v1171 = vpop.f32.mrb[0].mxu0
        %v1172 = vadd.f32 0.0, %v1171
        %v1173 = vpop.f32.mrb[0].mxu0
        %1174 = vmatprep.mubr.bf16.mxu0 0
        %1175 = vmatmul.mubr.bf16.gmra.mrb[0].mxu0 %v1100
        %v1176 = vpop.f32.mrb[0].mxu0
        %v1177 = vadd.f32 0.0, %v1176
        %v1178 = vpop.f32.mrb[0].mxu0
        %v1179 = vpop.f32.mrb[0].mxu0
        %v1180 = vadd.f32 0.0, %v1179
        %v1181 = vpop.f32.mrb[0].mxu0
        %1182 = vmatprep.mubr.bf16.mxu0 0
        %1183 = vmatmul.mubr.bf16.gmra.mrb[0].mxu0 %v1103
        %v1184 = vpop.f32.mrb[0].mxu0
        %v1185 = vadd.f32 0.0, %v1184
        %v1186 = vpop.f32.mrb[0].mxu0
        %v1187 = vpop.f32.mrb[0].mxu0
        %v1188 = vadd.f32 0.0, %v1187
        %v1189 = vpop.f32.mrb[0].mxu0
        %1190 = vmatprep.mubr.bf16.mxu0 0
        %1191 = vmatmul.mubr.bf16.gmra.mrb[0].mxu0 %v1106
        %v1192 = vpop.f32.mrb[0].mxu0
        %v1193 = vadd.f32 0.0, %v1192
        %v1194 = vpop.f32.mrb[0].mxu0
        %v1195 = vpop.f32.mrb[0].mxu0
        %v1196 = vadd.f32 0.0, %v1195
        %v1197 = vpop.f32.mrb[0].mxu0
        %1198 = vmatprep.mubr.bf16.mxu0 0
        %1199 = vmatmul.mubr.bf16.gmra.mrb[0].mxu0 %v1109
        %v1200 = vpop.f32.mrb[0].mxu0
        %v1201 = vadd.f32 0.0, %v1200
        %v1202 = vpop.f32.mrb[0].mxu0
        %v1203 = vpop.f32.mrb[0].mxu0
        %v1204 = vadd.f32 0.0, %v1203
        %v1205 = vpop.f32.mrb[0].mxu0
        %1206 = vmatprep.mubr.bf16.mxu0 0
        %1207 = vmatmul.mubr.bf16.gmra.mrb[0].mxu0 %v1112
        %v1208 = vpop.f32.mrb[0].mxu0
        %v1209 = vadd.f32 0.0, %v1208
        %v1210 = vpop.f32.mrb[0].mxu0
        %v1211 = vpop.f32.mrb[0].mxu0
        %v1212 = vadd.f32 0.0, %v1211
        %v1213 = vpop.f32.mrb[0].mxu0
        %1214 = vmatprep.mubr.bf16.mxu0 0
        %1215 = vmatmul.mubr.bf16.gmra.mrb[0].mxu0 %v1115
        %v1216 = vpop.f32.mrb[0].mxu0
        %v1217 = vadd.f32 0.0, %v1216
        %v1218 = vpop.f32.mrb[0].mxu0
        %v1219 = vpop.f32.mrb[0].mxu0
        %v1220 = vadd.f32 0.0, %v1219
        %v1221 = vpop.f32.mrb[0].mxu0
        %1222 = vmatprep.mubr.bf16.mxu0 0
        %1223 = vmatmul.mubr.bf16.gmra.mrb[0].mxu0 %v1118
        %v1224 = vpop.f32.mrb[0].mxu0
        %v1225 = vadd.f32 0.0, %v1224
        %v1226 = vpop.f32.mrb[0].mxu0
        %v1227 = vpop.f32.mrb[0].mxu0
        %v1228 = vadd.f32 0.0, %v1227
        %v1229 = vpop.f32.mrb[0].mxu0
        %1230 = vmatprep.mubr.bf16.mxu0 0
        %1231 = vmatmul.mubr.bf16.gmra.mrb[0].mxu0 %v1121
        %v1232 = vpop.f32.mrb[0].mxu0
        %v1233 = vadd.f32 0.0, %v1232
        %v1234 = vpop.f32.mrb[0].mxu0
        %v1235 = vpop.f32.mrb[0].mxu0
        %v1236 = vadd.f32 0.0, %v1235
        %v1237 = vpop.f32.mrb[0].mxu0
        %1238 = vdwg.mxu0
        %v1239 = vadd.f32 %v900, %v1161
        %v1240 = vadd.f32 %v903, %v1164
        %v1241 = vadd.f32 %v908, %v1169
        %v1242 = vadd.f32 %v911, %v1172
        %v1243 = vadd.f32 %v916, %v1177
        %v1244 = vadd.f32 %v919, %v1180
        %v1245 = vadd.f32 %v924, %v1185
        %v1246 = vadd.f32 %v927, %v1188
        %v1247 = vadd.f32 %v932, %v1193
        %v1248 = vadd.f32 %v935, %v1196
        %v1249 = vadd.f32 %v940, %v1201
        %v1250 = vadd.f32 %v943, %v1204
        %v1251 = vadd.f32 %v948, %v1209
        %v1252 = vadd.f32 %v951, %v1212
        %v1253 = vadd.f32 %v956, %v1217
        %v1254 = vadd.f32 %v959, %v1220
        %v1255 = vadd.f32 %v964, %v1225
        %v1256 = vadd.f32 %v967, %v1228
        %v1257 = vadd.f32 %v972, %v1233
        %v1258 = vadd.f32 %v975, %v1236
        %s1259 = scalar_lea.vmem %s1, 6
        %v1260 = vld [vmem:[%s1259] sm:$0x3]
        %v1263 = vunpack.c.l.b16 %v352
        %v1264 = vunpack.c.l.b16 %v353
        %v1265 = vpack.c.b16 %v1264, %v1263
        %v1267 = vsel %vm634, %v1265, 0
        %v1270 = vsel %vm665, %v1260, 0
        %1272 = vmatprep.subr.bf16.mxu0 0
        %1273 = vmatpush1.bf16.msra.mxu0 %v1270
        %1274 = vmatprep.subr.bf16.mxu0 0
        %1275 = vmatpush1.bf16.msra.mxu0 0
        %1276 = vmatprep.subr.bf16.mxu0 0
        %1277 = vmatpush1.bf16.msra.mxu0 0
        %1278 = vmatprep.subr.bf16.mxu0 0
        %1279 = vmatpush1.bf16.msra.mxu0 0
        %1280 = vmatprep.subr.bf16.mxu0 0
        %1281 = vmatpush1.bf16.msra.mxu0 0
        %1282 = vmatprep.subr.bf16.mxu0 0
        %1283 = vmatpush1.bf16.msra.mxu0 0
        %1284 = vmatprep.subr.bf16.mxu0 0
        %1285 = vmatpush1.bf16.msra.mxu0 0
        %1286 = vmatprep.subr.bf16.mxu0 0
        %1287 = vmatpush1.bf16.msra.mxu0 0
        %1288 = vmatprep.subr.bf16.mxu0 0
        %1289 = vmatpush1.bf16.msra.mxu0 0
        %1290 = vmatprep.subr.bf16.mxu0 0
        %1291 = vmatpush1.bf16.msra.mxu0 0
        %1292 = vmatprep.subr.bf16.mxu0 0
        %1293 = vmatpush1.bf16.msra.mxu0 0
        %1294 = vmatprep.subr.bf16.mxu0 0
        %1295 = vmatpush1.bf16.msra.mxu0 0
        %1296 = vmatprep.subr.bf16.mxu0 0
        %1297 = vmatpush1.bf16.msra.mxu0 0
        %1298 = vmatprep.subr.bf16.mxu0 0
        %1299 = vmatpush1.bf16.msra.mxu0 0
        %1300 = vmatprep.subr.bf16.mxu0 0
        %1301 = vmatpush1.bf16.msra.mxu0 0
        %1302 = vmatprep.subr.bf16.mxu0 0
        %1303 = vmatpush1.bf16.msra.mxu0 0
        %1304 = vmatprep.mubr.bf16.mxu0 0
        %1305 = vmatmul.mubr.bf16.gmra.mrb[0].mxu0 %v836
        %v1306 = vpop.f32.mrb[0].mxu0
        %v1307 = vadd.f32 0.0, %v1306
        %v1308 = vpop.f32.mrb[0].mxu0
        %v1309 = vpop.f32.mrb[0].mxu0
        %v1310 = vadd.f32 0.0, %v1309
        %v1311 = vpop.f32.mrb[0].mxu0
        %1312 = vmatprep.mubr.bf16.mxu0 0
        %1313 = vmatmul.mubr.bf16.gmra.mrb[0].mxu0 %v839
        %v1314 = vpop.f32.mrb[0].mxu0
        %v1315 = vadd.f32 0.0, %v1314
        %v1316 = vpop.f32.mrb[0].mxu0
        %v1317 = vpop.f32.mrb[0].mxu0
        %v1318 = vadd.f32 0.0, %v1317
        %v1319 = vpop.f32.mrb[0].mxu0
        %1320 = vmatprep.mubr.bf16.mxu0 0
        %1321 = vmatmul.mubr.bf16.gmra.mrb[0].mxu0 %v842
        %v1322 = vpop.f32.mrb[0].mxu0
        %v1323 = vadd.f32 0.0, %v1322
        %v1324 = vpop.f32.mrb[0].mxu0
        %v1325 = vpop.f32.mrb[0].mxu0
        %v1326 = vadd.f32 0.0, %v1325
        %v1327 = vpop.f32.mrb[0].mxu0
        %1328 = vmatprep.mubr.bf16.mxu0 0
        %1329 = vmatmul.mubr.bf16.gmra.mrb[0].mxu0 %v845
        %v1330 = vpop.f32.mrb[0].mxu0
        %v1331 = vadd.f32 0.0, %v1330
        %v1332 = vpop.f32.mrb[0].mxu0
        %v1333 = vpop.f32.mrb[0].mxu0
        %v1334 = vadd.f32 0.0, %v1333
        %v1335 = vpop.f32.mrb[0].mxu0
        %1336 = vmatprep.mubr.bf16.mxu0 0
        %1337 = vmatmul.mubr.bf16.gmra.mrb[0].mxu0 %v848
        %v1338 = vpop.f32.mrb[0].mxu0
        %v1339 = vadd.f32 0.0, %v1338
        %v1340 = vpop.f32.mrb[0].mxu0
        %v1341 = vpop.f32.mrb[0].mxu0
        %v1342 = vadd.f32 0.0, %v1341
        %v1343 = vpop.f32.mrb[0].mxu0
        %1344 = vmatprep.mubr.bf16.mxu0 0
        %1345 = vmatmul.mubr.bf16.gmra.mrb[0].mxu0 %v851
        %v1346 = vpop.f32.mrb[0].mxu0
        %v1347 = vadd.f32 0.0, %v1346
        %v1348 = vpop.f32.mrb[0].mxu0
        %v1349 = vpop.f32.mrb[0].mxu0
        %v1350 = vadd.f32 0.0, %v1349
        %v1351 = vpop.f32.mrb[0].mxu0
        %1352 = vmatprep.mubr.bf16.mxu0 0
        %1353 = vmatmul.mubr.bf16.gmra.mrb[0].mxu0 %v854
        %v1354 = vpop.f32.mrb[0].mxu0
        %v1355 = vadd.f32 0.0, %v1354
        %v1356 = vpop.f32.mrb[0].mxu0
        %v1357 = vpop.f32.mrb[0].mxu0
        %v1358 = vadd.f32 0.0, %v1357
        %v1359 = vpop.f32.mrb[0].mxu0
        %1360 = vmatprep.mubr.bf16.mxu0 0
        %1361 = vmatmul.mubr.bf16.gmra.mrb[0].mxu0 %v857
        %v1362 = vpop.f32.mrb[0].mxu0
        %v1363 = vadd.f32 0.0, %v1362
        %v1364 = vpop.f32.mrb[0].mxu0
        %v1365 = vpop.f32.mrb[0].mxu0
        %v1366 = vadd.f32 0.0, %v1365
        %v1367 = vpop.f32.mrb[0].mxu0
        %1368 = vmatprep.mubr.bf16.mxu0 0
        %1369 = vmatmul.mubr.bf16.gmra.mrb[0].mxu0 %v860
        %v1370 = vpop.f32.mrb[0].mxu0
        %v1371 = vadd.f32 0.0, %v1370
        %v1372 = vpop.f32.mrb[0].mxu0
        %v1373 = vpop.f32.mrb[0].mxu0
        %v1374 = vadd.f32 0.0, %v1373
        %v1375 = vpop.f32.mrb[0].mxu0
        %1376 = vmatprep.mubr.bf16.mxu0 0
        %1377 = vmatmul.mubr.bf16.gmra.mrb[0].mxu0 %v1267
        %v1378 = vpop.f32.mrb[0].mxu0
        %v1379 = vadd.f32 0.0, %v1378
        %v1380 = vpop.f32.mrb[0].mxu0
        %v1381 = vpop.f32.mrb[0].mxu0
        %v1382 = vadd.f32 0.0, %v1381
        %v1383 = vpop.f32.mrb[0].mxu0
        %1384 = vdwg.mxu0
        %v1385 = vadd.f32 %v1239, %v1307
        %v1386 = vadd.f32 %v1240, %v1310
        %v1387 = vadd.f32 %v1241, %v1315
        %v1388 = vadd.f32 %v1242, %v1318
        %v1389 = vadd.f32 %v1243, %v1323
        %v1390 = vadd.f32 %v1244, %v1326
        %v1391 = vadd.f32 %v1245, %v1331
        %v1392 = vadd.f32 %v1246, %v1334
        %v1393 = vadd.f32 %v1247, %v1339
        %v1394 = vadd.f32 %v1248, %v1342
        %v1395 = vadd.f32 %v1249, %v1347
        %v1396 = vadd.f32 %v1250, %v1350
        %v1397 = vadd.f32 %v1251, %v1355
        %v1398 = vadd.f32 %v1252, %v1358
        %v1399 = vadd.f32 %v1253, %v1363
        %v1400 = vadd.f32 %v1254, %v1366
        %v1401 = vadd.f32 %v1255, %v1371
        %v1402 = vadd.f32 %v1256, %v1374
        %v1403 = vadd.f32 %v1257, %v1379
        %v1404 = vadd.f32 %v1258, %v1382
        %v1406 = vshrl.u32 %v352, 16
        %v1408 = vrot.slane %v1406, 4
        %v1409 = vshll.u32 %v352, 16
        %v1411 = vrot.slane %v1409, 5
        %v1412 = vor.u32 %v1408, %v1411
        %v1413 = vrot.slane %v1412, 4
        %v1415 = vshll.u32 %v353, 16
        %v1417 = vrot.slane %v1415, 5
        %v1418 = vsel %vm361, %v1413, %v1417
        %v1419 = vshrl.u32 %v353, 16
        %v1421 = vrot.slane %v1419, 4
        %v1422 = vor.u32 %v1421, %v1417
        %v1423 = vrot.slane %v1422, 4
        %v1425 = vshll.u32 %v354, 16
        %v1427 = vrot.slane %v1425, 5
        %v1428 = vsel %vm361, %v1423, %v1427
        %s1429 = scalar_lea.vmem %s1, 8
        %v1430 = vld [vmem:[%s1429] sm:$0x3]
        %v1431 = vunpack.c.l.b16 %v1418
        %v1432 = vunpack.c.l.b16 %v1428
        %v1433 = vpack.c.b16 %v1432, %v1431
        %v1435 = vsel %vm634, %v1433, 0
        %v1438 = vsel %vm665, %v1430, 0
        %1440 = vmatprep.subr.bf16.mxu0 0
        %1441 = vmatpush1.bf16.msra.mxu0 %v1438
        %1442 = vmatprep.subr.bf16.mxu0 0
        %1443 = vmatpush1.bf16.msra.mxu0 0
        %1444 = vmatprep.subr.bf16.mxu0 0
        %1445 = vmatpush1.bf16.msra.mxu0 0
        %1446 = vmatprep.subr.bf16.mxu0 0
        %1447 = vmatpush1.bf16.msra.mxu0 0
        %1448 = vmatprep.subr.bf16.mxu0 0
        %1449 = vmatpush1.bf16.msra.mxu0 0
        %1450 = vmatprep.subr.bf16.mxu0 0
        %1451 = vmatpush1.bf16.msra.mxu0 0
        %1452 = vmatprep.subr.bf16.mxu0 0
        %1453 = vmatpush1.bf16.msra.mxu0 0
        %1454 = vmatprep.subr.bf16.mxu0 0
        %1455 = vmatpush1.bf16.msra.mxu0 0
        %1456 = vmatprep.subr.bf16.mxu0 0
        %1457 = vmatpush1.bf16.msra.mxu0 0
        %1458 = vmatprep.subr.bf16.mxu0 0
        %1459 = vmatpush1.bf16.msra.mxu0 0
        %1460 = vmatprep.subr.bf16.mxu0 0
        %1461 = vmatpush1.bf16.msra.mxu0 0
        %1462 = vmatprep.subr.bf16.mxu0 0
        %1463 = vmatpush1.bf16.msra.mxu0 0
        %1464 = vmatprep.subr.bf16.mxu0 0
        %1465 = vmatpush1.bf16.msra.mxu0 0
        %1466 = vmatprep.subr.bf16.mxu0 0
        %1467 = vmatpush1.bf16.msra.mxu0 0
        %1468 = vmatprep.subr.bf16.mxu0 0
        %1469 = vmatpush1.bf16.msra.mxu0 0
        %1470 = vmatprep.subr.bf16.mxu0 0
        %1471 = vmatpush1.bf16.msra.mxu0 0
        %1472 = vmatprep.mubr.bf16.mxu0 0
        %1473 = vmatmul.mubr.bf16.gmra.mrb[0].mxu0 %v639
        %v1474 = vpop.f32.mrb[0].mxu0
        %v1475 = vadd.f32 0.0, %v1474
        %v1476 = vpop.f32.mrb[0].mxu0
        %v1477 = vpop.f32.mrb[0].mxu0
        %v1478 = vadd.f32 0.0, %v1477
        %v1479 = vpop.f32.mrb[0].mxu0
        %1480 = vmatprep.mubr.bf16.mxu0 0
        %1481 = vmatmul.mubr.bf16.gmra.mrb[0].mxu0 %v642
        %v1482 = vpop.f32.mrb[0].mxu0
        %v1483 = vadd.f32 0.0, %v1482
        %v1484 = vpop.f32.mrb[0].mxu0
        %v1485 = vpop.f32.mrb[0].mxu0
        %v1486 = vadd.f32 0.0, %v1485
        %v1487 = vpop.f32.mrb[0].mxu0
        %1488 = vmatprep.mubr.bf16.mxu0 0
        %1489 = vmatmul.mubr.bf16.gmra.mrb[0].mxu0 %v645
        %v1490 = vpop.f32.mrb[0].mxu0
        %v1491 = vadd.f32 0.0, %v1490
        %v1492 = vpop.f32.mrb[0].mxu0
        %v1493 = vpop.f32.mrb[0].mxu0
        %v1494 = vadd.f32 0.0, %v1493
        %v1495 = vpop.f32.mrb[0].mxu0
        %1496 = vmatprep.mubr.bf16.mxu0 0
        %1497 = vmatmul.mubr.bf16.gmra.mrb[0].mxu0 %v648
        %v1498 = vpop.f32.mrb[0].mxu0
        %v1499 = vadd.f32 0.0, %v1498
        %v1500 = vpop.f32.mrb[0].mxu0
        %v1501 = vpop.f32.mrb[0].mxu0
        %v1502 = vadd.f32 0.0, %v1501
        %v1503 = vpop.f32.mrb[0].mxu0
        %1504 = vmatprep.mubr.bf16.mxu0 0
        %1505 = vmatmul.mubr.bf16.gmra.mrb[0].mxu0 %v651
        %v1506 = vpop.f32.mrb[0].mxu0
        %v1507 = vadd.f32 0.0, %v1506
        %v1508 = vpop.f32.mrb[0].mxu0
        %v1509 = vpop.f32.mrb[0].mxu0
        %v1510 = vadd.f32 0.0, %v1509
        %v1511 = vpop.f32.mrb[0].mxu0
        %1512 = vmatprep.mubr.bf16.mxu0 0
        %1513 = vmatmul.mubr.bf16.gmra.mrb[0].mxu0 %v654
        %v1514 = vpop.f32.mrb[0].mxu0
        %v1515 = vadd.f32 0.0, %v1514
        %v1516 = vpop.f32.mrb[0].mxu0
        %v1517 = vpop.f32.mrb[0].mxu0
        %v1518 = vadd.f32 0.0, %v1517
        %v1519 = vpop.f32.mrb[0].mxu0
        %1520 = vmatprep.mubr.bf16.mxu0 0
        %1521 = vmatmul.mubr.bf16.gmra.mrb[0].mxu0 %v657
        %v1522 = vpop.f32.mrb[0].mxu0
        %v1523 = vadd.f32 0.0, %v1522
        %v1524 = vpop.f32.mrb[0].mxu0
        %v1525 = vpop.f32.mrb[0].mxu0
        %v1526 = vadd.f32 0.0, %v1525
        %v1527 = vpop.f32.mrb[0].mxu0
        %1528 = vmatprep.mubr.bf16.mxu0 0
        %1529 = vmatmul.mubr.bf16.gmra.mrb[0].mxu0 %v660
        %v1530 = vpop.f32.mrb[0].mxu0
        %v1531 = vadd.f32 0.0, %v1530
        %v1532 = vpop.f32.mrb[0].mxu0
        %v1533 = vpop.f32.mrb[0].mxu0
        %v1534 = vadd.f32 0.0, %v1533
        %v1535 = vpop.f32.mrb[0].mxu0
        %1536 = vmatprep.mubr.bf16.mxu0 0
        %1537 = vmatmul.mubr.bf16.gmra.mrb[0].mxu0 %v663
        %v1538 = vpop.f32.mrb[0].mxu0
        %v1539 = vadd.f32 0.0, %v1538
        %v1540 = vpop.f32.mrb[0].mxu0
        %v1541 = vpop.f32.mrb[0].mxu0
        %v1542 = vadd.f32 0.0, %v1541
        %v1543 = vpop.f32.mrb[0].mxu0
        %1544 = vmatprep.mubr.bf16.mxu0 0
        %1545 = vmatmul.mubr.bf16.gmra.mrb[0].mxu0 %v1435
        %v1546 = vpop.f32.mrb[0].mxu0
        %v1547 = vadd.f32 0.0, %v1546
        %v1548 = vpop.f32.mrb[0].mxu0
        %v1549 = vpop.f32.mrb[0].mxu0
        %v1550 = vadd.f32 0.0, %v1549
        %v1551 = vpop.f32.mrb[0].mxu0
        %1552 = vdwg.mxu0
        %v1553 = vadd.f32 %v1385, %v1475
        %v1554 = vadd.f32 %v1386, %v1478
        %v1555 = vadd.f32 %v1387, %v1483
        %v1556 = vadd.f32 %v1388, %v1486
        %v1557 = vadd.f32 %v1389, %v1491
        %v1558 = vadd.f32 %v1390, %v1494
        %v1559 = vadd.f32 %v1391, %v1499
        %v1560 = vadd.f32 %v1392, %v1502
        %v1561 = vadd.f32 %v1393, %v1507
        %v1562 = vadd.f32 %v1394, %v1510
        %v1563 = vadd.f32 %v1395, %v1515
        %v1564 = vadd.f32 %v1396, %v1518
        %v1565 = vadd.f32 %v1397, %v1523
        %v1566 = vadd.f32 %v1398, %v1526
        %v1567 = vadd.f32 %v1399, %v1531
        %v1568 = vadd.f32 %v1400, %v1534
        %v1569 = vadd.f32 %v1401, %v1539
        %v1570 = vadd.f32 %v1402, %v1542
        %v1571 = vadd.f32 %v1403, %v1547
        %v1572 = vadd.f32 %v1404, %v1550
        %v1574 = vrot.slane %v352, 5
        %v1575 = vrot.slane %v1574, 4
        %v1576 = vrot.slane %v353, 5
        %v1577 = vsel %vm990, %v1575, %v1576
        %v1578 = vrot.slane %v1576, 4
        %v1579 = vrot.slane %v354, 5
        %v1580 = vsel %vm990, %v1578, %v1579
        %s1581 = scalar_lea.vmem %s1, 10
        %v1582 = vld [vmem:[%s1581] sm:$0x3]
        %v1583 = vunpack.c.l.b16 %v1577
        %v1584 = vunpack.c.l.b16 %v1580
        %v1585 = vpack.c.b16 %v1584, %v1583
        %v1587 = vsel %vm634, %v1585, 0
        %v1590 = vsel %vm665, %v1582, 0
        %1592 = vmatprep.subr.bf16.mxu0 0
        %1593 = vmatpush1.bf16.msra.mxu0 %v1590
        %1594 = vmatprep.subr.bf16.mxu0 0
        %1595 = vmatpush1.bf16.msra.mxu0 0
        %1596 = vmatprep.subr.bf16.mxu0 0
        %1597 = vmatpush1.bf16.msra.mxu0 0
        %1598 = vmatprep.subr.bf16.mxu0 0
        %1599 = vmatpush1.bf16.msra.mxu0 0
        %1600 = vmatprep.subr.bf16.mxu0 0
        %1601 = vmatpush1.bf16.msra.mxu0 0
        %1602 = vmatprep.subr.bf16.mxu0 0
        %1603 = vmatpush1.bf16.msra.mxu0 0
        %1604 = vmatprep.subr.bf16.mxu0 0
        %1605 = vmatpush1.bf16.msra.mxu0 0
        %1606 = vmatprep.subr.bf16.mxu0 0
        %1607 = vmatpush1.bf16.msra.mxu0 0
        %1608 = vmatprep.subr.bf16.mxu0 0
        %1609 = vmatpush1.bf16.msra.mxu0 0
        %1610 = vmatprep.subr.bf16.mxu0 0
        %1611 = vmatpush1.bf16.msra.mxu0 0
        %1612 = vmatprep.subr.bf16.mxu0 0
        %1613 = vmatpush1.bf16.msra.mxu0 0
        %1614 = vmatprep.subr.bf16.mxu0 0
        %1615 = vmatpush1.bf16.msra.mxu0 0
        %1616 = vmatprep.subr.bf16.mxu0 0
        %1617 = vmatpush1.bf16.msra.mxu0 0
        %1618 = vmatprep.subr.bf16.mxu0 0
        %1619 = vmatpush1.bf16.msra.mxu0 0
        %1620 = vmatprep.subr.bf16.mxu0 0
        %1621 = vmatpush1.bf16.msra.mxu0 0
        %1622 = vmatprep.subr.bf16.mxu0 0
        %1623 = vmatpush1.bf16.msra.mxu0 0
        %1624 = vmatprep.mubr.bf16.mxu0 0
        %1625 = vmatmul.mubr.bf16.gmra.mrb[0].mxu0 %v1097
        %v1626 = vpop.f32.mrb[0].mxu0
        %v1627 = vadd.f32 0.0, %v1626
        %v1628 = vpop.f32.mrb[0].mxu0
        %v1629 = vpop.f32.mrb[0].mxu0
        %v1630 = vadd.f32 0.0, %v1629
        %v1631 = vpop.f32.mrb[0].mxu0
        %1632 = vmatprep.mubr.bf16.mxu0 0
        %1633 = vmatmul.mubr.bf16.gmra.mrb[0].mxu0 %v1100
        %v1634 = vpop.f32.mrb[0].mxu0
        %v1635 = vadd.f32 0.0, %v1634
        %v1636 = vpop.f32.mrb[0].mxu0
        %v1637 = vpop.f32.mrb[0].mxu0
        %v1638 = vadd.f32 0.0, %v1637
        %v1639 = vpop.f32.mrb[0].mxu0
        %1640 = vmatprep.mubr.bf16.mxu0 0
        %1641 = vmatmul.mubr.bf16.gmra.mrb[0].mxu0 %v1103
        %v1642 = vpop.f32.mrb[0].mxu0
        %v1643 = vadd.f32 0.0, %v1642
        %v1644 = vpop.f32.mrb[0].mxu0
        %v1645 = vpop.f32.mrb[0].mxu0
        %v1646 = vadd.f32 0.0, %v1645
        %v1647 = vpop.f32.mrb[0].mxu0
        %1648 = vmatprep.mubr.bf16.mxu0 0
        %1649 = vmatmul.mubr.bf16.gmra.mrb[0].mxu0 %v1106
        %v1650 = vpop.f32.mrb[0].mxu0
        %v1651 = vadd.f32 0.0, %v1650
        %v1652 = vpop.f32.mrb[0].mxu0
        %v1653 = vpop.f32.mrb[0].mxu0
        %v1654 = vadd.f32 0.0, %v1653
        %v1655 = vpop.f32.mrb[0].mxu0
        %1656 = vmatprep.mubr.bf16.mxu0 0
        %1657 = vmatmul.mubr.bf16.gmra.mrb[0].mxu0 %v1109
        %v1658 = vpop.f32.mrb[0].mxu0
        %v1659 = vadd.f32 0.0, %v1658
        %v1660 = vpop.f32.mrb[0].mxu0
        %v1661 = vpop.f32.mrb[0].mxu0
        %v1662 = vadd.f32 0.0, %v1661
        %v1663 = vpop.f32.mrb[0].mxu0
        %1664 = vmatprep.mubr.bf16.mxu0 0
        %1665 = vmatmul.mubr.bf16.gmra.mrb[0].mxu0 %v1112
        %v1666 = vpop.f32.mrb[0].mxu0
        %v1667 = vadd.f32 0.0, %v1666
        %v1668 = vpop.f32.mrb[0].mxu0
        %v1669 = vpop.f32.mrb[0].mxu0
        %v1670 = vadd.f32 0.0, %v1669
        %v1671 = vpop.f32.mrb[0].mxu0
        %1672 = vmatprep.mubr.bf16.mxu0 0
        %1673 = vmatmul.mubr.bf16.gmra.mrb[0].mxu0 %v1115
        %v1674 = vpop.f32.mrb[0].mxu0
        %v1675 = vadd.f32 0.0, %v1674
        %v1676 = vpop.f32.mrb[0].mxu0
        %v1677 = vpop.f32.mrb[0].mxu0
        %v1678 = vadd.f32 0.0, %v1677
        %v1679 = vpop.f32.mrb[0].mxu0
        %1680 = vmatprep.mubr.bf16.mxu0 0
        %1681 = vmatmul.mubr.bf16.gmra.mrb[0].mxu0 %v1118
        %v1682 = vpop.f32.mrb[0].mxu0
        %v1683 = vadd.f32 0.0, %v1682
        %v1684 = vpop.f32.mrb[0].mxu0
        %v1685 = vpop.f32.mrb[0].mxu0
        %v1686 = vadd.f32 0.0, %v1685
        %v1687 = vpop.f32.mrb[0].mxu0
        %1688 = vmatprep.mubr.bf16.mxu0 0
        %1689 = vmatmul.mubr.bf16.gmra.mrb[0].mxu0 %v1121
        %v1690 = vpop.f32.mrb[0].mxu0
        %v1691 = vadd.f32 0.0, %v1690
        %v1692 = vpop.f32.mrb[0].mxu0
        %v1693 = vpop.f32.mrb[0].mxu0
        %v1694 = vadd.f32 0.0, %v1693
        %v1695 = vpop.f32.mrb[0].mxu0
        %1696 = vmatprep.mubr.bf16.mxu0 0
        %1697 = vmatmul.mubr.bf16.gmra.mrb[0].mxu0 %v1587
        %v1698 = vpop.f32.mrb[0].mxu0
        %v1699 = vadd.f32 0.0, %v1698
        %v1700 = vpop.f32.mrb[0].mxu0
        %v1701 = vpop.f32.mrb[0].mxu0
        %v1702 = vadd.f32 0.0, %v1701
        %v1703 = vpop.f32.mrb[0].mxu0
        %1704 = vdwg.mxu0
        %v1705 = vadd.f32 %v1553, %v1627
        %v1706 = vadd.f32 %v1554, %v1630
        %v1707 = vadd.f32 %v1555, %v1635
        %v1708 = vadd.f32 %v1556, %v1638
        %v1709 = vadd.f32 %v1557, %v1643
        %v1710 = vadd.f32 %v1558, %v1646
        %v1711 = vadd.f32 %v1559, %v1651
        %v1712 = vadd.f32 %v1560, %v1654
        %v1713 = vadd.f32 %v1561, %v1659
        %v1714 = vadd.f32 %v1562, %v1662
        %v1715 = vadd.f32 %v1563, %v1667
        %v1716 = vadd.f32 %v1564, %v1670
        %v1717 = vadd.f32 %v1565, %v1675
        %v1718 = vadd.f32 %v1566, %v1678
        %v1719 = vadd.f32 %v1567, %v1683
        %v1720 = vadd.f32 %v1568, %v1686
        %v1721 = vadd.f32 %v1569, %v1691
        %v1722 = vadd.f32 %v1570, %v1694
        %v1723 = vadd.f32 %v1571, %v1699
        %v1724 = vadd.f32 %v1572, %v1702
        %s1725 = scalar_lea.vmem %s1, 12
        %v1726 = vld [vmem:[%s1725] sm:$0x3]
        %v1729 = vunpack.c.l.b16 %v355
        %v1730 = vunpack.c.l.b16 %v356
        %v1731 = vpack.c.b16 %v1730, %v1729
        %v1733 = vsel %vm634, %v1731, 0
        %v1736 = vsel %vm665, %v1726, 0
        %1738 = vmatprep.subr.bf16.mxu0 0
        %1739 = vmatpush1.bf16.msra.mxu0 %v1736
        %1740 = vmatprep.subr.bf16.mxu0 0
        %1741 = vmatpush1.bf16.msra.mxu0 0
        %1742 = vmatprep.subr.bf16.mxu0 0
        %1743 = vmatpush1.bf16.msra.mxu0 0
        %1744 = vmatprep.subr.bf16.mxu0 0
        %1745 = vmatpush1.bf16.msra.mxu0 0
        %1746 = vmatprep.subr.bf16.mxu0 0
        %1747 = vmatpush1.bf16.msra.mxu0 0
        %1748 = vmatprep.subr.bf16.mxu0 0
        %1749 = vmatpush1.bf16.msra.mxu0 0
        %1750 = vmatprep.subr.bf16.mxu0 0
        %1751 = vmatpush1.bf16.msra.mxu0 0
        %1752 = vmatprep.subr.bf16.mxu0 0
        %1753 = vmatpush1.bf16.msra.mxu0 0
        %1754 = vmatprep.subr.bf16.mxu0 0
        %1755 = vmatpush1.bf16.msra.mxu0 0
        %1756 = vmatprep.subr.bf16.mxu0 0
        %1757 = vmatpush1.bf16.msra.mxu0 0
        %1758 = vmatprep.subr.bf16.mxu0 0
        %1759 = vmatpush1.bf16.msra.mxu0 0
        %1760 = vmatprep.subr.bf16.mxu0 0
        %1761 = vmatpush1.bf16.msra.mxu0 0
        %1762 = vmatprep.subr.bf16.mxu0 0
        %1763 = vmatpush1.bf16.msra.mxu0 0
        %1764 = vmatprep.subr.bf16.mxu0 0
        %1765 = vmatpush1.bf16.msra.mxu0 0
        %1766 = vmatprep.subr.bf16.mxu0 0
        %1767 = vmatpush1.bf16.msra.mxu0 0
        %1768 = vmatprep.subr.bf16.mxu0 0
        %1769 = vmatpush1.bf16.msra.mxu0 0
        %1770 = vmatprep.mubr.bf16.mxu0 0
        %1771 = vmatmul.mubr.bf16.gmra.mrb[0].mxu0 %v839
        %v1772 = vpop.f32.mrb[0].mxu0
        %v1773 = vadd.f32 0.0, %v1772
        %v1774 = vpop.f32.mrb[0].mxu0
        %v1775 = vpop.f32.mrb[0].mxu0
        %v1776 = vadd.f32 0.0, %v1775
        %v1777 = vpop.f32.mrb[0].mxu0
        %1778 = vmatprep.mubr.bf16.mxu0 0
        %1779 = vmatmul.mubr.bf16.gmra.mrb[0].mxu0 %v842
        %v1780 = vpop.f32.mrb[0].mxu0
        %v1781 = vadd.f32 0.0, %v1780
        %v1782 = vpop.f32.mrb[0].mxu0
        %v1783 = vpop.f32.mrb[0].mxu0
        %v1784 = vadd.f32 0.0, %v1783
        %v1785 = vpop.f32.mrb[0].mxu0
        %1786 = vmatprep.mubr.bf16.mxu0 0
        %1787 = vmatmul.mubr.bf16.gmra.mrb[0].mxu0 %v845
        %v1788 = vpop.f32.mrb[0].mxu0
        %v1789 = vadd.f32 0.0, %v1788
        %v1790 = vpop.f32.mrb[0].mxu0
        %v1791 = vpop.f32.mrb[0].mxu0
        %v1792 = vadd.f32 0.0, %v1791
        %v1793 = vpop.f32.mrb[0].mxu0
        %1794 = vmatprep.mubr.bf16.mxu0 0
        %1795 = vmatmul.mubr.bf16.gmra.mrb[0].mxu0 %v848
        %v1796 = vpop.f32.mrb[0].mxu0
        %v1797 = vadd.f32 0.0, %v1796
        %v1798 = vpop.f32.mrb[0].mxu0
        %v1799 = vpop.f32.mrb[0].mxu0
        %v1800 = vadd.f32 0.0, %v1799
        %v1801 = vpop.f32.mrb[0].mxu0
        %1802 = vmatprep.mubr.bf16.mxu0 0
        %1803 = vmatmul.mubr.bf16.gmra.mrb[0].mxu0 %v851
        %v1804 = vpop.f32.mrb[0].mxu0
        %v1805 = vadd.f32 0.0, %v1804
        %v1806 = vpop.f32.mrb[0].mxu0
        %v1807 = vpop.f32.mrb[0].mxu0
        %v1808 = vadd.f32 0.0, %v1807
        %v1809 = vpop.f32.mrb[0].mxu0
        %1810 = vmatprep.mubr.bf16.mxu0 0
        %1811 = vmatmul.mubr.bf16.gmra.mrb[0].mxu0 %v854
        %v1812 = vpop.f32.mrb[0].mxu0
        %v1813 = vadd.f32 0.0, %v1812
        %v1814 = vpop.f32.mrb[0].mxu0
        %v1815 = vpop.f32.mrb[0].mxu0
        %v1816 = vadd.f32 0.0, %v1815
        %v1817 = vpop.f32.mrb[0].mxu0
        %1818 = vmatprep.mubr.bf16.mxu0 0
        %1819 = vmatmul.mubr.bf16.gmra.mrb[0].mxu0 %v857
        %v1820 = vpop.f32.mrb[0].mxu0
        %v1821 = vadd.f32 0.0, %v1820
        %v1822 = vpop.f32.mrb[0].mxu0
        %v1823 = vpop.f32.mrb[0].mxu0
        %v1824 = vadd.f32 0.0, %v1823
        %v1825 = vpop.f32.mrb[0].mxu0
        %1826 = vmatprep.mubr.bf16.mxu0 0
        %1827 = vmatmul.mubr.bf16.gmra.mrb[0].mxu0 %v860
        %v1828 = vpop.f32.mrb[0].mxu0
        %v1829 = vadd.f32 0.0, %v1828
        %v1830 = vpop.f32.mrb[0].mxu0
        %v1831 = vpop.f32.mrb[0].mxu0
        %v1832 = vadd.f32 0.0, %v1831
        %v1833 = vpop.f32.mrb[0].mxu0
        %1834 = vmatprep.mubr.bf16.mxu0 0
        %1835 = vmatmul.mubr.bf16.gmra.mrb[0].mxu0 %v1267
        %v1836 = vpop.f32.mrb[0].mxu0
        %v1837 = vadd.f32 0.0, %v1836
        %v1838 = vpop.f32.mrb[0].mxu0
        %v1839 = vpop.f32.mrb[0].mxu0
        %v1840 = vadd.f32 0.0, %v1839
        %v1841 = vpop.f32.mrb[0].mxu0
        %1842 = vmatprep.mubr.bf16.mxu0 0
        %1843 = vmatmul.mubr.bf16.gmra.mrb[0].mxu0 %v1733
        %v1844 = vpop.f32.mrb[0].mxu0
        %v1845 = vadd.f32 0.0, %v1844
        %v1846 = vpop.f32.mrb[0].mxu0
        %v1847 = vpop.f32.mrb[0].mxu0
        %v1848 = vadd.f32 0.0, %v1847
        %v1849 = vpop.f32.mrb[0].mxu0
        %1850 = vdwg.mxu0
        %v1851 = vadd.f32 %v1705, %v1773
        %v1852 = vadd.f32 %v1706, %v1776
        %v1853 = vadd.f32 %v1707, %v1781
        %v1854 = vadd.f32 %v1708, %v1784
        %v1855 = vadd.f32 %v1709, %v1789
        %v1856 = vadd.f32 %v1710, %v1792
        %v1857 = vadd.f32 %v1711, %v1797
        %v1858 = vadd.f32 %v1712, %v1800
        %v1859 = vadd.f32 %v1713, %v1805
        %v1860 = vadd.f32 %v1714, %v1808
        %v1861 = vadd.f32 %v1715, %v1813
        %v1862 = vadd.f32 %v1716, %v1816
        %v1863 = vadd.f32 %v1717, %v1821
        %v1864 = vadd.f32 %v1718, %v1824
        %v1865 = vadd.f32 %v1719, %v1829
        %v1866 = vadd.f32 %v1720, %v1832
        %v1867 = vadd.f32 %v1721, %v1837
        %v1868 = vadd.f32 %v1722, %v1840
        %v1869 = vadd.f32 %v1723, %v1845
        %v1870 = vadd.f32 %v1724, %v1848
        %v1872 = vshrl.u32 %v355, 16
        %v1874 = vrot.slane %v1872, 4
        %v1875 = vshll.u32 %v355, 16
        %v1877 = vrot.slane %v1875, 5
        %v1878 = vor.u32 %v1874, %v1877
        %v1879 = vrot.slane %v1878, 4
        %v1881 = vshll.u32 %v356, 16
        %v1883 = vrot.slane %v1881, 5
        %v1884 = vsel %vm361, %v1879, %v1883
        %v1885 = vshrl.u32 %v356, 16
        %v1887 = vrot.slane %v1885, 4
        %v1888 = vor.u32 %v1887, %v1883
        %v1889 = vrot.slane %v1888, 4
        %v1891 = vshll.u32 %v357, 16
        %v1893 = vrot.slane %v1891, 5
        %v1894 = vsel %vm361, %v1889, %v1893
        %s1895 = scalar_lea.vmem %s1, 14
        %v1896 = vld [vmem:[%s1895] sm:$0x3]
        %v1897 = vunpack.c.l.b16 %v1884
        %v1898 = vunpack.c.l.b16 %v1894
        %v1899 = vpack.c.b16 %v1898, %v1897
        %v1901 = vsel %vm634, %v1899, 0
        %v1904 = vsel %vm665, %v1896, 0
        %1906 = vmatprep.subr.bf16.mxu0 0
        %1907 = vmatpush1.bf16.msra.mxu0 %v1904
        %1908 = vmatprep.subr.bf16.mxu0 0
        %1909 = vmatpush1.bf16.msra.mxu0 0
        %1910 = vmatprep.subr.bf16.mxu0 0
        %1911 = vmatpush1.bf16.msra.mxu0 0
        %1912 = vmatprep.subr.bf16.mxu0 0
        %1913 = vmatpush1.bf16.msra.mxu0 0
        %1914 = vmatprep.subr.bf16.mxu0 0
        %1915 = vmatpush1.bf16.msra.mxu0 0
        %1916 = vmatprep.subr.bf16.mxu0 0
        %1917 = vmatpush1.bf16.msra.mxu0 0
        %1918 = vmatprep.subr.bf16.mxu0 0
        %1919 = vmatpush1.bf16.msra.mxu0 0
        %1920 = vmatprep.subr.bf16.mxu0 0
        %1921 = vmatpush1.bf16.msra.mxu0 0
        %1922 = vmatprep.subr.bf16.mxu0 0
        %1923 = vmatpush1.bf16.msra.mxu0 0
        %1924 = vmatprep.subr.bf16.mxu0 0
        %1925 = vmatpush1.bf16.msra.mxu0 0
        %1926 = vmatprep.subr.bf16.mxu0 0
        %1927 = vmatpush1.bf16.msra.mxu0 0
        %1928 = vmatprep.subr.bf16.mxu0 0
        %1929 = vmatpush1.bf16.msra.mxu0 0
        %1930 = vmatprep.subr.bf16.mxu0 0
        %1931 = vmatpush1.bf16.msra.mxu0 0
        %1932 = vmatprep.subr.bf16.mxu0 0
        %1933 = vmatpush1.bf16.msra.mxu0 0
        %1934 = vmatprep.subr.bf16.mxu0 0
        %1935 = vmatpush1.bf16.msra.mxu0 0
        %1936 = vmatprep.subr.bf16.mxu0 0
        %1937 = vmatpush1.bf16.msra.mxu0 0
        %1938 = vmatprep.mubr.bf16.mxu0 0
        %1939 = vmatmul.mubr.bf16.gmra.mrb[0].mxu0 %v642
        %v1940 = vpop.f32.mrb[0].mxu0
        %v1941 = vadd.f32 0.0, %v1940
        %v1942 = vpop.f32.mrb[0].mxu0
        %v1943 = vpop.f32.mrb[0].mxu0
        %v1944 = vadd.f32 0.0, %v1943
        %v1945 = vpop.f32.mrb[0].mxu0
        %1946 = vmatprep.mubr.bf16.mxu0 0
        %1947 = vmatmul.mubr.bf16.gmra.mrb[0].mxu0 %v645
        %v1948 = vpop.f32.mrb[0].mxu0
        %v1949 = vadd.f32 0.0, %v1948
        %v1950 = vpop.f32.mrb[0].mxu0
        %v1951 = vpop.f32.mrb[0].mxu0
        %v1952 = vadd.f32 0.0, %v1951
        %v1953 = vpop.f32.mrb[0].mxu0
        %1954 = vmatprep.mubr.bf16.mxu0 0
        %1955 = vmatmul.mubr.bf16.gmra.mrb[0].mxu0 %v648
        %v1956 = vpop.f32.mrb[0].mxu0
        %v1957 = vadd.f32 0.0, %v1956
        %v1958 = vpop.f32.mrb[0].mxu0
        %v1959 = vpop.f32.mrb[0].mxu0
        %v1960 = vadd.f32 0.0, %v1959
        %v1961 = vpop.f32.mrb[0].mxu0
        %1962 = vmatprep.mubr.bf16.mxu0 0
        %1963 = vmatmul.mubr.bf16.gmra.mrb[0].mxu0 %v651
        %v1964 = vpop.f32.mrb[0].mxu0
        %v1965 = vadd.f32 0.0, %v1964
        %v1966 = vpop.f32.mrb[0].mxu0
        %v1967 = vpop.f32.mrb[0].mxu0
        %v1968 = vadd.f32 0.0, %v1967
        %v1969 = vpop.f32.mrb[0].mxu0
        %1970 = vmatprep.mubr.bf16.mxu0 0
        %1971 = vmatmul.mubr.bf16.gmra.mrb[0].mxu0 %v654
        %v1972 = vpop.f32.mrb[0].mxu0
        %v1973 = vadd.f32 0.0, %v1972
        %v1974 = vpop.f32.mrb[0].mxu0
        %v1975 = vpop.f32.mrb[0].mxu0
        %v1976 = vadd.f32 0.0, %v1975
        %v1977 = vpop.f32.mrb[0].mxu0
        %1978 = vmatprep.mubr.bf16.mxu0 0
        %1979 = vmatmul.mubr.bf16.gmra.mrb[0].mxu0 %v657
        %v1980 = vpop.f32.mrb[0].mxu0
        %v1981 = vadd.f32 0.0, %v1980
        %v1982 = vpop.f32.mrb[0].mxu0
        %v1983 = vpop.f32.mrb[0].mxu0
        %v1984 = vadd.f32 0.0, %v1983
        %v1985 = vpop.f32.mrb[0].mxu0
        %1986 = vmatprep.mubr.bf16.mxu0 0
        %1987 = vmatmul.mubr.bf16.gmra.mrb[0].mxu0 %v660
        %v1988 = vpop.f32.mrb[0].mxu0
        %v1989 = vadd.f32 0.0, %v1988
        %v1990 = vpop.f32.mrb[0].mxu0
        %v1991 = vpop.f32.mrb[0].mxu0
        %v1992 = vadd.f32 0.0, %v1991
        %v1993 = vpop.f32.mrb[0].mxu0
        %1994 = vmatprep.mubr.bf16.mxu0 0
        %1995 = vmatmul.mubr.bf16.gmra.mrb[0].mxu0 %v663
        %v1996 = vpop.f32.mrb[0].mxu0
        %v1997 = vadd.f32 0.0, %v1996
        %v1998 = vpop.f32.mrb[0].mxu0
        %v1999 = vpop.f32.mrb[0].mxu0
        %v2000 = vadd.f32 0.0, %v1999
        %v2001 = vpop.f32.mrb[0].mxu0
        %2002 = vmatprep.mubr.bf16.mxu0 0
        %2003 = vmatmul.mubr.bf16.gmra.mrb[0].mxu0 %v1435
        %v2004 = vpop.f32.mrb[0].mxu0
        %v2005 = vadd.f32 0.0, %v2004
        %v2006 = vpop.f32.mrb[0].mxu0
        %v2007 = vpop.f32.mrb[0].mxu0
        %v2008 = vadd.f32 0.0, %v2007
        %v2009 = vpop.f32.mrb[0].mxu0
        %2010 = vmatprep.mubr.bf16.mxu0 0
        %2011 = vmatmul.mubr.bf16.gmra.mrb[0].mxu0 %v1901
        %v2012 = vpop.f32.mrb[0].mxu0
        %v2013 = vadd.f32 0.0, %v2012
        %v2014 = vpop.f32.mrb[0].mxu0
        %v2015 = vpop.f32.mrb[0].mxu0
        %v2016 = vadd.f32 0.0, %v2015
        %v2017 = vpop.f32.mrb[0].mxu0
        %2018 = vdwg.mxu0
        %v2019 = vadd.f32 %v1851, %v1941
        %v2020 = vadd.f32 %v1852, %v1944
        %v2021 = vadd.f32 %v1853, %v1949
        %v2022 = vadd.f32 %v1854, %v1952
        %v2023 = vadd.f32 %v1855, %v1957
        %v2024 = vadd.f32 %v1856, %v1960
        %v2025 = vadd.f32 %v1857, %v1965
        %v2026 = vadd.f32 %v1858, %v1968
        %v2027 = vadd.f32 %v1859, %v1973
        %v2028 = vadd.f32 %v1860, %v1976
        %v2029 = vadd.f32 %v1861, %v1981
        %v2030 = vadd.f32 %v1862, %v1984
        %v2031 = vadd.f32 %v1863, %v1989
        %v2032 = vadd.f32 %v1864, %v1992
        %v2033 = vadd.f32 %v1865, %v1997
        %v2034 = vadd.f32 %v1866, %v2000
        %v2035 = vadd.f32 %v1867, %v2005
        %v2036 = vadd.f32 %v1868, %v2008
        %v2037 = vadd.f32 %v1869, %v2013
        %v2038 = vadd.f32 %v1870, %v2016
        %v2040 = vrot.slane %v355, 5
        %v2041 = vrot.slane %v2040, 4
        %v2042 = vrot.slane %v356, 5
        %v2043 = vsel %vm990, %v2041, %v2042
        %v2044 = vrot.slane %v2042, 4
        %v2045 = vrot.slane %v357, 5
        %v2046 = vsel %vm990, %v2044, %v2045
        %s2047 = scalar_lea.vmem %s1, 16
        %v2048 = vld [vmem:[%s2047] sm:$0x3]
        %v2049 = vunpack.c.l.b16 %v2043
        %v2050 = vunpack.c.l.b16 %v2046
        %v2051 = vpack.c.b16 %v2050, %v2049
        %v2053 = vsel %vm634, %v2051, 0
        %v2056 = vsel %vm665, %v2048, 0
        %2058 = vmatprep.subr.bf16.mxu0 0
        %2059 = vmatpush1.bf16.msra.mxu0 %v2056
        %2060 = vmatprep.subr.bf16.mxu0 0
        %2061 = vmatpush1.bf16.msra.mxu0 0
        %2062 = vmatprep.subr.bf16.mxu0 0
        %2063 = vmatpush1.bf16.msra.mxu0 0
        %2064 = vmatprep.subr.bf16.mxu0 0
        %2065 = vmatpush1.bf16.msra.mxu0 0
        %2066 = vmatprep.subr.bf16.mxu0 0
        %2067 = vmatpush1.bf16.msra.mxu0 0
        %2068 = vmatprep.subr.bf16.mxu0 0
        %2069 = vmatpush1.bf16.msra.mxu0 0
        %2070 = vmatprep.subr.bf16.mxu0 0
        %2071 = vmatpush1.bf16.msra.mxu0 0
        %2072 = vmatprep.subr.bf16.mxu0 0
        %2073 = vmatpush1.bf16.msra.mxu0 0
        %2074 = vmatprep.subr.bf16.mxu0 0
        %2075 = vmatpush1.bf16.msra.mxu0 0
        %2076 = vmatprep.subr.bf16.mxu0 0
        %2077 = vmatpush1.bf16.msra.mxu0 0
        %2078 = vmatprep.subr.bf16.mxu0 0
        %2079 = vmatpush1.bf16.msra.mxu0 0
        %2080 = vmatprep.subr.bf16.mxu0 0
        %2081 = vmatpush1.bf16.msra.mxu0 0
        %2082 = vmatprep.subr.bf16.mxu0 0
        %2083 = vmatpush1.bf16.msra.mxu0 0
        %2084 = vmatprep.subr.bf16.mxu0 0
        %2085 = vmatpush1.bf16.msra.mxu0 0
        %2086 = vmatprep.subr.bf16.mxu0 0
        %2087 = vmatpush1.bf16.msra.mxu0 0
        %2088 = vmatprep.subr.bf16.mxu0 0
        %2089 = vmatpush1.bf16.msra.mxu0 0
        %2090 = vmatprep.mubr.bf16.mxu0 0
        %2091 = vmatmul.mubr.bf16.gmra.mrb[0].mxu0 %v1100
        %v2092 = vpop.f32.mrb[0].mxu0
        %v2093 = vadd.f32 0.0, %v2092
        %v2094 = vpop.f32.mrb[0].mxu0
        %v2095 = vpop.f32.mrb[0].mxu0
        %v2096 = vadd.f32 0.0, %v2095
        %v2097 = vpop.f32.mrb[0].mxu0
        %2098 = vmatprep.mubr.bf16.mxu0 0
        %2099 = vmatmul.mubr.bf16.gmra.mrb[0].mxu0 %v1103
        %v2100 = vpop.f32.mrb[0].mxu0
        %v2101 = vadd.f32 0.0, %v2100
        %v2102 = vpop.f32.mrb[0].mxu0
        %v2103 = vpop.f32.mrb[0].mxu0
        %v2104 = vadd.f32 0.0, %v2103
        %v2105 = vpop.f32.mrb[0].mxu0
        %2106 = vmatprep.mubr.bf16.mxu0 0
        %2107 = vmatmul.mubr.bf16.gmra.mrb[0].mxu0 %v1106
        %v2108 = vpop.f32.mrb[0].mxu0
        %v2109 = vadd.f32 0.0, %v2108
        %v2110 = vpop.f32.mrb[0].mxu0
        %v2111 = vpop.f32.mrb[0].mxu0
        %v2112 = vadd.f32 0.0, %v2111
        %v2113 = vpop.f32.mrb[0].mxu0
        %2114 = vmatprep.mubr.bf16.mxu0 0
        %2115 = vmatmul.mubr.bf16.gmra.mrb[0].mxu0 %v1109
        %v2116 = vpop.f32.mrb[0].mxu0
        %v2117 = vadd.f32 0.0, %v2116
        %v2118 = vpop.f32.mrb[0].mxu0
        %v2119 = vpop.f32.mrb[0].mxu0
        %v2120 = vadd.f32 0.0, %v2119
        %v2121 = vpop.f32.mrb[0].mxu0
        %2122 = vmatprep.mubr.bf16.mxu0 0
        %2123 = vmatmul.mubr.bf16.gmra.mrb[0].mxu0 %v1112
        %v2124 = vpop.f32.mrb[0].mxu0
        %v2125 = vadd.f32 0.0, %v2124
        %v2126 = vpop.f32.mrb[0].mxu0
        %v2127 = vpop.f32.mrb[0].mxu0
        %v2128 = vadd.f32 0.0, %v2127
        %v2129 = vpop.f32.mrb[0].mxu0
        %2130 = vmatprep.mubr.bf16.mxu0 0
        %2131 = vmatmul.mubr.bf16.gmra.mrb[0].mxu0 %v1115
        %v2132 = vpop.f32.mrb[0].mxu0
        %v2133 = vadd.f32 0.0, %v2132
        %v2134 = vpop.f32.mrb[0].mxu0
        %v2135 = vpop.f32.mrb[0].mxu0
        %v2136 = vadd.f32 0.0, %v2135
        %v2137 = vpop.f32.mrb[0].mxu0
        %2138 = vmatprep.mubr.bf16.mxu0 0
        %2139 = vmatmul.mubr.bf16.gmra.mrb[0].mxu0 %v1118
        %v2140 = vpop.f32.mrb[0].mxu0
        %v2141 = vadd.f32 0.0, %v2140
        %v2142 = vpop.f32.mrb[0].mxu0
        %v2143 = vpop.f32.mrb[0].mxu0
        %v2144 = vadd.f32 0.0, %v2143
        %v2145 = vpop.f32.mrb[0].mxu0
        %2146 = vmatprep.mubr.bf16.mxu0 0
        %2147 = vmatmul.mubr.bf16.gmra.mrb[0].mxu0 %v1121
        %v2148 = vpop.f32.mrb[0].mxu0
        %v2149 = vadd.f32 0.0, %v2148
        %v2150 = vpop.f32.mrb[0].mxu0
        %v2151 = vpop.f32.mrb[0].mxu0
        %v2152 = vadd.f32 0.0, %v2151
        %v2153 = vpop.f32.mrb[0].mxu0
        %2154 = vmatprep.mubr.bf16.mxu0 0
        %2155 = vmatmul.mubr.bf16.gmra.mrb[0].mxu0 %v1587
        %v2156 = vpop.f32.mrb[0].mxu0
        %v2157 = vadd.f32 0.0, %v2156
        %v2158 = vpop.f32.mrb[0].mxu0
        %v2159 = vpop.f32.mrb[0].mxu0
        %v2160 = vadd.f32 0.0, %v2159
        %v2161 = vpop.f32.mrb[0].mxu0
        %2162 = vmatprep.mubr.bf16.mxu0 0
        %2163 = vmatmul.mubr.bf16.gmra.mrb[0].mxu0 %v2053
        %v2164 = vpop.f32.mrb[0].mxu0
        %v2165 = vadd.f32 0.0, %v2164
        %v2166 = vpop.f32.mrb[0].mxu0
        %v2167 = vpop.f32.mrb[0].mxu0
        %v2168 = vadd.f32 0.0, %v2167
        %v2169 = vpop.f32.mrb[0].mxu0
        %2170 = vdwg.mxu0
        %v2171 = vadd.f32 %v2019, %v2093
        %v2172 = vadd.f32 %v2020, %v2096
        %v2173 = vadd.f32 %v2021, %v2101
        %v2174 = vadd.f32 %v2022, %v2104
        %v2175 = vadd.f32 %v2023, %v2109
        %v2176 = vadd.f32 %v2024, %v2112
        %v2177 = vadd.f32 %v2025, %v2117
        %v2178 = vadd.f32 %v2026, %v2120
        %v2179 = vadd.f32 %v2027, %v2125
        %v2180 = vadd.f32 %v2028, %v2128
        %v2181 = vadd.f32 %v2029, %v2133
        %v2182 = vadd.f32 %v2030, %v2136
        %v2183 = vadd.f32 %v2031, %v2141
        %v2184 = vadd.f32 %v2032, %v2144
        %v2185 = vadd.f32 %v2033, %v2149
        %v2186 = vadd.f32 %v2034, %v2152
        %v2187 = vadd.f32 %v2035, %v2157
        %v2188 = vadd.f32 %v2036, %v2160
        %v2189 = vadd.f32 %v2037, %v2165
        %v2190 = vadd.f32 %v2038, %v2168
        %v2191 = vld [vmem:[%s2] sm:$0x1]
        %v2193 = vlaneseq
        %v2194 = vshrl.u32 %v2193, 7
        %v2195 = vsub.s32 0, %v2194
        %v2196 = vrot.slane %v2191, %v2195
        %v2198 = vadd.f32 %v2171, %v2196
        %v2199 = vadd.f32 %v2172, %v2196
        %v2200 = vadd.f32 %v2173, %v2196
        %v2201 = vadd.f32 %v2174, %v2196
        %v2202 = vadd.f32 %v2175, %v2196
        %v2203 = vadd.f32 %v2176, %v2196
        %v2204 = vadd.f32 %v2177, %v2196
        %v2205 = vadd.f32 %v2178, %v2196
        %v2206 = vadd.f32 %v2179, %v2196
        %v2207 = vadd.f32 %v2180, %v2196
        %v2208 = vadd.f32 %v2181, %v2196
        %v2209 = vadd.f32 %v2182, %v2196
        %v2210 = vadd.f32 %v2183, %v2196
        %v2211 = vadd.f32 %v2184, %v2196
        %v2212 = vadd.f32 %v2185, %v2196
        %v2213 = vadd.f32 %v2186, %v2196
        %v2214 = vadd.f32 %v2187, %v2196
        %v2215 = vadd.f32 %v2188, %v2196
        %v2216 = vadd.f32 %v2189, %v2196
        %v2217 = vadd.f32 %v2190, %v2196
        %v2218 = vmax.f32 %v2198, 0.0
        %v2219 = vmax.f32 %v2199, 0.0
        %v2220 = vmax.f32 %v2200, 0.0
        %v2221 = vmax.f32 %v2201, 0.0
        %v2222 = vmax.f32 %v2202, 0.0
        %v2223 = vmax.f32 %v2203, 0.0
        %v2224 = vmax.f32 %v2204, 0.0
        %v2225 = vmax.f32 %v2205, 0.0
        %v2226 = vmax.f32 %v2206, 0.0
        %v2227 = vmax.f32 %v2207, 0.0
        %v2228 = vmax.f32 %v2208, 0.0
        %v2229 = vmax.f32 %v2209, 0.0
        %v2230 = vmax.f32 %v2210, 0.0
        %v2231 = vmax.f32 %v2211, 0.0
        %v2232 = vmax.f32 %v2212, 0.0
        %v2233 = vmax.f32 %v2213, 0.0
        %v2234 = vmax.f32 %v2214, 0.0
        %v2235 = vmax.f32 %v2215, 0.0
        %v2236 = vmax.f32 %v2216, 0.0
        %v2237 = vmax.f32 %v2217, 0.0
        %v2238 = vpack.c.bf16 %v2219, %v2218
        %v2239 = vpack.c.bf16 %v2221, %v2220
        %v2240 = vpack.c.bf16 %v2223, %v2222
        %v2241 = vpack.c.bf16 %v2225, %v2224
        %v2242 = vpack.c.bf16 %v2227, %v2226
        %v2243 = vpack.c.bf16 %v2229, %v2228
        %v2244 = vpack.c.bf16 %v2231, %v2230
        %v2245 = vpack.c.bf16 %v2233, %v2232
        %v2246 = vpack.c.bf16 %v2235, %v2234
        %v2247 = vpack.c.bf16 %v2237, %v2236
        %v2248 = vld [vmem:[%s3] sm:$0xf]
        %v2249 = vld [vmem:[%s4] sm:$0x1]
        %v2251 = vlaneseq
        %v2252 = vshrl.u32 %v2251, 7
        %v2253 = vsub.s32 0, %v2252
        %v2254 = vrot.slane %v2249, %v2253
        %vm2256 = vcmask 64512
        %v2258 = vsel %vm2256, %v2238, 0
        %v2261 = vsel %vm2256, %v2239, 0
        %v2264 = vsel %vm2256, %v2240, 0
        %v2267 = vsel %vm2256, %v2241, 0
        %v2270 = vsel %vm2256, %v2242, 0
        %v2273 = vsel %vm2256, %v2243, 0
        %v2276 = vsel %vm2256, %v2244, 0
        %v2279 = vsel %vm2256, %v2245, 0
        %v2282 = vsel %vm2256, %v2246, 0
        %v2285 = vsel %vm2256, %v2247, 0
        %vm2287 = vcmask 1043456
        %v2289 = vsel %vm2287, %v2248, 0
        %2291 = vmatprep.subr.bf16.mxu0 0
        %2292 = vmatpush1.bf16.msra.mxu0 %v2289
        %2293 = vmatprep.subr.bf16.mxu0 0
        %2294 = vmatpush1.bf16.msra.mxu0 0
        %2295 = vmatprep.subr.bf16.mxu0 0
        %2296 = vmatpush1.bf16.msra.mxu0 0
        %2297 = vmatprep.subr.bf16.mxu0 0
        %2298 = vmatpush1.bf16.msra.mxu0 0
        %2299 = vmatprep.subr.bf16.mxu0 0
        %2300 = vmatpush1.bf16.msra.mxu0 0
        %2301 = vmatprep.subr.bf16.mxu0 0
        %2302 = vmatpush1.bf16.msra.mxu0 0
        %2303 = vmatprep.subr.bf16.mxu0 0
        %2304 = vmatpush1.bf16.msra.mxu0 0
        %2305 = vmatprep.subr.bf16.mxu0 0
        %2306 = vmatpush1.bf16.msra.mxu0 0
        %2307 = vmatprep.subr.bf16.mxu0 0
        %2308 = vmatpush1.bf16.msra.mxu0 0
        %2309 = vmatprep.subr.bf16.mxu0 0
        %2310 = vmatpush1.bf16.msra.mxu0 0
        %2311 = vmatprep.subr.bf16.mxu0 0
        %2312 = vmatpush1.bf16.msra.mxu0 0
        %2313 = vmatprep.subr.bf16.mxu0 0
        %2314 = vmatpush1.bf16.msra.mxu0 0
        %2315 = vmatprep.subr.bf16.mxu0 0
        %2316 = vmatpush1.bf16.msra.mxu0 0
        %2317 = vmatprep.subr.bf16.mxu0 0
        %2318 = vmatpush1.bf16.msra.mxu0 0
        %2319 = vmatprep.subr.bf16.mxu0 0
        %2320 = vmatpush1.bf16.msra.mxu0 0
        %2321 = vmatprep.subr.bf16.mxu0 0
        %2322 = vmatpush1.bf16.msra.mxu0 0
        %2323 = vmatprep.mubr.bf16.mxu0 0
        %2324 = vmatmul.mubr.bf16.gmra.mrb[0].mxu0 %v2258
        %v2325 = vpop.f32.mrb[0].mxu0
        %v2326 = vadd.f32 %v2254, %v2325
        %v2327 = vpop.f32.mrb[0].mxu0
        %v2328 = vpop.f32.mrb[0].mxu0
        %v2329 = vadd.f32 %v2254, %v2328
        %v2330 = vpop.f32.mrb[0].mxu0
        %2331 = vmatprep.mubr.bf16.mxu0 0
        %2332 = vmatmul.mubr.bf16.gmra.mrb[0].mxu0 %v2261
        %v2333 = vpop.f32.mrb[0].mxu0
        %v2334 = vadd.f32 %v2254, %v2333
        %v2335 = vpop.f32.mrb[0].mxu0
        %v2336 = vpop.f32.mrb[0].mxu0
        %v2337 = vadd.f32 %v2254, %v2336
        %v2338 = vpop.f32.mrb[0].mxu0
        %2339 = vmatprep.mubr.bf16.mxu0 0
        %2340 = vmatmul.mubr.bf16.gmra.mrb[0].mxu0 %v2264
        %v2341 = vpop.f32.mrb[0].mxu0
        %v2342 = vadd.f32 %v2254, %v2341
        %v2343 = vpop.f32.mrb[0].mxu0
        %v2344 = vpop.f32.mrb[0].mxu0
        %v2345 = vadd.f32 %v2254, %v2344
        %v2346 = vpop.f32.mrb[0].mxu0
        %2347 = vmatprep.mubr.bf16.mxu0 0
        %2348 = vmatmul.mubr.bf16.gmra.mrb[0].mxu0 %v2267
        %v2349 = vpop.f32.mrb[0].mxu0
        %v2350 = vadd.f32 %v2254, %v2349
        %v2351 = vpop.f32.mrb[0].mxu0
        %v2352 = vpop.f32.mrb[0].mxu0
        %v2353 = vadd.f32 %v2254, %v2352
        %v2354 = vpop.f32.mrb[0].mxu0
        %2355 = vmatprep.mubr.bf16.mxu0 0
        %2356 = vmatmul.mubr.bf16.gmra.mrb[0].mxu0 %v2270
        %v2357 = vpop.f32.mrb[0].mxu0
        %v2358 = vadd.f32 %v2254, %v2357
        %v2359 = vpop.f32.mrb[0].mxu0
        %v2360 = vpop.f32.mrb[0].mxu0
        %v2361 = vadd.f32 %v2254, %v2360
        %v2362 = vpop.f32.mrb[0].mxu0
        %2363 = vmatprep.mubr.bf16.mxu0 0
        %2364 = vmatmul.mubr.bf16.gmra.mrb[0].mxu0 %v2273
        %v2365 = vpop.f32.mrb[0].mxu0
        %v2366 = vadd.f32 %v2254, %v2365
        %v2367 = vpop.f32.mrb[0].mxu0
        %v2368 = vpop.f32.mrb[0].mxu0
        %v2369 = vadd.f32 %v2254, %v2368
        %v2370 = vpop.f32.mrb[0].mxu0
        %2371 = vmatprep.mubr.bf16.mxu0 0
        %2372 = vmatmul.mubr.bf16.gmra.mrb[0].mxu0 %v2276
        %v2373 = vpop.f32.mrb[0].mxu0
        %v2374 = vadd.f32 %v2254, %v2373
        %v2375 = vpop.f32.mrb[0].mxu0
        %v2376 = vpop.f32.mrb[0].mxu0
        %v2377 = vadd.f32 %v2254, %v2376
        %v2378 = vpop.f32.mrb[0].mxu0
        %2379 = vmatprep.mubr.bf16.mxu0 0
        %2380 = vmatmul.mubr.bf16.gmra.mrb[0].mxu0 %v2279
        %v2381 = vpop.f32.mrb[0].mxu0
        %v2382 = vadd.f32 %v2254, %v2381
        %v2383 = vpop.f32.mrb[0].mxu0
        %v2384 = vpop.f32.mrb[0].mxu0
        %v2385 = vadd.f32 %v2254, %v2384
        %v2386 = vpop.f32.mrb[0].mxu0
        %2387 = vmatprep.mubr.bf16.mxu0 0
        %2388 = vmatmul.mubr.bf16.gmra.mrb[0].mxu0 %v2282
        %v2389 = vpop.f32.mrb[0].mxu0
        %v2390 = vadd.f32 %v2254, %v2389
        %v2391 = vpop.f32.mrb[0].mxu0
        %v2392 = vpop.f32.mrb[0].mxu0
        %v2393 = vadd.f32 %v2254, %v2392
        %v2394 = vpop.f32.mrb[0].mxu0
        %2395 = vmatprep.mubr.bf16.mxu0 0
        %2396 = vmatmul.mubr.bf16.gmra.mrb[0].mxu0 %v2285
        %v2397 = vpop.f32.mrb[0].mxu0
        %v2398 = vadd.f32 %v2254, %v2397
        %v2399 = vpop.f32.mrb[0].mxu0
        %v2400 = vpop.f32.mrb[0].mxu0
        %v2401 = vadd.f32 %v2254, %v2400
        %v2402 = vpop.f32.mrb[0].mxu0
        %2403 = vdwg.mxu0
        %v2404 = vlaneseq
        %v2405 = vand.u32 %v2404, 127
        %vm2406 = vcmp.eq.s32.totalorder %v2405, 0
        %v2407 = vsel %vm2406, 1, 0
        %vm2408 = vcmp.eq.s32.totalorder %v2407, 1
        %v2409 = vsel %vm2408, %v2326, 0.0
        %v2410 = vsel %vm2408, %v2329, 0.0
        %v2411 = vsel %vm2408, %v2334, 0.0
        %v2412 = vsel %vm2408, %v2337, 0.0
        %v2413 = vsel %vm2408, %v2342, 0.0
        %v2414 = vsel %vm2408, %v2345, 0.0
        %v2415 = vsel %vm2408, %v2350, 0.0
        %v2416 = vsel %vm2408, %v2353, 0.0
        %v2417 = vsel %vm2408, %v2358, 0.0
        %v2418 = vsel %vm2408, %v2361, 0.0
        %v2419 = vsel %vm2408, %v2366, 0.0
        %v2420 = vsel %vm2408, %v2369, 0.0
        %v2421 = vsel %vm2408, %v2374, 0.0
        %v2422 = vsel %vm2408, %v2377, 0.0
        %v2423 = vsel %vm2408, %v2382, 0.0
        %v2424 = vsel %vm2408, %v2385, 0.0
        %v2425 = vsel %vm2408, %v2390, 0.0
        %v2426 = vsel %vm2408, %v2393, 0.0
        %v2427 = vsel %vm2408, %v2398, 0.0
        %v2428 = vsel %vm2408, %v2401, 0.0
        %vm2429 = vcmask 23552
        %v2430 = vsel %vm2429, %v2409, 0.0
        %2431 = vadd.xlane.f32.xlu0 %v2430
        %v2432 = vpop.xlane.xlu0 %2431
        %v2433 = vsel %vm2429, %v2410, 0.0
        %2434 = vadd.xlane.f32.xlu0 %v2433
        %v2435 = vpop.xlane.xlu0 %2434
        %v2436 = vsel %vm2429, %v2411, 0.0
        %2437 = vadd.xlane.f32.xlu0 %v2436
        %v2438 = vpop.xlane.xlu0 %2437
        %v2439 = vsel %vm2429, %v2412, 0.0
        %2440 = vadd.xlane.f32.xlu0 %v2439
        %v2441 = vpop.xlane.xlu0 %2440
        %v2442 = vsel %vm2429, %v2413, 0.0
        %2443 = vadd.xlane.f32.xlu0 %v2442
        %v2444 = vpop.xlane.xlu0 %2443
        %v2445 = vsel %vm2429, %v2414, 0.0
        %2446 = vadd.xlane.f32.xlu0 %v2445
        %v2447 = vpop.xlane.xlu0 %2446
        %v2448 = vsel %vm2429, %v2415, 0.0
        %2449 = vadd.xlane.f32.xlu0 %v2448
        %v2450 = vpop.xlane.xlu0 %2449
        %v2451 = vsel %vm2429, %v2416, 0.0
        %2452 = vadd.xlane.f32.xlu0 %v2451
        %v2453 = vpop.xlane.xlu0 %2452
        %v2454 = vsel %vm2429, %v2417, 0.0
        %2455 = vadd.xlane.f32.xlu0 %v2454
        %v2456 = vpop.xlane.xlu0 %2455
        %v2457 = vsel %vm2429, %v2418, 0.0
        %2458 = vadd.xlane.f32.xlu0 %v2457
        %v2459 = vpop.xlane.xlu0 %2458
        %v2460 = vsel %vm2429, %v2419, 0.0
        %2461 = vadd.xlane.f32.xlu0 %v2460
        %v2462 = vpop.xlane.xlu0 %2461
        %v2463 = vsel %vm2429, %v2420, 0.0
        %2464 = vadd.xlane.f32.xlu0 %v2463
        %v2465 = vpop.xlane.xlu0 %2464
        %v2466 = vsel %vm2429, %v2421, 0.0
        %2467 = vadd.xlane.f32.xlu0 %v2466
        %v2468 = vpop.xlane.xlu0 %2467
        %v2469 = vsel %vm2429, %v2422, 0.0
        %2470 = vadd.xlane.f32.xlu0 %v2469
        %v2471 = vpop.xlane.xlu0 %2470
        %v2472 = vsel %vm2429, %v2423, 0.0
        %2473 = vadd.xlane.f32.xlu0 %v2472
        %v2474 = vpop.xlane.xlu0 %2473
        %v2475 = vsel %vm2429, %v2424, 0.0
        %2476 = vadd.xlane.f32.xlu0 %v2475
        %v2477 = vpop.xlane.xlu0 %2476
        %v2478 = vsel %vm2429, %v2425, 0.0
        %2479 = vadd.xlane.f32.xlu0 %v2478
        %v2480 = vpop.xlane.xlu0 %2479
        %v2481 = vsel %vm2429, %v2426, 0.0
        %2482 = vadd.xlane.f32.xlu0 %v2481
        %v2483 = vpop.xlane.xlu0 %2482
        %v2484 = vsel %vm2429, %v2427, 0.0
        %2485 = vadd.xlane.f32.xlu0 %v2484
        %v2486 = vpop.xlane.xlu0 %2485
        %v2487 = vsel %vm2429, %v2428, 0.0
        %2488 = vadd.xlane.f32.xlu0 %v2487
        %v2489 = vpop.xlane.xlu0 %2488
        %v2490 = vpack.c.bf16 %v2435, %v2432
        %v2491 = vpack.c.bf16 %v2441, %v2438
        %v2492 = vpack.c.bf16 %v2447, %v2444
        %v2493 = vpack.c.bf16 %v2453, %v2450
        %v2494 = vpack.c.bf16 %v2459, %v2456
        %v2495 = vpack.c.bf16 %v2465, %v2462
        %v2496 = vpack.c.bf16 %v2471, %v2468
        %v2497 = vpack.c.bf16 %v2477, %v2474
        %v2498 = vpack.c.bf16 %v2483, %v2480
        %v2499 = vpack.c.bf16 %v2489, %v2486
        %vm2500 = vcmp.eq.s32.totalorder %v2405, 1
        %v2501 = vsel %vm2500, 1, 0
        %vm2502 = vcmp.eq.s32.totalorder %v2501, 1
        %v2503 = vsel %vm2502, %v2326, 0.0
        %v2504 = vsel %vm2502, %v2329, 0.0
        %v2505 = vsel %vm2502, %v2334, 0.0
        %v2506 = vsel %vm2502, %v2337, 0.0
        %v2507 = vsel %vm2502, %v2342, 0.0
        %v2508 = vsel %vm2502, %v2345, 0.0
        %v2509 = vsel %vm2502, %v2350, 0.0
        %v2510 = vsel %vm2502, %v2353, 0.0
        %v2511 = vsel %vm2502, %v2358, 0.0
        %v2512 = vsel %vm2502, %v2361, 0.0
        %v2513 = vsel %vm2502, %v2366, 0.0
        %v2514 = vsel %vm2502, %v2369, 0.0
        %v2515 = vsel %vm2502, %v2374, 0.0
        %v2516 = vsel %vm2502, %v2377, 0.0
        %v2517 = vsel %vm2502, %v2382, 0.0
        %v2518 = vsel %vm2502, %v2385, 0.0
        %v2519 = vsel %vm2502, %v2390, 0.0
        %v2520 = vsel %vm2502, %v2393, 0.0
        %v2521 = vsel %vm2502, %v2398, 0.0
        %v2522 = vsel %vm2502, %v2401, 0.0
        %v2523 = vsel %vm2429, %v2503, 0.0
        %2524 = vadd.xlane.f32.xlu0 %v2523
        %v2525 = vpop.xlane.xlu0 %2524
        %v2526 = vsel %vm2429, %v2504, 0.0
        %2527 = vadd.xlane.f32.xlu0 %v2526
        %v2528 = vpop.xlane.xlu0 %2527
        %v2529 = vsel %vm2429, %v2505, 0.0
        %2530 = vadd.xlane.f32.xlu0 %v2529
        %v2531 = vpop.xlane.xlu0 %2530
        %v2532 = vsel %vm2429, %v2506, 0.0
        %2533 = vadd.xlane.f32.xlu0 %v2532
        %v2534 = vpop.xlane.xlu0 %2533
        %v2535 = vsel %vm2429, %v2507, 0.0
        %2536 = vadd.xlane.f32.xlu0 %v2535
        %v2537 = vpop.xlane.xlu0 %2536
        %v2538 = vsel %vm2429, %v2508, 0.0
        %2539 = vadd.xlane.f32.xlu0 %v2538
        %v2540 = vpop.xlane.xlu0 %2539
        %v2541 = vsel %vm2429, %v2509, 0.0
        %2542 = vadd.xlane.f32.xlu0 %v2541
        %v2543 = vpop.xlane.xlu0 %2542
        %v2544 = vsel %vm2429, %v2510, 0.0
        %2545 = vadd.xlane.f32.xlu0 %v2544
        %v2546 = vpop.xlane.xlu0 %2545
        %v2547 = vsel %vm2429, %v2511, 0.0
        %2548 = vadd.xlane.f32.xlu0 %v2547
        %v2549 = vpop.xlane.xlu0 %2548
        %v2550 = vsel %vm2429, %v2512, 0.0
        %2551 = vadd.xlane.f32.xlu0 %v2550
        %v2552 = vpop.xlane.xlu0 %2551
        %v2553 = vsel %vm2429, %v2513, 0.0
        %2554 = vadd.xlane.f32.xlu0 %v2553
        %v2555 = vpop.xlane.xlu0 %2554
        %v2556 = vsel %vm2429, %v2514, 0.0
        %2557 = vadd.xlane.f32.xlu0 %v2556
        %v2558 = vpop.xlane.xlu0 %2557
        %v2559 = vsel %vm2429, %v2515, 0.0
        %2560 = vadd.xlane.f32.xlu0 %v2559
        %v2561 = vpop.xlane.xlu0 %2560
        %v2562 = vsel %vm2429, %v2516, 0.0
        %2563 = vadd.xlane.f32.xlu0 %v2562
        %v2564 = vpop.xlane.xlu0 %2563
        %v2565 = vsel %vm2429, %v2517, 0.0
        %2566 = vadd.xlane.f32.xlu0 %v2565
        %v2567 = vpop.xlane.xlu0 %2566
        %v2568 = vsel %vm2429, %v2518, 0.0
        %2569 = vadd.xlane.f32.xlu0 %v2568
        %v2570 = vpop.xlane.xlu0 %2569
        %v2571 = vsel %vm2429, %v2519, 0.0
        %2572 = vadd.xlane.f32.xlu0 %v2571
        %v2573 = vpop.xlane.xlu0 %2572
        %v2574 = vsel %vm2429, %v2520, 0.0
        %2575 = vadd.xlane.f32.xlu0 %v2574
        %v2576 = vpop.xlane.xlu0 %2575
        %v2577 = vsel %vm2429, %v2521, 0.0
        %2578 = vadd.xlane.f32.xlu0 %v2577
        %v2579 = vpop.xlane.xlu0 %2578
        %v2580 = vsel %vm2429, %v2522, 0.0
        %2581 = vadd.xlane.f32.xlu0 %v2580
        %v2582 = vpop.xlane.xlu0 %2581
        %v2583 = vpack.c.bf16 %v2528, %v2525
        %v2584 = vpack.c.bf16 %v2534, %v2531
        %v2585 = vpack.c.bf16 %v2540, %v2537
        %v2586 = vpack.c.bf16 %v2546, %v2543
        %v2587 = vpack.c.bf16 %v2552, %v2549
        %v2588 = vpack.c.bf16 %v2558, %v2555
        %v2589 = vpack.c.bf16 %v2564, %v2561
        %v2590 = vpack.c.bf16 %v2570, %v2567
        %v2591 = vpack.c.bf16 %v2576, %v2573
        %v2592 = vpack.c.bf16 %v2582, %v2579
        %vm2593 = vcmp.eq.s32.totalorder %v2405, 2
        %v2594 = vsel %vm2593, 1, 0
        %vm2595 = vcmp.eq.s32.totalorder %v2594, 1
        %v2596 = vsel %vm2595, %v2326, 0.0
        %v2597 = vsel %vm2595, %v2329, 0.0
        %v2598 = vsel %vm2595, %v2334, 0.0
        %v2599 = vsel %vm2595, %v2337, 0.0
        %v2600 = vsel %vm2595, %v2342, 0.0
        %v2601 = vsel %vm2595, %v2345, 0.0
        %v2602 = vsel %vm2595, %v2350, 0.0
        %v2603 = vsel %vm2595, %v2353, 0.0
        %v2604 = vsel %vm2595, %v2358, 0.0
        %v2605 = vsel %vm2595, %v2361, 0.0
        %v2606 = vsel %vm2595, %v2366, 0.0
        %v2607 = vsel %vm2595, %v2369, 0.0
        %v2608 = vsel %vm2595, %v2374, 0.0
        %v2609 = vsel %vm2595, %v2377, 0.0
        %v2610 = vsel %vm2595, %v2382, 0.0
        %v2611 = vsel %vm2595, %v2385, 0.0
        %v2612 = vsel %vm2595, %v2390, 0.0
        %v2613 = vsel %vm2595, %v2393, 0.0
        %v2614 = vsel %vm2595, %v2398, 0.0
        %v2615 = vsel %vm2595, %v2401, 0.0
        %v2616 = vsel %vm2429, %v2596, 0.0
        %2617 = vadd.xlane.f32.xlu0 %v2616
        %v2618 = vpop.xlane.xlu0 %2617
        %v2619 = vsel %vm2429, %v2597, 0.0
        %2620 = vadd.xlane.f32.xlu0 %v2619
        %v2621 = vpop.xlane.xlu0 %2620
        %v2622 = vsel %vm2429, %v2598, 0.0
        %2623 = vadd.xlane.f32.xlu0 %v2622
        %v2624 = vpop.xlane.xlu0 %2623
        %v2625 = vsel %vm2429, %v2599, 0.0
        %2626 = vadd.xlane.f32.xlu0 %v2625
        %v2627 = vpop.xlane.xlu0 %2626
        %v2628 = vsel %vm2429, %v2600, 0.0
        %2629 = vadd.xlane.f32.xlu0 %v2628
        %v2630 = vpop.xlane.xlu0 %2629
        %v2631 = vsel %vm2429, %v2601, 0.0
        %2632 = vadd.xlane.f32.xlu0 %v2631
        %v2633 = vpop.xlane.xlu0 %2632
        %v2634 = vsel %vm2429, %v2602, 0.0
        %2635 = vadd.xlane.f32.xlu0 %v2634
        %v2636 = vpop.xlane.xlu0 %2635
        %v2637 = vsel %vm2429, %v2603, 0.0
        %2638 = vadd.xlane.f32.xlu0 %v2637
        %v2639 = vpop.xlane.xlu0 %2638
        %v2640 = vsel %vm2429, %v2604, 0.0
        %2641 = vadd.xlane.f32.xlu0 %v2640
        %v2642 = vpop.xlane.xlu0 %2641
        %v2643 = vsel %vm2429, %v2605, 0.0
        %2644 = vadd.xlane.f32.xlu0 %v2643
        %v2645 = vpop.xlane.xlu0 %2644
        %v2646 = vsel %vm2429, %v2606, 0.0
        %2647 = vadd.xlane.f32.xlu0 %v2646
        %v2648 = vpop.xlane.xlu0 %2647
        %v2649 = vsel %vm2429, %v2607, 0.0
        %2650 = vadd.xlane.f32.xlu0 %v2649
        %v2651 = vpop.xlane.xlu0 %2650
        %v2652 = vsel %vm2429, %v2608, 0.0
        %2653 = vadd.xlane.f32.xlu0 %v2652
        %v2654 = vpop.xlane.xlu0 %2653
        %v2655 = vsel %vm2429, %v2609, 0.0
        %2656 = vadd.xlane.f32.xlu0 %v2655
        %v2657 = vpop.xlane.xlu0 %2656
        %v2658 = vsel %vm2429, %v2610, 0.0
        %2659 = vadd.xlane.f32.xlu0 %v2658
        %v2660 = vpop.xlane.xlu0 %2659
        %v2661 = vsel %vm2429, %v2611, 0.0
        %2662 = vadd.xlane.f32.xlu0 %v2661
        %v2663 = vpop.xlane.xlu0 %2662
        %v2664 = vsel %vm2429, %v2612, 0.0
        %2665 = vadd.xlane.f32.xlu0 %v2664
        %v2666 = vpop.xlane.xlu0 %2665
        %v2667 = vsel %vm2429, %v2613, 0.0
        %2668 = vadd.xlane.f32.xlu0 %v2667
        %v2669 = vpop.xlane.xlu0 %2668
        %v2670 = vsel %vm2429, %v2614, 0.0
        %2671 = vadd.xlane.f32.xlu0 %v2670
        %v2672 = vpop.xlane.xlu0 %2671
        %v2673 = vsel %vm2429, %v2615, 0.0
        %2674 = vadd.xlane.f32.xlu0 %v2673
        %v2675 = vpop.xlane.xlu0 %2674
        %v2676 = vpack.c.bf16 %v2621, %v2618
        %v2677 = vpack.c.bf16 %v2627, %v2624
        %v2678 = vpack.c.bf16 %v2633, %v2630
        %v2679 = vpack.c.bf16 %v2639, %v2636
        %v2680 = vpack.c.bf16 %v2645, %v2642
        %v2681 = vpack.c.bf16 %v2651, %v2648
        %v2682 = vpack.c.bf16 %v2657, %v2654
        %v2683 = vpack.c.bf16 %v2663, %v2660
        %v2684 = vpack.c.bf16 %v2669, %v2666
        %v2685 = vpack.c.bf16 %v2675, %v2672
        %v2686 = vld [vmem:[%s6] sm:$0xf]
        %v2687 = vld [vmem:[%s6 + $0x4] sm:$0xf]
        %v2688 = vld [vmem:[%s310] sm:$0xf]
        %v2689 = vld [vmem:[%s310 + $0x4] sm:$0xf]
        %v2690 = vld [vmem:[%s310 + $0x8] sm:$0xf]
        %v2691 = vld [vmem:[%s310 + $0xc] sm:$0xf]
        %v2702 = vunpack.c.l.b16 %v2490
        %v2703 = vunpack.c.h.b16 %v2490
        %v2704 = vunpack.c.l.b16 %v2491
        %v2705 = vunpack.c.h.b16 %v2491
        %v2706 = vunpack.c.l.b16 %v2492
        %v2707 = vunpack.c.h.b16 %v2492
        %v2708 = vunpack.c.l.b16 %v2493
        %v2709 = vunpack.c.h.b16 %v2493
        %v2710 = vunpack.c.l.b16 %v2494
        %v2711 = vunpack.c.h.b16 %v2494
        %v2712 = vunpack.c.l.b16 %v2495
        %v2713 = vunpack.c.h.b16 %v2495
        %v2714 = vunpack.c.l.b16 %v2496
        %v2715 = vunpack.c.h.b16 %v2496
        %v2716 = vunpack.c.l.b16 %v2497
        %v2717 = vunpack.c.h.b16 %v2497
        %v2718 = vunpack.c.l.b16 %v2498
        %v2719 = vunpack.c.h.b16 %v2498
        %v2720 = vunpack.c.l.b16 %v2499
        %v2721 = vunpack.c.h.b16 %v2499
        %v2722 = vlaneseq
        %v2723 = vshrl.u32 %v2722, 7
        %v2724 = vsub.s32 %v2405, %v2723
        %v2725 = vrot.slane %v2702, %v2724
        %v2726 = vadd.s32 %v2405, 4294967288
        %v2727 = vlaneseq
        %v2728 = vshrl.u32 %v2727, 7
        %v2729 = vsub.s32 %v2726, %v2728
        %v2730 = vrot.slane %v2703, %v2729
        %vm2731 = vcmask 130112
        %v2732 = vsel %vm2731, %v2730, %v2725
        %v2733 = vlaneseq
        %v2734 = vshrl.u32 %v2733, 7
        %v2735 = vsub.s32 %v2405, %v2734
        %v2736 = vrot.slane %v2704, %v2735
        %v2737 = vlaneseq
        %v2738 = vshrl.u32 %v2737, 7
        %v2739 = vsub.s32 %v2726, %v2738
        %v2740 = vrot.slane %v2705, %v2739
        %v2741 = vsel %vm2731, %v2740, %v2736
        %v2742 = vlaneseq
        %v2743 = vshrl.u32 %v2742, 7
        %v2744 = vsub.s32 %v2405, %v2743
        %v2745 = vrot.slane %v2706, %v2744
        %v2746 = vlaneseq
        %v2747 = vshrl.u32 %v2746, 7
        %v2748 = vsub.s32 %v2726, %v2747
        %v2749 = vrot.slane %v2707, %v2748
        %v2750 = vsel %vm2731, %v2749, %v2745
        %v2751 = vlaneseq
        %v2752 = vshrl.u32 %v2751, 7
        %v2753 = vsub.s32 %v2405, %v2752
        %v2754 = vrot.slane %v2708, %v2753
        %v2755 = vlaneseq
        %v2756 = vshrl.u32 %v2755, 7
        %v2757 = vsub.s32 %v2726, %v2756
        %v2758 = vrot.slane %v2709, %v2757
        %v2759 = vsel %vm2731, %v2758, %v2754
        %v2760 = vlaneseq
        %v2761 = vshrl.u32 %v2760, 7
        %v2762 = vsub.s32 %v2405, %v2761
        %v2763 = vrot.slane %v2710, %v2762
        %v2764 = vlaneseq
        %v2765 = vshrl.u32 %v2764, 7
        %v2766 = vsub.s32 %v2726, %v2765
        %v2767 = vrot.slane %v2711, %v2766
        %v2768 = vsel %vm2731, %v2767, %v2763
        %v2769 = vlaneseq
        %v2770 = vshrl.u32 %v2769, 7
        %v2771 = vsub.s32 %v2405, %v2770
        %v2772 = vrot.slane %v2712, %v2771
        %v2773 = vlaneseq
        %v2774 = vshrl.u32 %v2773, 7
        %v2775 = vsub.s32 %v2726, %v2774
        %v2776 = vrot.slane %v2713, %v2775
        %v2777 = vsel %vm2731, %v2776, %v2772
        %v2778 = vlaneseq
        %v2779 = vshrl.u32 %v2778, 7
        %v2780 = vsub.s32 %v2405, %v2779
        %v2781 = vrot.slane %v2714, %v2780
        %v2782 = vlaneseq
        %v2783 = vshrl.u32 %v2782, 7
        %v2784 = vsub.s32 %v2726, %v2783
        %v2785 = vrot.slane %v2715, %v2784
        %v2786 = vsel %vm2731, %v2785, %v2781
        %v2787 = vlaneseq
        %v2788 = vshrl.u32 %v2787, 7
        %v2789 = vsub.s32 %v2405, %v2788
        %v2790 = vrot.slane %v2716, %v2789
        %v2791 = vlaneseq
        %v2792 = vshrl.u32 %v2791, 7
        %v2793 = vsub.s32 %v2726, %v2792
        %v2794 = vrot.slane %v2717, %v2793
        %v2795 = vsel %vm2731, %v2794, %v2790
        %v2796 = vlaneseq
        %v2797 = vshrl.u32 %v2796, 7
        %v2798 = vsub.s32 %v2405, %v2797
        %v2799 = vrot.slane %v2718, %v2798
        %v2800 = vlaneseq
        %v2801 = vshrl.u32 %v2800, 7
        %v2802 = vsub.s32 %v2726, %v2801
        %v2803 = vrot.slane %v2719, %v2802
        %v2804 = vsel %vm2731, %v2803, %v2799
        %v2805 = vlaneseq
        %v2806 = vshrl.u32 %v2805, 7
        %v2807 = vsub.s32 %v2405, %v2806
        %v2808 = vrot.slane %v2720, %v2807
        %v2809 = vlaneseq
        %v2810 = vshrl.u32 %v2809, 7
        %v2811 = vsub.s32 %v2726, %v2810
        %v2812 = vrot.slane %v2721, %v2811
        %v2813 = vsel %vm2731, %v2812, %v2808
        %vm2814 = vcmask 1041409
        %v2815 = vsel %vm2814, %v2741, %v2732
        %vm2816 = vcmask 1042434
        %v2817 = vsel %vm2816, %v2750, %v2815
        %vm2818 = vcmask 1043459
        %v2819 = vsel %vm2818, %v2759, %v2817
        %vm2820 = vcmask 1044484
        %v2821 = vsel %vm2820, %v2768, %v2819
        %vm2822 = vcmask 1045509
        %v2823 = vsel %vm2822, %v2777, %v2821
        %vm2824 = vcmask 1046534
        %v2825 = vsel %vm2824, %v2786, %v2823
        %vm2826 = vcmask 1047559
        %v2827 = vsel %vm2826, %v2795, %v2825
        %v2828 = vsel %vm2814, %v2813, %v2804
        %v2829 = vpack.c.b16 %v2828, %v2827
        %v2832 = vunpack.c.l.b16 %v2686
        %v2833 = vunpack.c.l.b16 %v2687
        %v2834 = vpack.c.b16 %v2833, %v2832
        %vm2836 = vcmask 130048
        %v2838 = vsel %vm2836, %v2829, 0
        %2840 = vmatprep.subr.bf16.mxu0 0
        %2841 = vmatpush1.bf16.msra.mxu0 %v2834
        %2842 = vmatprep.subr.bf16.mxu0 0
        %2843 = vmatpush1.bf16.msra.mxu0 0
        %2844 = vmatprep.subr.bf16.mxu0 0
        %2845 = vmatpush1.bf16.msra.mxu0 0
        %2846 = vmatprep.subr.bf16.mxu0 0
        %2847 = vmatpush1.bf16.msra.mxu0 0
        %2848 = vmatprep.subr.bf16.mxu0 0
        %2849 = vmatpush1.bf16.msra.mxu0 0
        %2850 = vmatprep.subr.bf16.mxu0 0
        %2851 = vmatpush1.bf16.msra.mxu0 0
        %2852 = vmatprep.subr.bf16.mxu0 0
        %2853 = vmatpush1.bf16.msra.mxu0 0
        %2854 = vmatprep.subr.bf16.mxu0 0
        %2855 = vmatpush1.bf16.msra.mxu0 0
        %2856 = vmatprep.subr.bf16.mxu0 0
        %2857 = vmatpush1.bf16.msra.mxu0 0
        %2858 = vmatprep.subr.bf16.mxu0 0
        %2859 = vmatpush1.bf16.msra.mxu0 0
        %2860 = vmatprep.subr.bf16.mxu0 0
        %2861 = vmatpush1.bf16.msra.mxu0 0
        %2862 = vmatprep.subr.bf16.mxu0 0
        %2863 = vmatpush1.bf16.msra.mxu0 0
        %2864 = vmatprep.subr.bf16.mxu0 0
        %2865 = vmatpush1.bf16.msra.mxu0 0
        %2866 = vmatprep.subr.bf16.mxu0 0
        %2867 = vmatpush1.bf16.msra.mxu0 0
        %2868 = vmatprep.subr.bf16.mxu0 0
        %2869 = vmatpush1.bf16.msra.mxu0 0
        %2870 = vmatprep.subr.bf16.mxu0 0
        %2871 = vmatpush1.bf16.msra.mxu0 0
        %2872 = vmatprep.mubr.bf16.mxu0 0
        %2873 = vmatmul.mubr.bf16.gmra.mrb[0].mxu0 %v2838
        %v2874 = vpop.f32.mrb[0].mxu0
        %v2875 = vadd.f32 0.0, %v2874
        %v2876 = vpop.f32.mrb[0].mxu0
        %v2877 = vpop.f32.mrb[0].mxu0
        %v2878 = vadd.f32 0.0, %v2877
        %v2879 = vpop.f32.mrb[0].mxu0
        %2880 = vdwg.mxu0
        %v2881 = vpack.c.bf16 %v2878, %v2875
        %v2886 = vunpack.c.l.b16 %v2688
        %v2887 = vunpack.c.l.b16 %v2689
        %v2888 = vunpack.c.l.b16 %v2690
        %v2889 = vunpack.c.l.b16 %v2691
        %v2890 = vpack.c.b16 %v2887, %v2886
        %v2891 = vpack.c.b16 %v2889, %v2888
        %vm2892 = vcmask 80896
        %v2894 = vsel %vm2892, %v2890, 0
        %v2897 = vsel %vm2892, %v2891, 0
        %vm2899 = vcmask 1044480
        %v2901 = vsel %vm2899, %v2881, 0
        %2903 = vmatprep.subr.bf16.mxu0 0
        %2904 = vmatpush1.bf16.msra.mxu0 %v2901
        %2905 = vmatprep.subr.bf16.mxu0 0
        %2906 = vmatpush1.bf16.msra.mxu0 0
        %2907 = vmatprep.subr.bf16.mxu0 0
        %2908 = vmatpush1.bf16.msra.mxu0 0
        %2909 = vmatprep.subr.bf16.mxu0 0
        %2910 = vmatpush1.bf16.msra.mxu0 0
        %2911 = vmatprep.subr.bf16.mxu0 0
        %2912 = vmatpush1.bf16.msra.mxu0 0
        %2913 = vmatprep.subr.bf16.mxu0 0
        %2914 = vmatpush1.bf16.msra.mxu0 0
        %2915 = vmatprep.subr.bf16.mxu0 0
        %2916 = vmatpush1.bf16.msra.mxu0 0
        %2917 = vmatprep.subr.bf16.mxu0 0
        %2918 = vmatpush1.bf16.msra.mxu0 0
        %2919 = vmatprep.subr.bf16.mxu0 0
        %2920 = vmatpush1.bf16.msra.mxu0 0
        %2921 = vmatprep.subr.bf16.mxu0 0
        %2922 = vmatpush1.bf16.msra.mxu0 0
        %2923 = vmatprep.subr.bf16.mxu0 0
        %2924 = vmatpush1.bf16.msra.mxu0 0
        %2925 = vmatprep.subr.bf16.mxu0 0
        %2926 = vmatpush1.bf16.msra.mxu0 0
        %2927 = vmatprep.subr.bf16.mxu0 0
        %2928 = vmatpush1.bf16.msra.mxu0 0
        %2929 = vmatprep.subr.bf16.mxu0 0
        %2930 = vmatpush1.bf16.msra.mxu0 0
        %2931 = vmatprep.subr.bf16.mxu0 0
        %2932 = vmatpush1.bf16.msra.mxu0 0
        %2933 = vmatprep.subr.bf16.mxu0 0
        %2934 = vmatpush1.bf16.msra.mxu0 0
        %2935 = vmatprep.mubr.bf16.mxu0 0
        %2936 = vmatmul.mubr.bf16.gmra.mrb[0].mxu0 %v2894
        %v2937 = vpop.f32.mrb[0].mxu0
        %v2938 = vadd.f32 0.0, %v2937
        %v2939 = vpop.f32.mrb[0].mxu0
        %v2940 = vpop.f32.mrb[0].mxu0
        %v2941 = vadd.f32 0.0, %v2940
        %v2942 = vpop.f32.mrb[0].mxu0
        %2943 = vmatprep.mubr.bf16.mxu0 0
        %2944 = vmatmul.mubr.bf16.gmra.mrb[0].mxu0 %v2897
        %v2945 = vpop.f32.mrb[0].mxu0
        %v2946 = vadd.f32 0.0, %v2945
        %v2947 = vpop.f32.mrb[0].mxu0
        %v2948 = vpop.f32.mrb[0].mxu0
        %v2949 = vadd.f32 0.0, %v2948
        %v2950 = vpop.f32.mrb[0].mxu0
        %2951 = vdwg.mxu0
        %v2952 = vpack.c.bf16 %v2941, %v2938
        %v2953 = vpack.c.bf16 %v2949, %v2946
        %v2956 = vunpack.c.l.b16 %v2952
        %v2957 = vunpack.c.h.b16 %v2952
        %v2958 = vunpack.c.l.b16 %v2953
        %v2959 = vunpack.c.h.b16 %v2953
        %v2960 = vpack.c.b16 %v2956, %v2956
        %v2961 = vpack.c.b16 %v2957, %v2957
        %v2962 = vpack.c.b16 %v2958, %v2958
        %v2963 = vpack.c.b16 %v2959, %v2959
        %vm2968 = vcmask 519168
        %2969 = vst.msk [vmem:[%s300] sm:$0xf] %vm2968, %v2960
        %2970 = vst.msk [vmem:[%s300 + $0x4] sm:$0xf] %vm2968, %v2961
        %2971 = vst.msk [vmem:[%s300 + $0x8] sm:$0xf] %vm2968, %v2962
        %2972 = vst.msk [vmem:[%s300 + $0xc] sm:$0xf] %vm2968, %v2963
        %v2983 = vunpack.c.l.b16 %v2583
        %v2984 = vunpack.c.h.b16 %v2583
        %v2985 = vunpack.c.l.b16 %v2584
        %v2986 = vunpack.c.h.b16 %v2584
        %v2987 = vunpack.c.l.b16 %v2585
        %v2988 = vunpack.c.h.b16 %v2585
        %v2989 = vunpack.c.l.b16 %v2586
        %v2990 = vunpack.c.h.b16 %v2586
        %v2991 = vunpack.c.l.b16 %v2587
        %v2992 = vunpack.c.h.b16 %v2587
        %v2993 = vunpack.c.l.b16 %v2588
        %v2994 = vunpack.c.h.b16 %v2588
        %v2995 = vunpack.c.l.b16 %v2589
        %v2996 = vunpack.c.h.b16 %v2589
        %v2997 = vunpack.c.l.b16 %v2590
        %v2998 = vunpack.c.h.b16 %v2590
        %v2999 = vunpack.c.l.b16 %v2591
        %v3000 = vunpack.c.h.b16 %v2591
        %v3001 = vunpack.c.l.b16 %v2592
        %v3002 = vunpack.c.h.b16 %v2592
        %v3003 = vlaneseq
        %v3004 = vshrl.u32 %v3003, 7
        %v3005 = vsub.s32 %v2405, %v3004
        %v3006 = vrot.slane %v2983, %v3005
        %v3007 = vlaneseq
        %v3008 = vshrl.u32 %v3007, 7
        %v3009 = vsub.s32 %v2726, %v3008
        %v3010 = vrot.slane %v2984, %v3009
        %v3011 = vsel %vm2731, %v3010, %v3006
        %v3012 = vlaneseq
        %v3013 = vshrl.u32 %v3012, 7
        %v3014 = vsub.s32 %v2405, %v3013
        %v3015 = vrot.slane %v2985, %v3014
        %v3016 = vlaneseq
        %v3017 = vshrl.u32 %v3016, 7
        %v3018 = vsub.s32 %v2726, %v3017
        %v3019 = vrot.slane %v2986, %v3018
        %v3020 = vsel %vm2731, %v3019, %v3015
        %v3021 = vlaneseq
        %v3022 = vshrl.u32 %v3021, 7
        %v3023 = vsub.s32 %v2405, %v3022
        %v3024 = vrot.slane %v2987, %v3023
        %v3025 = vlaneseq
        %v3026 = vshrl.u32 %v3025, 7
        %v3027 = vsub.s32 %v2726, %v3026
        %v3028 = vrot.slane %v2988, %v3027
        %v3029 = vsel %vm2731, %v3028, %v3024
        %v3030 = vlaneseq
        %v3031 = vshrl.u32 %v3030, 7
        %v3032 = vsub.s32 %v2405, %v3031
        %v3033 = vrot.slane %v2989, %v3032
        %v3034 = vlaneseq
        %v3035 = vshrl.u32 %v3034, 7
        %v3036 = vsub.s32 %v2726, %v3035
        %v3037 = vrot.slane %v2990, %v3036
        %v3038 = vsel %vm2731, %v3037, %v3033
        %v3039 = vlaneseq
        %v3040 = vshrl.u32 %v3039, 7
        %v3041 = vsub.s32 %v2405, %v3040
        %v3042 = vrot.slane %v2991, %v3041
        %v3043 = vlaneseq
        %v3044 = vshrl.u32 %v3043, 7
        %v3045 = vsub.s32 %v2726, %v3044
        %v3046 = vrot.slane %v2992, %v3045
        %v3047 = vsel %vm2731, %v3046, %v3042
        %v3048 = vlaneseq
        %v3049 = vshrl.u32 %v3048, 7
        %v3050 = vsub.s32 %v2405, %v3049
        %v3051 = vrot.slane %v2993, %v3050
        %v3052 = vlaneseq
        %v3053 = vshrl.u32 %v3052, 7
        %v3054 = vsub.s32 %v2726, %v3053
        %v3055 = vrot.slane %v2994, %v3054
        %v3056 = vsel %vm2731, %v3055, %v3051
        %v3057 = vlaneseq
        %v3058 = vshrl.u32 %v3057, 7
        %v3059 = vsub.s32 %v2405, %v3058
        %v3060 = vrot.slane %v2995, %v3059
        %v3061 = vlaneseq
        %v3062 = vshrl.u32 %v3061, 7
        %v3063 = vsub.s32 %v2726, %v3062
        %v3064 = vrot.slane %v2996, %v3063
        %v3065 = vsel %vm2731, %v3064, %v3060
        %v3066 = vlaneseq
        %v3067 = vshrl.u32 %v3066, 7
        %v3068 = vsub.s32 %v2405, %v3067
        %v3069 = vrot.slane %v2997, %v3068
        %v3070 = vlaneseq
        %v3071 = vshrl.u32 %v3070, 7
        %v3072 = vsub.s32 %v2726, %v3071
        %v3073 = vrot.slane %v2998, %v3072
        %v3074 = vsel %vm2731, %v3073, %v3069
        %v3075 = vlaneseq
        %v3076 = vshrl.u32 %v3075, 7
        %v3077 = vsub.s32 %v2405, %v3076
        %v3078 = vrot.slane %v2999, %v3077
        %v3079 = vlaneseq
        %v3080 = vshrl.u32 %v3079, 7
        %v3081 = vsub.s32 %v2726, %v3080
        %v3082 = vrot.slane %v3000, %v3081
        %v3083 = vsel %vm2731, %v3082, %v3078
        %v3084 = vlaneseq
        %v3085 = vshrl.u32 %v3084, 7
        %v3086 = vsub.s32 %v2405, %v3085
        %v3087 = vrot.slane %v3001, %v3086
        %v3088 = vlaneseq
        %v3089 = vshrl.u32 %v3088, 7
        %v3090 = vsub.s32 %v2726, %v3089
        %v3091 = vrot.slane %v3002, %v3090
        %v3092 = vsel %vm2731, %v3091, %v3087
        %v3093 = vsel %vm2814, %v3020, %v3011
        %v3094 = vsel %vm2816, %v3029, %v3093
        %v3095 = vsel %vm2818, %v3038, %v3094
        %v3096 = vsel %vm2820, %v3047, %v3095
        %v3097 = vsel %vm2822, %v3056, %v3096
        %v3098 = vsel %vm2824, %v3065, %v3097
        %v3099 = vsel %vm2826, %v3074, %v3098
        %v3100 = vsel %vm2814, %v3092, %v3083
        %v3101 = vpack.c.b16 %v3100, %v3099
        %v3103 = vsel %vm2836, %v3101, 0
        %3105 = vmatprep.subr.bf16.mxu0 0
        %3106 = vmatpush1.bf16.msra.mxu0 %v2834
        %3107 = vmatprep.subr.bf16.mxu0 0
        %3108 = vmatpush1.bf16.msra.mxu0 0
        %3109 = vmatprep.subr.bf16.mxu0 0
        %3110 = vmatpush1.bf16.msra.mxu0 0
        %3111 = vmatprep.subr.bf16.mxu0 0
        %3112 = vmatpush1.bf16.msra.mxu0 0
        %3113 = vmatprep.subr.bf16.mxu0 0
        %3114 = vmatpush1.bf16.msra.mxu0 0
        %3115 = vmatprep.subr.bf16.mxu0 0
        %3116 = vmatpush1.bf16.msra.mxu0 0
        %3117 = vmatprep.subr.bf16.mxu0 0
        %3118 = vmatpush1.bf16.msra.mxu0 0
        %3119 = vmatprep.subr.bf16.mxu0 0
        %3120 = vmatpush1.bf16.msra.mxu0 0
        %3121 = vmatprep.subr.bf16.mxu0 0
        %3122 = vmatpush1.bf16.msra.mxu0 0
        %3123 = vmatprep.subr.bf16.mxu0 0
        %3124 = vmatpush1.bf16.msra.mxu0 0
        %3125 = vmatprep.subr.bf16.mxu0 0
        %3126 = vmatpush1.bf16.msra.mxu0 0
        %3127 = vmatprep.subr.bf16.mxu0 0
        %3128 = vmatpush1.bf16.msra.mxu0 0
        %3129 = vmatprep.subr.bf16.mxu0 0
        %3130 = vmatpush1.bf16.msra.mxu0 0
        %3131 = vmatprep.subr.bf16.mxu0 0
        %3132 = vmatpush1.bf16.msra.mxu0 0
        %3133 = vmatprep.subr.bf16.mxu0 0
        %3134 = vmatpush1.bf16.msra.mxu0 0
        %3135 = vmatprep.subr.bf16.mxu0 0
        %3136 = vmatpush1.bf16.msra.mxu0 0
        %3137 = vmatprep.mubr.bf16.mxu0 0
        %3138 = vmatmul.mubr.bf16.gmra.mrb[0].mxu0 %v3103
        %v3139 = vpop.f32.mrb[0].mxu0
        %v3140 = vadd.f32 0.0, %v3139
        %v3141 = vpop.f32.mrb[0].mxu0
        %v3142 = vpop.f32.mrb[0].mxu0
        %v3143 = vadd.f32 0.0, %v3142
        %v3144 = vpop.f32.mrb[0].mxu0
        %3145 = vdwg.mxu0
        %v3146 = vpack.c.bf16 %v3143, %v3140
        %v3148 = vsel %vm2899, %v3146, 0
        %3150 = vmatprep.subr.bf16.mxu0 0
        %3151 = vmatpush1.bf16.msra.mxu0 %v3148
        %3152 = vmatprep.subr.bf16.mxu0 0
        %3153 = vmatpush1.bf16.msra.mxu0 0
        %3154 = vmatprep.subr.bf16.mxu0 0
        %3155 = vmatpush1.bf16.msra.mxu0 0
        %3156 = vmatprep.subr.bf16.mxu0 0
        %3157 = vmatpush1.bf16.msra.mxu0 0
        %3158 = vmatprep.subr.bf16.mxu0 0
        %3159 = vmatpush1.bf16.msra.mxu0 0
        %3160 = vmatprep.subr.bf16.mxu0 0
        %3161 = vmatpush1.bf16.msra.mxu0 0
        %3162 = vmatprep.subr.bf16.mxu0 0
        %3163 = vmatpush1.bf16.msra.mxu0 0
        %3164 = vmatprep.subr.bf16.mxu0 0
        %3165 = vmatpush1.bf16.msra.mxu0 0
        %3166 = vmatprep.subr.bf16.mxu0 0
        %3167 = vmatpush1.bf16.msra.mxu0 0
        %3168 = vmatprep.subr.bf16.mxu0 0
        %3169 = vmatpush1.bf16.msra.mxu0 0
        %3170 = vmatprep.subr.bf16.mxu0 0
        %3171 = vmatpush1.bf16.msra.mxu0 0
        %3172 = vmatprep.subr.bf16.mxu0 0
        %3173 = vmatpush1.bf16.msra.mxu0 0
        %3174 = vmatprep.subr.bf16.mxu0 0
        %3175 = vmatpush1.bf16.msra.mxu0 0
        %3176 = vmatprep.subr.bf16.mxu0 0
        %3177 = vmatpush1.bf16.msra.mxu0 0
        %3178 = vmatprep.subr.bf16.mxu0 0
        %3179 = vmatpush1.bf16.msra.mxu0 0
        %3180 = vmatprep.subr.bf16.mxu0 0
        %3181 = vmatpush1.bf16.msra.mxu0 0
        %3182 = vmatprep.mubr.bf16.mxu0 0
        %3183 = vmatmul.mubr.bf16.gmra.mrb[0].mxu0 %v2894
        %v3184 = vpop.f32.mrb[0].mxu0
        %v3185 = vadd.f32 0.0, %v3184
        %v3186 = vpop.f32.mrb[0].mxu0
        %v3187 = vpop.f32.mrb[0].mxu0
        %v3188 = vadd.f32 0.0, %v3187
        %v3189 = vpop.f32.mrb[0].mxu0
        %3190 = vmatprep.mubr.bf16.mxu0 0
        %3191 = vmatmul.mubr.bf16.gmra.mrb[0].mxu0 %v2897
        %v3192 = vpop.f32.mrb[0].mxu0
        %v3193 = vadd.f32 0.0, %v3192
        %v3194 = vpop.f32.mrb[0].mxu0
        %v3195 = vpop.f32.mrb[0].mxu0
        %v3196 = vadd.f32 0.0, %v3195
        %v3197 = vpop.f32.mrb[0].mxu0
        %3198 = vdwg.mxu0
        %v3199 = vpack.c.bf16 %v3188, %v3185
        %v3200 = vpack.c.bf16 %v3196, %v3193
        %v3203 = vunpack.c.l.b16 %v3199
        %v3204 = vunpack.c.h.b16 %v3199
        %v3205 = vunpack.c.l.b16 %v3200
        %v3206 = vunpack.c.h.b16 %v3200
        %v3207 = vpack.c.b16 %v3203, %v3203
        %v3208 = vpack.c.b16 %v3204, %v3204
        %v3209 = vpack.c.b16 %v3205, %v3205
        %v3210 = vpack.c.b16 %v3206, %v3206
        %s3215 = scalar_lea.vmem %s300, 16 [#allocation2]
        %3216 = vst.msk [vmem:[%s3215] sm:$0xf] %vm2968, %v3207
        %3217 = vst.msk [vmem:[%s3215 + $0x4] sm:$0xf] %vm2968, %v3208
        %3218 = vst.msk [vmem:[%s3215 + $0x8] sm:$0xf] %vm2968, %v3209
        %3219 = vst.msk [vmem:[%s3215 + $0xc] sm:$0xf] %vm2968, %v3210
        %v3230 = vunpack.c.l.b16 %v2676
        %v3231 = vunpack.c.h.b16 %v2676
        %v3232 = vunpack.c.l.b16 %v2677
        %v3233 = vunpack.c.h.b16 %v2677
        %v3234 = vunpack.c.l.b16 %v2678
        %v3235 = vunpack.c.h.b16 %v2678
        %v3236 = vunpack.c.l.b16 %v2679
        %v3237 = vunpack.c.h.b16 %v2679
        %v3238 = vunpack.c.l.b16 %v2680
        %v3239 = vunpack.c.h.b16 %v2680
        %v3240 = vunpack.c.l.b16 %v2681
        %v3241 = vunpack.c.h.b16 %v2681
        %v3242 = vunpack.c.l.b16 %v2682
        %v3243 = vunpack.c.h.b16 %v2682
        %v3244 = vunpack.c.l.b16 %v2683
        %v3245 = vunpack.c.h.b16 %v2683
        %v3246 = vunpack.c.l.b16 %v2684
        %v3247 = vunpack.c.h.b16 %v2684
        %v3248 = vunpack.c.l.b16 %v2685
        %v3249 = vunpack.c.h.b16 %v2685
        %v3250 = vlaneseq
        %v3251 = vshrl.u32 %v3250, 7
        %v3252 = vsub.s32 %v2405, %v3251
        %v3253 = vrot.slane %v3230, %v3252
        %v3254 = vlaneseq
        %v3255 = vshrl.u32 %v3254, 7
        %v3256 = vsub.s32 %v2726, %v3255
        %v3257 = vrot.slane %v3231, %v3256
        %v3258 = vsel %vm2731, %v3257, %v3253
        %v3259 = vlaneseq
        %v3260 = vshrl.u32 %v3259, 7
        %v3261 = vsub.s32 %v2405, %v3260
        %v3262 = vrot.slane %v3232, %v3261
        %v3263 = vlaneseq
        %v3264 = vshrl.u32 %v3263, 7
        %v3265 = vsub.s32 %v2726, %v3264
        %v3266 = vrot.slane %v3233, %v3265
        %v3267 = vsel %vm2731, %v3266, %v3262
        %v3268 = vlaneseq
        %v3269 = vshrl.u32 %v3268, 7
        %v3270 = vsub.s32 %v2405, %v3269
        %v3271 = vrot.slane %v3234, %v3270
        %v3272 = vlaneseq
        %v3273 = vshrl.u32 %v3272, 7
        %v3274 = vsub.s32 %v2726, %v3273
        %v3275 = vrot.slane %v3235, %v3274
        %v3276 = vsel %vm2731, %v3275, %v3271
        %v3277 = vlaneseq
        %v3278 = vshrl.u32 %v3277, 7
        %v3279 = vsub.s32 %v2405, %v3278
        %v3280 = vrot.slane %v3236, %v3279
        %v3281 = vlaneseq
        %v3282 = vshrl.u32 %v3281, 7
        %v3283 = vsub.s32 %v2726, %v3282
        %v3284 = vrot.slane %v3237, %v3283
        %v3285 = vsel %vm2731, %v3284, %v3280
        %v3286 = vlaneseq
        %v3287 = vshrl.u32 %v3286, 7
        %v3288 = vsub.s32 %v2405, %v3287
        %v3289 = vrot.slane %v3238, %v3288
        %v3290 = vlaneseq
        %v3291 = vshrl.u32 %v3290, 7
        %v3292 = vsub.s32 %v2726, %v3291
        %v3293 = vrot.slane %v3239, %v3292
        %v3294 = vsel %vm2731, %v3293, %v3289
        %v3295 = vlaneseq
        %v3296 = vshrl.u32 %v3295, 7
        %v3297 = vsub.s32 %v2405, %v3296
        %v3298 = vrot.slane %v3240, %v3297
        %v3299 = vlaneseq
        %v3300 = vshrl.u32 %v3299, 7
        %v3301 = vsub.s32 %v2726, %v3300
        %v3302 = vrot.slane %v3241, %v3301
        %v3303 = vsel %vm2731, %v3302, %v3298
        %v3304 = vlaneseq
        %v3305 = vshrl.u32 %v3304, 7
        %v3306 = vsub.s32 %v2405, %v3305
        %v3307 = vrot.slane %v3242, %v3306
        %v3308 = vlaneseq
        %v3309 = vshrl.u32 %v3308, 7
        %v3310 = vsub.s32 %v2726, %v3309
        %v3311 = vrot.slane %v3243, %v3310
        %v3312 = vsel %vm2731, %v3311, %v3307
        %v3313 = vlaneseq
        %v3314 = vshrl.u32 %v3313, 7
        %v3315 = vsub.s32 %v2405, %v3314
        %v3316 = vrot.slane %v3244, %v3315
        %v3317 = vlaneseq
        %v3318 = vshrl.u32 %v3317, 7
        %v3319 = vsub.s32 %v2726, %v3318
        %v3320 = vrot.slane %v3245, %v3319
        %v3321 = vsel %vm2731, %v3320, %v3316
        %v3322 = vlaneseq
        %v3323 = vshrl.u32 %v3322, 7
        %v3324 = vsub.s32 %v2405, %v3323
        %v3325 = vrot.slane %v3246, %v3324
        %v3326 = vlaneseq
        %v3327 = vshrl.u32 %v3326, 7
        %v3328 = vsub.s32 %v2726, %v3327
        %v3329 = vrot.slane %v3247, %v3328
        %v3330 = vsel %vm2731, %v3329, %v3325
        %v3331 = vlaneseq
        %v3332 = vshrl.u32 %v3331, 7
        %v3333 = vsub.s32 %v2405, %v3332
        %v3334 = vrot.slane %v3248, %v3333
        %v3335 = vlaneseq
        %v3336 = vshrl.u32 %v3335, 7
        %v3337 = vsub.s32 %v2726, %v3336
        %v3338 = vrot.slane %v3249, %v3337
        %v3339 = vsel %vm2731, %v3338, %v3334
        %v3340 = vsel %vm2814, %v3267, %v3258
        %v3341 = vsel %vm2816, %v3276, %v3340
        %v3342 = vsel %vm2818, %v3285, %v3341
        %v3343 = vsel %vm2820, %v3294, %v3342
        %v3344 = vsel %vm2822, %v3303, %v3343
        %v3345 = vsel %vm2824, %v3312, %v3344
        %v3346 = vsel %vm2826, %v3321, %v3345
        %v3347 = vsel %vm2814, %v3339, %v3330
        %v3348 = vpack.c.b16 %v3347, %v3346
        %v3350 = vsel %vm2836, %v3348, 0
        %3352 = vmatprep.subr.bf16.mxu0 0
        %3353 = vmatpush1.bf16.msra.mxu0 %v2834
        %3354 = vmatprep.subr.bf16.mxu0 0
        %3355 = vmatpush1.bf16.msra.mxu0 0
        %3356 = vmatprep.subr.bf16.mxu0 0
        %3357 = vmatpush1.bf16.msra.mxu0 0
        %3358 = vmatprep.subr.bf16.mxu0 0
        %3359 = vmatpush1.bf16.msra.mxu0 0
        %3360 = vmatprep.subr.bf16.mxu0 0
        %3361 = vmatpush1.bf16.msra.mxu0 0
        %3362 = vmatprep.subr.bf16.mxu0 0
        %3363 = vmatpush1.bf16.msra.mxu0 0
        %3364 = vmatprep.subr.bf16.mxu0 0
        %3365 = vmatpush1.bf16.msra.mxu0 0
        %3366 = vmatprep.subr.bf16.mxu0 0
        %3367 = vmatpush1.bf16.msra.mxu0 0
        %3368 = vmatprep.subr.bf16.mxu0 0
        %3369 = vmatpush1.bf16.msra.mxu0 0
        %3370 = vmatprep.subr.bf16.mxu0 0
        %3371 = vmatpush1.bf16.msra.mxu0 0
        %3372 = vmatprep.subr.bf16.mxu0 0
        %3373 = vmatpush1.bf16.msra.mxu0 0
        %3374 = vmatprep.subr.bf16.mxu0 0
        %3375 = vmatpush1.bf16.msra.mxu0 0
        %3376 = vmatprep.subr.bf16.mxu0 0
        %3377 = vmatpush1.bf16.msra.mxu0 0
        %3378 = vmatprep.subr.bf16.mxu0 0
        %3379 = vmatpush1.bf16.msra.mxu0 0
        %3380 = vmatprep.subr.bf16.mxu0 0
        %3381 = vmatpush1.bf16.msra.mxu0 0
        %3382 = vmatprep.subr.bf16.mxu0 0
        %3383 = vmatpush1.bf16.msra.mxu0 0
        %3384 = vmatprep.mubr.bf16.mxu0 0
        %3385 = vmatmul.mubr.bf16.gmra.mrb[0].mxu0 %v3350
        %v3386 = vpop.f32.mrb[0].mxu0
        %v3387 = vadd.f32 0.0, %v3386
        %v3388 = vpop.f32.mrb[0].mxu0
        %v3389 = vpop.f32.mrb[0].mxu0
        %v3390 = vadd.f32 0.0, %v3389
        %v3391 = vpop.f32.mrb[0].mxu0
        %3392 = vdwg.mxu0
        %v3393 = vpack.c.bf16 %v3390, %v3387
        %v3395 = vsel %vm2899, %v3393, 0
        %3397 = vmatprep.subr.bf16.mxu0 0
        %3398 = vmatpush1.bf16.msra.mxu0 %v3395
        %3399 = vmatprep.subr.bf16.mxu0 0
        %3400 = vmatpush1.bf16.msra.mxu0 0
        %3401 = vmatprep.subr.bf16.mxu0 0
        %3402 = vmatpush1.bf16.msra.mxu0 0
        %3403 = vmatprep.subr.bf16.mxu0 0
        %3404 = vmatpush1.bf16.msra.mxu0 0
        %3405 = vmatprep.subr.bf16.mxu0 0
        %3406 = vmatpush1.bf16.msra.mxu0 0
        %3407 = vmatprep.subr.bf16.mxu0 0
        %3408 = vmatpush1.bf16.msra.mxu0 0
        %3409 = vmatprep.subr.bf16.mxu0 0
        %3410 = vmatpush1.bf16.msra.mxu0 0
        %3411 = vmatprep.subr.bf16.mxu0 0
        %3412 = vmatpush1.bf16.msra.mxu0 0
        %3413 = vmatprep.subr.bf16.mxu0 0
        %3414 = vmatpush1.bf16.msra.mxu0 0
        %3415 = vmatprep.subr.bf16.mxu0 0
        %3416 = vmatpush1.bf16.msra.mxu0 0
        %3417 = vmatprep.subr.bf16.mxu0 0
        %3418 = vmatpush1.bf16.msra.mxu0 0
        %3419 = vmatprep.subr.bf16.mxu0 0
        %3420 = vmatpush1.bf16.msra.mxu0 0
        %3421 = vmatprep.subr.bf16.mxu0 0
        %3422 = vmatpush1.bf16.msra.mxu0 0
        %3423 = vmatprep.subr.bf16.mxu0 0
        %3424 = vmatpush1.bf16.msra.mxu0 0
        %3425 = vmatprep.subr.bf16.mxu0 0
        %3426 = vmatpush1.bf16.msra.mxu0 0
        %3427 = vmatprep.subr.bf16.mxu0 0
        %3428 = vmatpush1.bf16.msra.mxu0 0
        %3429 = vmatprep.mubr.bf16.mxu0 0
        %3430 = vmatmul.mubr.bf16.gmra.mrb[0].mxu0 %v2894
        %v3431 = vpop.f32.mrb[0].mxu0
        %v3432 = vadd.f32 0.0, %v3431
        %v3433 = vpop.f32.mrb[0].mxu0
        %v3434 = vpop.f32.mrb[0].mxu0
        %v3435 = vadd.f32 0.0, %v3434
        %v3436 = vpop.f32.mrb[0].mxu0
        %3437 = vmatprep.mubr.bf16.mxu0 0
        %3438 = vmatmul.mubr.bf16.gmra.mrb[0].mxu0 %v2897
        %v3439 = vpop.f32.mrb[0].mxu0
        %v3440 = vadd.f32 0.0, %v3439
        %v3441 = vpop.f32.mrb[0].mxu0
        %v3442 = vpop.f32.mrb[0].mxu0
        %v3443 = vadd.f32 0.0, %v3442
        %v3444 = vpop.f32.mrb[0].mxu0
        %3445 = vdwg.mxu0
        %v3446 = vpack.c.bf16 %v3435, %v3432
        %v3447 = vpack.c.bf16 %v3443, %v3440
        %v3450 = vunpack.c.l.b16 %v3446
        %v3451 = vunpack.c.h.b16 %v3446
        %v3452 = vunpack.c.l.b16 %v3447
        %v3453 = vunpack.c.h.b16 %v3447
        %v3454 = vpack.c.b16 %v3450, %v3450
        %v3455 = vpack.c.b16 %v3451, %v3451
        %v3456 = vpack.c.b16 %v3452, %v3452
        %v3457 = vpack.c.b16 %v3453, %v3453
        %s3462 = scalar_lea.vmem %s300, 32 [#allocation2]
        %3463 = vst.msk [vmem:[%s3462] sm:$0xf] %vm2968, %v3454
        %3464 = vst.msk [vmem:[%s3462 + $0x4] sm:$0xf] %vm2968, %v3455
        %3465 = vst.msk [vmem:[%s3462 + $0x8] sm:$0xf] %vm2968, %v3456
        %3466 = vst.msk [vmem:[%s3462 + $0xc] sm:$0xf] %vm2968, %v3457
        %s3467 = sand.u32 %s200, 1
        %s3468 = scalar_lea.sflag [#allocation3], %s3467
        %s3469 = sand.u32 %s200, 1
        %s3470 = smul.addr %s3469, 48
        %s3471 = scalar_lea.vmem [#allocation2], %s3470
        // Predicated region
        $region49: #{seghead_forward.1} parent=47 // pred_check
          %p3472 = pneg %p210
        $region50: #{seghead_forward.1} parent=47 // pred_check_branch
          %3474 = sbr.rel (%p3472) target = $region52
        $region51: #{seghead_forward.1} parent=47 // pred_region
          #allocation5 [shape = 'u32[6]{0}', space=smem, size = 0x18, scoped, tag = 'DMA stride descriptor']
          %s3475 = smul.u32 4, %s26
          %s3477 = ssub.s32 768, 768
          %3478 = vsyncadd %s3468, %s3477
          %s3479 = smul.addr %s25, 24
          %s3480 = sadd.s32 %s3475, %s3479
          %s3481 = smul.addr %s3480, 64
          %s3482 = scalar_lea.hbm %s7, %s3481
          %s3484 = sshll.u32 1, 14
          %s3485 = sxor.u32 4294967295, %s3484
          %s3488 = sshll.u32 7, 18
          %s3489 = sxor.u32 4294967295, %s3488
          %s3490 = sand.u32 0, %s3489
          %s3492 = sor.u32 %s3490, 0
          %s3494 = sshll.u32 3, 24
          %s3495 = sxor.u32 4294967295, %s3494
          %s3496 = sand.u32 %s3492, %s3495
          %s3498 = sor.u32 %s3496, 0
          %s3499 = sshll.u32 %s3471, 4
          %s3500 = int_to_ptr.vmem [resolvable:$true] %s3499
          %3506 = sst [smem:[#allocation5]] 256
          %s3507 = scalar_lea.smem [#allocation5], 1
          %3508 = sst [smem:[%s3507]] 512
          %s3509 = scalar_lea.smem [#allocation5], 2
          %3510 = sst [smem:[%s3509]] 4
          %s3511 = scalar_lea.smem [#allocation5], 3
          %3512 = sst [smem:[%s3511]] 64
          %s3513 = scalar_lea.smem [#allocation5], 4
          %3514 = sst [smem:[%s3513]] 64
          %s3515 = scalar_lea.smem [#allocation5], 5
          %3516 = sst [smem:[%s3515]] 4
          %3518 = dma.general %s3500, 768, %s3482, %s3468, [#allocation4], [#allocation5], %s3498, 0
        $region52: #{seghead_forward.1} parent=47 // pred_fallthru
          _
      $region48: #{seghead_forward.1} parent=5 // pred_fallthru
        _
      %p3519 = scmp.le.s32.totalorder 2, %s16
      // Predicated region
      $region53: #{seghead_forward.1} parent=5 // pred_check
        %p3520 = pneg %p3519
      $region54: #{seghead_forward.1} parent=5 // pred_check_branch
        %3522 = sbr.rel (%p3520) target = $region56
      $region55: #{seghead_forward.1} parent=5 // pred_region
        %s3523 = ssub.s32 %s16, 2
        // Predicated region
        $region57: #{seghead_forward.1} parent=55 // pred_check
          %p3524 = pneg %p216
        $region58: #{seghead_forward.1} parent=55 // pred_check_branch
          %3526 = sbr.rel (%p3524) target = $region60
        $region59: #{seghead_forward.1} parent=55 // pred_region
          %s3527 = sand.u32 %s201, 1
          %s3528 = scalar_lea.sflag [#allocation3], %s3527
          %s3529 = sand.u32 %s201, 1
          %s3530 = smul.addr %s3529, 48
          %s3531 = scalar_lea.vmem [#allocation2], %s3530
          %3532 = dma.done %s3528, 768
        $region60: #{seghead_forward.1} parent=55 // pred_fallthru
          _
      $region56: #{seghead_forward.1} parent=5 // pred_fallthru
        _
    $region6: #{seghead_forward.1} parent=1 // loop_footer
      %s20 = sadd.s32 1, %s16
    $region7: #{seghead_forward.1} parent=1 // loop_footer_branch
      %15 = sbr.rel target = $region3
    $region8: #{seghead_forward.1} parent=1 // loop_exit
      _
    %3533 = vsyncpa [#allocation3], 1
    %s3534 = scalar_lea.sflag [#allocation3], 1
    %3535 = vsyncpa %s3534, 1

</llo_original>
